<compile_context>
chip_gen: v6e
topology: v6e:2x2x1
jax: 0.10.0
libtpu: 0.0.40
codegen_flags: <defaults>
</compile_context>

<pallas_src>
import functools

import jax
import jax.numpy as jnp
from jax.experimental import pallas as pl
from jax.experimental.pallas import tpu as pltpu

_BN_EPS = 1e-5


# -----------------------------------------------------------------------------
# Kernel 1: single-block matmul + bias + ReLU  (1x1 conv with BN folded in)
# -----------------------------------------------------------------------------
def _mm_bias_relu_kernel(x_ref, w_ref, b_ref, o_ref):
    y = jnp.dot(x_ref[...], w_ref[...], preferred_element_type=jnp.float32)
    o_ref[...] = jnp.maximum(y + b_ref[...], 0.0).astype(o_ref.dtype)


def conv1x1_bn_relu(x_nhwc, w_oihw, scale, bias):
    """1x1 conv (no bias) + BN(scale,bias) + ReLU.  w_oihw: (Cout,Cin,1,1)."""
    n, h, w, c = x_nhwc.shape
    cout = w_oihw.shape[0]
    cout_pad = ((cout + 127) // 128) * 128          # lane-dense output stores
    m = n * h * w

    # Fold BN scale into the weights; only the bias add stays in the epilogue.
    wmat = jnp.transpose(w_oihw[:, :, 0, 0], (1, 0)) * scale[None, :]
    wmat = jnp.pad(wmat, ((0, 0), (0, cout_pad - cout))).astype(jnp.bfloat16)
    bm = jnp.pad(bias, (0, cout_pad - cout))[None, :].astype(jnp.float32)
    xm = x_nhwc.reshape(m, c).astype(jnp.bfloat16)  # (M, Cin)

    out = pl.pallas_call(
        _mm_bias_relu_kernel,
        out_shape=jax.ShapeDtypeStruct((m, cout_pad), jnp.float32),
        grid=(1,),
        in_specs=[
            pl.BlockSpec((m, c), lambda i: (0, 0)),
            pl.BlockSpec((c, cout_pad), lambda i: (0, 0)),
            pl.BlockSpec((1, cout_pad), lambda i: (0, 0)),
        ],
        out_specs=pl.BlockSpec((m, cout_pad), lambda i: (0, 0)),
    )(xm, wmat, bm)
    return out[:, :cout].reshape(n, h, w, cout)


# -----------------------------------------------------------------------------
# Kernel 2: fused last_conv = 3x3 conv + BN + ReLU + (Dropout=id) + 1x1 + BN + ReLU
#   One grid step per batch image; whole activation VMEM-resident.
#   The 3 kh taps are accumulated in-kernel from row windows at offsets
#   0, W, 2W (W is a multiple of 8 -> sublane-aligned slices).
# -----------------------------------------------------------------------------
def _last_conv_kernel(H, W, x_ref, w1_ref, b1_ref, w2_ref, b2_ref, o_ref,
                      acc_ref):
    M = H * W
    acc_ref[...] = jnp.dot(x_ref[0, 0:M, :], w1_ref[0],
                           preferred_element_type=jnp.float32)
    acc_ref[...] += jnp.dot(x_ref[0, W:W + M, :], w1_ref[1],
                            preferred_element_type=jnp.float32)
    acc_ref[...] += jnp.dot(x_ref[0, 2 * W:2 * W + M, :], w1_ref[2],
                            preferred_element_type=jnp.float32)
    # BN bias + ReLU for lc1, then fused lc2 (1x1) + BN bias + ReLU.
    y1 = jnp.maximum(acc_ref[...] + b1_ref[...], 0.0).astype(jnp.bfloat16)
    y2 = jnp.dot(y1, w2_ref[...], preferred_element_type=jnp.float32)
    o_ref[0] = jnp.maximum(y2 + b2_ref[...], 0.0).astype(o_ref.dtype)


def last_conv_fused(cat_nhwc, w1_oihw, s1, b1, w2_oihw, s2, b2):
    """cat_nhwc: (N,H,W,384). Returns (N,H,W,fc)."""
    n, h, w, c = cat_nhwc.shape
    c1 = w1_oihw.shape[0]                      # 256
    fc = w2_oihw.shape[0]
    fc_pad = ((fc + 127) // 128) * 128
    assert w % 8 == 0, "W must be a multiple of 8 for aligned kh row windows"

    # kw-expansion only (3x, bf16): (N, H+2, W, 3C) -> (N, (H+2)*W, 3C).
    xp = jnp.pad(cat_nhwc, ((0, 0), (1, 1), (1, 1), (0, 0)))
    cat3 = jnp.concatenate([xp[:, :, dw:dw + w, :] for dw in range(3)],
                           axis=-1)
    x_in = cat3.reshape(n, (h + 2) * w, 3 * c).astype(jnp.bfloat16)

    # lc1 weights (Cout, Cin, 3, 3) -> (kh, kw*Cin, Cout), BN scale folded.
    w1 = jnp.transpose(w1_oihw, (2, 3, 1, 0)) * s1[None, None, None, :]
    w1 = w1.reshape(3, 3 * c, c1).astype(jnp.bfloat16)
    b1m = b1[None, :].astype(jnp.float32)

    # lc2 weights (fc, C1, 1, 1) -> (C1, fc_pad), scale folded, lane padded.
    w2 = jnp.transpose(w2_oihw[:, :, 0, 0], (1, 0)) * s2[None, :]
    w2 = jnp.pad(w2, ((0, 0), (0, fc_pad - fc))).astype(jnp.bfloat16)
    b2m = jnp.pad(b2, (0, fc_pad - fc))[None, :].astype(jnp.float32)

    rows = (h + 2) * w
    out = pl.pallas_call(
        functools.partial(_last_conv_kernel, h, w),
        out_shape=jax.ShapeDtypeStruct((n, h * w, fc_pad), jnp.float32),
        grid=(n,),
        in_specs=[
            pl.BlockSpec((1, rows, 3 * c), lambda b: (b, 0, 0)),
            pl.BlockSpec((3, 3 * c, c1), lambda b: (0, 0, 0)),
            pl.BlockSpec((1, c1), lambda b: (0, 0)),
            pl.BlockSpec((c1, fc_pad), lambda b: (0, 0)),
            pl.BlockSpec((1, fc_pad), lambda b: (0, 0)),
        ],
        out_specs=pl.BlockSpec((1, h * w, fc_pad), lambda b: (b, 0, 0)),
        scratch_shapes=[pltpu.VMEM((h * w, c1), jnp.float32)],
        compiler_params=pltpu.CompilerParams(
            dimension_semantics=("parallel",)),
    )(x_in, w1, b1m, w2, b2m)
    return out[:, :, :fc].reshape(n, h, w, fc)


# -----------------------------------------------------------------------------
# Bilinear align_corners=True resize (plain JAX glue, matches F.interpolate).
# -----------------------------------------------------------------------------
def bilinear_align_corners(x_nhwc, out_h, out_w):
    n, h, w, c = x_nhwc.shape
    hs = jnp.linspace(0.0, float(h - 1), out_h)
    ws = jnp.linspace(0.0, float(w - 1), out_w)
    h0 = jnp.floor(hs).astype(jnp.int32)
    h1 = jnp.minimum(h0 + 1, h - 1)
    fh = (hs - h0.astype(hs.dtype))[None, :, None, None]
    w0 = jnp.floor(ws).astype(jnp.int32)
    w1 = jnp.minimum(w0 + 1, w - 1)
    fw = (ws - w0.astype(ws.dtype))[None, None, :, None]
    top = x_nhwc[:, h0, :, :]
    bot = x_nhwc[:, h1, :, :]
    rows = top * (1.0 - fh) + bot * fh
    left = rows[:, :, w0, :]
    right = rows[:, :, w1, :]
    return left * (1.0 - fw) + right * fw


# -----------------------------------------------------------------------------
# Parameter construction (deterministic, mirrors Decoder._init_weight in eval)
# -----------------------------------------------------------------------------
def _kaiming_normal(key, cout, cin, kh, kw):
    fan_in = cin * kh * kw
    std = (2.0 / fan_in) ** 0.5
    return std * jax.random.normal(key, (cout, cin, kh, kw), dtype=jnp.float32)


def _bn_fold(cout):
    # gamma=1, beta=0, running_mean=0, running_var=1  (freshly-init eval BN)
    scale = jnp.full((cout,), 1.0 / jnp.sqrt(1.0 + _BN_EPS), dtype=jnp.float32)
    bias = jnp.zeros((cout,), dtype=jnp.float32)
    return scale, bias


def init_decoder_params(fc, key):
    keys = jax.random.split(key, 6)
    params = {}
    for name, k, cin in (("dr2", keys[0], 64), ("dr3", keys[1], 128),
                         ("dr4", keys[2], 256), ("dr5", keys[3], 512)):
        params[name + "_w"] = _kaiming_normal(k, 96, cin, 1, 1)
        params[name + "_s"], params[name + "_b"] = _bn_fold(96)
    params["lc1_w"] = _kaiming_normal(keys[4], 256, 384, 3, 3)
    params["lc1_s"], params["lc1_b"] = _bn_fold(256)
    params["lc2_w"] = _kaiming_normal(keys[5], fc, 256, 1, 1)
    params["lc2_s"], params["lc2_b"] = _bn_fold(fc)
    return params


# -----------------------------------------------------------------------------
# Decoder forward (inputs/outputs in NCHW, like PyTorch)
# -----------------------------------------------------------------------------
def decoder_forward(params, x, low2, low3, low4):
    to_nhwc = lambda a: jnp.transpose(a, (0, 2, 3, 1))
    x = to_nhwc(x)
    low2 = to_nhwc(low2)
    low3 = to_nhwc(low3)
    low4 = to_nhwc(low4)

    x2 = conv1x1_bn_relu(low2, params["dr2_w"], params["dr2_s"], params["dr2_b"])
    x3 = conv1x1_bn_relu(low3, params["dr3_w"], params["dr3_s"], params["dr3_b"])
    x4 = conv1x1_bn_relu(low4, params["dr4_w"], params["dr4_s"], params["dr4_b"])
    x5 = conv1x1_bn_relu(x,    params["dr5_w"], params["dr5_s"], params["dr5_b"])

    out_h, out_w = x2.shape[1], x2.shape[2]
    x5 = bilinear_align_corners(x5, out_h, out_w)
    x3 = bilinear_align_corners(x3, out_h, out_w)
    x4 = bilinear_align_corners(x4, out_h, out_w)

    cat = jnp.concatenate([x5, x2, x3, x4], axis=-1)  # == torch.cat dim=1

    # TODO(synk): Dropout(0.5) is identity at inference; training-mode dropout
    # would need a PRNG mask.
    y = last_conv_fused(cat,
                        params["lc1_w"], params["lc1_s"], params["lc1_b"],
                        params["lc2_w"], params["lc2_s"], params["lc2_b"])

    return jnp.transpose(y, (0, 3, 1, 2))  # back to NCHW


# -----------------------------------------------------------------------------
if __name__ == "__main__":
    key = jax.random.PRNGKey(0)
    k_par, k_x, k2, k3, k4 = jax.random.split(key, 5)

    fc = 8
    batch = 2
    params = init_decoder_params(fc, k_par)

    # Typical pyramid: feat2 @ 16x16, feat3 @ 8x8, feat4 @ 4x4, x @ 2x2.
    x = jax.random.normal(k_x, (batch, 512, 2, 2), dtype=jnp.float32)
    low2 = jax.random.normal(k2, (batch, 64, 16, 16), dtype=jnp.float32)
    low3 = jax.random.normal(k3, (batch, 128, 8, 8), dtype=jnp.float32)
    low4 = jax.random.normal(k4, (batch, 256, 4, 4), dtype=jnp.float32)

    fwd = jax.jit(decoder_forward)
    out = fwd(params, x, low2, low3, low4)
    out = jax.block_until_ready(out)
    assert out.shape == (batch, fc, 16, 16), out.shape
    assert bool(jnp.all(jnp.isfinite(out)))
    print("KERNEL_OK")
</pallas_src>

<mosaic_0001>
module attributes {stable_mosaic.version = 11 : i64} {
  func.func @_mm_bias_relu_kernel(%arg0: i32, %arg1: memref<8x512xbf16, #tpu.memory_space<vmem>>, %arg2: memref<512x128xbf16, #tpu.memory_space<vmem>>, %arg3: memref<1x128xf32, #tpu.memory_space<vmem>>, %arg4: memref<8x128xf32, #tpu.memory_space<vmem>>) attributes {dimension_semantics = [#tpu.dimension_semantics<arbitrary>], iteration_bounds = array<i64: 1>, scalar_prefetch = 0 : i64, scratch_operands = 0 : i64, tpu.core_type = #tpu.core_type<tc>, window_params = [{pipeline_mode = #tpu.pipeline_mode<synchronous>, transform_indices = @transform_0, window_bounds = array<i64: 8, 512>}, {pipeline_mode = #tpu.pipeline_mode<synchronous>, transform_indices = @transform_1, window_bounds = array<i64: 512, 128>}, {pipeline_mode = #tpu.pipeline_mode<synchronous>, transform_indices = @transform_2, window_bounds = array<i64: 1, 128>}, {pipeline_mode = #tpu.pipeline_mode<synchronous>, transform_indices = @transform_3, window_bounds = array<i64: 8, 128>}]} {
    %c0 = arith.constant 0 : index
    %c0_0 = arith.constant 0 : index
    %0 = vector.load %arg1[%c0, %c0_0] : memref<8x512xbf16, #tpu.memory_space<vmem>>, vector<8x512xbf16>
    %c0_1 = arith.constant 0 : index
    %c0_2 = arith.constant 0 : index
    %1 = vector.load %arg2[%c0_1, %c0_2] : memref<512x128xbf16, #tpu.memory_space<vmem>>, vector<512x128xbf16>
    %cst = arith.constant dense<0.000000e+00> : vector<8x128xf32>
    %2 = tpu.matmul %0, %1, %cst {dimension_numbers = #tpu.dot_dimension_numbers<[1], [0], [0], [1], [0, 0, 1, 1], [], []>} : vector<8x512xbf16>, vector<512x128xbf16>, vector<8x128xf32> -> vector<8x128xf32>
    %c0_3 = arith.constant 0 : index
    %c0_4 = arith.constant 0 : index
    %3 = vector.load %arg3[%c0_3, %c0_4] : memref<1x128xf32, #tpu.memory_space<vmem>>, vector<1x128xf32>
    %4 = vector.broadcast %3 : vector<1x128xf32> to vector<8x128xf32>
    %5 = arith.addf %2, %4 : vector<8x128xf32>
    %cst_5 = arith.constant 0.000000e+00 : f32
    %6 = vector.broadcast %cst_5 : f32 to vector<8x128xf32>
    %7 = arith.maximumf %5, %6 : vector<8x128xf32>
    %c0_6 = arith.constant 0 : index
    %c0_7 = arith.constant 0 : index
    %8 = vector.load %arg4[%c0_6, %c0_7] : memref<8x128xf32, #tpu.memory_space<vmem>>, vector<8x128xf32>
    tpu.vector_store %arg4[%c0_6, %c0_7], %7 {strides = array<i32>} : memref<8x128xf32, #tpu.memory_space<vmem>>, vector<8x128xf32>,
    return
  }
  func.func @transform_0(%arg0: i32) -> (i32, i32) {
    %c0_i32 = arith.constant 0 : i32
    %c0_i32_0 = arith.constant 0 : i32
    %c0_i32_1 = arith.constant 0 : i32
    return %c0_i32, %c0_i32_0 : i32, i32
  }
  func.func @transform_1(%arg0: i32) -> (i32, i32) {
    %c0_i32 = arith.constant 0 : i32
    %c0_i32_0 = arith.constant 0 : i32
    %c0_i32_1 = arith.constant 0 : i32
    return %c0_i32, %c0_i32_0 : i32, i32
  }
  func.func @transform_2(%arg0: i32) -> (i32, i32) {
    %c0_i32 = arith.constant 0 : i32
    %c0_i32_0 = arith.constant 0 : i32
    %c0_i32_1 = arith.constant 0 : i32
    return %c0_i32, %c0_i32_0 : i32, i32
  }
  func.func @transform_3(%arg0: i32) -> (i32, i32) {
    %c0_i32 = arith.constant 0 : i32
    %c0_i32_0 = arith.constant 0 : i32
    %c0_i32_1 = arith.constant 0 : i32
    return %c0_i32, %c0_i32_0 : i32, i32
  }
}

module attributes {stable_mosaic.version = 11 : i64} {
  func.func @_mm_bias_relu_kernel(%arg0: i32, %arg1: memref<128x128xbf16, #tpu.memory_space<vmem>>, %arg2: memref<128x128xbf16, #tpu.memory_space<vmem>>, %arg3: memref<1x128xf32, #tpu.memory_space<vmem>>, %arg4: memref<128x128xf32, #tpu.memory_space<vmem>>) attributes {dimension_semantics = [#tpu.dimension_semantics<arbitrary>], iteration_bounds = array<i64: 1>, scalar_prefetch = 0 : i64, scratch_operands = 0 : i64, tpu.core_type = #tpu.core_type<tc>, window_params = [{pipeline_mode = #tpu.pipeline_mode<synchronous>, transform_indices = @transform_0, window_bounds = array<i64: 128, 128>}, {pipeline_mode = #tpu.pipeline_mode<synchronous>, transform_indices = @transform_1, window_bounds = array<i64: 128, 128>}, {pipeline_mode = #tpu.pipeline_mode<synchronous>, transform_indices = @transform_2, window_bounds = array<i64: 1, 128>}, {pipeline_mode = #tpu.pipeline_mode<synchronous>, transform_indices = @transform_3, window_bounds = array<i64: 128, 128>}]} {
    %c0 = arith.constant 0 : index
    %c0_0 = arith.constant 0 : index
    %0 = vector.load %arg1[%c0, %c0_0] : memref<128x128xbf16, #tpu.memory_space<vmem>>, vector<128x128xbf16>
    %c0_1 = arith.constant 0 : index
    %c0_2 = arith.constant 0 : index
    %1 = vector.load %arg2[%c0_1, %c0_2] : memref<128x128xbf16, #tpu.memory_space<vmem>>, vector<128x128xbf16>
    %cst = arith.constant dense<0.000000e+00> : vector<128x128xf32>
    %2 = tpu.matmul %0, %1, %cst {dimension_numbers = #tpu.dot_dimension_numbers<[1], [0], [0], [1], [0, 0, 1, 1], [], []>} : vector<128x128xbf16>, vector<128x128xbf16>, vector<128x128xf32> -> vector<128x128xf32>
    %c0_3 = arith.constant 0 : index
    %c0_4 = arith.constant 0 : index
    %3 = vector.load %arg3[%c0_3, %c0_4] : memref<1x128xf32, #tpu.memory_space<vmem>>, vector<1x128xf32>
    %4 = vector.broadcast %3 : vector<1x128xf32> to vector<128x128xf32>
    %5 = arith.addf %2, %4 : vector<128x128xf32>
    %cst_5 = arith.constant 0.000000e+00 : f32
    %6 = vector.broadcast %cst_5 : f32 to vector<128x128xf32>
    %7 = arith.maximumf %5, %6 : vector<128x128xf32>
    %c0_6 = arith.constant 0 : index
    %c0_7 = arith.constant 0 : index
    %8 = vector.load %arg4[%c0_6, %c0_7] : memref<128x128xf32, #tpu.memory_space<vmem>>, vector<128x128xf32>
    tpu.vector_store %arg4[%c0_6, %c0_7], %7 {strides = array<i32>} : memref<128x128xf32, #tpu.memory_space<vmem>>, vector<128x128xf32>,
    return
  }
  func.func @transform_0(%arg0: i32) -> (i32, i32) {
    %c0_i32 = arith.constant 0 : i32
    %c0_i32_0 = arith.constant 0 : i32
    %c0_i32_1 = arith.constant 0 : i32
    return %c0_i32, %c0_i32_0 : i32, i32
  }
  func.func @transform_1(%arg0: i32) -> (i32, i32) {
    %c0_i32 = arith.constant 0 : i32
    %c0_i32_0 = arith.constant 0 : i32
    %c0_i32_1 = arith.constant 0 : i32
    return %c0_i32, %c0_i32_0 : i32, i32
  }
  func.func @transform_2(%arg0: i32) -> (i32, i32) {
    %c0_i32 = arith.constant 0 : i32
    %c0_i32_0 = arith.constant 0 : i32
    %c0_i32_1 = arith.constant 0 : i32
    return %c0_i32, %c0_i32_0 : i32, i32
  }
  func.func @transform_3(%arg0: i32) -> (i32, i32) {
    %c0_i32 = arith.constant 0 : i32
    %c0_i32_0 = arith.constant 0 : i32
    %c0_i32_1 = arith.constant 0 : i32
    return %c0_i32, %c0_i32_0 : i32, i32
  }
}

module attributes {stable_mosaic.version = 11 : i64} {
  func.func @_mm_bias_relu_kernel(%arg0: i32, %arg1: memref<32x256xbf16, #tpu.memory_space<vmem>>, %arg2: memref<256x128xbf16, #tpu.memory_space<vmem>>, %arg3: memref<1x128xf32, #tpu.memory_space<vmem>>, %arg4: memref<32x128xf32, #tpu.memory_space<vmem>>) attributes {dimension_semantics = [#tpu.dimension_semantics<arbitrary>], iteration_bounds = array<i64: 1>, scalar_prefetch = 0 : i64, scratch_operands = 0 : i64, tpu.core_type = #tpu.core_type<tc>, window_params = [{pipeline_mode = #tpu.pipeline_mode<synchronous>, transform_indices = @transform_0, window_bounds = array<i64: 32, 256>}, {pipeline_mode = #tpu.pipeline_mode<synchronous>, transform_indices = @transform_1, window_bounds = array<i64: 256, 128>}, {pipeline_mode = #tpu.pipeline_mode<synchronous>, transform_indices = @transform_2, window_bounds = array<i64: 1, 128>}, {pipeline_mode = #tpu.pipeline_mode<synchronous>, transform_indices = @transform_3, window_bounds = array<i64: 32, 128>}]} {
    %c0 = arith.constant 0 : index
    %c0_0 = arith.constant 0 : index
    %0 = vector.load %arg1[%c0, %c0_0] : memref<32x256xbf16, #tpu.memory_space<vmem>>, vector<32x256xbf16>
    %c0_1 = arith.constant 0 : index
    %c0_2 = arith.constant 0 : index
    %1 = vector.load %arg2[%c0_1, %c0_2] : memref<256x128xbf16, #tpu.memory_space<vmem>>, vector<256x128xbf16>
    %cst = arith.constant dense<0.000000e+00> : vector<32x128xf32>
    %2 = tpu.matmul %0, %1, %cst {dimension_numbers = #tpu.dot_dimension_numbers<[1], [0], [0], [1], [0, 0, 1, 1], [], []>} : vector<32x256xbf16>, vector<256x128xbf16>, vector<32x128xf32> -> vector<32x128xf32>
    %c0_3 = arith.constant 0 : index
    %c0_4 = arith.constant 0 : index
    %3 = vector.load %arg3[%c0_3, %c0_4] : memref<1x128xf32, #tpu.memory_space<vmem>>, vector<1x128xf32>
    %4 = vector.broadcast %3 : vector<1x128xf32> to vector<32x128xf32>
    %5 = arith.addf %2, %4 : vector<32x128xf32>
    %cst_5 = arith.constant 0.000000e+00 : f32
    %6 = vector.broadcast %cst_5 : f32 to vector<32x128xf32>
    %7 = arith.maximumf %5, %6 : vector<32x128xf32>
    %c0_6 = arith.constant 0 : index
    %c0_7 = arith.constant 0 : index
    %8 = vector.load %arg4[%c0_6, %c0_7] : memref<32x128xf32, #tpu.memory_space<vmem>>, vector<32x128xf32>
    tpu.vector_store %arg4[%c0_6, %c0_7], %7 {strides = array<i32>} : memref<32x128xf32, #tpu.memory_space<vmem>>, vector<32x128xf32>,
    return
  }
  func.func @transform_0(%arg0: i32) -> (i32, i32) {
    %c0_i32 = arith.constant 0 : i32
    %c0_i32_0 = arith.constant 0 : i32
    %c0_i32_1 = arith.constant 0 : i32
    return %c0_i32, %c0_i32_0 : i32, i32
  }
  func.func @transform_1(%arg0: i32) -> (i32, i32) {
    %c0_i32 = arith.constant 0 : i32
    %c0_i32_0 = arith.constant 0 : i32
    %c0_i32_1 = arith.constant 0 : i32
    return %c0_i32, %c0_i32_0 : i32, i32
  }
  func.func @transform_2(%arg0: i32) -> (i32, i32) {
    %c0_i32 = arith.constant 0 : i32
    %c0_i32_0 = arith.constant 0 : i32
    %c0_i32_1 = arith.constant 0 : i32
    return %c0_i32, %c0_i32_0 : i32, i32
  }
  func.func @transform_3(%arg0: i32) -> (i32, i32) {
    %c0_i32 = arith.constant 0 : i32
    %c0_i32_0 = arith.constant 0 : i32
    %c0_i32_1 = arith.constant 0 : i32
    return %c0_i32, %c0_i32_0 : i32, i32
  }
}

module attributes {stable_mosaic.version = 11 : i64} {
  func.func @_mm_bias_relu_kernel(%arg0: i32, %arg1: memref<512x64xbf16, #tpu.memory_space<vmem>>, %arg2: memref<64x128xbf16, #tpu.memory_space<vmem>>, %arg3: memref<1x128xf32, #tpu.memory_space<vmem>>, %arg4: memref<512x128xf32, #tpu.memory_space<vmem>>) attributes {dimension_semantics = [#tpu.dimension_semantics<arbitrary>], iteration_bounds = array<i64: 1>, scalar_prefetch = 0 : i64, scratch_operands = 0 : i64, tpu.core_type = #tpu.core_type<tc>, window_params = [{pipeline_mode = #tpu.pipeline_mode<synchronous>, transform_indices = @transform_0, window_bounds = array<i64: 512, 64>}, {pipeline_mode = #tpu.pipeline_mode<synchronous>, transform_indices = @transform_1, window_bounds = array<i64: 64, 128>}, {pipeline_mode = #tpu.pipeline_mode<synchronous>, transform_indices = @transform_2, window_bounds = array<i64: 1, 128>}, {pipeline_mode = #tpu.pipeline_mode<synchronous>, transform_indices = @transform_3, window_bounds = array<i64: 512, 128>}]} {
    %c0 = arith.constant 0 : index
    %c0_0 = arith.constant 0 : index
    %0 = vector.load %arg1[%c0, %c0_0] : memref<512x64xbf16, #tpu.memory_space<vmem>>, vector<512x64xbf16>
    %c0_1 = arith.constant 0 : index
    %c0_2 = arith.constant 0 : index
    %1 = vector.load %arg2[%c0_1, %c0_2] : memref<64x128xbf16, #tpu.memory_space<vmem>>, vector<64x128xbf16>
    %cst = arith.constant dense<0.000000e+00> : vector<512x128xf32>
    %2 = tpu.matmul %0, %1, %cst {dimension_numbers = #tpu.dot_dimension_numbers<[1], [0], [0], [1], [0, 0, 1, 1], [], []>} : vector<512x64xbf16>, vector<64x128xbf16>, vector<512x128xf32> -> vector<512x128xf32>
    %c0_3 = arith.constant 0 : index
    %c0_4 = arith.constant 0 : index
    %3 = vector.load %arg3[%c0_3, %c0_4] : memref<1x128xf32, #tpu.memory_space<vmem>>, vector<1x128xf32>
    %4 = vector.broadcast %3 : vector<1x128xf32> to vector<512x128xf32>
    %5 = arith.addf %2, %4 : vector<512x128xf32>
    %cst_5 = arith.constant 0.000000e+00 : f32
    %6 = vector.broadcast %cst_5 : f32 to vector<512x128xf32>
    %7 = arith.maximumf %5, %6 : vector<512x128xf32>
    %c0_6 = arith.constant 0 : index
    %c0_7 = arith.constant 0 : index
    %8 = vector.load %arg4[%c0_6, %c0_7] : memref<512x128xf32, #tpu.memory_space<vmem>>, vector<512x128xf32>
    tpu.vector_store %arg4[%c0_6, %c0_7], %7 {strides = array<i32>} : memref<512x128xf32, #tpu.memory_space<vmem>>, vector<512x128xf32>,
    return
  }
  func.func @transform_0(%arg0: i32) -> (i32, i32) {
    %c0_i32 = arith.constant 0 : i32
    %c0_i32_0 = arith.constant 0 : i32
    %c0_i32_1 = arith.constant 0 : i32
    return %c0_i32, %c0_i32_0 : i32, i32
  }
  func.func @transform_1(%arg0: i32) -> (i32, i32) {
    %c0_i32 = arith.constant 0 : i32
    %c0_i32_0 = arith.constant 0 : i32
    %c0_i32_1 = arith.constant 0 : i32
    return %c0_i32, %c0_i32_0 : i32, i32
  }
  func.func @transform_2(%arg0: i32) -> (i32, i32) {
    %c0_i32 = arith.constant 0 : i32
    %c0_i32_0 = arith.constant 0 : i32
    %c0_i32_1 = arith.constant 0 : i32
    return %c0_i32, %c0_i32_0 : i32, i32
  }
  func.func @transform_3(%arg0: i32) -> (i32, i32) {
    %c0_i32 = arith.constant 0 : i32
    %c0_i32_0 = arith.constant 0 : i32
    %c0_i32_1 = arith.constant 0 : i32
    return %c0_i32, %c0_i32_0 : i32, i32
  }
}

module attributes {stable_mosaic.version = 11 : i64} {
  func.func @_last_conv_kernel(%arg0: i32, %arg1: memref<1x288x1152xbf16, #tpu.memory_space<vmem>>, %arg2: memref<3x1152x256xbf16, #tpu.memory_space<vmem>>, %arg3: memref<1x256xf32, #tpu.memory_space<vmem>>, %arg4: memref<256x128xbf16, #tpu.memory_space<vmem>>, %arg5: memref<1x128xf32, #tpu.memory_space<vmem>>, %arg6: memref<1x256x128xf32, #tpu.memory_space<vmem>>, %arg7: memref<256x256xf32, #tpu.memory_space<vmem>>) attributes {dimension_semantics = [#tpu.dimension_semantics<parallel>], iteration_bounds = array<i64: 2>, scalar_prefetch = 0 : i64, scratch_operands = 1 : i64, tpu.core_type = #tpu.core_type<tc>, window_params = [{transform_indices = @transform_0, window_bounds = array<i64: 1, 288, 1152>}, {pipeline_mode = #tpu.pipeline_mode<synchronous>, transform_indices = @transform_1, window_bounds = array<i64: 3, 1152, 256>}, {pipeline_mode = #tpu.pipeline_mode<synchronous>, transform_indices = @transform_2, window_bounds = array<i64: 1, 256>}, {pipeline_mode = #tpu.pipeline_mode<synchronous>, transform_indices = @transform_3, window_bounds = array<i64: 256, 128>}, {pipeline_mode = #tpu.pipeline_mode<synchronous>, transform_indices = @transform_4, window_bounds = array<i64: 1, 128>}, {transform_indices = @transform_5, window_bounds = array<i64: 1, 256, 128>}]} {
    %c0 = arith.constant 0 : index
    %c0_0 = arith.constant 0 : index
    %c0_1 = arith.constant 0 : index
    %0 = vector.load %arg1[%c0, %c0_0, %c0_1] : memref<1x288x1152xbf16, #tpu.memory_space<vmem>>, vector<1x256x1152xbf16>
    %1 = vector.shape_cast %0 : vector<1x256x1152xbf16> to vector<256x1152xbf16>
    %c0_2 = arith.constant 0 : index
    %c0_3 = arith.constant 0 : index
    %c0_4 = arith.constant 0 : index
    %2 = vector.load %arg2[%c0_2, %c0_3, %c0_4] : memref<3x1152x256xbf16, #tpu.memory_space<vmem>>, vector<1x1152x256xbf16>
    %3 = vector.shape_cast %2 : vector<1x1152x256xbf16> to vector<1152x256xbf16>
    %cst = arith.constant dense<0.000000e+00> : vector<256x256xf32>
    %4 = tpu.matmul %1, %3, %cst {dimension_numbers = #tpu.dot_dimension_numbers<[1], [0], [0], [1], [0, 0, 1, 1], [], []>} : vector<256x1152xbf16>, vector<1152x256xbf16>, vector<256x256xf32> -> vector<256x256xf32>
    %c0_5 = arith.constant 0 : index
    %c0_6 = arith.constant 0 : index
    %5 = vector.load %arg7[%c0_5, %c0_6] : memref<256x256xf32, #tpu.memory_space<vmem>>, vector<256x256xf32>
    tpu.vector_store %arg7[%c0_5, %c0_6], %4 {strides = array<i32>} : memref<256x256xf32, #tpu.memory_space<vmem>>, vector<256x256xf32>,
    %c0_7 = arith.constant 0 : index
    %c0_8 = arith.constant 0 : index
    %6 = vector.load %arg7[%c0_7, %c0_8] : memref<256x256xf32, #tpu.memory_space<vmem>>, vector<256x256xf32>
    %c0_9 = arith.constant 0 : index
    %c16 = arith.constant 16 : index
    %c0_10 = arith.constant 0 : index
    %7 = vector.load %arg1[%c0_9, %c16, %c0_10] : memref<1x288x1152xbf16, #tpu.memory_space<vmem>>, vector<1x256x1152xbf16>
    %8 = vector.shape_cast %7 : vector<1x256x1152xbf16> to vector<256x1152xbf16>
    %c1 = arith.constant 1 : index
    %c0_11 = arith.constant 0 : index
    %c0_12 = arith.constant 0 : index
    %9 = vector.load %arg2[%c1, %c0_11, %c0_12] : memref<3x1152x256xbf16, #tpu.memory_space<vmem>>, vector<1x1152x256xbf16>
    %10 = vector.shape_cast %9 : vector<1x1152x256xbf16> to vector<1152x256xbf16>
    %cst_13 = arith.constant dense<0.000000e+00> : vector<256x256xf32>
    %11 = tpu.matmul %8, %10, %cst_13 {dimension_numbers = #tpu.dot_dimension_numbers<[1], [0], [0], [1], [0, 0, 1, 1], [], []>} : vector<256x1152xbf16>, vector<1152x256xbf16>, vector<256x256xf32> -> vector<256x256xf32>
    %12 = arith.addf %6, %11 : vector<256x256xf32>
    %c0_14 = arith.constant 0 : index
    %c0_15 = arith.constant 0 : index
    %13 = vector.load %arg7[%c0_14, %c0_15] : memref<256x256xf32, #tpu.memory_space<vmem>>, vector<256x256xf32>
    tpu.vector_store %arg7[%c0_14, %c0_15], %12 {strides = array<i32>} : memref<256x256xf32, #tpu.memory_space<vmem>>, vector<256x256xf32>,
    %c0_16 = arith.constant 0 : index
    %c0_17 = arith.constant 0 : index
    %14 = vector.load %arg7[%c0_16, %c0_17] : memref<256x256xf32, #tpu.memory_space<vmem>>, vector<256x256xf32>
    %c0_18 = arith.constant 0 : index
    %c32 = arith.constant 32 : index
    %c0_19 = arith.constant 0 : index
    %15 = vector.load %arg1[%c0_18, %c32, %c0_19] : memref<1x288x1152xbf16, #tpu.memory_space<vmem>>, vector<1x256x1152xbf16>
    %16 = vector.shape_cast %15 : vector<1x256x1152xbf16> to vector<256x1152xbf16>
    %c2 = arith.constant 2 : index
    %c0_20 = arith.constant 0 : index
    %c0_21 = arith.constant 0 : index
    %17 = vector.load %arg2[%c2, %c0_20, %c0_21] : memref<3x1152x256xbf16, #tpu.memory_space<vmem>>, vector<1x1152x256xbf16>
    %18 = vector.shape_cast %17 : vector<1x1152x256xbf16> to vector<1152x256xbf16>
    %cst_22 = arith.constant dense<0.000000e+00> : vector<256x256xf32>
    %19 = tpu.matmul %16, %18, %cst_22 {dimension_numbers = #tpu.dot_dimension_numbers<[1], [0], [0], [1], [0, 0, 1, 1], [], []>} : vector<256x1152xbf16>, vector<1152x256xbf16>, vector<256x256xf32> -> vector<256x256xf32>
    %20 = arith.addf %14, %19 : vector<256x256xf32>
    %c0_23 = arith.constant 0 : index
    %c0_24 = arith.constant 0 : index
    %21 = vector.load %arg7[%c0_23, %c0_24] : memref<256x256xf32, #tpu.memory_space<vmem>>, vector<256x256xf32>
    tpu.vector_store %arg7[%c0_23, %c0_24], %20 {strides = array<i32>} : memref<256x256xf32, #tpu.memory_space<vmem>>, vector<256x256xf32>,
    %c0_25 = arith.constant 0 : index
    %c0_26 = arith.constant 0 : index
    %22 = vector.load %arg7[%c0_25, %c0_26] : memref<256x256xf32, #tpu.memory_space<vmem>>, vector<256x256xf32>
    %c0_27 = arith.constant 0 : index
    %c0_28 = arith.constant 0 : index
    %23 = vector.load %arg3[%c0_27, %c0_28] : memref<1x256xf32, #tpu.memory_space<vmem>>, vector<1x256xf32>
    %24 = vector.broadcast %23 : vector<1x256xf32> to vector<256x256xf32>
    %25 = arith.addf %22, %24 : vector<256x256xf32>
    %cst_29 = arith.constant 0.000000e+00 : f32
    %26 = vector.broadcast %cst_29 : f32 to vector<256x256xf32>
    %27 = arith.maximumf %25, %26 : vector<256x256xf32>
    %28 = arith.truncf %27 : vector<256x256xf32> to vector<256x256xbf16>
    %c0_30 = arith.constant 0 : index
    %c0_31 = arith.constant 0 : index
    %29 = vector.load %arg4[%c0_30, %c0_31] : memref<256x128xbf16, #tpu.memory_space<vmem>>, vector<256x128xbf16>
    %cst_32 = arith.constant dense<0.000000e+00> : vector<256x128xf32>
    %30 = tpu.matmul %28, %29, %cst_32 {dimension_numbers = #tpu.dot_dimension_numbers<[1], [0], [0], [1], [0, 0, 1, 1], [], []>} : vector<256x256xbf16>, vector<256x128xbf16>, vector<256x128xf32> -> vector<256x128xf32>
    %c0_33 = arith.constant 0 : index
    %c0_34 = arith.constant 0 : index
    %31 = vector.load %arg5[%c0_33, %c0_34] : memref<1x128xf32, #tpu.memory_space<vmem>>, vector<1x128xf32>
    %32 = vector.broadcast %31 : vector<1x128xf32> to vector<256x128xf32>
    %33 = arith.addf %30, %32 : vector<256x128xf32>
    %cst_35 = arith.constant 0.000000e+00 : f32
    %34 = vector.broadcast %cst_35 : f32 to vector<256x128xf32>
    %35 = arith.maximumf %33, %34 : vector<256x128xf32>
    %c0_36 = arith.constant 0 : index
    %c0_37 = arith.constant 0 : index
    %c0_38 = arith.constant 0 : index
    %36 = vector.load %arg6[%c0_36, %c0_37, %c0_38] : memref<1x256x128xf32, #tpu.memory_space<vmem>>, vector<1x256x128xf32>
    %37 = vector.shape_cast %36 : vector<1x256x128xf32> to vector<256x128xf32>
    %38 = vector.shape_cast %35 : vector<256x128xf32> to vector<1x256x128xf32>
    tpu.vector_store %arg6[%c0_36, %c0_37, %c0_38], %38 {strides = array<i32>} : memref<1x256x128xf32, #tpu.memory_space<vmem>>, vector<1x256x128xf32>,
    return
  }
  func.func @transform_0(%arg0: i32) -> (i32, i32, i32) {
    %c0_i32 = arith.constant 0 : i32
    %c0_i32_0 = arith.constant 0 : i32
    %c0_i32_1 = arith.constant 0 : i32
    return %arg0, %c0_i32, %c0_i32_0 : i32, i32, i32
  }
  func.func @transform_1(%arg0: i32) -> (i32, i32, i32) {
    %c0_i32 = arith.constant 0 : i32
    %c0_i32_0 = arith.constant 0 : i32
    %c0_i32_1 = arith.constant 0 : i32
    %c0_i32_2 = arith.constant 0 : i32
    return %c0_i32, %c0_i32_0, %c0_i32_1 : i32, i32, i32
  }
  func.func @transform_2(%arg0: i32) -> (i32, i32) {
    %c0_i32 = arith.constant 0 : i32
    %c0_i32_0 = arith.constant 0 : i32
    %c0_i32_1 = arith.constant 0 : i32
    return %c0_i32, %c0_i32_0 : i32, i32
  }
  func.func @transform_3(%arg0: i32) -> (i32, i32) {
    %c0_i32 = arith.constant 0 : i32
    %c0_i32_0 = arith.constant 0 : i32
    %c0_i32_1 = arith.constant 0 : i32
    return %c0_i32, %c0_i32_0 : i32, i32
  }
  func.func @transform_4(%arg0: i32) -> (i32, i32) {
    %c0_i32 = arith.constant 0 : i32
    %c0_i32_0 = arith.constant 0 : i32
    %c0_i32_1 = arith.constant 0 : i32
    return %c0_i32, %c0_i32_0 : i32, i32
  }
  func.func @transform_5(%arg0: i32) -> (i32, i32, i32) {
    %c0_i32 = arith.constant 0 : i32
    %c0_i32_0 = arith.constant 0 : i32
    %c0_i32_1 = arith.constant 0 : i32
    return %arg0, %c0_i32, %c0_i32_0 : i32, i32, i32
  }
}

</mosaic_0001>

<llo_original>
// kernel: decoder_forward.8
$region0: #{decoder_forward.8}
  #allocation0 [shape = 'u32[]', space=smem, size = 0x4, offset = 0x4, fixed_abs, tag = 'smem constant byte address 0x4 - core index']
  #allocation1 [shape = 'u32[144,128]{1,0:T(1,128)}', space=vmem, size = 0x12000, scoped, tag = 'internal scratch']
  %s0 = inlined_call_operand.vmem [shape: bf16[8,512], index: 0, kind: input, shape index: {}]
  %s1 = inlined_call_operand.vmem [shape: bf16[512,128], index: 1, kind: input, shape index: {}]
  %s2 = inlined_call_operand.vmem [shape: f32[1,128], index: 2, kind: input, shape index: {}]
  %s3 = inlined_call_operand.vmem [shape: f32[8,128], index: 3, kind: output, shape index: {}]
  %s4 = sld [smem:[#allocation0]]
  $region22: #{decoder_forward.8} parent=0
    _
  %s6 = ssub.s32 1, %s4
  %s7 = scalar_select 0, %s6, %s4
  // Predicated region
  $region2: #{decoder_forward.8} parent=0 // pred_check
    _
  $region3: #{decoder_forward.8} parent=0 // pred_check_branch
    %9 = sbr.rel (0) target = $region5
  $region4: #{decoder_forward.8} parent=0 // pred_region
    _
  $region5: #{decoder_forward.8} parent=0 // pred_fallthru
    _
  // Predicated region
  $region6: #{decoder_forward.8} parent=0 // pred_check
    _
  $region7: #{decoder_forward.8} parent=0 // pred_check_branch
    %11 = sbr.rel (0) target = $region9
  $region8: #{decoder_forward.8} parent=0 // pred_region
    _
  $region9: #{decoder_forward.8} parent=0 // pred_fallthru
    _
  // Predicated region
  $region10: #{decoder_forward.8} parent=0 // pred_check
    _
  $region11: #{decoder_forward.8} parent=0 // pred_check_branch
    %13 = sbr.rel (0) target = $region13
  $region12: #{decoder_forward.8} parent=0 // pred_region
    _
  $region13: #{decoder_forward.8} parent=0 // pred_fallthru
    _
  %v15 = vld [vmem:[%s0] sm:$0xff]
  %v16 = vld [vmem:[%s0 + $0x8] sm:$0xff]
  %v17 = vld [vmem:[%s1] sm:$0xf]
  %v18 = vld [vmem:[%s1 + $0x4] sm:$0xf]
  %v19 = vld [vmem:[%s1 + $0x8] sm:$0xf]
  %v20 = vld [vmem:[%s1 + $0xc] sm:$0xf]
  %v21 = vld [vmem:[%s1 + $0x10] sm:$0xf]
  %v22 = vld [vmem:[%s1 + $0x14] sm:$0xf]
  %v23 = vld [vmem:[%s1 + $0x18] sm:$0xf]
  %v24 = vld [vmem:[%s1 + $0x1c] sm:$0xf]
  %v25 = vld [vmem:[%s1 + $0x20] sm:$0xf]
  %v26 = vld [vmem:[%s1 + $0x24] sm:$0xf]
  %v27 = vld [vmem:[%s1 + $0x28] sm:$0xf]
  %v28 = vld [vmem:[%s1 + $0x2c] sm:$0xf]
  %v29 = vld [vmem:[%s1 + $0x30] sm:$0xf]
  %v30 = vld [vmem:[%s1 + $0x34] sm:$0xf]
  %v31 = vld [vmem:[%s1 + $0x38] sm:$0xf]
  %v32 = vld [vmem:[%s1 + $0x3c] sm:$0xf]
  %v33 = vld [vmem:[%s1 + $0x40] sm:$0xf]
  %v34 = vld [vmem:[%s1 + $0x44] sm:$0xf]
  %v35 = vld [vmem:[%s1 + $0x48] sm:$0xf]
  %v36 = vld [vmem:[%s1 + $0x4c] sm:$0xf]
  %v37 = vld [vmem:[%s1 + $0x50] sm:$0xf]
  %v38 = vld [vmem:[%s1 + $0x54] sm:$0xf]
  %v39 = vld [vmem:[%s1 + $0x58] sm:$0xf]
  %v40 = vld [vmem:[%s1 + $0x5c] sm:$0xf]
  %v41 = vld [vmem:[%s1 + $0x60] sm:$0xf]
  %v42 = vld [vmem:[%s1 + $0x64] sm:$0xf]
  %v43 = vld [vmem:[%s1 + $0x68] sm:$0xf]
  %v44 = vld [vmem:[%s1 + $0x6c] sm:$0xf]
  %v45 = vld [vmem:[%s1 + $0x70] sm:$0xf]
  %v46 = vld [vmem:[%s1 + $0x74] sm:$0xf]
  %v47 = vld [vmem:[%s1 + $0x78] sm:$0xf]
  %v48 = vld [vmem:[%s1 + $0x7c] sm:$0xf]
  %v49 = vld [vmem:[%s1 + $0x80] sm:$0xf]
  %v50 = vld [vmem:[%s1 + $0x84] sm:$0xf]
  %v51 = vld [vmem:[%s1 + $0x88] sm:$0xf]
  %v52 = vld [vmem:[%s1 + $0x8c] sm:$0xf]
  %v53 = vld [vmem:[%s1 + $0x90] sm:$0xf]
  %v54 = vld [vmem:[%s1 + $0x94] sm:$0xf]
  %v55 = vld [vmem:[%s1 + $0x98] sm:$0xf]
  %v56 = vld [vmem:[%s1 + $0x9c] sm:$0xf]
  %v57 = vld [vmem:[%s1 + $0xa0] sm:$0xf]
  %v58 = vld [vmem:[%s1 + $0xa4] sm:$0xf]
  %v59 = vld [vmem:[%s1 + $0xa8] sm:$0xf]
  %v60 = vld [vmem:[%s1 + $0xac] sm:$0xf]
  %v61 = vld [vmem:[%s1 + $0xb0] sm:$0xf]
  %v62 = vld [vmem:[%s1 + $0xb4] sm:$0xf]
  %v63 = vld [vmem:[%s1 + $0xb8] sm:$0xf]
  %v64 = vld [vmem:[%s1 + $0xbc] sm:$0xf]
  %v65 = vld [vmem:[%s1 + $0xc0] sm:$0xf]
  %v66 = vld [vmem:[%s1 + $0xc4] sm:$0xf]
  %v67 = vld [vmem:[%s1 + $0xc8] sm:$0xf]
  %v68 = vld [vmem:[%s1 + $0xcc] sm:$0xf]
  %v69 = vld [vmem:[%s1 + $0xd0] sm:$0xf]
  %v70 = vld [vmem:[%s1 + $0xd4] sm:$0xf]
  %v71 = vld [vmem:[%s1 + $0xd8] sm:$0xf]
  %v72 = vld [vmem:[%s1 + $0xdc] sm:$0xf]
  %v73 = vld [vmem:[%s1 + $0xe0] sm:$0xf]
  %v74 = vld [vmem:[%s1 + $0xe4] sm:$0xf]
  %v75 = vld [vmem:[%s1 + $0xe8] sm:$0xf]
  %v76 = vld [vmem:[%s1 + $0xec] sm:$0xf]
  %v77 = vld [vmem:[%s1 + $0xf0] sm:$0xf]
  %v78 = vld [vmem:[%s1 + $0xf4] sm:$0xf]
  %v79 = vld [vmem:[%s1 + $0xf8] sm:$0xf]
  %v80 = vld [vmem:[%s1 + $0xfc] sm:$0xf]
  %v81 = vld [vmem:[%s2] sm:$0x1]
  %v83 = vlaneseq
  %v84 = vshrl.u32 %v83, 7
  %v85 = vsub.s32 0, %v84
  %v86 = vrot.slane %v81, %v85
  %v90 = vunpack.c.l.b16 %v15
  %v91 = vunpack.c.h.b16 %v15
  %v92 = vunpack.c.l.b16 %v16
  %v93 = vunpack.c.h.b16 %v16
  %v94 = vpack.c.b16 %v90, %v90
  %v95 = vpack.c.b16 %v91, %v91
  %v96 = vpack.c.b16 %v92, %v92
  %v97 = vpack.c.b16 %v93, %v93
  %v166 = vunpack.c.l.b16 %v17
  %v167 = vunpack.c.l.b16 %v18
  %v168 = vunpack.c.l.b16 %v19
  %v169 = vunpack.c.l.b16 %v20
  %v170 = vunpack.c.l.b16 %v21
  %v171 = vunpack.c.l.b16 %v22
  %v172 = vunpack.c.l.b16 %v23
  %v173 = vunpack.c.l.b16 %v24
  %v174 = vunpack.c.l.b16 %v25
  %v175 = vunpack.c.l.b16 %v26
  %v176 = vunpack.c.l.b16 %v27
  %v177 = vunpack.c.l.b16 %v28
  %v178 = vunpack.c.l.b16 %v29
  %v179 = vunpack.c.l.b16 %v30
  %v180 = vunpack.c.l.b16 %v31
  %v181 = vunpack.c.l.b16 %v32
  %v182 = vunpack.c.l.b16 %v33
  %v183 = vunpack.c.l.b16 %v34
  %v184 = vunpack.c.l.b16 %v35
  %v185 = vunpack.c.l.b16 %v36
  %v186 = vunpack.c.l.b16 %v37
  %v187 = vunpack.c.l.b16 %v38
  %v188 = vunpack.c.l.b16 %v39
  %v189 = vunpack.c.l.b16 %v40
  %v190 = vunpack.c.l.b16 %v41
  %v191 = vunpack.c.l.b16 %v42
  %v192 = vunpack.c.l.b16 %v43
  %v193 = vunpack.c.l.b16 %v44
  %v194 = vunpack.c.l.b16 %v45
  %v195 = vunpack.c.l.b16 %v46
  %v196 = vunpack.c.l.b16 %v47
  %v197 = vunpack.c.l.b16 %v48
  %v198 = vunpack.c.l.b16 %v49
  %v199 = vunpack.c.l.b16 %v50
  %v200 = vunpack.c.l.b16 %v51
  %v201 = vunpack.c.l.b16 %v52
  %v202 = vunpack.c.l.b16 %v53
  %v203 = vunpack.c.l.b16 %v54
  %v204 = vunpack.c.l.b16 %v55
  %v205 = vunpack.c.l.b16 %v56
  %v206 = vunpack.c.l.b16 %v57
  %v207 = vunpack.c.l.b16 %v58
  %v208 = vunpack.c.l.b16 %v59
  %v209 = vunpack.c.l.b16 %v60
  %v210 = vunpack.c.l.b16 %v61
  %v211 = vunpack.c.l.b16 %v62
  %v212 = vunpack.c.l.b16 %v63
  %v213 = vunpack.c.l.b16 %v64
  %v214 = vunpack.c.l.b16 %v65
  %v215 = vunpack.c.l.b16 %v66
  %v216 = vunpack.c.l.b16 %v67
  %v217 = vunpack.c.l.b16 %v68
  %v218 = vunpack.c.l.b16 %v69
  %v219 = vunpack.c.l.b16 %v70
  %v220 = vunpack.c.l.b16 %v71
  %v221 = vunpack.c.l.b16 %v72
  %v222 = vunpack.c.l.b16 %v73
  %v223 = vunpack.c.l.b16 %v74
  %v224 = vunpack.c.l.b16 %v75
  %v225 = vunpack.c.l.b16 %v76
  %v226 = vunpack.c.l.b16 %v77
  %v227 = vunpack.c.l.b16 %v78
  %v228 = vunpack.c.l.b16 %v79
  %v229 = vunpack.c.l.b16 %v80
  %v230 = vpack.c.b16 %v167, %v166
  %v231 = vpack.c.b16 %v169, %v168
  %v232 = vpack.c.b16 %v171, %v170
  %v233 = vpack.c.b16 %v173, %v172
  %v234 = vpack.c.b16 %v175, %v174
  %v235 = vpack.c.b16 %v177, %v176
  %v236 = vpack.c.b16 %v179, %v178
  %v237 = vpack.c.b16 %v181, %v180
  %v238 = vpack.c.b16 %v183, %v182
  %v239 = vpack.c.b16 %v185, %v184
  %v240 = vpack.c.b16 %v187, %v186
  %v241 = vpack.c.b16 %v189, %v188
  %v242 = vpack.c.b16 %v191, %v190
  %v243 = vpack.c.b16 %v193, %v192
  %v244 = vpack.c.b16 %v195, %v194
  %v245 = vpack.c.b16 %v197, %v196
  %v246 = vpack.c.b16 %v199, %v198
  %v247 = vpack.c.b16 %v201, %v200
  %v248 = vpack.c.b16 %v203, %v202
  %v249 = vpack.c.b16 %v205, %v204
  %v250 = vpack.c.b16 %v207, %v206
  %v251 = vpack.c.b16 %v209, %v208
  %v252 = vpack.c.b16 %v211, %v210
  %v253 = vpack.c.b16 %v213, %v212
  %v254 = vpack.c.b16 %v215, %v214
  %v255 = vpack.c.b16 %v217, %v216
  %v256 = vpack.c.b16 %v219, %v218
  %v257 = vpack.c.b16 %v221, %v220
  %v258 = vpack.c.b16 %v223, %v222
  %v259 = vpack.c.b16 %v225, %v224
  %v260 = vpack.c.b16 %v227, %v226
  %v261 = vpack.c.b16 %v229, %v228
  %294 = vmatprep.subr.bf16.mxu0 0
  %295 = vmatpush1.bf16.msra.mxu0 %v237
  %296 = vmatprep.subr.bf16.mxu0 0
  %297 = vmatpush1.bf16.msra.mxu0 %v236
  %298 = vmatprep.subr.bf16.mxu0 0
  %299 = vmatpush1.bf16.msra.mxu0 %v235
  %300 = vmatprep.subr.bf16.mxu0 0
  %301 = vmatpush1.bf16.msra.mxu0 %v234
  %302 = vmatprep.subr.bf16.mxu0 0
  %303 = vmatpush1.bf16.msra.mxu0 %v233
  %304 = vmatprep.subr.bf16.mxu0 0
  %305 = vmatpush1.bf16.msra.mxu0 %v232
  %306 = vmatprep.subr.bf16.mxu0 0
  %307 = vmatpush1.bf16.msra.mxu0 %v231
  %308 = vmatprep.subr.bf16.mxu0 0
  %309 = vmatpush1.bf16.msra.mxu0 %v230
  %310 = vmatprep.subr.bf16.mxu0 0
  %311 = vmatpush2.bf16.msra.mxu0 %v245
  %312 = vmatprep.subr.bf16.mxu0 0
  %313 = vmatpush2.bf16.msra.mxu0 %v244
  %314 = vmatprep.subr.bf16.mxu0 0
  %315 = vmatpush2.bf16.msra.mxu0 %v243
  %316 = vmatprep.subr.bf16.mxu0 0
  %317 = vmatpush2.bf16.msra.mxu0 %v242
  %318 = vmatprep.subr.bf16.mxu0 0
  %319 = vmatpush2.bf16.msra.mxu0 %v241
  %320 = vmatprep.subr.bf16.mxu0 0
  %321 = vmatpush2.bf16.msra.mxu0 %v240
  %322 = vmatprep.subr.bf16.mxu0 0
  %323 = vmatpush2.bf16.msra.mxu0 %v239
  %324 = vmatprep.subr.bf16.mxu0 0
  %325 = vmatpush2.bf16.msra.mxu0 %v238
  %326 = vmatprep.mubr.bf16.mxu0 %v95
  %327 = vmatmul.mubr.bf16.gmra.mxu0 %v94
  %v328 = vpop.f32.mrf.mxu0
  %v329 = vadd.f32 %v86, %v328
  %v330 = vpop.f32.mrf.mxu0
  %v331 = vpop.f32.mrf.mxu0
  %v332 = vpop.f32.mrf.mxu0
  %333 = vdwg.mxu0
  %334 = vmatprep.subr.bf16.mxu0 0
  %335 = vmatpush1.bf16.msra.mxu0 %v253
  %336 = vmatprep.subr.bf16.mxu0 0
  %337 = vmatpush1.bf16.msra.mxu0 %v252
  %338 = vmatprep.subr.bf16.mxu0 0
  %339 = vmatpush1.bf16.msra.mxu0 %v251
  %340 = vmatprep.subr.bf16.mxu0 0
  %341 = vmatpush1.bf16.msra.mxu0 %v250
  %342 = vmatprep.subr.bf16.mxu0 0
  %343 = vmatpush1.bf16.msra.mxu0 %v249
  %344 = vmatprep.subr.bf16.mxu0 0
  %345 = vmatpush1.bf16.msra.mxu0 %v248
  %346 = vmatprep.subr.bf16.mxu0 0
  %347 = vmatpush1.bf16.msra.mxu0 %v247
  %348 = vmatprep.subr.bf16.mxu0 0
  %349 = vmatpush1.bf16.msra.mxu0 %v246
  %350 = vmatprep.subr.bf16.mxu0 0
  %351 = vmatpush2.bf16.msra.mxu0 %v261
  %352 = vmatprep.subr.bf16.mxu0 0
  %353 = vmatpush2.bf16.msra.mxu0 %v260
  %354 = vmatprep.subr.bf16.mxu0 0
  %355 = vmatpush2.bf16.msra.mxu0 %v259
  %356 = vmatprep.subr.bf16.mxu0 0
  %357 = vmatpush2.bf16.msra.mxu0 %v258
  %358 = vmatprep.subr.bf16.mxu0 0
  %359 = vmatpush2.bf16.msra.mxu0 %v257
  %360 = vmatprep.subr.bf16.mxu0 0
  %361 = vmatpush2.bf16.msra.mxu0 %v256
  %362 = vmatprep.subr.bf16.mxu0 0
  %363 = vmatpush2.bf16.msra.mxu0 %v255
  %364 = vmatprep.subr.bf16.mxu0 0
  %365 = vmatpush2.bf16.msra.mxu0 %v254
  %366 = vmatprep.mubr.bf16.mxu0 %v97
  %367 = vmatmul.mubr.bf16.gmra.mxu0 %v96
  %v368 = vpop.f32.mrf.mxu0
  %v369 = vadd.f32 %v329, %v368
  %v370 = vpop.f32.mrf.mxu0
  %v371 = vpop.f32.mrf.mxu0
  %v372 = vpop.f32.mrf.mxu0
  %373 = vdwg.mxu0
  %v374 = vmax.f32 %v369, 0.0
  %375 = vst [vmem:[%s3] sm:$0xff] %v374
  // Predicated region
  $region14: #{decoder_forward.8} parent=0 // pred_check
    _
  $region15: #{decoder_forward.8} parent=0 // pred_check_branch
    %377 = sbr.rel (0) target = $region17
  $region16: #{decoder_forward.8} parent=0 // pred_region
    _
  $region17: #{decoder_forward.8} parent=0 // pred_fallthru
    _
  // Predicated region
  $region18: #{decoder_forward.8} parent=0 // pred_check
    _
  $region19: #{decoder_forward.8} parent=0 // pred_check_branch
    %379 = sbr.rel (0) target = $region21
  $region20: #{decoder_forward.8} parent=0 // pred_region
    _
  $region21: #{decoder_forward.8} parent=0 // pred_fallthru
    _

// kernel: decoder_forward.6
$region0: #{decoder_forward.6}
  #allocation0 [shape = 'u32[]', space=smem, size = 0x4, offset = 0x4, fixed_abs, tag = 'smem constant byte address 0x4 - core index']
  #allocation1 [shape = 'u32[144,128]{1,0:T(1,128)}', space=vmem, size = 0x12000, scoped, tag = 'internal scratch']
  %s0 = inlined_call_operand.vmem [shape: bf16[128,128], index: 0, kind: input, shape index: {}]
  %s1 = inlined_call_operand.vmem [shape: bf16[128,128], index: 1, kind: input, shape index: {}]
  %s2 = inlined_call_operand.vmem [shape: f32[1,128], index: 2, kind: input, shape index: {}]
  %s3 = inlined_call_operand.vmem [shape: f32[128,128], index: 3, kind: output, shape index: {}]
  %s4 = sld [smem:[#allocation0]]
  $region22: #{decoder_forward.6} parent=0
    _
  %s6 = ssub.s32 1, %s4
  %s7 = scalar_select 0, %s6, %s4
  // Predicated region
  $region2: #{decoder_forward.6} parent=0 // pred_check
    _
  $region3: #{decoder_forward.6} parent=0 // pred_check_branch
    %9 = sbr.rel (0) target = $region5
  $region4: #{decoder_forward.6} parent=0 // pred_region
    _
  $region5: #{decoder_forward.6} parent=0 // pred_fallthru
    _
  // Predicated region
  $region6: #{decoder_forward.6} parent=0 // pred_check
    _
  $region7: #{decoder_forward.6} parent=0 // pred_check_branch
    %11 = sbr.rel (0) target = $region9
  $region8: #{decoder_forward.6} parent=0 // pred_region
    _
  $region9: #{decoder_forward.6} parent=0 // pred_fallthru
    _
  // Predicated region
  $region10: #{decoder_forward.6} parent=0 // pred_check
    _
  $region11: #{decoder_forward.6} parent=0 // pred_check_branch
    %13 = sbr.rel (0) target = $region13
  $region12: #{decoder_forward.6} parent=0 // pred_region
    _
  $region13: #{decoder_forward.6} parent=0 // pred_fallthru
    _
  %v15 = vld [vmem:[%s0] sm:$0xf]
  %v16 = vld [vmem:[%s0 + $0x4] sm:$0xf]
  %v17 = vld [vmem:[%s0 + $0x8] sm:$0xf]
  %v18 = vld [vmem:[%s0 + $0xc] sm:$0xf]
  %v19 = vld [vmem:[%s0 + $0x10] sm:$0xf]
  %v20 = vld [vmem:[%s0 + $0x14] sm:$0xf]
  %v21 = vld [vmem:[%s0 + $0x18] sm:$0xf]
  %v22 = vld [vmem:[%s0 + $0x1c] sm:$0xf]
  %v23 = vld [vmem:[%s0 + $0x20] sm:$0xf]
  %v24 = vld [vmem:[%s0 + $0x24] sm:$0xf]
  %v25 = vld [vmem:[%s0 + $0x28] sm:$0xf]
  %v26 = vld [vmem:[%s0 + $0x2c] sm:$0xf]
  %v27 = vld [vmem:[%s0 + $0x30] sm:$0xf]
  %v28 = vld [vmem:[%s0 + $0x34] sm:$0xf]
  %v29 = vld [vmem:[%s0 + $0x38] sm:$0xf]
  %v30 = vld [vmem:[%s0 + $0x3c] sm:$0xf]
  %v31 = vld [vmem:[%s1] sm:$0xf]
  %v32 = vld [vmem:[%s1 + $0x4] sm:$0xf]
  %v33 = vld [vmem:[%s1 + $0x8] sm:$0xf]
  %v34 = vld [vmem:[%s1 + $0xc] sm:$0xf]
  %v35 = vld [vmem:[%s1 + $0x10] sm:$0xf]
  %v36 = vld [vmem:[%s1 + $0x14] sm:$0xf]
  %v37 = vld [vmem:[%s1 + $0x18] sm:$0xf]
  %v38 = vld [vmem:[%s1 + $0x1c] sm:$0xf]
  %v39 = vld [vmem:[%s1 + $0x20] sm:$0xf]
  %v40 = vld [vmem:[%s1 + $0x24] sm:$0xf]
  %v41 = vld [vmem:[%s1 + $0x28] sm:$0xf]
  %v42 = vld [vmem:[%s1 + $0x2c] sm:$0xf]
  %v43 = vld [vmem:[%s1 + $0x30] sm:$0xf]
  %v44 = vld [vmem:[%s1 + $0x34] sm:$0xf]
  %v45 = vld [vmem:[%s1 + $0x38] sm:$0xf]
  %v46 = vld [vmem:[%s1 + $0x3c] sm:$0xf]
  %v47 = vld [vmem:[%s2] sm:$0x1]
  %v49 = vlaneseq
  %v50 = vshrl.u32 %v49, 7
  %v51 = vsub.s32 0, %v50
  %v52 = vrot.slane %v47, %v51
  %v70 = vunpack.c.l.b16 %v15
  %v71 = vunpack.c.l.b16 %v16
  %v72 = vunpack.c.l.b16 %v17
  %v73 = vunpack.c.l.b16 %v18
  %v74 = vunpack.c.l.b16 %v19
  %v75 = vunpack.c.l.b16 %v20
  %v76 = vunpack.c.l.b16 %v21
  %v77 = vunpack.c.l.b16 %v22
  %v78 = vunpack.c.l.b16 %v23
  %v79 = vunpack.c.l.b16 %v24
  %v80 = vunpack.c.l.b16 %v25
  %v81 = vunpack.c.l.b16 %v26
  %v82 = vunpack.c.l.b16 %v27
  %v83 = vunpack.c.l.b16 %v28
  %v84 = vunpack.c.l.b16 %v29
  %v85 = vunpack.c.l.b16 %v30
  %v86 = vpack.c.b16 %v71, %v70
  %v87 = vpack.c.b16 %v73, %v72
  %v88 = vpack.c.b16 %v75, %v74
  %v89 = vpack.c.b16 %v77, %v76
  %v90 = vpack.c.b16 %v79, %v78
  %v91 = vpack.c.b16 %v81, %v80
  %v92 = vpack.c.b16 %v83, %v82
  %v93 = vpack.c.b16 %v85, %v84
  %v118 = vunpack.c.l.b16 %v31
  %v119 = vunpack.c.l.b16 %v32
  %v120 = vunpack.c.l.b16 %v33
  %v121 = vunpack.c.l.b16 %v34
  %v122 = vunpack.c.l.b16 %v35
  %v123 = vunpack.c.l.b16 %v36
  %v124 = vunpack.c.l.b16 %v37
  %v125 = vunpack.c.l.b16 %v38
  %v126 = vunpack.c.l.b16 %v39
  %v127 = vunpack.c.l.b16 %v40
  %v128 = vunpack.c.l.b16 %v41
  %v129 = vunpack.c.l.b16 %v42
  %v130 = vunpack.c.l.b16 %v43
  %v131 = vunpack.c.l.b16 %v44
  %v132 = vunpack.c.l.b16 %v45
  %v133 = vunpack.c.l.b16 %v46
  %v134 = vpack.c.b16 %v119, %v118
  %v135 = vpack.c.b16 %v121, %v120
  %v136 = vpack.c.b16 %v123, %v122
  %v137 = vpack.c.b16 %v125, %v124
  %v138 = vpack.c.b16 %v127, %v126
  %v139 = vpack.c.b16 %v129, %v128
  %v140 = vpack.c.b16 %v131, %v130
  %v141 = vpack.c.b16 %v133, %v132
  %150 = vmatprep.subr.bf16.mxu0 0
  %151 = vmatpush1.bf16.msra.mxu0 %v141
  %152 = vmatprep.subr.bf16.mxu0 0
  %153 = vmatpush1.bf16.msra.mxu0 %v140
  %154 = vmatprep.subr.bf16.mxu0 0
  %155 = vmatpush1.bf16.msra.mxu0 %v139
  %156 = vmatprep.subr.bf16.mxu0 0
  %157 = vmatpush1.bf16.msra.mxu0 %v138
  %158 = vmatprep.subr.bf16.mxu0 0
  %159 = vmatpush1.bf16.msra.mxu0 %v137
  %160 = vmatprep.subr.bf16.mxu0 0
  %161 = vmatpush1.bf16.msra.mxu0 %v136
  %162 = vmatprep.subr.bf16.mxu0 0
  %163 = vmatpush1.bf16.msra.mxu0 %v135
  %164 = vmatprep.subr.bf16.mxu0 0
  %165 = vmatpush1.bf16.msra.mxu0 %v134
  %166 = vmatprep.subr.bf16.mxu0 0
  %167 = vmatpush2.bf16.msra.mxu0 0
  %168 = vmatprep.subr.bf16.mxu0 0
  %169 = vmatpush2.bf16.msra.mxu0 0
  %170 = vmatprep.subr.bf16.mxu0 0
  %171 = vmatpush2.bf16.msra.mxu0 0
  %172 = vmatprep.subr.bf16.mxu0 0
  %173 = vmatpush2.bf16.msra.mxu0 0
  %174 = vmatprep.subr.bf16.mxu0 0
  %175 = vmatpush2.bf16.msra.mxu0 0
  %176 = vmatprep.subr.bf16.mxu0 0
  %177 = vmatpush2.bf16.msra.mxu0 0
  %178 = vmatprep.subr.bf16.mxu0 0
  %179 = vmatpush2.bf16.msra.mxu0 0
  %180 = vmatprep.subr.bf16.mxu0 0
  %181 = vmatpush2.bf16.msra.mxu0 0
  %182 = vmatprep.mubr.bf16.mxu0 0
  %183 = vmatmul.mubr.bf16.gmra.mxu0 %v86
  %v184 = vpop.f32.mrf.mxu0
  %v185 = vadd.f32 %v52, %v184
  %v186 = vpop.f32.mrf.mxu0
  %v187 = vpop.f32.mrf.mxu0
  %v188 = vadd.f32 %v52, %v187
  %v189 = vpop.f32.mrf.mxu0
  %190 = vmatprep.mubr.bf16.mxu0 0
  %191 = vmatmul.mubr.bf16.gmra.mxu0 %v87
  %v192 = vpop.f32.mrf.mxu0
  %v193 = vadd.f32 %v52, %v192
  %v194 = vpop.f32.mrf.mxu0
  %v195 = vpop.f32.mrf.mxu0
  %v196 = vadd.f32 %v52, %v195
  %v197 = vpop.f32.mrf.mxu0
  %198 = vmatprep.mubr.bf16.mxu0 0
  %199 = vmatmul.mubr.bf16.gmra.mxu0 %v88
  %v200 = vpop.f32.mrf.mxu0
  %v201 = vadd.f32 %v52, %v200
  %v202 = vpop.f32.mrf.mxu0
  %v203 = vpop.f32.mrf.mxu0
  %v204 = vadd.f32 %v52, %v203
  %v205 = vpop.f32.mrf.mxu0
  %206 = vmatprep.mubr.bf16.mxu0 0
  %207 = vmatmul.mubr.bf16.gmra.mxu0 %v89
  %v208 = vpop.f32.mrf.mxu0
  %v209 = vadd.f32 %v52, %v208
  %v210 = vpop.f32.mrf.mxu0
  %v211 = vpop.f32.mrf.mxu0
  %v212 = vadd.f32 %v52, %v211
  %v213 = vpop.f32.mrf.mxu0
  %214 = vmatprep.mubr.bf16.mxu0 0
  %215 = vmatmul.mubr.bf16.gmra.mxu0 %v90
  %v216 = vpop.f32.mrf.mxu0
  %v217 = vadd.f32 %v52, %v216
  %v218 = vpop.f32.mrf.mxu0
  %v219 = vpop.f32.mrf.mxu0
  %v220 = vadd.f32 %v52, %v219
  %v221 = vpop.f32.mrf.mxu0
  %222 = vmatprep.mubr.bf16.mxu0 0
  %223 = vmatmul.mubr.bf16.gmra.mxu0 %v91
  %v224 = vpop.f32.mrf.mxu0
  %v225 = vadd.f32 %v52, %v224
  %v226 = vpop.f32.mrf.mxu0
  %v227 = vpop.f32.mrf.mxu0
  %v228 = vadd.f32 %v52, %v227
  %v229 = vpop.f32.mrf.mxu0
  %230 = vmatprep.mubr.bf16.mxu0 0
  %231 = vmatmul.mubr.bf16.gmra.mxu0 %v92
  %v232 = vpop.f32.mrf.mxu0
  %v233 = vadd.f32 %v52, %v232
  %v234 = vpop.f32.mrf.mxu0
  %v235 = vpop.f32.mrf.mxu0
  %v236 = vadd.f32 %v52, %v235
  %v237 = vpop.f32.mrf.mxu0
  %238 = vmatprep.mubr.bf16.mxu0 0
  %239 = vmatmul.mubr.bf16.gmra.mxu0 %v93
  %v240 = vpop.f32.mrf.mxu0
  %v241 = vadd.f32 %v52, %v240
  %v242 = vpop.f32.mrf.mxu0
  %v243 = vpop.f32.mrf.mxu0
  %v244 = vadd.f32 %v52, %v243
  %v245 = vpop.f32.mrf.mxu0
  %246 = vdwg.mxu0
  %v247 = vmax.f32 %v185, 0.0
  %v248 = vmax.f32 %v188, 0.0
  %v249 = vmax.f32 %v193, 0.0
  %v250 = vmax.f32 %v196, 0.0
  %v251 = vmax.f32 %v201, 0.0
  %v252 = vmax.f32 %v204, 0.0
  %v253 = vmax.f32 %v209, 0.0
  %v254 = vmax.f32 %v212, 0.0
  %v255 = vmax.f32 %v217, 0.0
  %v256 = vmax.f32 %v220, 0.0
  %v257 = vmax.f32 %v225, 0.0
  %v258 = vmax.f32 %v228, 0.0
  %v259 = vmax.f32 %v233, 0.0
  %v260 = vmax.f32 %v236, 0.0
  %v261 = vmax.f32 %v241, 0.0
  %v262 = vmax.f32 %v244, 0.0
  %263 = vst [vmem:[%s3] sm:$0xff] %v247
  %264 = vst [vmem:[%s3 + $0x8] sm:$0xff] %v248
  %265 = vst [vmem:[%s3 + $0x10] sm:$0xff] %v249
  %266 = vst [vmem:[%s3 + $0x18] sm:$0xff] %v250
  %267 = vst [vmem:[%s3 + $0x20] sm:$0xff] %v251
  %268 = vst [vmem:[%s3 + $0x28] sm:$0xff] %v252
  %269 = vst [vmem:[%s3 + $0x30] sm:$0xff] %v253
  %270 = vst [vmem:[%s3 + $0x38] sm:$0xff] %v254
  %271 = vst [vmem:[%s3 + $0x40] sm:$0xff] %v255
  %272 = vst [vmem:[%s3 + $0x48] sm:$0xff] %v256
  %273 = vst [vmem:[%s3 + $0x50] sm:$0xff] %v257
  %274 = vst [vmem:[%s3 + $0x58] sm:$0xff] %v258
  %275 = vst [vmem:[%s3 + $0x60] sm:$0xff] %v259
  %276 = vst [vmem:[%s3 + $0x68] sm:$0xff] %v260
  %277 = vst [vmem:[%s3 + $0x70] sm:$0xff] %v261
  %278 = vst [vmem:[%s3 + $0x78] sm:$0xff] %v262
  // Predicated region
  $region14: #{decoder_forward.6} parent=0 // pred_check
    _
  $region15: #{decoder_forward.6} parent=0 // pred_check_branch
    %280 = sbr.rel (0) target = $region17
  $region16: #{decoder_forward.6} parent=0 // pred_region
    _
  $region17: #{decoder_forward.6} parent=0 // pred_fallthru
    _
  // Predicated region
  $region18: #{decoder_forward.6} parent=0 // pred_check
    _
  $region19: #{decoder_forward.6} parent=0 // pred_check_branch
    %282 = sbr.rel (0) target = $region21
  $region20: #{decoder_forward.6} parent=0 // pred_region
    _
  $region21: #{decoder_forward.6} parent=0 // pred_fallthru
    _

// kernel: decoder_forward.7
$region0: #{decoder_forward.7}
  #allocation0 [shape = 'u32[]', space=smem, size = 0x4, offset = 0x4, fixed_abs, tag = 'smem constant byte address 0x4 - core index']
  #allocation1 [shape = 'u32[144,128]{1,0:T(1,128)}', space=vmem, size = 0x12000, scoped, tag = 'internal scratch']
  %s0 = inlined_call_operand.vmem [shape: bf16[32,256], index: 0, kind: input, shape index: {}]
  %s1 = inlined_call_operand.vmem [shape: bf16[256,128], index: 1, kind: input, shape index: {}]
  %s2 = inlined_call_operand.vmem [shape: f32[1,128], index: 2, kind: input, shape index: {}]
  %s3 = inlined_call_operand.vmem [shape: f32[32,128], index: 3, kind: output, shape index: {}]
  %s4 = sld [smem:[#allocation0]]
  $region22: #{decoder_forward.7} parent=0
    _
  %s6 = ssub.s32 1, %s4
  %s7 = scalar_select 0, %s6, %s4
  // Predicated region
  $region2: #{decoder_forward.7} parent=0 // pred_check
    _
  $region3: #{decoder_forward.7} parent=0 // pred_check_branch
    %9 = sbr.rel (0) target = $region5
  $region4: #{decoder_forward.7} parent=0 // pred_region
    _
  $region5: #{decoder_forward.7} parent=0 // pred_fallthru
    _
  // Predicated region
  $region6: #{decoder_forward.7} parent=0 // pred_check
    _
  $region7: #{decoder_forward.7} parent=0 // pred_check_branch
    %11 = sbr.rel (0) target = $region9
  $region8: #{decoder_forward.7} parent=0 // pred_region
    _
  $region9: #{decoder_forward.7} parent=0 // pred_fallthru
    _
  // Predicated region
  $region10: #{decoder_forward.7} parent=0 // pred_check
    _
  $region11: #{decoder_forward.7} parent=0 // pred_check_branch
    %13 = sbr.rel (0) target = $region13
  $region12: #{decoder_forward.7} parent=0 // pred_region
    _
  $region13: #{decoder_forward.7} parent=0 // pred_fallthru
    _
  %v15 = vld [vmem:[%s0] sm:$0xff]
  %v16 = vld [vmem:[%s0 + $0x8] sm:$0xff]
  %v17 = vld [vmem:[%s0 + $0x10] sm:$0xff]
  %v18 = vld [vmem:[%s0 + $0x18] sm:$0xff]
  %v19 = vld [vmem:[%s1] sm:$0xf]
  %v20 = vld [vmem:[%s1 + $0x4] sm:$0xf]
  %v21 = vld [vmem:[%s1 + $0x8] sm:$0xf]
  %v22 = vld [vmem:[%s1 + $0xc] sm:$0xf]
  %v23 = vld [vmem:[%s1 + $0x10] sm:$0xf]
  %v24 = vld [vmem:[%s1 + $0x14] sm:$0xf]
  %v25 = vld [vmem:[%s1 + $0x18] sm:$0xf]
  %v26 = vld [vmem:[%s1 + $0x1c] sm:$0xf]
  %v27 = vld [vmem:[%s1 + $0x20] sm:$0xf]
  %v28 = vld [vmem:[%s1 + $0x24] sm:$0xf]
  %v29 = vld [vmem:[%s1 + $0x28] sm:$0xf]
  %v30 = vld [vmem:[%s1 + $0x2c] sm:$0xf]
  %v31 = vld [vmem:[%s1 + $0x30] sm:$0xf]
  %v32 = vld [vmem:[%s1 + $0x34] sm:$0xf]
  %v33 = vld [vmem:[%s1 + $0x38] sm:$0xf]
  %v34 = vld [vmem:[%s1 + $0x3c] sm:$0xf]
  %v35 = vld [vmem:[%s1 + $0x40] sm:$0xf]
  %v36 = vld [vmem:[%s1 + $0x44] sm:$0xf]
  %v37 = vld [vmem:[%s1 + $0x48] sm:$0xf]
  %v38 = vld [vmem:[%s1 + $0x4c] sm:$0xf]
  %v39 = vld [vmem:[%s1 + $0x50] sm:$0xf]
  %v40 = vld [vmem:[%s1 + $0x54] sm:$0xf]
  %v41 = vld [vmem:[%s1 + $0x58] sm:$0xf]
  %v42 = vld [vmem:[%s1 + $0x5c] sm:$0xf]
  %v43 = vld [vmem:[%s1 + $0x60] sm:$0xf]
  %v44 = vld [vmem:[%s1 + $0x64] sm:$0xf]
  %v45 = vld [vmem:[%s1 + $0x68] sm:$0xf]
  %v46 = vld [vmem:[%s1 + $0x6c] sm:$0xf]
  %v47 = vld [vmem:[%s1 + $0x70] sm:$0xf]
  %v48 = vld [vmem:[%s1 + $0x74] sm:$0xf]
  %v49 = vld [vmem:[%s1 + $0x78] sm:$0xf]
  %v50 = vld [vmem:[%s1 + $0x7c] sm:$0xf]
  %v51 = vld [vmem:[%s2] sm:$0x1]
  %v53 = vlaneseq
  %v54 = vshrl.u32 %v53, 7
  %v55 = vsub.s32 0, %v54
  %v56 = vrot.slane %v51, %v55
  %v62 = vunpack.c.l.b16 %v15
  %v63 = vunpack.c.h.b16 %v15
  %v64 = vunpack.c.l.b16 %v16
  %v65 = vunpack.c.h.b16 %v16
  %v66 = vunpack.c.l.b16 %v17
  %v67 = vunpack.c.h.b16 %v17
  %v68 = vunpack.c.l.b16 %v18
  %v69 = vunpack.c.h.b16 %v18
  %v70 = vpack.c.b16 %v64, %v62
  %v71 = vpack.c.b16 %v65, %v63
  %v72 = vpack.c.b16 %v68, %v66
  %v73 = vpack.c.b16 %v69, %v67
  %v110 = vunpack.c.l.b16 %v19
  %v111 = vunpack.c.l.b16 %v20
  %v112 = vunpack.c.l.b16 %v21
  %v113 = vunpack.c.l.b16 %v22
  %v114 = vunpack.c.l.b16 %v23
  %v115 = vunpack.c.l.b16 %v24
  %v116 = vunpack.c.l.b16 %v25
  %v117 = vunpack.c.l.b16 %v26
  %v118 = vunpack.c.l.b16 %v27
  %v119 = vunpack.c.l.b16 %v28
  %v120 = vunpack.c.l.b16 %v29
  %v121 = vunpack.c.l.b16 %v30
  %v122 = vunpack.c.l.b16 %v31
  %v123 = vunpack.c.l.b16 %v32
  %v124 = vunpack.c.l.b16 %v33
  %v125 = vunpack.c.l.b16 %v34
  %v126 = vunpack.c.l.b16 %v35
  %v127 = vunpack.c.l.b16 %v36
  %v128 = vunpack.c.l.b16 %v37
  %v129 = vunpack.c.l.b16 %v38
  %v130 = vunpack.c.l.b16 %v39
  %v131 = vunpack.c.l.b16 %v40
  %v132 = vunpack.c.l.b16 %v41
  %v133 = vunpack.c.l.b16 %v42
  %v134 = vunpack.c.l.b16 %v43
  %v135 = vunpack.c.l.b16 %v44
  %v136 = vunpack.c.l.b16 %v45
  %v137 = vunpack.c.l.b16 %v46
  %v138 = vunpack.c.l.b16 %v47
  %v139 = vunpack.c.l.b16 %v48
  %v140 = vunpack.c.l.b16 %v49
  %v141 = vunpack.c.l.b16 %v50
  %v142 = vpack.c.b16 %v111, %v110
  %v143 = vpack.c.b16 %v113, %v112
  %v144 = vpack.c.b16 %v115, %v114
  %v145 = vpack.c.b16 %v117, %v116
  %v146 = vpack.c.b16 %v119, %v118
  %v147 = vpack.c.b16 %v121, %v120
  %v148 = vpack.c.b16 %v123, %v122
  %v149 = vpack.c.b16 %v125, %v124
  %v150 = vpack.c.b16 %v127, %v126
  %v151 = vpack.c.b16 %v129, %v128
  %v152 = vpack.c.b16 %v131, %v130
  %v153 = vpack.c.b16 %v133, %v132
  %v154 = vpack.c.b16 %v135, %v134
  %v155 = vpack.c.b16 %v137, %v136
  %v156 = vpack.c.b16 %v139, %v138
  %v157 = vpack.c.b16 %v141, %v140
  %174 = vmatprep.subr.bf16.mxu0 0
  %175 = vmatpush1.bf16.msra.mxu0 %v149
  %176 = vmatprep.subr.bf16.mxu0 0
  %177 = vmatpush1.bf16.msra.mxu0 %v148
  %178 = vmatprep.subr.bf16.mxu0 0
  %179 = vmatpush1.bf16.msra.mxu0 %v147
  %180 = vmatprep.subr.bf16.mxu0 0
  %181 = vmatpush1.bf16.msra.mxu0 %v146
  %182 = vmatprep.subr.bf16.mxu0 0
  %183 = vmatpush1.bf16.msra.mxu0 %v145
  %184 = vmatprep.subr.bf16.mxu0 0
  %185 = vmatpush1.bf16.msra.mxu0 %v144
  %186 = vmatprep.subr.bf16.mxu0 0
  %187 = vmatpush1.bf16.msra.mxu0 %v143
  %188 = vmatprep.subr.bf16.mxu0 0
  %189 = vmatpush1.bf16.msra.mxu0 %v142
  %190 = vmatprep.subr.bf16.mxu0 0
  %191 = vmatpush2.bf16.msra.mxu0 %v157
  %192 = vmatprep.subr.bf16.mxu0 0
  %193 = vmatpush2.bf16.msra.mxu0 %v156
  %194 = vmatprep.subr.bf16.mxu0 0
  %195 = vmatpush2.bf16.msra.mxu0 %v155
  %196 = vmatprep.subr.bf16.mxu0 0
  %197 = vmatpush2.bf16.msra.mxu0 %v154
  %198 = vmatprep.subr.bf16.mxu0 0
  %199 = vmatpush2.bf16.msra.mxu0 %v153
  %200 = vmatprep.subr.bf16.mxu0 0
  %201 = vmatpush2.bf16.msra.mxu0 %v152
  %202 = vmatprep.subr.bf16.mxu0 0
  %203 = vmatpush2.bf16.msra.mxu0 %v151
  %204 = vmatprep.subr.bf16.mxu0 0
  %205 = vmatpush2.bf16.msra.mxu0 %v150
  %206 = vmatprep.mubr.bf16.mxu0 %v71
  %207 = vmatmul.mubr.bf16.gmra.mxu0 %v70
  %v208 = vpop.f32.mrf.mxu0
  %v209 = vadd.f32 %v56, %v208
  %v210 = vpop.f32.mrf.mxu0
  %v211 = vpop.f32.mrf.mxu0
  %v212 = vadd.f32 %v56, %v211
  %v213 = vpop.f32.mrf.mxu0
  %214 = vmatprep.mubr.bf16.mxu0 %v73
  %215 = vmatmul.mubr.bf16.gmra.mxu0 %v72
  %v216 = vpop.f32.mrf.mxu0
  %v217 = vadd.f32 %v56, %v216
  %v218 = vpop.f32.mrf.mxu0
  %v219 = vpop.f32.mrf.mxu0
  %v220 = vadd.f32 %v56, %v219
  %v221 = vpop.f32.mrf.mxu0
  %222 = vdwg.mxu0
  %v223 = vmax.f32 %v209, 0.0
  %v224 = vmax.f32 %v212, 0.0
  %v225 = vmax.f32 %v217, 0.0
  %v226 = vmax.f32 %v220, 0.0
  %227 = vst [vmem:[%s3] sm:$0xff] %v223
  %228 = vst [vmem:[%s3 + $0x8] sm:$0xff] %v224
  %229 = vst [vmem:[%s3 + $0x10] sm:$0xff] %v225
  %230 = vst [vmem:[%s3 + $0x18] sm:$0xff] %v226
  // Predicated region
  $region14: #{decoder_forward.7} parent=0 // pred_check
    _
  $region15: #{decoder_forward.7} parent=0 // pred_check_branch
    %232 = sbr.rel (0) target = $region17
  $region16: #{decoder_forward.7} parent=0 // pred_region
    _
  $region17: #{decoder_forward.7} parent=0 // pred_fallthru
    _
  // Predicated region
  $region18: #{decoder_forward.7} parent=0 // pred_check
    _
  $region19: #{decoder_forward.7} parent=0 // pred_check_branch
    %234 = sbr.rel (0) target = $region21
  $region20: #{decoder_forward.7} parent=0 // pred_region
    _
  $region21: #{decoder_forward.7} parent=0 // pred_fallthru
    _

// kernel: decoder_forward.5
$region0: #{decoder_forward.5}
  #allocation0 [shape = 'u32[]', space=smem, size = 0x4, offset = 0x4, fixed_abs, tag = 'smem constant byte address 0x4 - core index']
  #allocation1 [shape = 'u32[144,128]{1,0:T(1,128)}', space=vmem, size = 0x12000, scoped, tag = 'internal scratch']
  %s0 = inlined_call_operand.vmem [shape: bf16[512,64], index: 0, kind: input, shape index: {}]
  %s1 = inlined_call_operand.vmem [shape: bf16[64,128], index: 1, kind: input, shape index: {}]
  %s2 = inlined_call_operand.vmem [shape: f32[1,128], index: 2, kind: input, shape index: {}]
  %s3 = inlined_call_operand.vmem [shape: f32[512,128], index: 3, kind: output, shape index: {}]
  %s4 = sld [smem:[#allocation0]]
  $region22: #{decoder_forward.5} parent=0
    _
  %s6 = ssub.s32 1, %s4
  %s7 = scalar_select 0, %s6, %s4
  // Predicated region
  $region2: #{decoder_forward.5} parent=0 // pred_check
    _
  $region3: #{decoder_forward.5} parent=0 // pred_check_branch
    %9 = sbr.rel (0) target = $region5
  $region4: #{decoder_forward.5} parent=0 // pred_region
    _
  $region5: #{decoder_forward.5} parent=0 // pred_fallthru
    _
  // Predicated region
  $region6: #{decoder_forward.5} parent=0 // pred_check
    _
  $region7: #{decoder_forward.5} parent=0 // pred_check_branch
    %11 = sbr.rel (0) target = $region9
  $region8: #{decoder_forward.5} parent=0 // pred_region
    _
  $region9: #{decoder_forward.5} parent=0 // pred_fallthru
    _
  // Predicated region
  $region10: #{decoder_forward.5} parent=0 // pred_check
    _
  $region11: #{decoder_forward.5} parent=0 // pred_check_branch
    %13 = sbr.rel (0) target = $region13
  $region12: #{decoder_forward.5} parent=0 // pred_region
    _
  $region13: #{decoder_forward.5} parent=0 // pred_fallthru
    _
  %v15 = vld [vmem:[%s0] sm:$0xf]
  %v16 = vld [vmem:[%s0 + $0x4] sm:$0xf]
  %v17 = vld [vmem:[%s0 + $0x8] sm:$0xf]
  %v18 = vld [vmem:[%s0 + $0xc] sm:$0xf]
  %v19 = vld [vmem:[%s0 + $0x10] sm:$0xf]
  %v20 = vld [vmem:[%s0 + $0x14] sm:$0xf]
  %v21 = vld [vmem:[%s0 + $0x18] sm:$0xf]
  %v22 = vld [vmem:[%s0 + $0x1c] sm:$0xf]
  %v23 = vld [vmem:[%s0 + $0x20] sm:$0xf]
  %v24 = vld [vmem:[%s0 + $0x24] sm:$0xf]
  %v25 = vld [vmem:[%s0 + $0x28] sm:$0xf]
  %v26 = vld [vmem:[%s0 + $0x2c] sm:$0xf]
  %v27 = vld [vmem:[%s0 + $0x30] sm:$0xf]
  %v28 = vld [vmem:[%s0 + $0x34] sm:$0xf]
  %v29 = vld [vmem:[%s0 + $0x38] sm:$0xf]
  %v30 = vld [vmem:[%s0 + $0x3c] sm:$0xf]
  %v31 = vld [vmem:[%s0 + $0x40] sm:$0xf]
  %v32 = vld [vmem:[%s0 + $0x44] sm:$0xf]
  %v33 = vld [vmem:[%s0 + $0x48] sm:$0xf]
  %v34 = vld [vmem:[%s0 + $0x4c] sm:$0xf]
  %v35 = vld [vmem:[%s0 + $0x50] sm:$0xf]
  %v36 = vld [vmem:[%s0 + $0x54] sm:$0xf]
  %v37 = vld [vmem:[%s0 + $0x58] sm:$0xf]
  %v38 = vld [vmem:[%s0 + $0x5c] sm:$0xf]
  %v39 = vld [vmem:[%s0 + $0x60] sm:$0xf]
  %v40 = vld [vmem:[%s0 + $0x64] sm:$0xf]
  %v41 = vld [vmem:[%s0 + $0x68] sm:$0xf]
  %v42 = vld [vmem:[%s0 + $0x6c] sm:$0xf]
  %v43 = vld [vmem:[%s0 + $0x70] sm:$0xf]
  %v44 = vld [vmem:[%s0 + $0x74] sm:$0xf]
  %v45 = vld [vmem:[%s0 + $0x78] sm:$0xf]
  %v46 = vld [vmem:[%s0 + $0x7c] sm:$0xf]
  %v47 = vld [vmem:[%s0 + $0x80] sm:$0xf]
  %v48 = vld [vmem:[%s0 + $0x84] sm:$0xf]
  %v49 = vld [vmem:[%s0 + $0x88] sm:$0xf]
  %v50 = vld [vmem:[%s0 + $0x8c] sm:$0xf]
  %v51 = vld [vmem:[%s0 + $0x90] sm:$0xf]
  %v52 = vld [vmem:[%s0 + $0x94] sm:$0xf]
  %v53 = vld [vmem:[%s0 + $0x98] sm:$0xf]
  %v54 = vld [vmem:[%s0 + $0x9c] sm:$0xf]
  %v55 = vld [vmem:[%s0 + $0xa0] sm:$0xf]
  %v56 = vld [vmem:[%s0 + $0xa4] sm:$0xf]
  %v57 = vld [vmem:[%s0 + $0xa8] sm:$0xf]
  %v58 = vld [vmem:[%s0 + $0xac] sm:$0xf]
  %v59 = vld [vmem:[%s0 + $0xb0] sm:$0xf]
  %v60 = vld [vmem:[%s0 + $0xb4] sm:$0xf]
  %v61 = vld [vmem:[%s0 + $0xb8] sm:$0xf]
  %v62 = vld [vmem:[%s0 + $0xbc] sm:$0xf]
  %v63 = vld [vmem:[%s0 + $0xc0] sm:$0xf]
  %v64 = vld [vmem:[%s0 + $0xc4] sm:$0xf]
  %v65 = vld [vmem:[%s0 + $0xc8] sm:$0xf]
  %v66 = vld [vmem:[%s0 + $0xcc] sm:$0xf]
  %v67 = vld [vmem:[%s0 + $0xd0] sm:$0xf]
  %v68 = vld [vmem:[%s0 + $0xd4] sm:$0xf]
  %v69 = vld [vmem:[%s0 + $0xd8] sm:$0xf]
  %v70 = vld [vmem:[%s0 + $0xdc] sm:$0xf]
  %v71 = vld [vmem:[%s0 + $0xe0] sm:$0xf]
  %v72 = vld [vmem:[%s0 + $0xe4] sm:$0xf]
  %v73 = vld [vmem:[%s0 + $0xe8] sm:$0xf]
  %v74 = vld [vmem:[%s0 + $0xec] sm:$0xf]
  %v75 = vld [vmem:[%s0 + $0xf0] sm:$0xf]
  %v76 = vld [vmem:[%s0 + $0xf4] sm:$0xf]
  %v77 = vld [vmem:[%s0 + $0xf8] sm:$0xf]
  %v78 = vld [vmem:[%s0 + $0xfc] sm:$0xf]
  %v79 = vld [vmem:[%s1] sm:$0xf]
  %v80 = vld [vmem:[%s1 + $0x4] sm:$0xf]
  %v81 = vld [vmem:[%s1 + $0x8] sm:$0xf]
  %v82 = vld [vmem:[%s1 + $0xc] sm:$0xf]
  %v83 = vld [vmem:[%s1 + $0x10] sm:$0xf]
  %v84 = vld [vmem:[%s1 + $0x14] sm:$0xf]
  %v85 = vld [vmem:[%s1 + $0x18] sm:$0xf]
  %v86 = vld [vmem:[%s1 + $0x1c] sm:$0xf]
  %v87 = vld [vmem:[%s2] sm:$0x1]
  %v89 = vlaneseq
  %v90 = vshrl.u32 %v89, 7
  %v91 = vsub.s32 0, %v90
  %v92 = vrot.slane %v87, %v91
  %v158 = vunpack.c.l.b16 %v15
  %v159 = vunpack.c.l.b16 %v16
  %v160 = vunpack.c.l.b16 %v17
  %v161 = vunpack.c.l.b16 %v18
  %v162 = vunpack.c.l.b16 %v19
  %v163 = vunpack.c.l.b16 %v20
  %v164 = vunpack.c.l.b16 %v21
  %v165 = vunpack.c.l.b16 %v22
  %v166 = vunpack.c.l.b16 %v23
  %v167 = vunpack.c.l.b16 %v24
  %v168 = vunpack.c.l.b16 %v25
  %v169 = vunpack.c.l.b16 %v26
  %v170 = vunpack.c.l.b16 %v27
  %v171 = vunpack.c.l.b16 %v28
  %v172 = vunpack.c.l.b16 %v29
  %v173 = vunpack.c.l.b16 %v30
  %v174 = vunpack.c.l.b16 %v31
  %v175 = vunpack.c.l.b16 %v32
  %v176 = vunpack.c.l.b16 %v33
  %v177 = vunpack.c.l.b16 %v34
  %v178 = vunpack.c.l.b16 %v35
  %v179 = vunpack.c.l.b16 %v36
  %v180 = vunpack.c.l.b16 %v37
  %v181 = vunpack.c.l.b16 %v38
  %v182 = vunpack.c.l.b16 %v39
  %v183 = vunpack.c.l.b16 %v40
  %v184 = vunpack.c.l.b16 %v41
  %v185 = vunpack.c.l.b16 %v42
  %v186 = vunpack.c.l.b16 %v43
  %v187 = vunpack.c.l.b16 %v44
  %v188 = vunpack.c.l.b16 %v45
  %v189 = vunpack.c.l.b16 %v46
  %v190 = vunpack.c.l.b16 %v47
  %v191 = vunpack.c.l.b16 %v48
  %v192 = vunpack.c.l.b16 %v49
  %v193 = vunpack.c.l.b16 %v50
  %v194 = vunpack.c.l.b16 %v51
  %v195 = vunpack.c.l.b16 %v52
  %v196 = vunpack.c.l.b16 %v53
  %v197 = vunpack.c.l.b16 %v54
  %v198 = vunpack.c.l.b16 %v55
  %v199 = vunpack.c.l.b16 %v56
  %v200 = vunpack.c.l.b16 %v57
  %v201 = vunpack.c.l.b16 %v58
  %v202 = vunpack.c.l.b16 %v59
  %v203 = vunpack.c.l.b16 %v60
  %v204 = vunpack.c.l.b16 %v61
  %v205 = vunpack.c.l.b16 %v62
  %v206 = vunpack.c.l.b16 %v63
  %v207 = vunpack.c.l.b16 %v64
  %v208 = vunpack.c.l.b16 %v65
  %v209 = vunpack.c.l.b16 %v66
  %v210 = vunpack.c.l.b16 %v67
  %v211 = vunpack.c.l.b16 %v68
  %v212 = vunpack.c.l.b16 %v69
  %v213 = vunpack.c.l.b16 %v70
  %v214 = vunpack.c.l.b16 %v71
  %v215 = vunpack.c.l.b16 %v72
  %v216 = vunpack.c.l.b16 %v73
  %v217 = vunpack.c.l.b16 %v74
  %v218 = vunpack.c.l.b16 %v75
  %v219 = vunpack.c.l.b16 %v76
  %v220 = vunpack.c.l.b16 %v77
  %v221 = vunpack.c.l.b16 %v78
  %v222 = vpack.c.b16 %v159, %v158
  %v223 = vpack.c.b16 %v161, %v160
  %v224 = vpack.c.b16 %v163, %v162
  %v225 = vpack.c.b16 %v165, %v164
  %v226 = vpack.c.b16 %v167, %v166
  %v227 = vpack.c.b16 %v169, %v168
  %v228 = vpack.c.b16 %v171, %v170
  %v229 = vpack.c.b16 %v173, %v172
  %v230 = vpack.c.b16 %v175, %v174
  %v231 = vpack.c.b16 %v177, %v176
  %v232 = vpack.c.b16 %v179, %v178
  %v233 = vpack.c.b16 %v181, %v180
  %v234 = vpack.c.b16 %v183, %v182
  %v235 = vpack.c.b16 %v185, %v184
  %v236 = vpack.c.b16 %v187, %v186
  %v237 = vpack.c.b16 %v189, %v188
  %v238 = vpack.c.b16 %v191, %v190
  %v239 = vpack.c.b16 %v193, %v192
  %v240 = vpack.c.b16 %v195, %v194
  %v241 = vpack.c.b16 %v197, %v196
  %v242 = vpack.c.b16 %v199, %v198
  %v243 = vpack.c.b16 %v201, %v200
  %v244 = vpack.c.b16 %v203, %v202
  %v245 = vpack.c.b16 %v205, %v204
  %v246 = vpack.c.b16 %v207, %v206
  %v247 = vpack.c.b16 %v209, %v208
  %v248 = vpack.c.b16 %v211, %v210
  %v249 = vpack.c.b16 %v213, %v212
  %v250 = vpack.c.b16 %v215, %v214
  %v251 = vpack.c.b16 %v217, %v216
  %v252 = vpack.c.b16 %v219, %v218
  %v253 = vpack.c.b16 %v221, %v220
  %v262 = vunpack.c.l.b16 %v79
  %v263 = vunpack.c.l.b16 %v80
  %v264 = vunpack.c.l.b16 %v81
  %v265 = vunpack.c.l.b16 %v82
  %v266 = vunpack.c.l.b16 %v83
  %v267 = vunpack.c.l.b16 %v84
  %v268 = vunpack.c.l.b16 %v85
  %v269 = vunpack.c.l.b16 %v86
  %v270 = vpack.c.b16 %v263, %v262
  %v271 = vpack.c.b16 %v265, %v264
  %v272 = vpack.c.b16 %v267, %v266
  %v273 = vpack.c.b16 %v269, %v268
  %vm278 = vcmask 523264
  %v280 = vsel %vm278, %v222, 0
  %v283 = vsel %vm278, %v223, 0
  %v286 = vsel %vm278, %v224, 0
  %v289 = vsel %vm278, %v225, 0
  %v292 = vsel %vm278, %v226, 0
  %v295 = vsel %vm278, %v227, 0
  %v298 = vsel %vm278, %v228, 0
  %v301 = vsel %vm278, %v229, 0
  %v304 = vsel %vm278, %v230, 0
  %v307 = vsel %vm278, %v231, 0
  %v310 = vsel %vm278, %v232, 0
  %v313 = vsel %vm278, %v233, 0
  %v316 = vsel %vm278, %v234, 0
  %v319 = vsel %vm278, %v235, 0
  %v322 = vsel %vm278, %v236, 0
  %v325 = vsel %vm278, %v237, 0
  %v328 = vsel %vm278, %v238, 0
  %v331 = vsel %vm278, %v239, 0
  %v334 = vsel %vm278, %v240, 0
  %v337 = vsel %vm278, %v241, 0
  %v340 = vsel %vm278, %v242, 0
  %v343 = vsel %vm278, %v243, 0
  %v346 = vsel %vm278, %v244, 0
  %v349 = vsel %vm278, %v245, 0
  %v352 = vsel %vm278, %v246, 0
  %v355 = vsel %vm278, %v247, 0
  %v358 = vsel %vm278, %v248, 0
  %v361 = vsel %vm278, %v249, 0
  %v364 = vsel %vm278, %v250, 0
  %v367 = vsel %vm278, %v251, 0
  %v370 = vsel %vm278, %v252, 0
  %v373 = vsel %vm278, %v253, 0
  %375 = vmatprep.subr.bf16.mxu0 0
  %376 = vmatpush1.bf16.msra.mxu0 0
  %377 = vmatprep.subr.bf16.mxu0 0
  %378 = vmatpush1.bf16.msra.mxu0 0
  %379 = vmatprep.subr.bf16.mxu0 0
  %380 = vmatpush1.bf16.msra.mxu0 0
  %381 = vmatprep.subr.bf16.mxu0 0
  %382 = vmatpush1.bf16.msra.mxu0 0
  %383 = vmatprep.subr.bf16.mxu0 0
  %384 = vmatpush1.bf16.msra.mxu0 %v273
  %385 = vmatprep.subr.bf16.mxu0 0
  %386 = vmatpush1.bf16.msra.mxu0 %v272
  %387 = vmatprep.subr.bf16.mxu0 0
  %388 = vmatpush1.bf16.msra.mxu0 %v271
  %389 = vmatprep.subr.bf16.mxu0 0
  %390 = vmatpush1.bf16.msra.mxu0 %v270
  %391 = vmatprep.subr.bf16.mxu0 0
  %392 = vmatpush2.bf16.msra.mxu0 0
  %393 = vmatprep.subr.bf16.mxu0 0
  %394 = vmatpush2.bf16.msra.mxu0 0
  %395 = vmatprep.subr.bf16.mxu0 0
  %396 = vmatpush2.bf16.msra.mxu0 0
  %397 = vmatprep.subr.bf16.mxu0 0
  %398 = vmatpush2.bf16.msra.mxu0 0
  %399 = vmatprep.subr.bf16.mxu0 0
  %400 = vmatpush2.bf16.msra.mxu0 0
  %401 = vmatprep.subr.bf16.mxu0 0
  %402 = vmatpush2.bf16.msra.mxu0 0
  %403 = vmatprep.subr.bf16.mxu0 0
  %404 = vmatpush2.bf16.msra.mxu0 0
  %405 = vmatprep.subr.bf16.mxu0 0
  %406 = vmatpush2.bf16.msra.mxu0 0
  %407 = vmatprep.mubr.bf16.mxu0 0
  %408 = vmatmul.mubr.bf16.gmra.mxu0 %v280
  %v409 = vpop.f32.mrf.mxu0
  %v410 = vadd.f32 %v92, %v409
  %v411 = vpop.f32.mrf.mxu0
  %v412 = vpop.f32.mrf.mxu0
  %v413 = vadd.f32 %v92, %v412
  %v414 = vpop.f32.mrf.mxu0
  %415 = vmatprep.mubr.bf16.mxu0 0
  %416 = vmatmul.mubr.bf16.gmra.mxu0 %v283
  %v417 = vpop.f32.mrf.mxu0
  %v418 = vadd.f32 %v92, %v417
  %v419 = vpop.f32.mrf.mxu0
  %v420 = vpop.f32.mrf.mxu0
  %v421 = vadd.f32 %v92, %v420
  %v422 = vpop.f32.mrf.mxu0
  %423 = vmatprep.mubr.bf16.mxu0 0
  %424 = vmatmul.mubr.bf16.gmra.mxu0 %v286
  %v425 = vpop.f32.mrf.mxu0
  %v426 = vadd.f32 %v92, %v425
  %v427 = vpop.f32.mrf.mxu0
  %v428 = vpop.f32.mrf.mxu0
  %v429 = vadd.f32 %v92, %v428
  %v430 = vpop.f32.mrf.mxu0
  %431 = vmatprep.mubr.bf16.mxu0 0
  %432 = vmatmul.mubr.bf16.gmra.mxu0 %v289
  %v433 = vpop.f32.mrf.mxu0
  %v434 = vadd.f32 %v92, %v433
  %v435 = vpop.f32.mrf.mxu0
  %v436 = vpop.f32.mrf.mxu0
  %v437 = vadd.f32 %v92, %v436
  %v438 = vpop.f32.mrf.mxu0
  %439 = vmatprep.mubr.bf16.mxu0 0
  %440 = vmatmul.mubr.bf16.gmra.mxu0 %v292
  %v441 = vpop.f32.mrf.mxu0
  %v442 = vadd.f32 %v92, %v441
  %v443 = vpop.f32.mrf.mxu0
  %v444 = vpop.f32.mrf.mxu0
  %v445 = vadd.f32 %v92, %v444
  %v446 = vpop.f32.mrf.mxu0
  %447 = vmatprep.mubr.bf16.mxu0 0
  %448 = vmatmul.mubr.bf16.gmra.mxu0 %v295
  %v449 = vpop.f32.mrf.mxu0
  %v450 = vadd.f32 %v92, %v449
  %v451 = vpop.f32.mrf.mxu0
  %v452 = vpop.f32.mrf.mxu0
  %v453 = vadd.f32 %v92, %v452
  %v454 = vpop.f32.mrf.mxu0
  %455 = vmatprep.mubr.bf16.mxu0 0
  %456 = vmatmul.mubr.bf16.gmra.mxu0 %v298
  %v457 = vpop.f32.mrf.mxu0
  %v458 = vadd.f32 %v92, %v457
  %v459 = vpop.f32.mrf.mxu0
  %v460 = vpop.f32.mrf.mxu0
  %v461 = vadd.f32 %v92, %v460
  %v462 = vpop.f32.mrf.mxu0
  %463 = vmatprep.mubr.bf16.mxu0 0
  %464 = vmatmul.mubr.bf16.gmra.mxu0 %v301
  %v465 = vpop.f32.mrf.mxu0
  %v466 = vadd.f32 %v92, %v465
  %v467 = vpop.f32.mrf.mxu0
  %v468 = vpop.f32.mrf.mxu0
  %v469 = vadd.f32 %v92, %v468
  %v470 = vpop.f32.mrf.mxu0
  %471 = vmatprep.mubr.bf16.mxu0 0
  %472 = vmatmul.mubr.bf16.gmra.mxu0 %v304
  %v473 = vpop.f32.mrf.mxu0
  %v474 = vadd.f32 %v92, %v473
  %v475 = vpop.f32.mrf.mxu0
  %v476 = vpop.f32.mrf.mxu0
  %v477 = vadd.f32 %v92, %v476
  %v478 = vpop.f32.mrf.mxu0
  %479 = vmatprep.mubr.bf16.mxu0 0
  %480 = vmatmul.mubr.bf16.gmra.mxu0 %v307
  %v481 = vpop.f32.mrf.mxu0
  %v482 = vadd.f32 %v92, %v481
  %v483 = vpop.f32.mrf.mxu0
  %v484 = vpop.f32.mrf.mxu0
  %v485 = vadd.f32 %v92, %v484
  %v486 = vpop.f32.mrf.mxu0
  %487 = vmatprep.mubr.bf16.mxu0 0
  %488 = vmatmul.mubr.bf16.gmra.mxu0 %v310
  %v489 = vpop.f32.mrf.mxu0
  %v490 = vadd.f32 %v92, %v489
  %v491 = vpop.f32.mrf.mxu0
  %v492 = vpop.f32.mrf.mxu0
  %v493 = vadd.f32 %v92, %v492
  %v494 = vpop.f32.mrf.mxu0
  %495 = vmatprep.mubr.bf16.mxu0 0
  %496 = vmatmul.mubr.bf16.gmra.mxu0 %v313
  %v497 = vpop.f32.mrf.mxu0
  %v498 = vadd.f32 %v92, %v497
  %v499 = vpop.f32.mrf.mxu0
  %v500 = vpop.f32.mrf.mxu0
  %v501 = vadd.f32 %v92, %v500
  %v502 = vpop.f32.mrf.mxu0
  %503 = vmatprep.mubr.bf16.mxu0 0
  %504 = vmatmul.mubr.bf16.gmra.mxu0 %v316
  %v505 = vpop.f32.mrf.mxu0
  %v506 = vadd.f32 %v92, %v505
  %v507 = vpop.f32.mrf.mxu0
  %v508 = vpop.f32.mrf.mxu0
  %v509 = vadd.f32 %v92, %v508
  %v510 = vpop.f32.mrf.mxu0
  %511 = vmatprep.mubr.bf16.mxu0 0
  %512 = vmatmul.mubr.bf16.gmra.mxu0 %v319
  %v513 = vpop.f32.mrf.mxu0
  %v514 = vadd.f32 %v92, %v513
  %v515 = vpop.f32.mrf.mxu0
  %v516 = vpop.f32.mrf.mxu0
  %v517 = vadd.f32 %v92, %v516
  %v518 = vpop.f32.mrf.mxu0
  %519 = vmatprep.mubr.bf16.mxu0 0
  %520 = vmatmul.mubr.bf16.gmra.mxu0 %v322
  %v521 = vpop.f32.mrf.mxu0
  %v522 = vadd.f32 %v92, %v521
  %v523 = vpop.f32.mrf.mxu0
  %v524 = vpop.f32.mrf.mxu0
  %v525 = vadd.f32 %v92, %v524
  %v526 = vpop.f32.mrf.mxu0
  %527 = vmatprep.mubr.bf16.mxu0 0
  %528 = vmatmul.mubr.bf16.gmra.mxu0 %v325
  %v529 = vpop.f32.mrf.mxu0
  %v530 = vadd.f32 %v92, %v529
  %v531 = vpop.f32.mrf.mxu0
  %v532 = vpop.f32.mrf.mxu0
  %v533 = vadd.f32 %v92, %v532
  %v534 = vpop.f32.mrf.mxu0
  %535 = vmatprep.mubr.bf16.mxu0 0
  %536 = vmatmul.mubr.bf16.gmra.mxu0 %v328
  %v537 = vpop.f32.mrf.mxu0
  %v538 = vadd.f32 %v92, %v537
  %v539 = vpop.f32.mrf.mxu0
  %v540 = vpop.f32.mrf.mxu0
  %v541 = vadd.f32 %v92, %v540
  %v542 = vpop.f32.mrf.mxu0
  %543 = vmatprep.mubr.bf16.mxu0 0
  %544 = vmatmul.mubr.bf16.gmra.mxu0 %v331
  %v545 = vpop.f32.mrf.mxu0
  %v546 = vadd.f32 %v92, %v545
  %v547 = vpop.f32.mrf.mxu0
  %v548 = vpop.f32.mrf.mxu0
  %v549 = vadd.f32 %v92, %v548
  %v550 = vpop.f32.mrf.mxu0
  %551 = vmatprep.mubr.bf16.mxu0 0
  %552 = vmatmul.mubr.bf16.gmra.mxu0 %v334
  %v553 = vpop.f32.mrf.mxu0
  %v554 = vadd.f32 %v92, %v553
  %v555 = vpop.f32.mrf.mxu0
  %v556 = vpop.f32.mrf.mxu0
  %v557 = vadd.f32 %v92, %v556
  %v558 = vpop.f32.mrf.mxu0
  %559 = vmatprep.mubr.bf16.mxu0 0
  %560 = vmatmul.mubr.bf16.gmra.mxu0 %v337
  %v561 = vpop.f32.mrf.mxu0
  %v562 = vadd.f32 %v92, %v561
  %v563 = vpop.f32.mrf.mxu0
  %v564 = vpop.f32.mrf.mxu0
  %v565 = vadd.f32 %v92, %v564
  %v566 = vpop.f32.mrf.mxu0
  %567 = vmatprep.mubr.bf16.mxu0 0
  %568 = vmatmul.mubr.bf16.gmra.mxu0 %v340
  %v569 = vpop.f32.mrf.mxu0
  %v570 = vadd.f32 %v92, %v569
  %v571 = vpop.f32.mrf.mxu0
  %v572 = vpop.f32.mrf.mxu0
  %v573 = vadd.f32 %v92, %v572
  %v574 = vpop.f32.mrf.mxu0
  %575 = vmatprep.mubr.bf16.mxu0 0
  %576 = vmatmul.mubr.bf16.gmra.mxu0 %v343
  %v577 = vpop.f32.mrf.mxu0
  %v578 = vadd.f32 %v92, %v577
  %v579 = vpop.f32.mrf.mxu0
  %v580 = vpop.f32.mrf.mxu0
  %v581 = vadd.f32 %v92, %v580
  %v582 = vpop.f32.mrf.mxu0
  %583 = vmatprep.mubr.bf16.mxu0 0
  %584 = vmatmul.mubr.bf16.gmra.mxu0 %v346
  %v585 = vpop.f32.mrf.mxu0
  %v586 = vadd.f32 %v92, %v585
  %v587 = vpop.f32.mrf.mxu0
  %v588 = vpop.f32.mrf.mxu0
  %v589 = vadd.f32 %v92, %v588
  %v590 = vpop.f32.mrf.mxu0
  %591 = vmatprep.mubr.bf16.mxu0 0
  %592 = vmatmul.mubr.bf16.gmra.mxu0 %v349
  %v593 = vpop.f32.mrf.mxu0
  %v594 = vadd.f32 %v92, %v593
  %v595 = vpop.f32.mrf.mxu0
  %v596 = vpop.f32.mrf.mxu0
  %v597 = vadd.f32 %v92, %v596
  %v598 = vpop.f32.mrf.mxu0
  %599 = vmatprep.mubr.bf16.mxu0 0
  %600 = vmatmul.mubr.bf16.gmra.mxu0 %v352
  %v601 = vpop.f32.mrf.mxu0
  %v602 = vadd.f32 %v92, %v601
  %v603 = vpop.f32.mrf.mxu0
  %v604 = vpop.f32.mrf.mxu0
  %v605 = vadd.f32 %v92, %v604
  %v606 = vpop.f32.mrf.mxu0
  %607 = vmatprep.mubr.bf16.mxu0 0
  %608 = vmatmul.mubr.bf16.gmra.mxu0 %v355
  %v609 = vpop.f32.mrf.mxu0
  %v610 = vadd.f32 %v92, %v609
  %v611 = vpop.f32.mrf.mxu0
  %v612 = vpop.f32.mrf.mxu0
  %v613 = vadd.f32 %v92, %v612
  %v614 = vpop.f32.mrf.mxu0
  %615 = vmatprep.mubr.bf16.mxu0 0
  %616 = vmatmul.mubr.bf16.gmra.mxu0 %v358
  %v617 = vpop.f32.mrf.mxu0
  %v618 = vadd.f32 %v92, %v617
  %v619 = vpop.f32.mrf.mxu0
  %v620 = vpop.f32.mrf.mxu0
  %v621 = vadd.f32 %v92, %v620
  %v622 = vpop.f32.mrf.mxu0
  %623 = vmatprep.mubr.bf16.mxu0 0
  %624 = vmatmul.mubr.bf16.gmra.mxu0 %v361
  %v625 = vpop.f32.mrf.mxu0
  %v626 = vadd.f32 %v92, %v625
  %v627 = vpop.f32.mrf.mxu0
  %v628 = vpop.f32.mrf.mxu0
  %v629 = vadd.f32 %v92, %v628
  %v630 = vpop.f32.mrf.mxu0
  %631 = vmatprep.mubr.bf16.mxu0 0
  %632 = vmatmul.mubr.bf16.gmra.mxu0 %v364
  %v633 = vpop.f32.mrf.mxu0
  %v634 = vadd.f32 %v92, %v633
  %v635 = vpop.f32.mrf.mxu0
  %v636 = vpop.f32.mrf.mxu0
  %v637 = vadd.f32 %v92, %v636
  %v638 = vpop.f32.mrf.mxu0
  %639 = vmatprep.mubr.bf16.mxu0 0
  %640 = vmatmul.mubr.bf16.gmra.mxu0 %v367
  %v641 = vpop.f32.mrf.mxu0
  %v642 = vadd.f32 %v92, %v641
  %v643 = vpop.f32.mrf.mxu0
  %v644 = vpop.f32.mrf.mxu0
  %v645 = vadd.f32 %v92, %v644
  %v646 = vpop.f32.mrf.mxu0
  %647 = vmatprep.mubr.bf16.mxu0 0
  %648 = vmatmul.mubr.bf16.gmra.mxu0 %v370
  %v649 = vpop.f32.mrf.mxu0
  %v650 = vadd.f32 %v92, %v649
  %v651 = vpop.f32.mrf.mxu0
  %v652 = vpop.f32.mrf.mxu0
  %v653 = vadd.f32 %v92, %v652
  %v654 = vpop.f32.mrf.mxu0
  %655 = vmatprep.mubr.bf16.mxu0 0
  %656 = vmatmul.mubr.bf16.gmra.mxu0 %v373
  %v657 = vpop.f32.mrf.mxu0
  %v658 = vadd.f32 %v92, %v657
  %v659 = vpop.f32.mrf.mxu0
  %v660 = vpop.f32.mrf.mxu0
  %v661 = vadd.f32 %v92, %v660
  %v662 = vpop.f32.mrf.mxu0
  %663 = vdwg.mxu0
  %v664 = vmax.f32 %v410, 0.0
  %v665 = vmax.f32 %v413, 0.0
  %v666 = vmax.f32 %v418, 0.0
  %v667 = vmax.f32 %v421, 0.0
  %v668 = vmax.f32 %v426, 0.0
  %v669 = vmax.f32 %v429, 0.0
  %v670 = vmax.f32 %v434, 0.0
  %v671 = vmax.f32 %v437, 0.0
  %v672 = vmax.f32 %v442, 0.0
  %v673 = vmax.f32 %v445, 0.0
  %v674 = vmax.f32 %v450, 0.0
  %v675 = vmax.f32 %v453, 0.0
  %v676 = vmax.f32 %v458, 0.0
  %v677 = vmax.f32 %v461, 0.0
  %v678 = vmax.f32 %v466, 0.0
  %v679 = vmax.f32 %v469, 0.0
  %v680 = vmax.f32 %v474, 0.0
  %v681 = vmax.f32 %v477, 0.0
  %v682 = vmax.f32 %v482, 0.0
  %v683 = vmax.f32 %v485, 0.0
  %v684 = vmax.f32 %v490, 0.0
  %v685 = vmax.f32 %v493, 0.0
  %v686 = vmax.f32 %v498, 0.0
  %v687 = vmax.f32 %v501, 0.0
  %v688 = vmax.f32 %v506, 0.0
  %v689 = vmax.f32 %v509, 0.0
  %v690 = vmax.f32 %v514, 0.0
  %v691 = vmax.f32 %v517, 0.0
  %v692 = vmax.f32 %v522, 0.0
  %v693 = vmax.f32 %v525, 0.0
  %v694 = vmax.f32 %v530, 0.0
  %v695 = vmax.f32 %v533, 0.0
  %v696 = vmax.f32 %v538, 0.0
  %v697 = vmax.f32 %v541, 0.0
  %v698 = vmax.f32 %v546, 0.0
  %v699 = vmax.f32 %v549, 0.0
  %v700 = vmax.f32 %v554, 0.0
  %v701 = vmax.f32 %v557, 0.0
  %v702 = vmax.f32 %v562, 0.0
  %v703 = vmax.f32 %v565, 0.0
  %v704 = vmax.f32 %v570, 0.0
  %v705 = vmax.f32 %v573, 0.0
  %v706 = vmax.f32 %v578, 0.0
  %v707 = vmax.f32 %v581, 0.0
  %v708 = vmax.f32 %v586, 0.0
  %v709 = vmax.f32 %v589, 0.0
  %v710 = vmax.f32 %v594, 0.0
  %v711 = vmax.f32 %v597, 0.0
  %v712 = vmax.f32 %v602, 0.0
  %v713 = vmax.f32 %v605, 0.0
  %v714 = vmax.f32 %v610, 0.0
  %v715 = vmax.f32 %v613, 0.0
  %v716 = vmax.f32 %v618, 0.0
  %v717 = vmax.f32 %v621, 0.0
  %v718 = vmax.f32 %v626, 0.0
  %v719 = vmax.f32 %v629, 0.0
  %v720 = vmax.f32 %v634, 0.0
  %v721 = vmax.f32 %v637, 0.0
  %v722 = vmax.f32 %v642, 0.0
  %v723 = vmax.f32 %v645, 0.0
  %v724 = vmax.f32 %v650, 0.0
  %v725 = vmax.f32 %v653, 0.0
  %v726 = vmax.f32 %v658, 0.0
  %v727 = vmax.f32 %v661, 0.0
  %728 = vst [vmem:[%s3] sm:$0xff] %v664
  %729 = vst [vmem:[%s3 + $0x8] sm:$0xff] %v665
  %730 = vst [vmem:[%s3 + $0x10] sm:$0xff] %v666
  %731 = vst [vmem:[%s3 + $0x18] sm:$0xff] %v667
  %732 = vst [vmem:[%s3 + $0x20] sm:$0xff] %v668
  %733 = vst [vmem:[%s3 + $0x28] sm:$0xff] %v669
  %734 = vst [vmem:[%s3 + $0x30] sm:$0xff] %v670
  %735 = vst [vmem:[%s3 + $0x38] sm:$0xff] %v671
  %736 = vst [vmem:[%s3 + $0x40] sm:$0xff] %v672
  %737 = vst [vmem:[%s3 + $0x48] sm:$0xff] %v673
  %738 = vst [vmem:[%s3 + $0x50] sm:$0xff] %v674
  %739 = vst [vmem:[%s3 + $0x58] sm:$0xff] %v675
  %740 = vst [vmem:[%s3 + $0x60] sm:$0xff] %v676
  %741 = vst [vmem:[%s3 + $0x68] sm:$0xff] %v677
  %742 = vst [vmem:[%s3 + $0x70] sm:$0xff] %v678
  %743 = vst [vmem:[%s3 + $0x78] sm:$0xff] %v679
  %744 = vst [vmem:[%s3 + $0x80] sm:$0xff] %v680
  %745 = vst [vmem:[%s3 + $0x88] sm:$0xff] %v681
  %746 = vst [vmem:[%s3 + $0x90] sm:$0xff] %v682
  %747 = vst [vmem:[%s3 + $0x98] sm:$0xff] %v683
  %748 = vst [vmem:[%s3 + $0xa0] sm:$0xff] %v684
  %749 = vst [vmem:[%s3 + $0xa8] sm:$0xff] %v685
  %750 = vst [vmem:[%s3 + $0xb0] sm:$0xff] %v686
  %751 = vst [vmem:[%s3 + $0xb8] sm:$0xff] %v687
  %752 = vst [vmem:[%s3 + $0xc0] sm:$0xff] %v688
  %753 = vst [vmem:[%s3 + $0xc8] sm:$0xff] %v689
  %754 = vst [vmem:[%s3 + $0xd0] sm:$0xff] %v690
  %755 = vst [vmem:[%s3 + $0xd8] sm:$0xff] %v691
  %756 = vst [vmem:[%s3 + $0xe0] sm:$0xff] %v692
  %757 = vst [vmem:[%s3 + $0xe8] sm:$0xff] %v693
  %758 = vst [vmem:[%s3 + $0xf0] sm:$0xff] %v694
  %759 = vst [vmem:[%s3 + $0xf8] sm:$0xff] %v695
  %760 = vst [vmem:[%s3 + $0x100] sm:$0xff] %v696
  %761 = vst [vmem:[%s3 + $0x108] sm:$0xff] %v697
  %762 = vst [vmem:[%s3 + $0x110] sm:$0xff] %v698
  %763 = vst [vmem:[%s3 + $0x118] sm:$0xff] %v699
  %764 = vst [vmem:[%s3 + $0x120] sm:$0xff] %v700
  %765 = vst [vmem:[%s3 + $0x128] sm:$0xff] %v701
  %766 = vst [vmem:[%s3 + $0x130] sm:$0xff] %v702
  %767 = vst [vmem:[%s3 + $0x138] sm:$0xff] %v703
  %768 = vst [vmem:[%s3 + $0x140] sm:$0xff] %v704
  %769 = vst [vmem:[%s3 + $0x148] sm:$0xff] %v705
  %770 = vst [vmem:[%s3 + $0x150] sm:$0xff] %v706
  %771 = vst [vmem:[%s3 + $0x158] sm:$0xff] %v707
  %772 = vst [vmem:[%s3 + $0x160] sm:$0xff] %v708
  %773 = vst [vmem:[%s3 + $0x168] sm:$0xff] %v709
  %774 = vst [vmem:[%s3 + $0x170] sm:$0xff] %v710
  %775 = vst [vmem:[%s3 + $0x178] sm:$0xff] %v711
  %776 = vst [vmem:[%s3 + $0x180] sm:$0xff] %v712
  %777 = vst [vmem:[%s3 + $0x188] sm:$0xff] %v713
  %778 = vst [vmem:[%s3 + $0x190] sm:$0xff] %v714
  %779 = vst [vmem:[%s3 + $0x198] sm:$0xff] %v715
  %780 = vst [vmem:[%s3 + $0x1a0] sm:$0xff] %v716
  %781 = vst [vmem:[%s3 + $0x1a8] sm:$0xff] %v717
  %782 = vst [vmem:[%s3 + $0x1b0] sm:$0xff] %v718
  %783 = vst [vmem:[%s3 + $0x1b8] sm:$0xff] %v719
  %784 = vst [vmem:[%s3 + $0x1c0] sm:$0xff] %v720
  %785 = vst [vmem:[%s3 + $0x1c8] sm:$0xff] %v721
  %786 = vst [vmem:[%s3 + $0x1d0] sm:$0xff] %v722
  %787 = vst [vmem:[%s3 + $0x1d8] sm:$0xff] %v723
  %788 = vst [vmem:[%s3 + $0x1e0] sm:$0xff] %v724
  %789 = vst [vmem:[%s3 + $0x1e8] sm:$0xff] %v725
  %790 = vst [vmem:[%s3 + $0x1f0] sm:$0xff] %v726
  %791 = vst [vmem:[%s3 + $0x1f8] sm:$0xff] %v727
  // Predicated region
  $region14: #{decoder_forward.5} parent=0 // pred_check
    _
  $region15: #{decoder_forward.5} parent=0 // pred_check_branch
    %793 = sbr.rel (0) target = $region17
  $region16: #{decoder_forward.5} parent=0 // pred_region
    _
  $region17: #{decoder_forward.5} parent=0 // pred_fallthru
    _
  // Predicated region
  $region18: #{decoder_forward.5} parent=0 // pred_check
    _
  $region19: #{decoder_forward.5} parent=0 // pred_check_branch
    %795 = sbr.rel (0) target = $region21
  $region20: #{decoder_forward.5} parent=0 // pred_region
    _
  $region21: #{decoder_forward.5} parent=0 // pred_fallthru
    _

// kernel: decoder_forward.9
$region0: #{decoder_forward.9}
  #allocation0 [shape = 'u32[]', space=smem, size = 0x4, offset = 0x4, fixed_abs, tag = 'smem constant byte address 0x4 - core index']
  #allocation1 [shape = 'u32[144,128]{1,0:T(1,128)}', space=vmem, size = 0x12000, scoped, tag = 'internal scratch']
  #allocation2 [shape = 'f32[256,256]{1,0:T(8,128)}', space=vmem, size = 0x40000, scoped, tag = 'scratch operand']
  %s0 = inlined_call_operand.vmem [shape: bf16[2,288,1152], index: 0, kind: input, shape index: {}]
  %s1 = inlined_call_operand.vmem [shape: bf16[3,1152,256], index: 1, kind: input, shape index: {}]
  %s2 = inlined_call_operand.vmem [shape: f32[1,256], index: 2, kind: input, shape index: {}]
  %s3 = inlined_call_operand.vmem [shape: bf16[256,128], index: 3, kind: input, shape index: {}]
  %s4 = inlined_call_operand.vmem [shape: f32[1,128], index: 4, kind: input, shape index: {}]
  %s5 = inlined_call_operand.vmem [shape: f32[2,256,128], index: 5, kind: output, shape index: {}]
  %s6 = sld [smem:[#allocation0]]
  $region53: #{decoder_forward.9} parent=0
    _
  %s8 = ssub.s32 1, %s6
  %s9 = scalar_select 0, %s8, %s6
  loop: start=0, step=1, limit=4
  $region2: #{decoder_forward.9} parent=0 // loop_pre_header
    _
  $region3: #{decoder_forward.9} parent=0 // loop_header
    %s11 = sphi 0, %s15
    %p12 = scmp.ge.s32.totalorder %s11, 4
    %s21 = sphi 0, %s23
    %s24 = sphi 0, %s21
    %s25 = sphi 0, %s24
    %s41 = sphi 0, %s25
    %s45 = sphi 0, %s45
    %s47 = sphi 0, %s45
    %s48 = sphi 0, %s47
    %s62 = sphi 0, %s48
    %s66 = sphi 0, %s66
    %s68 = sphi 0, %s66
    %s69 = sphi 0, %s68
    %s83 = sphi 0, %s69
    %s87 = sphi 0, %s87
    %s89 = sphi 0, %s87
    %s90 = sphi 0, %s89
    %s104 = sphi 0, %s90
    %s108 = sphi 0, %s108
    %s110 = sphi 0, %s108
    %s111 = sphi 0, %s110
    %s125 = sphi 0, %s111
    %s131 = sphi 0, %s133
    %s134 = sphi 0, %s131
    %s135 = sphi 0, %s134
    %s151 = sphi 0, %s135
  $region4: #{decoder_forward.9} parent=0 // loop_header_branch
    %14 = sbr.rel (%p12) target = $region8
  $region5: #{decoder_forward.9} parent=0 // loop_body
    %s16 = ssub.s32 %s11, 1
    %s17 = ssub.s32 %s11, 2
    %s18 = sadd.s32 %s11, 1
    %s19 = ssub.s32 %s11, %s18
    %p20 = scmp.eq.s32.totalorder %s19, 0
    %s22 = sadd.s32 %s21, 1
    %s23 = scalar_select %p20, %s21, %s22
    %p26 = pneg %p20
    %p27 = scmp.eq.s32.totalorder %s11, 1
    %p28 = por %p26, %p27
    %p29 = scmp.ne.s32.totalorder %s21, %s24
    %p30 = scmp.eq.s32.totalorder %s11, 0
    %p31 = por %p29, %p30
    %p32 = scmp.ne.s32.totalorder %s21, %s24
    %p33 = scmp.eq.s32.totalorder %s16, 1
    %p34 = por %p32, %p33
    %p35 = scmp.ne.s32.totalorder %s24, %s25
    %p36 = scmp.eq.s32.totalorder %s16, 0
    %p37 = por %p35, %p36
    %p38 = scmp.ne.s32.totalorder %s24, %s25
    %p39 = scmp.eq.s32.totalorder %s17, 1
    %p40 = por %p38, %p39
    %p42 = scmp.ne.s32.totalorder %s25, %s41
    %p43 = scmp.eq.s32.totalorder %s17, 0
    %p44 = por %p42, %p43
    %s46 = sadd.s32 %s45, 1
    %p49 = scmp.eq.s32.totalorder %s11, 1
    %p50 = scmp.ne.s32.totalorder %s45, %s47
    %p51 = scmp.eq.s32.totalorder %s11, 0
    %p52 = por %p50, %p51
    %p53 = scmp.ne.s32.totalorder %s45, %s47
    %p54 = scmp.eq.s32.totalorder %s16, 1
    %p55 = por %p53, %p54
    %p56 = scmp.ne.s32.totalorder %s47, %s48
    %p57 = scmp.eq.s32.totalorder %s16, 0
    %p58 = por %p56, %p57
    %p59 = scmp.ne.s32.totalorder %s47, %s48
    %p60 = scmp.eq.s32.totalorder %s17, 1
    %p61 = por %p59, %p60
    %p63 = scmp.ne.s32.totalorder %s48, %s62
    %p64 = scmp.eq.s32.totalorder %s17, 0
    %p65 = por %p63, %p64
    %s67 = sadd.s32 %s66, 1
    %p70 = scmp.eq.s32.totalorder %s11, 1
    %p71 = scmp.ne.s32.totalorder %s66, %s68
    %p72 = scmp.eq.s32.totalorder %s11, 0
    %p73 = por %p71, %p72
    %p74 = scmp.ne.s32.totalorder %s66, %s68
    %p75 = scmp.eq.s32.totalorder %s16, 1
    %p76 = por %p74, %p75
    %p77 = scmp.ne.s32.totalorder %s68, %s69
    %p78 = scmp.eq.s32.totalorder %s16, 0
    %p79 = por %p77, %p78
    %p80 = scmp.ne.s32.totalorder %s68, %s69
    %p81 = scmp.eq.s32.totalorder %s17, 1
    %p82 = por %p80, %p81
    %p84 = scmp.ne.s32.totalorder %s69, %s83
    %p85 = scmp.eq.s32.totalorder %s17, 0
    %p86 = por %p84, %p85
    %s88 = sadd.s32 %s87, 1
    %p91 = scmp.eq.s32.totalorder %s11, 1
    %p92 = scmp.ne.s32.totalorder %s87, %s89
    %p93 = scmp.eq.s32.totalorder %s11, 0
    %p94 = por %p92, %p93
    %p95 = scmp.ne.s32.totalorder %s87, %s89
    %p96 = scmp.eq.s32.totalorder %s16, 1
    %p97 = por %p95, %p96
    %p98 = scmp.ne.s32.totalorder %s89, %s90
    %p99 = scmp.eq.s32.totalorder %s16, 0
    %p100 = por %p98, %p99
    %p101 = scmp.ne.s32.totalorder %s89, %s90
    %p102 = scmp.eq.s32.totalorder %s17, 1
    %p103 = por %p101, %p102
    %p105 = scmp.ne.s32.totalorder %s90, %s104
    %p106 = scmp.eq.s32.totalorder %s17, 0
    %p107 = por %p105, %p106
    %s109 = sadd.s32 %s108, 1
    %p112 = scmp.eq.s32.totalorder %s11, 1
    %p113 = scmp.ne.s32.totalorder %s108, %s110
    %p114 = scmp.eq.s32.totalorder %s11, 0
    %p115 = por %p113, %p114
    %p116 = scmp.ne.s32.totalorder %s108, %s110
    %p117 = scmp.eq.s32.totalorder %s16, 1
    %p118 = por %p116, %p117
    %p119 = scmp.ne.s32.totalorder %s110, %s111
    %p120 = scmp.eq.s32.totalorder %s16, 0
    %p121 = por %p119, %p120
    %p122 = scmp.ne.s32.totalorder %s110, %s111
    %p123 = scmp.eq.s32.totalorder %s17, 1
    %p124 = por %p122, %p123
    %p126 = scmp.ne.s32.totalorder %s111, %s125
    %p127 = scmp.eq.s32.totalorder %s17, 0
    %p128 = por %p126, %p127
    %s129 = ssub.s32 %s11, %s18
    %p130 = scmp.eq.s32.totalorder %s129, 0
    %s132 = sadd.s32 %s131, 1
    %s133 = scalar_select %p130, %s131, %s132
    %p136 = pneg %p130
    %p137 = scmp.eq.s32.totalorder %s11, 1
    %p138 = por %p136, %p137
    %p139 = scmp.ne.s32.totalorder %s131, %s134
    %p140 = scmp.eq.s32.totalorder %s11, 0
    %p141 = por %p139, %p140
    %p142 = scmp.ne.s32.totalorder %s131, %s134
    %p143 = scmp.eq.s32.totalorder %s16, 1
    %p144 = por %p142, %p143
    %p145 = scmp.ne.s32.totalorder %s134, %s135
    %p146 = scmp.eq.s32.totalorder %s16, 0
    %p147 = por %p145, %p146
    %p148 = scmp.ne.s32.totalorder %s134, %s135
    %p149 = scmp.eq.s32.totalorder %s17, 1
    %p150 = por %p148, %p149
    %p152 = scmp.ne.s32.totalorder %s135, %s151
    %p153 = scmp.eq.s32.totalorder %s17, 0
    %p154 = por %p152, %p153
    %p155 = scmp.le.s32.totalorder 1, %s11
    %p156 = scmp.lt.s32.totalorder %s11, 3
    %p157 = pnand %p155, %p156
    %p158 = pneg %p157
    // Predicated region
    $region9: #{decoder_forward.9} parent=5 // pred_check
      _
    $region10: #{decoder_forward.9} parent=5 // pred_check_branch
      %160 = sbr.rel (%p157) target = $region12
    $region11: #{decoder_forward.9} parent=5 // pred_region
      %s161 = ssub.s32 %s11, 1
      // Predicated region
      $region13: #{decoder_forward.9} parent=11 // pred_check
        %p162 = pneg %p58
      $region14: #{decoder_forward.9} parent=11 // pred_check_branch
        %164 = sbr.rel (%p162) target = $region16
      $region15: #{decoder_forward.9} parent=11 // pred_region
        _
      $region16: #{decoder_forward.9} parent=11 // pred_fallthru
        _
      // Predicated region
      $region17: #{decoder_forward.9} parent=11 // pred_check
        %p165 = pneg %p79
      $region18: #{decoder_forward.9} parent=11 // pred_check_branch
        %167 = sbr.rel (%p165) target = $region20
      $region19: #{decoder_forward.9} parent=11 // pred_region
        _
      $region20: #{decoder_forward.9} parent=11 // pred_fallthru
        _
      // Predicated region
      $region21: #{decoder_forward.9} parent=11 // pred_check
        %p168 = pneg %p100
      $region22: #{decoder_forward.9} parent=11 // pred_check_branch
        %170 = sbr.rel (%p168) target = $region24
      $region23: #{decoder_forward.9} parent=11 // pred_region
        _
      $region24: #{decoder_forward.9} parent=11 // pred_fallthru
        _
      // Predicated region
      $region25: #{decoder_forward.9} parent=11 // pred_check
        %p171 = pneg %p121
      $region26: #{decoder_forward.9} parent=11 // pred_check_branch
        %173 = sbr.rel (%p171) target = $region28
      $region27: #{decoder_forward.9} parent=11 // pred_region
        _
      $region28: #{decoder_forward.9} parent=11 // pred_fallthru
        _
    $region12: #{decoder_forward.9} parent=5 // pred_fallthru
      _
    %p174 = scmp.lt.s32.totalorder %s11, 2
    // Predicated region
    $region29: #{decoder_forward.9} parent=5 // pred_check
      %p175 = pneg %p174
    $region30: #{decoder_forward.9} parent=5 // pred_check_branch
      %177 = sbr.rel (%p175) target = $region32
    $region31: #{decoder_forward.9} parent=5 // pred_region
      // Predicated region
      $region33: #{decoder_forward.9} parent=31 // pred_check
        %p178 = pneg %p31
      $region34: #{decoder_forward.9} parent=31 // pred_check_branch
        %180 = sbr.rel (%p178) target = $region36
      $region35: #{decoder_forward.9} parent=31 // pred_region
        %p181 = scmp.lt.s32.totalorder %s11, 1
        %s182 = scalar_select %p181, %s11, 1
        %s183 = smul.addr %s182, 324
        %s184 = smul.addr %s183, 4
        %s185 = scalar_lea.vmem %s0, %s184
      $region36: #{decoder_forward.9} parent=31 // pred_fallthru
        _
    $region32: #{decoder_forward.9} parent=5 // pred_fallthru
      _
    %p186 = scmp.le.s32.totalorder 1, %s11
    %p187 = scmp.lt.s32.totalorder %s11, 3
    %p188 = pnand %p186, %p187
    %p189 = pneg %p188
    // Predicated region
    $region37: #{decoder_forward.9} parent=5 // pred_check
      _
    $region38: #{decoder_forward.9} parent=5 // pred_check_branch
      %191 = sbr.rel (%p188) target = $region40
    $region39: #{decoder_forward.9} parent=5 // pred_region
      %s192 = ssub.s32 %s11, 1
      %p193 = scmp.lt.s32.totalorder %s16, 1
      %s194 = scalar_select %p193, %s16, 1
      %s195 = smul.addr %s194, 324
      %s196 = smul.addr %s195, 4
      %s197 = scalar_lea.vmem %s0, %s196
      %p198 = pneg %p37
      %p199 = pneg %p34
      %p200 = pneg %p58
      %p201 = pneg %p55
      %p202 = pneg %p79
      %p203 = pneg %p76
      %p204 = pneg %p100
      %p205 = pneg %p97
      %p206 = pneg %p121
      %p207 = pneg %p118
      %p208 = pneg %p147
      %p209 = pneg %p144
      %p210 = scmp.lt.s32.totalorder %s16, 1
      %s211 = scalar_select %p210, %s16, 1
      %s212 = smul.addr %s211, 32
      %s213 = smul.addr %s212, 8
      %s214 = scalar_lea.vmem %s5, %s213
      %p215 = scmp.lt.s32.totalorder %s16, 1
      %s216 = scalar_select %p215, %s16, 1
      %s217 = smul.addr %s216, 324
      %s218 = smul.addr %s217, 4
      %s219 = scalar_lea.vmem %s0, %s218
      %p220 = scmp.lt.s32.totalorder %s16, 1
      %s221 = scalar_select %p220, %s16, 1
      %s222 = smul.addr %s221, 32
      %s223 = smul.addr %s222, 8
      %s224 = scalar_lea.vmem %s5, %s223
      %v226 = vld [vmem:[%s219] sm:$0xff]
      %v227 = vld [vmem:[%s219 + $0x8] sm:$0xff]
      %v228 = vld [vmem:[%s219 + $0x10] sm:$0xff]
      %v229 = vld [vmem:[%s219 + $0x18] sm:$0xff]
      %v230 = vld [vmem:[%s219 + $0x20] sm:$0xf]
      %v231 = vld [vmem:[%s219 + $0x24] sm:$0xff]
      %v232 = vld [vmem:[%s219 + $0x2c] sm:$0xff]
      %v233 = vld [vmem:[%s219 + $0x34] sm:$0xff]
      %v234 = vld [vmem:[%s219 + $0x3c] sm:$0xff]
      %v235 = vld [vmem:[%s219 + $0x44] sm:$0xf]
      %v236 = vld [vmem:[%s219 + $0x48] sm:$0xff]
      %v237 = vld [vmem:[%s219 + $0x50] sm:$0xff]
      %v238 = vld [vmem:[%s219 + $0x58] sm:$0xff]
      %v239 = vld [vmem:[%s219 + $0x60] sm:$0xff]
      %v240 = vld [vmem:[%s219 + $0x68] sm:$0xf]
      %v241 = vld [vmem:[%s219 + $0x6c] sm:$0xff]
      %v242 = vld [vmem:[%s219 + $0x74] sm:$0xff]
      %v243 = vld [vmem:[%s219 + $0x7c] sm:$0xff]
      %v244 = vld [vmem:[%s219 + $0x84] sm:$0xff]
      %v245 = vld [vmem:[%s219 + $0x8c] sm:$0xf]
      %v246 = vld [vmem:[%s219 + $0x90] sm:$0xff]
      %v247 = vld [vmem:[%s219 + $0x98] sm:$0xff]
      %v248 = vld [vmem:[%s219 + $0xa0] sm:$0xff]
      %v249 = vld [vmem:[%s219 + $0xa8] sm:$0xff]
      %v250 = vld [vmem:[%s219 + $0xb0] sm:$0xf]
      %v251 = vld [vmem:[%s219 + $0xb4] sm:$0xff]
      %v252 = vld [vmem:[%s219 + $0xbc] sm:$0xff]
      %v253 = vld [vmem:[%s219 + $0xc4] sm:$0xff]
      %v254 = vld [vmem:[%s219 + $0xcc] sm:$0xff]
      %v255 = vld [vmem:[%s219 + $0xd4] sm:$0xf]
      %v256 = vld [vmem:[%s219 + $0xd8] sm:$0xff]
      %v257 = vld [vmem:[%s219 + $0xe0] sm:$0xff]
      %v258 = vld [vmem:[%s219 + $0xe8] sm:$0xff]
      %v259 = vld [vmem:[%s219 + $0xf0] sm:$0xff]
      %v260 = vld [vmem:[%s219 + $0xf8] sm:$0xf]
      %v261 = vld [vmem:[%s219 + $0xfc] sm:$0xff]
      %v262 = vld [vmem:[%s219 + $0x104] sm:$0xff]
      %v263 = vld [vmem:[%s219 + $0x10c] sm:$0xff]
      %v264 = vld [vmem:[%s219 + $0x114] sm:$0xff]
      %v265 = vld [vmem:[%s219 + $0x11c] sm:$0xf]
      %v266 = vld [vmem:[%s219 + $0x120] sm:$0xff]
      %v267 = vld [vmem:[%s219 + $0x128] sm:$0xff]
      %v268 = vld [vmem:[%s219 + $0x130] sm:$0xff]
      %v269 = vld [vmem:[%s219 + $0x138] sm:$0xff]
      %v270 = vld [vmem:[%s219 + $0x140] sm:$0xf]
      %v271 = vld [vmem:[%s219 + $0x144] sm:$0xff]
      %v272 = vld [vmem:[%s219 + $0x14c] sm:$0xff]
      %v273 = vld [vmem:[%s219 + $0x154] sm:$0xff]
      %v274 = vld [vmem:[%s219 + $0x15c] sm:$0xff]
      %v275 = vld [vmem:[%s219 + $0x164] sm:$0xf]
      %v276 = vld [vmem:[%s219 + $0x168] sm:$0xff]
      %v277 = vld [vmem:[%s219 + $0x170] sm:$0xff]
      %v278 = vld [vmem:[%s219 + $0x178] sm:$0xff]
      %v279 = vld [vmem:[%s219 + $0x180] sm:$0xff]
      %v280 = vld [vmem:[%s219 + $0x188] sm:$0xf]
      %v281 = vld [vmem:[%s219 + $0x18c] sm:$0xff]
      %v282 = vld [vmem:[%s219 + $0x194] sm:$0xff]
      %v283 = vld [vmem:[%s219 + $0x19c] sm:$0xff]
      %v284 = vld [vmem:[%s219 + $0x1a4] sm:$0xff]
      %v285 = vld [vmem:[%s219 + $0x1ac] sm:$0xf]
      %v286 = vld [vmem:[%s219 + $0x1b0] sm:$0xff]
      %v287 = vld [vmem:[%s219 + $0x1b8] sm:$0xff]
      %v288 = vld [vmem:[%s219 + $0x1c0] sm:$0xff]
      %v289 = vld [vmem:[%s219 + $0x1c8] sm:$0xff]
      %v290 = vld [vmem:[%s219 + $0x1d0] sm:$0xf]
      %v291 = vld [vmem:[%s219 + $0x1d4] sm:$0xff]
      %v292 = vld [vmem:[%s219 + $0x1dc] sm:$0xff]
      %v293 = vld [vmem:[%s219 + $0x1e4] sm:$0xff]
      %v294 = vld [vmem:[%s219 + $0x1ec] sm:$0xff]
      %v295 = vld [vmem:[%s219 + $0x1f4] sm:$0xf]
      %v296 = vld [vmem:[%s219 + $0x1f8] sm:$0xff]
      %v297 = vld [vmem:[%s219 + $0x200] sm:$0xff]
      %v298 = vld [vmem:[%s219 + $0x208] sm:$0xff]
      %v299 = vld [vmem:[%s219 + $0x210] sm:$0xff]
      %v300 = vld [vmem:[%s219 + $0x218] sm:$0xf]
      %v301 = vld [vmem:[%s219 + $0x21c] sm:$0xff]
      %v302 = vld [vmem:[%s219 + $0x224] sm:$0xff]
      %v303 = vld [vmem:[%s219 + $0x22c] sm:$0xff]
      %v304 = vld [vmem:[%s219 + $0x234] sm:$0xff]
      %v305 = vld [vmem:[%s219 + $0x23c] sm:$0xf]
      %v306 = vld [vmem:[%s219 + $0x240] sm:$0xff]
      %v307 = vld [vmem:[%s219 + $0x248] sm:$0xff]
      %v308 = vld [vmem:[%s219 + $0x250] sm:$0xff]
      %v309 = vld [vmem:[%s219 + $0x258] sm:$0xff]
      %v310 = vld [vmem:[%s219 + $0x260] sm:$0xf]
      %v311 = vld [vmem:[%s219 + $0x264] sm:$0xff]
      %v312 = vld [vmem:[%s219 + $0x26c] sm:$0xff]
      %v313 = vld [vmem:[%s219 + $0x274] sm:$0xff]
      %v314 = vld [vmem:[%s219 + $0x27c] sm:$0xff]
      %v315 = vld [vmem:[%s219 + $0x284] sm:$0xf]
      %v316 = vld [vmem:[%s219 + $0x288] sm:$0xff]
      %v317 = vld [vmem:[%s219 + $0x290] sm:$0xff]
      %v318 = vld [vmem:[%s219 + $0x298] sm:$0xff]
      %v319 = vld [vmem:[%s219 + $0x2a0] sm:$0xff]
      %v320 = vld [vmem:[%s219 + $0x2a8] sm:$0xf]
      %v321 = vld [vmem:[%s219 + $0x2ac] sm:$0xff]
      %v322 = vld [vmem:[%s219 + $0x2b4] sm:$0xff]
      %v323 = vld [vmem:[%s219 + $0x2bc] sm:$0xff]
      %v324 = vld [vmem:[%s219 + $0x2c4] sm:$0xff]
      %v325 = vld [vmem:[%s219 + $0x2cc] sm:$0xf]
      %v326 = vld [vmem:[%s219 + $0x2d0] sm:$0xff]
      %v327 = vld [vmem:[%s219 + $0x2d8] sm:$0xff]
      %v328 = vld [vmem:[%s219 + $0x2e0] sm:$0xff]
      %v329 = vld [vmem:[%s219 + $0x2e8] sm:$0xff]
      %v330 = vld [vmem:[%s219 + $0x2f0] sm:$0xf]
      %v331 = vld [vmem:[%s219 + $0x2f4] sm:$0xff]
      %v332 = vld [vmem:[%s219 + $0x2fc] sm:$0xff]
      %v333 = vld [vmem:[%s219 + $0x304] sm:$0xff]
      %v334 = vld [vmem:[%s219 + $0x30c] sm:$0xff]
      %v335 = vld [vmem:[%s219 + $0x314] sm:$0xf]
      %v336 = vld [vmem:[%s219 + $0x318] sm:$0xff]
      %v337 = vld [vmem:[%s219 + $0x320] sm:$0xff]
      %v338 = vld [vmem:[%s219 + $0x328] sm:$0xff]
      %v339 = vld [vmem:[%s219 + $0x330] sm:$0xff]
      %v340 = vld [vmem:[%s219 + $0x338] sm:$0xf]
      %v341 = vld [vmem:[%s219 + $0x33c] sm:$0xff]
      %v342 = vld [vmem:[%s219 + $0x344] sm:$0xff]
      %v343 = vld [vmem:[%s219 + $0x34c] sm:$0xff]
      %v344 = vld [vmem:[%s219 + $0x354] sm:$0xff]
      %v345 = vld [vmem:[%s219 + $0x35c] sm:$0xf]
      %v346 = vld [vmem:[%s219 + $0x360] sm:$0xff]
      %v347 = vld [vmem:[%s219 + $0x368] sm:$0xff]
      %v348 = vld [vmem:[%s219 + $0x370] sm:$0xff]
      %v349 = vld [vmem:[%s219 + $0x378] sm:$0xff]
      %v350 = vld [vmem:[%s219 + $0x380] sm:$0xf]
      %v351 = vld [vmem:[%s219 + $0x384] sm:$0xff]
      %v352 = vld [vmem:[%s219 + $0x38c] sm:$0xff]
      %v353 = vld [vmem:[%s219 + $0x394] sm:$0xff]
      %v354 = vld [vmem:[%s219 + $0x39c] sm:$0xff]
      %v355 = vld [vmem:[%s219 + $0x3a4] sm:$0xf]
      %v356 = vld [vmem:[%s219 + $0x3a8] sm:$0xff]
      %v357 = vld [vmem:[%s219 + $0x3b0] sm:$0xff]
      %v358 = vld [vmem:[%s219 + $0x3b8] sm:$0xff]
      %v359 = vld [vmem:[%s219 + $0x3c0] sm:$0xff]
      %v360 = vld [vmem:[%s219 + $0x3c8] sm:$0xf]
      %v361 = vld [vmem:[%s219 + $0x3cc] sm:$0xff]
      %v362 = vld [vmem:[%s219 + $0x3d4] sm:$0xff]
      %v363 = vld [vmem:[%s219 + $0x3dc] sm:$0xff]
      %v364 = vld [vmem:[%s219 + $0x3e4] sm:$0xff]
      %v365 = vld [vmem:[%s219 + $0x3ec] sm:$0xf]
      %v366 = vld [vmem:[%s219 + $0x3f0] sm:$0xff]
      %v367 = vld [vmem:[%s219 + $0x3f8] sm:$0xff]
      %v368 = vld [vmem:[%s219 + $0x400] sm:$0xff]
      %v369 = vld [vmem:[%s219 + $0x408] sm:$0xff]
      %v370 = vld [vmem:[%s219 + $0x410] sm:$0xf]
      %v371 = vld [vmem:[%s219 + $0x414] sm:$0xff]
      %v372 = vld [vmem:[%s219 + $0x41c] sm:$0xff]
      %v373 = vld [vmem:[%s219 + $0x424] sm:$0xff]
      %v374 = vld [vmem:[%s219 + $0x42c] sm:$0xff]
      %v375 = vld [vmem:[%s219 + $0x434] sm:$0xf]
      %v376 = vld [vmem:[%s219 + $0x438] sm:$0xff]
      %v377 = vld [vmem:[%s219 + $0x440] sm:$0xff]
      %v378 = vld [vmem:[%s219 + $0x448] sm:$0xff]
      %v379 = vld [vmem:[%s219 + $0x450] sm:$0xff]
      %v380 = vld [vmem:[%s219 + $0x458] sm:$0xf]
      %v381 = vld [vmem:[%s219 + $0x45c] sm:$0xff]
      %v382 = vld [vmem:[%s219 + $0x464] sm:$0xff]
      %v383 = vld [vmem:[%s219 + $0x46c] sm:$0xff]
      %v384 = vld [vmem:[%s219 + $0x474] sm:$0xff]
      %v385 = vld [vmem:[%s219 + $0x47c] sm:$0xf]
      %v386 = vld [vmem:[%s1] sm:$0xff]
      %v387 = vld [vmem:[%s1 + $0x8] sm:$0xff]
      %v388 = vld [vmem:[%s1 + $0x10] sm:$0xff]
      %v389 = vld [vmem:[%s1 + $0x18] sm:$0xff]
      %v390 = vld [vmem:[%s1 + $0x20] sm:$0xff]
      %v391 = vld [vmem:[%s1 + $0x28] sm:$0xff]
      %v392 = vld [vmem:[%s1 + $0x30] sm:$0xff]
      %v393 = vld [vmem:[%s1 + $0x38] sm:$0xff]
      %v394 = vld [vmem:[%s1 + $0x40] sm:$0xff]
      %v395 = vld [vmem:[%s1 + $0x48] sm:$0xff]
      %v396 = vld [vmem:[%s1 + $0x50] sm:$0xff]
      %v397 = vld [vmem:[%s1 + $0x58] sm:$0xff]
      %v398 = vld [vmem:[%s1 + $0x60] sm:$0xff]
      %v399 = vld [vmem:[%s1 + $0x68] sm:$0xff]
      %v400 = vld [vmem:[%s1 + $0x70] sm:$0xff]
      %v401 = vld [vmem:[%s1 + $0x78] sm:$0xff]
      %v402 = vld [vmem:[%s1 + $0x80] sm:$0xff]
      %v403 = vld [vmem:[%s1 + $0x88] sm:$0xff]
      %v404 = vld [vmem:[%s1 + $0x90] sm:$0xff]
      %v405 = vld [vmem:[%s1 + $0x98] sm:$0xff]
      %v406 = vld [vmem:[%s1 + $0xa0] sm:$0xff]
      %v407 = vld [vmem:[%s1 + $0xa8] sm:$0xff]
      %v408 = vld [vmem:[%s1 + $0xb0] sm:$0xff]
      %v409 = vld [vmem:[%s1 + $0xb8] sm:$0xff]
      %v410 = vld [vmem:[%s1 + $0xc0] sm:$0xff]
      %v411 = vld [vmem:[%s1 + $0xc8] sm:$0xff]
      %v412 = vld [vmem:[%s1 + $0xd0] sm:$0xff]
      %v413 = vld [vmem:[%s1 + $0xd8] sm:$0xff]
      %v414 = vld [vmem:[%s1 + $0xe0] sm:$0xff]
      %v415 = vld [vmem:[%s1 + $0xe8] sm:$0xff]
      %v416 = vld [vmem:[%s1 + $0xf0] sm:$0xff]
      %v417 = vld [vmem:[%s1 + $0xf8] sm:$0xff]
      %v418 = vld [vmem:[%s1 + $0x100] sm:$0xff]
      %v419 = vld [vmem:[%s1 + $0x108] sm:$0xff]
      %v420 = vld [vmem:[%s1 + $0x110] sm:$0xff]
      %v421 = vld [vmem:[%s1 + $0x118] sm:$0xff]
      %v422 = vld [vmem:[%s1 + $0x120] sm:$0xff]
      %v423 = vld [vmem:[%s1 + $0x128] sm:$0xff]
      %v424 = vld [vmem:[%s1 + $0x130] sm:$0xff]
      %v425 = vld [vmem:[%s1 + $0x138] sm:$0xff]
      %v426 = vld [vmem:[%s1 + $0x140] sm:$0xff]
      %v427 = vld [vmem:[%s1 + $0x148] sm:$0xff]
      %v428 = vld [vmem:[%s1 + $0x150] sm:$0xff]
      %v429 = vld [vmem:[%s1 + $0x158] sm:$0xff]
      %v430 = vld [vmem:[%s1 + $0x160] sm:$0xff]
      %v431 = vld [vmem:[%s1 + $0x168] sm:$0xff]
      %v432 = vld [vmem:[%s1 + $0x170] sm:$0xff]
      %v433 = vld [vmem:[%s1 + $0x178] sm:$0xff]
      %v434 = vld [vmem:[%s1 + $0x180] sm:$0xff]
      %v435 = vld [vmem:[%s1 + $0x188] sm:$0xff]
      %v436 = vld [vmem:[%s1 + $0x190] sm:$0xff]
      %v437 = vld [vmem:[%s1 + $0x198] sm:$0xff]
      %v438 = vld [vmem:[%s1 + $0x1a0] sm:$0xff]
      %v439 = vld [vmem:[%s1 + $0x1a8] sm:$0xff]
      %v440 = vld [vmem:[%s1 + $0x1b0] sm:$0xff]
      %v441 = vld [vmem:[%s1 + $0x1b8] sm:$0xff]
      %v442 = vld [vmem:[%s1 + $0x1c0] sm:$0xff]
      %v443 = vld [vmem:[%s1 + $0x1c8] sm:$0xff]
      %v444 = vld [vmem:[%s1 + $0x1d0] sm:$0xff]
      %v445 = vld [vmem:[%s1 + $0x1d8] sm:$0xff]
      %v446 = vld [vmem:[%s1 + $0x1e0] sm:$0xff]
      %v447 = vld [vmem:[%s1 + $0x1e8] sm:$0xff]
      %v448 = vld [vmem:[%s1 + $0x1f0] sm:$0xff]
      %v449 = vld [vmem:[%s1 + $0x1f8] sm:$0xff]
      %v450 = vld [vmem:[%s1 + $0x200] sm:$0xff]
      %v451 = vld [vmem:[%s1 + $0x208] sm:$0xff]
      %v452 = vld [vmem:[%s1 + $0x210] sm:$0xff]
      %v453 = vld [vmem:[%s1 + $0x218] sm:$0xff]
      %v454 = vld [vmem:[%s1 + $0x220] sm:$0xff]
      %v455 = vld [vmem:[%s1 + $0x228] sm:$0xff]
      %v456 = vld [vmem:[%s1 + $0x230] sm:$0xff]
      %v457 = vld [vmem:[%s1 + $0x238] sm:$0xff]
      %v458 = vld [vmem:[%s1 + $0x240] sm:$0xff]
      %v459 = vld [vmem:[%s1 + $0x248] sm:$0xff]
      %v460 = vld [vmem:[%s1 + $0x250] sm:$0xff]
      %v461 = vld [vmem:[%s1 + $0x258] sm:$0xff]
      %v462 = vld [vmem:[%s1 + $0x260] sm:$0xff]
      %v463 = vld [vmem:[%s1 + $0x268] sm:$0xff]
      %v464 = vld [vmem:[%s1 + $0x270] sm:$0xff]
      %v465 = vld [vmem:[%s1 + $0x278] sm:$0xff]
      %v466 = vld [vmem:[%s1 + $0x280] sm:$0xff]
      %v467 = vld [vmem:[%s1 + $0x288] sm:$0xff]
      %v468 = vld [vmem:[%s1 + $0x290] sm:$0xff]
      %v469 = vld [vmem:[%s1 + $0x298] sm:$0xff]
      %v470 = vld [vmem:[%s1 + $0x2a0] sm:$0xff]
      %v471 = vld [vmem:[%s1 + $0x2a8] sm:$0xff]
      %v472 = vld [vmem:[%s1 + $0x2b0] sm:$0xff]
      %v473 = vld [vmem:[%s1 + $0x2b8] sm:$0xff]
      %v474 = vld [vmem:[%s1 + $0x2c0] sm:$0xff]
      %v475 = vld [vmem:[%s1 + $0x2c8] sm:$0xff]
      %v476 = vld [vmem:[%s1 + $0x2d0] sm:$0xff]
      %v477 = vld [vmem:[%s1 + $0x2d8] sm:$0xff]
      %v478 = vld [vmem:[%s1 + $0x2e0] sm:$0xff]
      %v479 = vld [vmem:[%s1 + $0x2e8] sm:$0xff]
      %v480 = vld [vmem:[%s1 + $0x2f0] sm:$0xff]
      %v481 = vld [vmem:[%s1 + $0x2f8] sm:$0xff]
      %v482 = vld [vmem:[%s1 + $0x300] sm:$0xff]
      %v483 = vld [vmem:[%s1 + $0x308] sm:$0xff]
      %v484 = vld [vmem:[%s1 + $0x310] sm:$0xff]
      %v485 = vld [vmem:[%s1 + $0x318] sm:$0xff]
      %v486 = vld [vmem:[%s1 + $0x320] sm:$0xff]
      %v487 = vld [vmem:[%s1 + $0x328] sm:$0xff]
      %v488 = vld [vmem:[%s1 + $0x330] sm:$0xff]
      %v489 = vld [vmem:[%s1 + $0x338] sm:$0xff]
      %v490 = vld [vmem:[%s1 + $0x340] sm:$0xff]
      %v491 = vld [vmem:[%s1 + $0x348] sm:$0xff]
      %v492 = vld [vmem:[%s1 + $0x350] sm:$0xff]
      %v493 = vld [vmem:[%s1 + $0x358] sm:$0xff]
      %v494 = vld [vmem:[%s1 + $0x360] sm:$0xff]
      %v495 = vld [vmem:[%s1 + $0x368] sm:$0xff]
      %v496 = vld [vmem:[%s1 + $0x370] sm:$0xff]
      %v497 = vld [vmem:[%s1 + $0x378] sm:$0xff]
      %v498 = vld [vmem:[%s1 + $0x380] sm:$0xff]
      %v499 = vld [vmem:[%s1 + $0x388] sm:$0xff]
      %v500 = vld [vmem:[%s1 + $0x390] sm:$0xff]
      %v501 = vld [vmem:[%s1 + $0x398] sm:$0xff]
      %v502 = vld [vmem:[%s1 + $0x3a0] sm:$0xff]
      %v503 = vld [vmem:[%s1 + $0x3a8] sm:$0xff]
      %v504 = vld [vmem:[%s1 + $0x3b0] sm:$0xff]
      %v505 = vld [vmem:[%s1 + $0x3b8] sm:$0xff]
      %v506 = vld [vmem:[%s1 + $0x3c0] sm:$0xff]
      %v507 = vld [vmem:[%s1 + $0x3c8] sm:$0xff]
      %v508 = vld [vmem:[%s1 + $0x3d0] sm:$0xff]
      %v509 = vld [vmem:[%s1 + $0x3d8] sm:$0xff]
      %v510 = vld [vmem:[%s1 + $0x3e0] sm:$0xff]
      %v511 = vld [vmem:[%s1 + $0x3e8] sm:$0xff]
      %v512 = vld [vmem:[%s1 + $0x3f0] sm:$0xff]
      %v513 = vld [vmem:[%s1 + $0x3f8] sm:$0xff]
      %v514 = vld [vmem:[%s1 + $0x400] sm:$0xff]
      %v515 = vld [vmem:[%s1 + $0x408] sm:$0xff]
      %v516 = vld [vmem:[%s1 + $0x410] sm:$0xff]
      %v517 = vld [vmem:[%s1 + $0x418] sm:$0xff]
      %v518 = vld [vmem:[%s1 + $0x420] sm:$0xff]
      %v519 = vld [vmem:[%s1 + $0x428] sm:$0xff]
      %v520 = vld [vmem:[%s1 + $0x430] sm:$0xff]
      %v521 = vld [vmem:[%s1 + $0x438] sm:$0xff]
      %v522 = vld [vmem:[%s1 + $0x440] sm:$0xff]
      %v523 = vld [vmem:[%s1 + $0x448] sm:$0xff]
      %v524 = vld [vmem:[%s1 + $0x450] sm:$0xff]
      %v525 = vld [vmem:[%s1 + $0x458] sm:$0xff]
      %v526 = vld [vmem:[%s1 + $0x460] sm:$0xff]
      %v527 = vld [vmem:[%s1 + $0x468] sm:$0xff]
      %v528 = vld [vmem:[%s1 + $0x470] sm:$0xff]
      %v529 = vld [vmem:[%s1 + $0x478] sm:$0xff]
      %v690 = vunpack.c.l.b16 %v226
      %v691 = vunpack.c.h.b16 %v226
      %v692 = vunpack.c.l.b16 %v227
      %v693 = vunpack.c.h.b16 %v227
      %v694 = vunpack.c.l.b16 %v228
      %v695 = vunpack.c.h.b16 %v228
      %v696 = vunpack.c.l.b16 %v229
      %v697 = vunpack.c.h.b16 %v229
      %v698 = vunpack.c.l.b16 %v230
      %v699 = vunpack.c.l.b16 %v231
      %v700 = vunpack.c.h.b16 %v231
      %v701 = vunpack.c.l.b16 %v232
      %v702 = vunpack.c.h.b16 %v232
      %v703 = vunpack.c.l.b16 %v233
      %v704 = vunpack.c.h.b16 %v233
      %v705 = vunpack.c.l.b16 %v234
      %v706 = vunpack.c.h.b16 %v234
      %v707 = vunpack.c.l.b16 %v235
      %v708 = vunpack.c.l.b16 %v236
      %v709 = vunpack.c.h.b16 %v236
      %v710 = vunpack.c.l.b16 %v237
      %v711 = vunpack.c.h.b16 %v237
      %v712 = vunpack.c.l.b16 %v238
      %v713 = vunpack.c.h.b16 %v238
      %v714 = vunpack.c.l.b16 %v239
      %v715 = vunpack.c.h.b16 %v239
      %v716 = vunpack.c.l.b16 %v240
      %v717 = vunpack.c.l.b16 %v241
      %v718 = vunpack.c.h.b16 %v241
      %v719 = vunpack.c.l.b16 %v242
      %v720 = vunpack.c.h.b16 %v242
      %v721 = vunpack.c.l.b16 %v243
      %v722 = vunpack.c.h.b16 %v243
      %v723 = vunpack.c.l.b16 %v244
      %v724 = vunpack.c.h.b16 %v244
      %v725 = vunpack.c.l.b16 %v245
      %v726 = vunpack.c.l.b16 %v246
      %v727 = vunpack.c.h.b16 %v246
      %v728 = vunpack.c.l.b16 %v247
      %v729 = vunpack.c.h.b16 %v247
      %v730 = vunpack.c.l.b16 %v248
      %v731 = vunpack.c.h.b16 %v248
      %v732 = vunpack.c.l.b16 %v249
      %v733 = vunpack.c.h.b16 %v249
      %v734 = vunpack.c.l.b16 %v250
      %v735 = vunpack.c.l.b16 %v251
      %v736 = vunpack.c.h.b16 %v251
      %v737 = vunpack.c.l.b16 %v252
      %v738 = vunpack.c.h.b16 %v252
      %v739 = vunpack.c.l.b16 %v253
      %v740 = vunpack.c.h.b16 %v253
      %v741 = vunpack.c.l.b16 %v254
      %v742 = vunpack.c.h.b16 %v254
      %v743 = vunpack.c.l.b16 %v255
      %v744 = vunpack.c.l.b16 %v256
      %v745 = vunpack.c.h.b16 %v256
      %v746 = vunpack.c.l.b16 %v257
      %v747 = vunpack.c.h.b16 %v257
      %v748 = vunpack.c.l.b16 %v258
      %v749 = vunpack.c.h.b16 %v258
      %v750 = vunpack.c.l.b16 %v259
      %v751 = vunpack.c.h.b16 %v259
      %v752 = vunpack.c.l.b16 %v260
      %v753 = vunpack.c.l.b16 %v261
      %v754 = vunpack.c.h.b16 %v261
      %v755 = vunpack.c.l.b16 %v262
      %v756 = vunpack.c.h.b16 %v262
      %v757 = vunpack.c.l.b16 %v263
      %v758 = vunpack.c.h.b16 %v263
      %v759 = vunpack.c.l.b16 %v264
      %v760 = vunpack.c.h.b16 %v264
      %v761 = vunpack.c.l.b16 %v265
      %v762 = vunpack.c.l.b16 %v266
      %v763 = vunpack.c.h.b16 %v266
      %v764 = vunpack.c.l.b16 %v267
      %v765 = vunpack.c.h.b16 %v267
      %v766 = vunpack.c.l.b16 %v268
      %v767 = vunpack.c.h.b16 %v268
      %v768 = vunpack.c.l.b16 %v269
      %v769 = vunpack.c.h.b16 %v269
      %v770 = vunpack.c.l.b16 %v270
      %v771 = vunpack.c.l.b16 %v271
      %v772 = vunpack.c.h.b16 %v271
      %v773 = vunpack.c.l.b16 %v272
      %v774 = vunpack.c.h.b16 %v272
      %v775 = vunpack.c.l.b16 %v273
      %v776 = vunpack.c.h.b16 %v273
      %v777 = vunpack.c.l.b16 %v274
      %v778 = vunpack.c.h.b16 %v274
      %v779 = vunpack.c.l.b16 %v275
      %v780 = vunpack.c.l.b16 %v276
      %v781 = vunpack.c.h.b16 %v276
      %v782 = vunpack.c.l.b16 %v277
      %v783 = vunpack.c.h.b16 %v277
      %v784 = vunpack.c.l.b16 %v278
      %v785 = vunpack.c.h.b16 %v278
      %v786 = vunpack.c.l.b16 %v279
      %v787 = vunpack.c.h.b16 %v279
      %v788 = vunpack.c.l.b16 %v280
      %v789 = vunpack.c.l.b16 %v281
      %v790 = vunpack.c.h.b16 %v281
      %v791 = vunpack.c.l.b16 %v282
      %v792 = vunpack.c.h.b16 %v282
      %v793 = vunpack.c.l.b16 %v283
      %v794 = vunpack.c.h.b16 %v283
      %v795 = vunpack.c.l.b16 %v284
      %v796 = vunpack.c.h.b16 %v284
      %v797 = vunpack.c.l.b16 %v285
      %v798 = vunpack.c.l.b16 %v286
      %v799 = vunpack.c.h.b16 %v286
      %v800 = vunpack.c.l.b16 %v287
      %v801 = vunpack.c.h.b16 %v287
      %v802 = vunpack.c.l.b16 %v288
      %v803 = vunpack.c.h.b16 %v288
      %v804 = vunpack.c.l.b16 %v289
      %v805 = vunpack.c.h.b16 %v289
      %v806 = vunpack.c.l.b16 %v290
      %v807 = vunpack.c.l.b16 %v291
      %v808 = vunpack.c.h.b16 %v291
      %v809 = vunpack.c.l.b16 %v292
      %v810 = vunpack.c.h.b16 %v292
      %v811 = vunpack.c.l.b16 %v293
      %v812 = vunpack.c.h.b16 %v293
      %v813 = vunpack.c.l.b16 %v294
      %v814 = vunpack.c.h.b16 %v294
      %v815 = vunpack.c.l.b16 %v295
      %v816 = vunpack.c.l.b16 %v296
      %v817 = vunpack.c.h.b16 %v296
      %v818 = vunpack.c.l.b16 %v297
      %v819 = vunpack.c.h.b16 %v297
      %v820 = vunpack.c.l.b16 %v298
      %v821 = vunpack.c.h.b16 %v298
      %v822 = vunpack.c.l.b16 %v299
      %v823 = vunpack.c.h.b16 %v299
      %v824 = vunpack.c.l.b16 %v300
      %v825 = vunpack.c.l.b16 %v301
      %v826 = vunpack.c.h.b16 %v301
      %v827 = vunpack.c.l.b16 %v302
      %v828 = vunpack.c.h.b16 %v302
      %v829 = vunpack.c.l.b16 %v303
      %v830 = vunpack.c.h.b16 %v303
      %v831 = vunpack.c.l.b16 %v304
      %v832 = vunpack.c.h.b16 %v304
      %v833 = vunpack.c.l.b16 %v305
      %v834 = vunpack.c.l.b16 %v306
      %v835 = vunpack.c.h.b16 %v306
      %v836 = vunpack.c.l.b16 %v307
      %v837 = vunpack.c.h.b16 %v307
      %v838 = vunpack.c.l.b16 %v308
      %v839 = vunpack.c.h.b16 %v308
      %v840 = vunpack.c.l.b16 %v309
      %v841 = vunpack.c.h.b16 %v309
      %v842 = vunpack.c.l.b16 %v310
      %v843 = vunpack.c.l.b16 %v311
      %v844 = vunpack.c.h.b16 %v311
      %v845 = vunpack.c.l.b16 %v312
      %v846 = vunpack.c.h.b16 %v312
      %v847 = vunpack.c.l.b16 %v313
      %v848 = vunpack.c.h.b16 %v313
      %v849 = vunpack.c.l.b16 %v314
      %v850 = vunpack.c.h.b16 %v314
      %v851 = vunpack.c.l.b16 %v315
      %v852 = vunpack.c.l.b16 %v316
      %v853 = vunpack.c.h.b16 %v316
      %v854 = vunpack.c.l.b16 %v317
      %v855 = vunpack.c.h.b16 %v317
      %v856 = vunpack.c.l.b16 %v318
      %v857 = vunpack.c.h.b16 %v318
      %v858 = vunpack.c.l.b16 %v319
      %v859 = vunpack.c.h.b16 %v319
      %v860 = vunpack.c.l.b16 %v320
      %v861 = vunpack.c.l.b16 %v321
      %v862 = vunpack.c.h.b16 %v321
      %v863 = vunpack.c.l.b16 %v322
      %v864 = vunpack.c.h.b16 %v322
      %v865 = vunpack.c.l.b16 %v323
      %v866 = vunpack.c.h.b16 %v323
      %v867 = vunpack.c.l.b16 %v324
      %v868 = vunpack.c.h.b16 %v324
      %v869 = vunpack.c.l.b16 %v325
      %v870 = vunpack.c.l.b16 %v326
      %v871 = vunpack.c.h.b16 %v326
      %v872 = vunpack.c.l.b16 %v327
      %v873 = vunpack.c.h.b16 %v327
      %v874 = vunpack.c.l.b16 %v328
      %v875 = vunpack.c.h.b16 %v328
      %v876 = vunpack.c.l.b16 %v329
      %v877 = vunpack.c.h.b16 %v329
      %v878 = vunpack.c.l.b16 %v330
      %v879 = vunpack.c.l.b16 %v331
      %v880 = vunpack.c.h.b16 %v331
      %v881 = vunpack.c.l.b16 %v332
      %v882 = vunpack.c.h.b16 %v332
      %v883 = vunpack.c.l.b16 %v333
      %v884 = vunpack.c.h.b16 %v333
      %v885 = vunpack.c.l.b16 %v334
      %v886 = vunpack.c.h.b16 %v334
      %v887 = vunpack.c.l.b16 %v335
      %v888 = vunpack.c.l.b16 %v336
      %v889 = vunpack.c.h.b16 %v336
      %v890 = vunpack.c.l.b16 %v337
      %v891 = vunpack.c.h.b16 %v337
      %v892 = vunpack.c.l.b16 %v338
      %v893 = vunpack.c.h.b16 %v338
      %v894 = vunpack.c.l.b16 %v339
      %v895 = vunpack.c.h.b16 %v339
      %v896 = vunpack.c.l.b16 %v340
      %v897 = vunpack.c.l.b16 %v341
      %v898 = vunpack.c.h.b16 %v341
      %v899 = vunpack.c.l.b16 %v342
      %v900 = vunpack.c.h.b16 %v342
      %v901 = vunpack.c.l.b16 %v343
      %v902 = vunpack.c.h.b16 %v343
      %v903 = vunpack.c.l.b16 %v344
      %v904 = vunpack.c.h.b16 %v344
      %v905 = vunpack.c.l.b16 %v345
      %v906 = vunpack.c.l.b16 %v346
      %v907 = vunpack.c.h.b16 %v346
      %v908 = vunpack.c.l.b16 %v347
      %v909 = vunpack.c.h.b16 %v347
      %v910 = vunpack.c.l.b16 %v348
      %v911 = vunpack.c.h.b16 %v348
      %v912 = vunpack.c.l.b16 %v349
      %v913 = vunpack.c.h.b16 %v349
      %v914 = vunpack.c.l.b16 %v350
      %v915 = vunpack.c.l.b16 %v351
      %v916 = vunpack.c.h.b16 %v351
      %v917 = vunpack.c.l.b16 %v352
      %v918 = vunpack.c.h.b16 %v352
      %v919 = vunpack.c.l.b16 %v353
      %v920 = vunpack.c.h.b16 %v353
      %v921 = vunpack.c.l.b16 %v354
      %v922 = vunpack.c.h.b16 %v354
      %v923 = vunpack.c.l.b16 %v355
      %v924 = vunpack.c.l.b16 %v356
      %v925 = vunpack.c.h.b16 %v356
      %v926 = vunpack.c.l.b16 %v357
      %v927 = vunpack.c.h.b16 %v357
      %v928 = vunpack.c.l.b16 %v358
      %v929 = vunpack.c.h.b16 %v358
      %v930 = vunpack.c.l.b16 %v359
      %v931 = vunpack.c.h.b16 %v359
      %v932 = vunpack.c.l.b16 %v360
      %v933 = vunpack.c.l.b16 %v361
      %v934 = vunpack.c.h.b16 %v361
      %v935 = vunpack.c.l.b16 %v362
      %v936 = vunpack.c.h.b16 %v362
      %v937 = vunpack.c.l.b16 %v363
      %v938 = vunpack.c.h.b16 %v363
      %v939 = vunpack.c.l.b16 %v364
      %v940 = vunpack.c.h.b16 %v364
      %v941 = vunpack.c.l.b16 %v365
      %v942 = vunpack.c.l.b16 %v366
      %v943 = vunpack.c.h.b16 %v366
      %v944 = vunpack.c.l.b16 %v367
      %v945 = vunpack.c.h.b16 %v367
      %v946 = vunpack.c.l.b16 %v368
      %v947 = vunpack.c.h.b16 %v368
      %v948 = vunpack.c.l.b16 %v369
      %v949 = vunpack.c.h.b16 %v369
      %v950 = vunpack.c.l.b16 %v370
      %v951 = vunpack.c.l.b16 %v371
      %v952 = vunpack.c.h.b16 %v371
      %v953 = vunpack.c.l.b16 %v372
      %v954 = vunpack.c.h.b16 %v372
      %v955 = vunpack.c.l.b16 %v373
      %v956 = vunpack.c.h.b16 %v373
      %v957 = vunpack.c.l.b16 %v374
      %v958 = vunpack.c.h.b16 %v374
      %v959 = vunpack.c.l.b16 %v375
      %v960 = vunpack.c.l.b16 %v376
      %v961 = vunpack.c.h.b16 %v376
      %v962 = vunpack.c.l.b16 %v377
      %v963 = vunpack.c.h.b16 %v377
      %v964 = vunpack.c.l.b16 %v378
      %v965 = vunpack.c.h.b16 %v378
      %v966 = vunpack.c.l.b16 %v379
      %v967 = vunpack.c.h.b16 %v379
      %v968 = vunpack.c.l.b16 %v380
      %v969 = vunpack.c.l.b16 %v381
      %v970 = vunpack.c.h.b16 %v381
      %v971 = vunpack.c.l.b16 %v382
      %v972 = vunpack.c.h.b16 %v382
      %v973 = vunpack.c.l.b16 %v383
      %v974 = vunpack.c.h.b16 %v383
      %v975 = vunpack.c.l.b16 %v384
      %v976 = vunpack.c.h.b16 %v384
      %v977 = vunpack.c.l.b16 %v385
      %v978 = vpack.c.b16 %v699, %v690
      %v979 = vpack.c.b16 %v700, %v691
      %v980 = vpack.c.b16 %v701, %v692
      %v981 = vpack.c.b16 %v702, %v693
      %v982 = vpack.c.b16 %v703, %v694
      %v983 = vpack.c.b16 %v704, %v695
      %v984 = vpack.c.b16 %v705, %v696
      %v985 = vpack.c.b16 %v706, %v697
      %v986 = vpack.c.b16 %v707, %v698
      %v987 = vpack.c.b16 %v717, %v708
      %v988 = vpack.c.b16 %v718, %v709
      %v989 = vpack.c.b16 %v719, %v710
      %v990 = vpack.c.b16 %v720, %v711
      %v991 = vpack.c.b16 %v721, %v712
      %v992 = vpack.c.b16 %v722, %v713
      %v993 = vpack.c.b16 %v723, %v714
      %v994 = vpack.c.b16 %v724, %v715
      %v995 = vpack.c.b16 %v725, %v716
      %v996 = vpack.c.b16 %v735, %v726
      %v997 = vpack.c.b16 %v736, %v727
      %v998 = vpack.c.b16 %v737, %v728
      %v999 = vpack.c.b16 %v738, %v729
      %v1000 = vpack.c.b16 %v739, %v730
      %v1001 = vpack.c.b16 %v740, %v731
      %v1002 = vpack.c.b16 %v741, %v732
      %v1003 = vpack.c.b16 %v742, %v733
      %v1004 = vpack.c.b16 %v743, %v734
      %v1005 = vpack.c.b16 %v753, %v744
      %v1006 = vpack.c.b16 %v754, %v745
      %v1007 = vpack.c.b16 %v755, %v746
      %v1008 = vpack.c.b16 %v756, %v747
      %v1009 = vpack.c.b16 %v757, %v748
      %v1010 = vpack.c.b16 %v758, %v749
      %v1011 = vpack.c.b16 %v759, %v750
      %v1012 = vpack.c.b16 %v760, %v751
      %v1013 = vpack.c.b16 %v761, %v752
      %v1014 = vpack.c.b16 %v771, %v762
      %v1015 = vpack.c.b16 %v772, %v763
      %v1016 = vpack.c.b16 %v773, %v764
      %v1017 = vpack.c.b16 %v774, %v765
      %v1018 = vpack.c.b16 %v775, %v766
      %v1019 = vpack.c.b16 %v776, %v767
      %v1020 = vpack.c.b16 %v777, %v768
      %v1021 = vpack.c.b16 %v778, %v769
      %v1022 = vpack.c.b16 %v779, %v770
      %v1023 = vpack.c.b16 %v789, %v780
      %v1024 = vpack.c.b16 %v790, %v781
      %v1025 = vpack.c.b16 %v791, %v782
      %v1026 = vpack.c.b16 %v792, %v783
      %v1027 = vpack.c.b16 %v793, %v784
      %v1028 = vpack.c.b16 %v794, %v785
      %v1029 = vpack.c.b16 %v795, %v786
      %v1030 = vpack.c.b16 %v796, %v787
      %v1031 = vpack.c.b16 %v797, %v788
      %v1032 = vpack.c.b16 %v807, %v798
      %v1033 = vpack.c.b16 %v808, %v799
      %v1034 = vpack.c.b16 %v809, %v800
      %v1035 = vpack.c.b16 %v810, %v801
      %v1036 = vpack.c.b16 %v811, %v802
      %v1037 = vpack.c.b16 %v812, %v803
      %v1038 = vpack.c.b16 %v813, %v804
      %v1039 = vpack.c.b16 %v814, %v805
      %v1040 = vpack.c.b16 %v815, %v806
      %v1041 = vpack.c.b16 %v825, %v816
      %v1042 = vpack.c.b16 %v826, %v817
      %v1043 = vpack.c.b16 %v827, %v818
      %v1044 = vpack.c.b16 %v828, %v819
      %v1045 = vpack.c.b16 %v829, %v820
      %v1046 = vpack.c.b16 %v830, %v821
      %v1047 = vpack.c.b16 %v831, %v822
      %v1048 = vpack.c.b16 %v832, %v823
      %v1049 = vpack.c.b16 %v833, %v824
      %v1050 = vpack.c.b16 %v843, %v834
      %v1051 = vpack.c.b16 %v844, %v835
      %v1052 = vpack.c.b16 %v845, %v836
      %v1053 = vpack.c.b16 %v846, %v837
      %v1054 = vpack.c.b16 %v847, %v838
      %v1055 = vpack.c.b16 %v848, %v839
      %v1056 = vpack.c.b16 %v849, %v840
      %v1057 = vpack.c.b16 %v850, %v841
      %v1058 = vpack.c.b16 %v851, %v842
      %v1059 = vpack.c.b16 %v861, %v852
      %v1060 = vpack.c.b16 %v862, %v853
      %v1061 = vpack.c.b16 %v863, %v854
      %v1062 = vpack.c.b16 %v864, %v855
      %v1063 = vpack.c.b16 %v865, %v856
      %v1064 = vpack.c.b16 %v866, %v857
      %v1065 = vpack.c.b16 %v867, %v858
      %v1066 = vpack.c.b16 %v868, %v859
      %v1067 = vpack.c.b16 %v869, %v860
      %v1068 = vpack.c.b16 %v879, %v870
      %v1069 = vpack.c.b16 %v880, %v871
      %v1070 = vpack.c.b16 %v881, %v872
      %v1071 = vpack.c.b16 %v882, %v873
      %v1072 = vpack.c.b16 %v883, %v874
      %v1073 = vpack.c.b16 %v884, %v875
      %v1074 = vpack.c.b16 %v885, %v876
      %v1075 = vpack.c.b16 %v886, %v877
      %v1076 = vpack.c.b16 %v887, %v878
      %v1077 = vpack.c.b16 %v897, %v888
      %v1078 = vpack.c.b16 %v898, %v889
      %v1079 = vpack.c.b16 %v899, %v890
      %v1080 = vpack.c.b16 %v900, %v891
      %v1081 = vpack.c.b16 %v901, %v892
      %v1082 = vpack.c.b16 %v902, %v893
      %v1083 = vpack.c.b16 %v903, %v894
      %v1084 = vpack.c.b16 %v904, %v895
      %v1085 = vpack.c.b16 %v905, %v896
      %v1086 = vpack.c.b16 %v915, %v906
      %v1087 = vpack.c.b16 %v916, %v907
      %v1088 = vpack.c.b16 %v917, %v908
      %v1089 = vpack.c.b16 %v918, %v909
      %v1090 = vpack.c.b16 %v919, %v910
      %v1091 = vpack.c.b16 %v920, %v911
      %v1092 = vpack.c.b16 %v921, %v912
      %v1093 = vpack.c.b16 %v922, %v913
      %v1094 = vpack.c.b16 %v923, %v914
      %v1095 = vpack.c.b16 %v933, %v924
      %v1096 = vpack.c.b16 %v934, %v925
      %v1097 = vpack.c.b16 %v935, %v926
      %v1098 = vpack.c.b16 %v936, %v927
      %v1099 = vpack.c.b16 %v937, %v928
      %v1100 = vpack.c.b16 %v938, %v929
      %v1101 = vpack.c.b16 %v939, %v930
      %v1102 = vpack.c.b16 %v940, %v931
      %v1103 = vpack.c.b16 %v941, %v932
      %v1104 = vpack.c.b16 %v951, %v942
      %v1105 = vpack.c.b16 %v952, %v943
      %v1106 = vpack.c.b16 %v953, %v944
      %v1107 = vpack.c.b16 %v954, %v945
      %v1108 = vpack.c.b16 %v955, %v946
      %v1109 = vpack.c.b16 %v956, %v947
      %v1110 = vpack.c.b16 %v957, %v948
      %v1111 = vpack.c.b16 %v958, %v949
      %v1112 = vpack.c.b16 %v959, %v950
      %v1113 = vpack.c.b16 %v969, %v960
      %v1114 = vpack.c.b16 %v970, %v961
      %v1115 = vpack.c.b16 %v971, %v962
      %v1116 = vpack.c.b16 %v972, %v963
      %v1117 = vpack.c.b16 %v973, %v964
      %v1118 = vpack.c.b16 %v974, %v965
      %v1119 = vpack.c.b16 %v975, %v966
      %v1120 = vpack.c.b16 %v976, %v967
      %v1121 = vpack.c.b16 %v977, %v968
      %v1410 = vunpack.c.l.b16 %v386
      %v1411 = vunpack.c.h.b16 %v386
      %v1412 = vunpack.c.l.b16 %v387
      %v1413 = vunpack.c.h.b16 %v387
      %v1414 = vunpack.c.l.b16 %v388
      %v1415 = vunpack.c.h.b16 %v388
      %v1416 = vunpack.c.l.b16 %v389
      %v1417 = vunpack.c.h.b16 %v389
      %v1418 = vunpack.c.l.b16 %v390
      %v1419 = vunpack.c.h.b16 %v390
      %v1420 = vunpack.c.l.b16 %v391
      %v1421 = vunpack.c.h.b16 %v391
      %v1422 = vunpack.c.l.b16 %v392
      %v1423 = vunpack.c.h.b16 %v392
      %v1424 = vunpack.c.l.b16 %v393
      %v1425 = vunpack.c.h.b16 %v393
      %v1426 = vunpack.c.l.b16 %v394
      %v1427 = vunpack.c.h.b16 %v394
      %v1428 = vunpack.c.l.b16 %v395
      %v1429 = vunpack.c.h.b16 %v395
      %v1430 = vunpack.c.l.b16 %v396
      %v1431 = vunpack.c.h.b16 %v396
      %v1432 = vunpack.c.l.b16 %v397
      %v1433 = vunpack.c.h.b16 %v397
      %v1434 = vunpack.c.l.b16 %v398
      %v1435 = vunpack.c.h.b16 %v398
      %v1436 = vunpack.c.l.b16 %v399
      %v1437 = vunpack.c.h.b16 %v399
      %v1438 = vunpack.c.l.b16 %v400
      %v1439 = vunpack.c.h.b16 %v400
      %v1440 = vunpack.c.l.b16 %v401
      %v1441 = vunpack.c.h.b16 %v401
      %v1442 = vunpack.c.l.b16 %v402
      %v1443 = vunpack.c.h.b16 %v402
      %v1444 = vunpack.c.l.b16 %v403
      %v1445 = vunpack.c.h.b16 %v403
      %v1446 = vunpack.c.l.b16 %v404
      %v1447 = vunpack.c.h.b16 %v404
      %v1448 = vunpack.c.l.b16 %v405
      %v1449 = vunpack.c.h.b16 %v405
      %v1450 = vunpack.c.l.b16 %v406
      %v1451 = vunpack.c.h.b16 %v406
      %v1452 = vunpack.c.l.b16 %v407
      %v1453 = vunpack.c.h.b16 %v407
      %v1454 = vunpack.c.l.b16 %v408
      %v1455 = vunpack.c.h.b16 %v408
      %v1456 = vunpack.c.l.b16 %v409
      %v1457 = vunpack.c.h.b16 %v409
      %v1458 = vunpack.c.l.b16 %v410
      %v1459 = vunpack.c.h.b16 %v410
      %v1460 = vunpack.c.l.b16 %v411
      %v1461 = vunpack.c.h.b16 %v411
      %v1462 = vunpack.c.l.b16 %v412
      %v1463 = vunpack.c.h.b16 %v412
      %v1464 = vunpack.c.l.b16 %v413
      %v1465 = vunpack.c.h.b16 %v413
      %v1466 = vunpack.c.l.b16 %v414
      %v1467 = vunpack.c.h.b16 %v414
      %v1468 = vunpack.c.l.b16 %v415
      %v1469 = vunpack.c.h.b16 %v415
      %v1470 = vunpack.c.l.b16 %v416
      %v1471 = vunpack.c.h.b16 %v416
      %v1472 = vunpack.c.l.b16 %v417
      %v1473 = vunpack.c.h.b16 %v417
      %v1474 = vunpack.c.l.b16 %v418
      %v1475 = vunpack.c.h.b16 %v418
      %v1476 = vunpack.c.l.b16 %v419
      %v1477 = vunpack.c.h.b16 %v419
      %v1478 = vunpack.c.l.b16 %v420
      %v1479 = vunpack.c.h.b16 %v420
      %v1480 = vunpack.c.l.b16 %v421
      %v1481 = vunpack.c.h.b16 %v421
      %v1482 = vunpack.c.l.b16 %v422
      %v1483 = vunpack.c.h.b16 %v422
      %v1484 = vunpack.c.l.b16 %v423
      %v1485 = vunpack.c.h.b16 %v423
      %v1486 = vunpack.c.l.b16 %v424
      %v1487 = vunpack.c.h.b16 %v424
      %v1488 = vunpack.c.l.b16 %v425
      %v1489 = vunpack.c.h.b16 %v425
      %v1490 = vunpack.c.l.b16 %v426
      %v1491 = vunpack.c.h.b16 %v426
      %v1492 = vunpack.c.l.b16 %v427
      %v1493 = vunpack.c.h.b16 %v427
      %v1494 = vunpack.c.l.b16 %v428
      %v1495 = vunpack.c.h.b16 %v428
      %v1496 = vunpack.c.l.b16 %v429
      %v1497 = vunpack.c.h.b16 %v429
      %v1498 = vunpack.c.l.b16 %v430
      %v1499 = vunpack.c.h.b16 %v430
      %v1500 = vunpack.c.l.b16 %v431
      %v1501 = vunpack.c.h.b16 %v431
      %v1502 = vunpack.c.l.b16 %v432
      %v1503 = vunpack.c.h.b16 %v432
      %v1504 = vunpack.c.l.b16 %v433
      %v1505 = vunpack.c.h.b16 %v433
      %v1506 = vunpack.c.l.b16 %v434
      %v1507 = vunpack.c.h.b16 %v434
      %v1508 = vunpack.c.l.b16 %v435
      %v1509 = vunpack.c.h.b16 %v435
      %v1510 = vunpack.c.l.b16 %v436
      %v1511 = vunpack.c.h.b16 %v436
      %v1512 = vunpack.c.l.b16 %v437
      %v1513 = vunpack.c.h.b16 %v437
      %v1514 = vunpack.c.l.b16 %v438
      %v1515 = vunpack.c.h.b16 %v438
      %v1516 = vunpack.c.l.b16 %v439
      %v1517 = vunpack.c.h.b16 %v439
      %v1518 = vunpack.c.l.b16 %v440
      %v1519 = vunpack.c.h.b16 %v440
      %v1520 = vunpack.c.l.b16 %v441
      %v1521 = vunpack.c.h.b16 %v441
      %v1522 = vunpack.c.l.b16 %v442
      %v1523 = vunpack.c.h.b16 %v442
      %v1524 = vunpack.c.l.b16 %v443
      %v1525 = vunpack.c.h.b16 %v443
      %v1526 = vunpack.c.l.b16 %v444
      %v1527 = vunpack.c.h.b16 %v444
      %v1528 = vunpack.c.l.b16 %v445
      %v1529 = vunpack.c.h.b16 %v445
      %v1530 = vunpack.c.l.b16 %v446
      %v1531 = vunpack.c.h.b16 %v446
      %v1532 = vunpack.c.l.b16 %v447
      %v1533 = vunpack.c.h.b16 %v447
      %v1534 = vunpack.c.l.b16 %v448
      %v1535 = vunpack.c.h.b16 %v448
      %v1536 = vunpack.c.l.b16 %v449
      %v1537 = vunpack.c.h.b16 %v449
      %v1538 = vunpack.c.l.b16 %v450
      %v1539 = vunpack.c.h.b16 %v450
      %v1540 = vunpack.c.l.b16 %v451
      %v1541 = vunpack.c.h.b16 %v451
      %v1542 = vunpack.c.l.b16 %v452
      %v1543 = vunpack.c.h.b16 %v452
      %v1544 = vunpack.c.l.b16 %v453
      %v1545 = vunpack.c.h.b16 %v453
      %v1546 = vunpack.c.l.b16 %v454
      %v1547 = vunpack.c.h.b16 %v454
      %v1548 = vunpack.c.l.b16 %v455
      %v1549 = vunpack.c.h.b16 %v455
      %v1550 = vunpack.c.l.b16 %v456
      %v1551 = vunpack.c.h.b16 %v456
      %v1552 = vunpack.c.l.b16 %v457
      %v1553 = vunpack.c.h.b16 %v457
      %v1554 = vunpack.c.l.b16 %v458
      %v1555 = vunpack.c.h.b16 %v458
      %v1556 = vunpack.c.l.b16 %v459
      %v1557 = vunpack.c.h.b16 %v459
      %v1558 = vunpack.c.l.b16 %v460
      %v1559 = vunpack.c.h.b16 %v460
      %v1560 = vunpack.c.l.b16 %v461
      %v1561 = vunpack.c.h.b16 %v461
      %v1562 = vunpack.c.l.b16 %v462
      %v1563 = vunpack.c.h.b16 %v462
      %v1564 = vunpack.c.l.b16 %v463
      %v1565 = vunpack.c.h.b16 %v463
      %v1566 = vunpack.c.l.b16 %v464
      %v1567 = vunpack.c.h.b16 %v464
      %v1568 = vunpack.c.l.b16 %v465
      %v1569 = vunpack.c.h.b16 %v465
      %v1570 = vunpack.c.l.b16 %v466
      %v1571 = vunpack.c.h.b16 %v466
      %v1572 = vunpack.c.l.b16 %v467
      %v1573 = vunpack.c.h.b16 %v467
      %v1574 = vunpack.c.l.b16 %v468
      %v1575 = vunpack.c.h.b16 %v468
      %v1576 = vunpack.c.l.b16 %v469
      %v1577 = vunpack.c.h.b16 %v469
      %v1578 = vunpack.c.l.b16 %v470
      %v1579 = vunpack.c.h.b16 %v470
      %v1580 = vunpack.c.l.b16 %v471
      %v1581 = vunpack.c.h.b16 %v471
      %v1582 = vunpack.c.l.b16 %v472
      %v1583 = vunpack.c.h.b16 %v472
      %v1584 = vunpack.c.l.b16 %v473
      %v1585 = vunpack.c.h.b16 %v473
      %v1586 = vunpack.c.l.b16 %v474
      %v1587 = vunpack.c.h.b16 %v474
      %v1588 = vunpack.c.l.b16 %v475
      %v1589 = vunpack.c.h.b16 %v475
      %v1590 = vunpack.c.l.b16 %v476
      %v1591 = vunpack.c.h.b16 %v476
      %v1592 = vunpack.c.l.b16 %v477
      %v1593 = vunpack.c.h.b16 %v477
      %v1594 = vunpack.c.l.b16 %v478
      %v1595 = vunpack.c.h.b16 %v478
      %v1596 = vunpack.c.l.b16 %v479
      %v1597 = vunpack.c.h.b16 %v479
      %v1598 = vunpack.c.l.b16 %v480
      %v1599 = vunpack.c.h.b16 %v480
      %v1600 = vunpack.c.l.b16 %v481
      %v1601 = vunpack.c.h.b16 %v481
      %v1602 = vunpack.c.l.b16 %v482
      %v1603 = vunpack.c.h.b16 %v482
      %v1604 = vunpack.c.l.b16 %v483
      %v1605 = vunpack.c.h.b16 %v483
      %v1606 = vunpack.c.l.b16 %v484
      %v1607 = vunpack.c.h.b16 %v484
      %v1608 = vunpack.c.l.b16 %v485
      %v1609 = vunpack.c.h.b16 %v485
      %v1610 = vunpack.c.l.b16 %v486
      %v1611 = vunpack.c.h.b16 %v486
      %v1612 = vunpack.c.l.b16 %v487
      %v1613 = vunpack.c.h.b16 %v487
      %v1614 = vunpack.c.l.b16 %v488
      %v1615 = vunpack.c.h.b16 %v488
      %v1616 = vunpack.c.l.b16 %v489
      %v1617 = vunpack.c.h.b16 %v489
      %v1618 = vunpack.c.l.b16 %v490
      %v1619 = vunpack.c.h.b16 %v490
      %v1620 = vunpack.c.l.b16 %v491
      %v1621 = vunpack.c.h.b16 %v491
      %v1622 = vunpack.c.l.b16 %v492
      %v1623 = vunpack.c.h.b16 %v492
      %v1624 = vunpack.c.l.b16 %v493
      %v1625 = vunpack.c.h.b16 %v493
      %v1626 = vunpack.c.l.b16 %v494
      %v1627 = vunpack.c.h.b16 %v494
      %v1628 = vunpack.c.l.b16 %v495
      %v1629 = vunpack.c.h.b16 %v495
      %v1630 = vunpack.c.l.b16 %v496
      %v1631 = vunpack.c.h.b16 %v496
      %v1632 = vunpack.c.l.b16 %v497
      %v1633 = vunpack.c.h.b16 %v497
      %v1634 = vunpack.c.l.b16 %v498
      %v1635 = vunpack.c.h.b16 %v498
      %v1636 = vunpack.c.l.b16 %v499
      %v1637 = vunpack.c.h.b16 %v499
      %v1638 = vunpack.c.l.b16 %v500
      %v1639 = vunpack.c.h.b16 %v500
      %v1640 = vunpack.c.l.b16 %v501
      %v1641 = vunpack.c.h.b16 %v501
      %v1642 = vunpack.c.l.b16 %v502
      %v1643 = vunpack.c.h.b16 %v502
      %v1644 = vunpack.c.l.b16 %v503
      %v1645 = vunpack.c.h.b16 %v503
      %v1646 = vunpack.c.l.b16 %v504
      %v1647 = vunpack.c.h.b16 %v504
      %v1648 = vunpack.c.l.b16 %v505
      %v1649 = vunpack.c.h.b16 %v505
      %v1650 = vunpack.c.l.b16 %v506
      %v1651 = vunpack.c.h.b16 %v506
      %v1652 = vunpack.c.l.b16 %v507
      %v1653 = vunpack.c.h.b16 %v507
      %v1654 = vunpack.c.l.b16 %v508
      %v1655 = vunpack.c.h.b16 %v508
      %v1656 = vunpack.c.l.b16 %v509
      %v1657 = vunpack.c.h.b16 %v509
      %v1658 = vunpack.c.l.b16 %v510
      %v1659 = vunpack.c.h.b16 %v510
      %v1660 = vunpack.c.l.b16 %v511
      %v1661 = vunpack.c.h.b16 %v511
      %v1662 = vunpack.c.l.b16 %v512
      %v1663 = vunpack.c.h.b16 %v512
      %v1664 = vunpack.c.l.b16 %v513
      %v1665 = vunpack.c.h.b16 %v513
      %v1666 = vunpack.c.l.b16 %v514
      %v1667 = vunpack.c.h.b16 %v514
      %v1668 = vunpack.c.l.b16 %v515
      %v1669 = vunpack.c.h.b16 %v515
      %v1670 = vunpack.c.l.b16 %v516
      %v1671 = vunpack.c.h.b16 %v516
      %v1672 = vunpack.c.l.b16 %v517
      %v1673 = vunpack.c.h.b16 %v517
      %v1674 = vunpack.c.l.b16 %v518
      %v1675 = vunpack.c.h.b16 %v518
      %v1676 = vunpack.c.l.b16 %v519
      %v1677 = vunpack.c.h.b16 %v519
      %v1678 = vunpack.c.l.b16 %v520
      %v1679 = vunpack.c.h.b16 %v520
      %v1680 = vunpack.c.l.b16 %v521
      %v1681 = vunpack.c.h.b16 %v521
      %v1682 = vunpack.c.l.b16 %v522
      %v1683 = vunpack.c.h.b16 %v522
      %v1684 = vunpack.c.l.b16 %v523
      %v1685 = vunpack.c.h.b16 %v523
      %v1686 = vunpack.c.l.b16 %v524
      %v1687 = vunpack.c.h.b16 %v524
      %v1688 = vunpack.c.l.b16 %v525
      %v1689 = vunpack.c.h.b16 %v525
      %v1690 = vunpack.c.l.b16 %v526
      %v1691 = vunpack.c.h.b16 %v526
      %v1692 = vunpack.c.l.b16 %v527
      %v1693 = vunpack.c.h.b16 %v527
      %v1694 = vunpack.c.l.b16 %v528
      %v1695 = vunpack.c.h.b16 %v528
      %v1696 = vunpack.c.l.b16 %v529
      %v1697 = vunpack.c.h.b16 %v529
      %v1698 = vpack.c.b16 %v1412, %v1410
      %v1699 = vpack.c.b16 %v1413, %v1411
      %v1700 = vpack.c.b16 %v1416, %v1414
      %v1701 = vpack.c.b16 %v1417, %v1415
      %v1702 = vpack.c.b16 %v1420, %v1418
      %v1703 = vpack.c.b16 %v1421, %v1419
      %v1704 = vpack.c.b16 %v1424, %v1422
      %v1705 = vpack.c.b16 %v1425, %v1423
      %v1706 = vpack.c.b16 %v1428, %v1426
      %v1707 = vpack.c.b16 %v1429, %v1427
      %v1708 = vpack.c.b16 %v1432, %v1430
      %v1709 = vpack.c.b16 %v1433, %v1431
      %v1710 = vpack.c.b16 %v1436, %v1434
      %v1711 = vpack.c.b16 %v1437, %v1435
      %v1712 = vpack.c.b16 %v1440, %v1438
      %v1713 = vpack.c.b16 %v1441, %v1439
      %v1714 = vpack.c.b16 %v1444, %v1442
      %v1715 = vpack.c.b16 %v1445, %v1443
      %v1716 = vpack.c.b16 %v1448, %v1446
      %v1717 = vpack.c.b16 %v1449, %v1447
      %v1718 = vpack.c.b16 %v1452, %v1450
      %v1719 = vpack.c.b16 %v1453, %v1451
      %v1720 = vpack.c.b16 %v1456, %v1454
      %v1721 = vpack.c.b16 %v1457, %v1455
      %v1722 = vpack.c.b16 %v1460, %v1458
      %v1723 = vpack.c.b16 %v1461, %v1459
      %v1724 = vpack.c.b16 %v1464, %v1462
      %v1725 = vpack.c.b16 %v1465, %v1463
      %v1726 = vpack.c.b16 %v1468, %v1466
      %v1727 = vpack.c.b16 %v1469, %v1467
      %v1728 = vpack.c.b16 %v1472, %v1470
      %v1729 = vpack.c.b16 %v1473, %v1471
      %v1730 = vpack.c.b16 %v1476, %v1474
      %v1731 = vpack.c.b16 %v1477, %v1475
      %v1732 = vpack.c.b16 %v1480, %v1478
      %v1733 = vpack.c.b16 %v1481, %v1479
      %v1734 = vpack.c.b16 %v1484, %v1482
      %v1735 = vpack.c.b16 %v1485, %v1483
      %v1736 = vpack.c.b16 %v1488, %v1486
      %v1737 = vpack.c.b16 %v1489, %v1487
      %v1738 = vpack.c.b16 %v1492, %v1490
      %v1739 = vpack.c.b16 %v1493, %v1491
      %v1740 = vpack.c.b16 %v1496, %v1494
      %v1741 = vpack.c.b16 %v1497, %v1495
      %v1742 = vpack.c.b16 %v1500, %v1498
      %v1743 = vpack.c.b16 %v1501, %v1499
      %v1744 = vpack.c.b16 %v1504, %v1502
      %v1745 = vpack.c.b16 %v1505, %v1503
      %v1746 = vpack.c.b16 %v1508, %v1506
      %v1747 = vpack.c.b16 %v1509, %v1507
      %v1748 = vpack.c.b16 %v1512, %v1510
      %v1749 = vpack.c.b16 %v1513, %v1511
      %v1750 = vpack.c.b16 %v1516, %v1514
      %v1751 = vpack.c.b16 %v1517, %v1515
      %v1752 = vpack.c.b16 %v1520, %v1518
      %v1753 = vpack.c.b16 %v1521, %v1519
      %v1754 = vpack.c.b16 %v1524, %v1522
      %v1755 = vpack.c.b16 %v1525, %v1523
      %v1756 = vpack.c.b16 %v1528, %v1526
      %v1757 = vpack.c.b16 %v1529, %v1527
      %v1758 = vpack.c.b16 %v1532, %v1530
      %v1759 = vpack.c.b16 %v1533, %v1531
      %v1760 = vpack.c.b16 %v1536, %v1534
      %v1761 = vpack.c.b16 %v1537, %v1535
      %v1762 = vpack.c.b16 %v1540, %v1538
      %v1763 = vpack.c.b16 %v1541, %v1539
      %v1764 = vpack.c.b16 %v1544, %v1542
      %v1765 = vpack.c.b16 %v1545, %v1543
      %v1766 = vpack.c.b16 %v1548, %v1546
      %v1767 = vpack.c.b16 %v1549, %v1547
      %v1768 = vpack.c.b16 %v1552, %v1550
      %v1769 = vpack.c.b16 %v1553, %v1551
      %v1770 = vpack.c.b16 %v1556, %v1554
      %v1771 = vpack.c.b16 %v1557, %v1555
      %v1772 = vpack.c.b16 %v1560, %v1558
      %v1773 = vpack.c.b16 %v1561, %v1559
      %v1774 = vpack.c.b16 %v1564, %v1562
      %v1775 = vpack.c.b16 %v1565, %v1563
      %v1776 = vpack.c.b16 %v1568, %v1566
      %v1777 = vpack.c.b16 %v1569, %v1567
      %v1778 = vpack.c.b16 %v1572, %v1570
      %v1779 = vpack.c.b16 %v1573, %v1571
      %v1780 = vpack.c.b16 %v1576, %v1574
      %v1781 = vpack.c.b16 %v1577, %v1575
      %v1782 = vpack.c.b16 %v1580, %v1578
      %v1783 = vpack.c.b16 %v1581, %v1579
      %v1784 = vpack.c.b16 %v1584, %v1582
      %v1785 = vpack.c.b16 %v1585, %v1583
      %v1786 = vpack.c.b16 %v1588, %v1586
      %v1787 = vpack.c.b16 %v1589, %v1587
      %v1788 = vpack.c.b16 %v1592, %v1590
      %v1789 = vpack.c.b16 %v1593, %v1591
      %v1790 = vpack.c.b16 %v1596, %v1594
      %v1791 = vpack.c.b16 %v1597, %v1595
      %v1792 = vpack.c.b16 %v1600, %v1598
      %v1793 = vpack.c.b16 %v1601, %v1599
      %v1794 = vpack.c.b16 %v1604, %v1602
      %v1795 = vpack.c.b16 %v1605, %v1603
      %v1796 = vpack.c.b16 %v1608, %v1606
      %v1797 = vpack.c.b16 %v1609, %v1607
      %v1798 = vpack.c.b16 %v1612, %v1610
      %v1799 = vpack.c.b16 %v1613, %v1611
      %v1800 = vpack.c.b16 %v1616, %v1614
      %v1801 = vpack.c.b16 %v1617, %v1615
      %v1802 = vpack.c.b16 %v1620, %v1618
      %v1803 = vpack.c.b16 %v1621, %v1619
      %v1804 = vpack.c.b16 %v1624, %v1622
      %v1805 = vpack.c.b16 %v1625, %v1623
      %v1806 = vpack.c.b16 %v1628, %v1626
      %v1807 = vpack.c.b16 %v1629, %v1627
      %v1808 = vpack.c.b16 %v1632, %v1630
      %v1809 = vpack.c.b16 %v1633, %v1631
      %v1810 = vpack.c.b16 %v1636, %v1634
      %v1811 = vpack.c.b16 %v1637, %v1635
      %v1812 = vpack.c.b16 %v1640, %v1638
      %v1813 = vpack.c.b16 %v1641, %v1639
      %v1814 = vpack.c.b16 %v1644, %v1642
      %v1815 = vpack.c.b16 %v1645, %v1643
      %v1816 = vpack.c.b16 %v1648, %v1646
      %v1817 = vpack.c.b16 %v1649, %v1647
      %v1818 = vpack.c.b16 %v1652, %v1650
      %v1819 = vpack.c.b16 %v1653, %v1651
      %v1820 = vpack.c.b16 %v1656, %v1654
      %v1821 = vpack.c.b16 %v1657, %v1655
      %v1822 = vpack.c.b16 %v1660, %v1658
      %v1823 = vpack.c.b16 %v1661, %v1659
      %v1824 = vpack.c.b16 %v1664, %v1662
      %v1825 = vpack.c.b16 %v1665, %v1663
      %v1826 = vpack.c.b16 %v1668, %v1666
      %v1827 = vpack.c.b16 %v1669, %v1667
      %v1828 = vpack.c.b16 %v1672, %v1670
      %v1829 = vpack.c.b16 %v1673, %v1671
      %v1830 = vpack.c.b16 %v1676, %v1674
      %v1831 = vpack.c.b16 %v1677, %v1675
      %v1832 = vpack.c.b16 %v1680, %v1678
      %v1833 = vpack.c.b16 %v1681, %v1679
      %v1834 = vpack.c.b16 %v1684, %v1682
      %v1835 = vpack.c.b16 %v1685, %v1683
      %v1836 = vpack.c.b16 %v1688, %v1686
      %v1837 = vpack.c.b16 %v1689, %v1687
      %v1838 = vpack.c.b16 %v1692, %v1690
      %v1839 = vpack.c.b16 %v1693, %v1691
      %v1840 = vpack.c.b16 %v1696, %v1694
      %v1841 = vpack.c.b16 %v1697, %v1695
      %1986 = vmatprep.subr.bf16.mxu0 %v1713
      %1987 = vmatpush1.bf16.msra.mxu0 %v1712
      %1988 = vmatprep.subr.bf16.mxu0 %v1711
      %1989 = vmatpush1.bf16.msra.mxu0 %v1710
      %1990 = vmatprep.subr.bf16.mxu0 %v1709
      %1991 = vmatpush1.bf16.msra.mxu0 %v1708
      %1992 = vmatprep.subr.bf16.mxu0 %v1707
      %1993 = vmatpush1.bf16.msra.mxu0 %v1706
      %1994 = vmatprep.subr.bf16.mxu0 %v1705
      %1995 = vmatpush1.bf16.msra.mxu0 %v1704
      %1996 = vmatprep.subr.bf16.mxu0 %v1703
      %1997 = vmatpush1.bf16.msra.mxu0 %v1702
      %1998 = vmatprep.subr.bf16.mxu0 %v1701
      %1999 = vmatpush1.bf16.msra.mxu0 %v1700
      %2000 = vmatprep.subr.bf16.mxu0 %v1699
      %2001 = vmatpush1.bf16.msra.mxu0 %v1698
      %2002 = vmatprep.subr.bf16.mxu0 %v1729
      %2003 = vmatpush2.bf16.msra.mxu0 %v1728
      %2004 = vmatprep.subr.bf16.mxu0 %v1727
      %2005 = vmatpush2.bf16.msra.mxu0 %v1726
      %2006 = vmatprep.subr.bf16.mxu0 %v1725
      %2007 = vmatpush2.bf16.msra.mxu0 %v1724
      %2008 = vmatprep.subr.bf16.mxu0 %v1723
      %2009 = vmatpush2.bf16.msra.mxu0 %v1722
      %2010 = vmatprep.subr.bf16.mxu0 %v1721
      %2011 = vmatpush2.bf16.msra.mxu0 %v1720
      %2012 = vmatprep.subr.bf16.mxu0 %v1719
      %2013 = vmatpush2.bf16.msra.mxu0 %v1718
      %2014 = vmatprep.subr.bf16.mxu0 %v1717
      %2015 = vmatpush2.bf16.msra.mxu0 %v1716
      %2016 = vmatprep.subr.bf16.mxu0 %v1715
      %2017 = vmatpush2.bf16.msra.mxu0 %v1714
      %2018 = vmatprep.mubr.bf16.mxu0 %v979
      %2019 = vmatmul.mubr.bf16.gmra.mxu0 %v978
      %v2020 = vpop.f32.mrf.mxu0
      %v2021 = vadd.f32 0.0, %v2020
      %v2022 = vpop.f32.mrf.mxu0
      %v2023 = vadd.f32 0.0, %v2022
      %v2024 = vpop.f32.mrf.mxu0
      %v2025 = vadd.f32 0.0, %v2024
      %v2026 = vpop.f32.mrf.mxu0
      %v2027 = vadd.f32 0.0, %v2026
      %2028 = vmatprep.mubr.bf16.mxu0 %v988
      %2029 = vmatmul.mubr.bf16.gmra.mxu0 %v987
      %v2030 = vpop.f32.mrf.mxu0
      %v2031 = vadd.f32 0.0, %v2030
      %v2032 = vpop.f32.mrf.mxu0
      %v2033 = vadd.f32 0.0, %v2032
      %v2034 = vpop.f32.mrf.mxu0
      %v2035 = vadd.f32 0.0, %v2034
      %v2036 = vpop.f32.mrf.mxu0
      %v2037 = vadd.f32 0.0, %v2036
      %2038 = vmatprep.mubr.bf16.mxu0 %v997
      %2039 = vmatmul.mubr.bf16.gmra.mxu0 %v996
      %v2040 = vpop.f32.mrf.mxu0
      %v2041 = vadd.f32 0.0, %v2040
      %v2042 = vpop.f32.mrf.mxu0
      %v2043 = vadd.f32 0.0, %v2042
      %v2044 = vpop.f32.mrf.mxu0
      %v2045 = vadd.f32 0.0, %v2044
      %v2046 = vpop.f32.mrf.mxu0
      %v2047 = vadd.f32 0.0, %v2046
      %2048 = vmatprep.mubr.bf16.mxu0 %v1006
      %2049 = vmatmul.mubr.bf16.gmra.mxu0 %v1005
      %v2050 = vpop.f32.mrf.mxu0
      %v2051 = vadd.f32 0.0, %v2050
      %v2052 = vpop.f32.mrf.mxu0
      %v2053 = vadd.f32 0.0, %v2052
      %v2054 = vpop.f32.mrf.mxu0
      %v2055 = vadd.f32 0.0, %v2054
      %v2056 = vpop.f32.mrf.mxu0
      %v2057 = vadd.f32 0.0, %v2056
      %2058 = vmatprep.mubr.bf16.mxu0 %v1015
      %2059 = vmatmul.mubr.bf16.gmra.mxu0 %v1014
      %v2060 = vpop.f32.mrf.mxu0
      %v2061 = vadd.f32 0.0, %v2060
      %v2062 = vpop.f32.mrf.mxu0
      %v2063 = vadd.f32 0.0, %v2062
      %v2064 = vpop.f32.mrf.mxu0
      %v2065 = vadd.f32 0.0, %v2064
      %v2066 = vpop.f32.mrf.mxu0
      %v2067 = vadd.f32 0.0, %v2066
      %2068 = vmatprep.mubr.bf16.mxu0 %v1024
      %2069 = vmatmul.mubr.bf16.gmra.mxu0 %v1023
      %v2070 = vpop.f32.mrf.mxu0
      %v2071 = vadd.f32 0.0, %v2070
      %v2072 = vpop.f32.mrf.mxu0
      %v2073 = vadd.f32 0.0, %v2072
      %v2074 = vpop.f32.mrf.mxu0
      %v2075 = vadd.f32 0.0, %v2074
      %v2076 = vpop.f32.mrf.mxu0
      %v2077 = vadd.f32 0.0, %v2076
      %2078 = vmatprep.mubr.bf16.mxu0 %v1033
      %2079 = vmatmul.mubr.bf16.gmra.mxu0 %v1032
      %v2080 = vpop.f32.mrf.mxu0
      %v2081 = vadd.f32 0.0, %v2080
      %v2082 = vpop.f32.mrf.mxu0
      %v2083 = vadd.f32 0.0, %v2082
      %v2084 = vpop.f32.mrf.mxu0
      %v2085 = vadd.f32 0.0, %v2084
      %v2086 = vpop.f32.mrf.mxu0
      %v2087 = vadd.f32 0.0, %v2086
      %2088 = vmatprep.mubr.bf16.mxu0 %v1042
      %2089 = vmatmul.mubr.bf16.gmra.mxu0 %v1041
      %v2090 = vpop.f32.mrf.mxu0
      %v2091 = vadd.f32 0.0, %v2090
      %v2092 = vpop.f32.mrf.mxu0
      %v2093 = vadd.f32 0.0, %v2092
      %v2094 = vpop.f32.mrf.mxu0
      %v2095 = vadd.f32 0.0, %v2094
      %v2096 = vpop.f32.mrf.mxu0
      %v2097 = vadd.f32 0.0, %v2096
      %2098 = vmatprep.mubr.bf16.mxu0 %v1051
      %2099 = vmatmul.mubr.bf16.gmra.mxu0 %v1050
      %v2100 = vpop.f32.mrf.mxu0
      %v2101 = vadd.f32 0.0, %v2100
      %v2102 = vpop.f32.mrf.mxu0
      %v2103 = vadd.f32 0.0, %v2102
      %v2104 = vpop.f32.mrf.mxu0
      %v2105 = vadd.f32 0.0, %v2104
      %v2106 = vpop.f32.mrf.mxu0
      %v2107 = vadd.f32 0.0, %v2106
      %2108 = vmatprep.mubr.bf16.mxu0 %v1060
      %2109 = vmatmul.mubr.bf16.gmra.mxu0 %v1059
      %v2110 = vpop.f32.mrf.mxu0
      %v2111 = vadd.f32 0.0, %v2110
      %v2112 = vpop.f32.mrf.mxu0
      %v2113 = vadd.f32 0.0, %v2112
      %v2114 = vpop.f32.mrf.mxu0
      %v2115 = vadd.f32 0.0, %v2114
      %v2116 = vpop.f32.mrf.mxu0
      %v2117 = vadd.f32 0.0, %v2116
      %2118 = vmatprep.mubr.bf16.mxu0 %v1069
      %2119 = vmatmul.mubr.bf16.gmra.mxu0 %v1068
      %v2120 = vpop.f32.mrf.mxu0
      %v2121 = vadd.f32 0.0, %v2120
      %v2122 = vpop.f32.mrf.mxu0
      %v2123 = vadd.f32 0.0, %v2122
      %v2124 = vpop.f32.mrf.mxu0
      %v2125 = vadd.f32 0.0, %v2124
      %v2126 = vpop.f32.mrf.mxu0
      %v2127 = vadd.f32 0.0, %v2126
      %2128 = vmatprep.mubr.bf16.mxu0 %v1078
      %2129 = vmatmul.mubr.bf16.gmra.mxu0 %v1077
      %v2130 = vpop.f32.mrf.mxu0
      %v2131 = vadd.f32 0.0, %v2130
      %v2132 = vpop.f32.mrf.mxu0
      %v2133 = vadd.f32 0.0, %v2132
      %v2134 = vpop.f32.mrf.mxu0
      %v2135 = vadd.f32 0.0, %v2134
      %v2136 = vpop.f32.mrf.mxu0
      %v2137 = vadd.f32 0.0, %v2136
      %2138 = vmatprep.mubr.bf16.mxu0 %v1087
      %2139 = vmatmul.mubr.bf16.gmra.mxu0 %v1086
      %v2140 = vpop.f32.mrf.mxu0
      %v2141 = vadd.f32 0.0, %v2140
      %v2142 = vpop.f32.mrf.mxu0
      %v2143 = vadd.f32 0.0, %v2142
      %v2144 = vpop.f32.mrf.mxu0
      %v2145 = vadd.f32 0.0, %v2144
      %v2146 = vpop.f32.mrf.mxu0
      %v2147 = vadd.f32 0.0, %v2146
      %2148 = vmatprep.mubr.bf16.mxu0 %v1096
      %2149 = vmatmul.mubr.bf16.gmra.mxu0 %v1095
      %v2150 = vpop.f32.mrf.mxu0
      %v2151 = vadd.f32 0.0, %v2150
      %v2152 = vpop.f32.mrf.mxu0
      %v2153 = vadd.f32 0.0, %v2152
      %v2154 = vpop.f32.mrf.mxu0
      %v2155 = vadd.f32 0.0, %v2154
      %v2156 = vpop.f32.mrf.mxu0
      %v2157 = vadd.f32 0.0, %v2156
      %2158 = vmatprep.mubr.bf16.mxu0 %v1105
      %2159 = vmatmul.mubr.bf16.gmra.mxu0 %v1104
      %v2160 = vpop.f32.mrf.mxu0
      %v2161 = vadd.f32 0.0, %v2160
      %v2162 = vpop.f32.mrf.mxu0
      %v2163 = vadd.f32 0.0, %v2162
      %v2164 = vpop.f32.mrf.mxu0
      %v2165 = vadd.f32 0.0, %v2164
      %v2166 = vpop.f32.mrf.mxu0
      %v2167 = vadd.f32 0.0, %v2166
      %2168 = vmatprep.mubr.bf16.mxu0 %v1114
      %2169 = vmatmul.mubr.bf16.gmra.mxu0 %v1113
      %v2170 = vpop.f32.mrf.mxu0
      %v2171 = vadd.f32 0.0, %v2170
      %v2172 = vpop.f32.mrf.mxu0
      %v2173 = vadd.f32 0.0, %v2172
      %v2174 = vpop.f32.mrf.mxu0
      %v2175 = vadd.f32 0.0, %v2174
      %v2176 = vpop.f32.mrf.mxu0
      %v2177 = vadd.f32 0.0, %v2176
      %2178 = vdwg.mxu0
      %2179 = vmatprep.subr.bf16.mxu0 %v1745
      %2180 = vmatpush1.bf16.msra.mxu0 %v1744
      %2181 = vmatprep.subr.bf16.mxu0 %v1743
      %2182 = vmatpush1.bf16.msra.mxu0 %v1742
      %2183 = vmatprep.subr.bf16.mxu0 %v1741
      %2184 = vmatpush1.bf16.msra.mxu0 %v1740
      %2185 = vmatprep.subr.bf16.mxu0 %v1739
      %2186 = vmatpush1.bf16.msra.mxu0 %v1738
      %2187 = vmatprep.subr.bf16.mxu0 %v1737
      %2188 = vmatpush1.bf16.msra.mxu0 %v1736
      %2189 = vmatprep.subr.bf16.mxu0 %v1735
      %2190 = vmatpush1.bf16.msra.mxu0 %v1734
      %2191 = vmatprep.subr.bf16.mxu0 %v1733
      %2192 = vmatpush1.bf16.msra.mxu0 %v1732
      %2193 = vmatprep.subr.bf16.mxu0 %v1731
      %2194 = vmatpush1.bf16.msra.mxu0 %v1730
      %2195 = vmatprep.subr.bf16.mxu0 %v1761
      %2196 = vmatpush2.bf16.msra.mxu0 %v1760
      %2197 = vmatprep.subr.bf16.mxu0 %v1759
      %2198 = vmatpush2.bf16.msra.mxu0 %v1758
      %2199 = vmatprep.subr.bf16.mxu0 %v1757
      %2200 = vmatpush2.bf16.msra.mxu0 %v1756
      %2201 = vmatprep.subr.bf16.mxu0 %v1755
      %2202 = vmatpush2.bf16.msra.mxu0 %v1754
      %2203 = vmatprep.subr.bf16.mxu0 %v1753
      %2204 = vmatpush2.bf16.msra.mxu0 %v1752
      %2205 = vmatprep.subr.bf16.mxu0 %v1751
      %2206 = vmatpush2.bf16.msra.mxu0 %v1750
      %2207 = vmatprep.subr.bf16.mxu0 %v1749
      %2208 = vmatpush2.bf16.msra.mxu0 %v1748
      %2209 = vmatprep.subr.bf16.mxu0 %v1747
      %2210 = vmatpush2.bf16.msra.mxu0 %v1746
      %2211 = vmatprep.mubr.bf16.mxu0 %v981
      %2212 = vmatmul.mubr.bf16.gmra.mxu0 %v980
      %v2213 = vpop.f32.mrf.mxu0
      %v2214 = vadd.f32 %v2021, %v2213
      %v2215 = vpop.f32.mrf.mxu0
      %v2216 = vadd.f32 %v2023, %v2215
      %v2217 = vpop.f32.mrf.mxu0
      %v2218 = vadd.f32 %v2025, %v2217
      %v2219 = vpop.f32.mrf.mxu0
      %v2220 = vadd.f32 %v2027, %v2219
      %2221 = vmatprep.mubr.bf16.mxu0 %v990
      %2222 = vmatmul.mubr.bf16.gmra.mxu0 %v989
      %v2223 = vpop.f32.mrf.mxu0
      %v2224 = vadd.f32 %v2031, %v2223
      %v2225 = vpop.f32.mrf.mxu0
      %v2226 = vadd.f32 %v2033, %v2225
      %v2227 = vpop.f32.mrf.mxu0
      %v2228 = vadd.f32 %v2035, %v2227
      %v2229 = vpop.f32.mrf.mxu0
      %v2230 = vadd.f32 %v2037, %v2229
      %2231 = vmatprep.mubr.bf16.mxu0 %v999
      %2232 = vmatmul.mubr.bf16.gmra.mxu0 %v998
      %v2233 = vpop.f32.mrf.mxu0
      %v2234 = vadd.f32 %v2041, %v2233
      %v2235 = vpop.f32.mrf.mxu0
      %v2236 = vadd.f32 %v2043, %v2235
      %v2237 = vpop.f32.mrf.mxu0
      %v2238 = vadd.f32 %v2045, %v2237
      %v2239 = vpop.f32.mrf.mxu0
      %v2240 = vadd.f32 %v2047, %v2239
      %2241 = vmatprep.mubr.bf16.mxu0 %v1008
      %2242 = vmatmul.mubr.bf16.gmra.mxu0 %v1007
      %v2243 = vpop.f32.mrf.mxu0
      %v2244 = vadd.f32 %v2051, %v2243
      %v2245 = vpop.f32.mrf.mxu0
      %v2246 = vadd.f32 %v2053, %v2245
      %v2247 = vpop.f32.mrf.mxu0
      %v2248 = vadd.f32 %v2055, %v2247
      %v2249 = vpop.f32.mrf.mxu0
      %v2250 = vadd.f32 %v2057, %v2249
      %2251 = vmatprep.mubr.bf16.mxu0 %v1017
      %2252 = vmatmul.mubr.bf16.gmra.mxu0 %v1016
      %v2253 = vpop.f32.mrf.mxu0
      %v2254 = vadd.f32 %v2061, %v2253
      %v2255 = vpop.f32.mrf.mxu0
      %v2256 = vadd.f32 %v2063, %v2255
      %v2257 = vpop.f32.mrf.mxu0
      %v2258 = vadd.f32 %v2065, %v2257
      %v2259 = vpop.f32.mrf.mxu0
      %v2260 = vadd.f32 %v2067, %v2259
      %2261 = vmatprep.mubr.bf16.mxu0 %v1026
      %2262 = vmatmul.mubr.bf16.gmra.mxu0 %v1025
      %v2263 = vpop.f32.mrf.mxu0
      %v2264 = vadd.f32 %v2071, %v2263
      %v2265 = vpop.f32.mrf.mxu0
      %v2266 = vadd.f32 %v2073, %v2265
      %v2267 = vpop.f32.mrf.mxu0
      %v2268 = vadd.f32 %v2075, %v2267
      %v2269 = vpop.f32.mrf.mxu0
      %v2270 = vadd.f32 %v2077, %v2269
      %2271 = vmatprep.mubr.bf16.mxu0 %v1035
      %2272 = vmatmul.mubr.bf16.gmra.mxu0 %v1034
      %v2273 = vpop.f32.mrf.mxu0
      %v2274 = vadd.f32 %v2081, %v2273
      %v2275 = vpop.f32.mrf.mxu0
      %v2276 = vadd.f32 %v2083, %v2275
      %v2277 = vpop.f32.mrf.mxu0
      %v2278 = vadd.f32 %v2085, %v2277
      %v2279 = vpop.f32.mrf.mxu0
      %v2280 = vadd.f32 %v2087, %v2279
      %2281 = vmatprep.mubr.bf16.mxu0 %v1044
      %2282 = vmatmul.mubr.bf16.gmra.mxu0 %v1043
      %v2283 = vpop.f32.mrf.mxu0
      %v2284 = vadd.f32 %v2091, %v2283
      %v2285 = vpop.f32.mrf.mxu0
      %v2286 = vadd.f32 %v2093, %v2285
      %v2287 = vpop.f32.mrf.mxu0
      %v2288 = vadd.f32 %v2095, %v2287
      %v2289 = vpop.f32.mrf.mxu0
      %v2290 = vadd.f32 %v2097, %v2289
      %2291 = vmatprep.mubr.bf16.mxu0 %v1053
      %2292 = vmatmul.mubr.bf16.gmra.mxu0 %v1052
      %v2293 = vpop.f32.mrf.mxu0
      %v2294 = vadd.f32 %v2101, %v2293
      %v2295 = vpop.f32.mrf.mxu0
      %v2296 = vadd.f32 %v2103, %v2295
      %v2297 = vpop.f32.mrf.mxu0
      %v2298 = vadd.f32 %v2105, %v2297
      %v2299 = vpop.f32.mrf.mxu0
      %v2300 = vadd.f32 %v2107, %v2299
      %2301 = vmatprep.mubr.bf16.mxu0 %v1062
      %2302 = vmatmul.mubr.bf16.gmra.mxu0 %v1061
      %v2303 = vpop.f32.mrf.mxu0
      %v2304 = vadd.f32 %v2111, %v2303
      %v2305 = vpop.f32.mrf.mxu0
      %v2306 = vadd.f32 %v2113, %v2305
      %v2307 = vpop.f32.mrf.mxu0
      %v2308 = vadd.f32 %v2115, %v2307
      %v2309 = vpop.f32.mrf.mxu0
      %v2310 = vadd.f32 %v2117, %v2309
      %2311 = vmatprep.mubr.bf16.mxu0 %v1071
      %2312 = vmatmul.mubr.bf16.gmra.mxu0 %v1070
      %v2313 = vpop.f32.mrf.mxu0
      %v2314 = vadd.f32 %v2121, %v2313
      %v2315 = vpop.f32.mrf.mxu0
      %v2316 = vadd.f32 %v2123, %v2315
      %v2317 = vpop.f32.mrf.mxu0
      %v2318 = vadd.f32 %v2125, %v2317
      %v2319 = vpop.f32.mrf.mxu0
      %v2320 = vadd.f32 %v2127, %v2319
      %2321 = vmatprep.mubr.bf16.mxu0 %v1080
      %2322 = vmatmul.mubr.bf16.gmra.mxu0 %v1079
      %v2323 = vpop.f32.mrf.mxu0
      %v2324 = vadd.f32 %v2131, %v2323
      %v2325 = vpop.f32.mrf.mxu0
      %v2326 = vadd.f32 %v2133, %v2325
      %v2327 = vpop.f32.mrf.mxu0
      %v2328 = vadd.f32 %v2135, %v2327
      %v2329 = vpop.f32.mrf.mxu0
      %v2330 = vadd.f32 %v2137, %v2329
      %2331 = vmatprep.mubr.bf16.mxu0 %v1089
      %2332 = vmatmul.mubr.bf16.gmra.mxu0 %v1088
      %v2333 = vpop.f32.mrf.mxu0
      %v2334 = vadd.f32 %v2141, %v2333
      %v2335 = vpop.f32.mrf.mxu0
      %v2336 = vadd.f32 %v2143, %v2335
      %v2337 = vpop.f32.mrf.mxu0
      %v2338 = vadd.f32 %v2145, %v2337
      %v2339 = vpop.f32.mrf.mxu0
      %v2340 = vadd.f32 %v2147, %v2339
      %2341 = vmatprep.mubr.bf16.mxu0 %v1098
      %2342 = vmatmul.mubr.bf16.gmra.mxu0 %v1097
      %v2343 = vpop.f32.mrf.mxu0
      %v2344 = vadd.f32 %v2151, %v2343
      %v2345 = vpop.f32.mrf.mxu0
      %v2346 = vadd.f32 %v2153, %v2345
      %v2347 = vpop.f32.mrf.mxu0
      %v2348 = vadd.f32 %v2155, %v2347
      %v2349 = vpop.f32.mrf.mxu0
      %v2350 = vadd.f32 %v2157, %v2349
      %2351 = vmatprep.mubr.bf16.mxu0 %v1107
      %2352 = vmatmul.mubr.bf16.gmra.mxu0 %v1106
      %v2353 = vpop.f32.mrf.mxu0
      %v2354 = vadd.f32 %v2161, %v2353
      %v2355 = vpop.f32.mrf.mxu0
      %v2356 = vadd.f32 %v2163, %v2355
      %v2357 = vpop.f32.mrf.mxu0
      %v2358 = vadd.f32 %v2165, %v2357
      %v2359 = vpop.f32.mrf.mxu0
      %v2360 = vadd.f32 %v2167, %v2359
      %2361 = vmatprep.mubr.bf16.mxu0 %v1116
      %2362 = vmatmul.mubr.bf16.gmra.mxu0 %v1115
      %v2363 = vpop.f32.mrf.mxu0
      %v2364 = vadd.f32 %v2171, %v2363
      %v2365 = vpop.f32.mrf.mxu0
      %v2366 = vadd.f32 %v2173, %v2365
      %v2367 = vpop.f32.mrf.mxu0
      %v2368 = vadd.f32 %v2175, %v2367
      %v2369 = vpop.f32.mrf.mxu0
      %v2370 = vadd.f32 %v2177, %v2369
      %2371 = vdwg.mxu0
      %2372 = vmatprep.subr.bf16.mxu0 %v1777
      %2373 = vmatpush1.bf16.msra.mxu0 %v1776
      %2374 = vmatprep.subr.bf16.mxu0 %v1775
      %2375 = vmatpush1.bf16.msra.mxu0 %v1774
      %2376 = vmatprep.subr.bf16.mxu0 %v1773
      %2377 = vmatpush1.bf16.msra.mxu0 %v1772
      %2378 = vmatprep.subr.bf16.mxu0 %v1771
      %2379 = vmatpush1.bf16.msra.mxu0 %v1770
      %2380 = vmatprep.subr.bf16.mxu0 %v1769
      %2381 = vmatpush1.bf16.msra.mxu0 %v1768
      %2382 = vmatprep.subr.bf16.mxu0 %v1767
      %2383 = vmatpush1.bf16.msra.mxu0 %v1766
      %2384 = vmatprep.subr.bf16.mxu0 %v1765
      %2385 = vmatpush1.bf16.msra.mxu0 %v1764
      %2386 = vmatprep.subr.bf16.mxu0 %v1763
      %2387 = vmatpush1.bf16.msra.mxu0 %v1762
      %2388 = vmatprep.subr.bf16.mxu0 %v1793
      %2389 = vmatpush2.bf16.msra.mxu0 %v1792
      %2390 = vmatprep.subr.bf16.mxu0 %v1791
      %2391 = vmatpush2.bf16.msra.mxu0 %v1790
      %2392 = vmatprep.subr.bf16.mxu0 %v1789
      %2393 = vmatpush2.bf16.msra.mxu0 %v1788
      %2394 = vmatprep.subr.bf16.mxu0 %v1787
      %2395 = vmatpush2.bf16.msra.mxu0 %v1786
      %2396 = vmatprep.subr.bf16.mxu0 %v1785
      %2397 = vmatpush2.bf16.msra.mxu0 %v1784
      %2398 = vmatprep.subr.bf16.mxu0 %v1783
      %2399 = vmatpush2.bf16.msra.mxu0 %v1782
      %2400 = vmatprep.subr.bf16.mxu0 %v1781
      %2401 = vmatpush2.bf16.msra.mxu0 %v1780
      %2402 = vmatprep.subr.bf16.mxu0 %v1779
      %2403 = vmatpush2.bf16.msra.mxu0 %v1778
      %2404 = vmatprep.mubr.bf16.mxu0 %v983
      %2405 = vmatmul.mubr.bf16.gmra.mxu0 %v982
      %v2406 = vpop.f32.mrf.mxu0
      %v2407 = vadd.f32 %v2214, %v2406
      %v2408 = vpop.f32.mrf.mxu0
      %v2409 = vadd.f32 %v2216, %v2408
      %v2410 = vpop.f32.mrf.mxu0
      %v2411 = vadd.f32 %v2218, %v2410
      %v2412 = vpop.f32.mrf.mxu0
      %v2413 = vadd.f32 %v2220, %v2412
      %2414 = vmatprep.mubr.bf16.mxu0 %v992
      %2415 = vmatmul.mubr.bf16.gmra.mxu0 %v991
      %v2416 = vpop.f32.mrf.mxu0
      %v2417 = vadd.f32 %v2224, %v2416
      %v2418 = vpop.f32.mrf.mxu0
      %v2419 = vadd.f32 %v2226, %v2418
      %v2420 = vpop.f32.mrf.mxu0
      %v2421 = vadd.f32 %v2228, %v2420
      %v2422 = vpop.f32.mrf.mxu0
      %v2423 = vadd.f32 %v2230, %v2422
      %2424 = vmatprep.mubr.bf16.mxu0 %v1001
      %2425 = vmatmul.mubr.bf16.gmra.mxu0 %v1000
      %v2426 = vpop.f32.mrf.mxu0
      %v2427 = vadd.f32 %v2234, %v2426
      %v2428 = vpop.f32.mrf.mxu0
      %v2429 = vadd.f32 %v2236, %v2428
      %v2430 = vpop.f32.mrf.mxu0
      %v2431 = vadd.f32 %v2238, %v2430
      %v2432 = vpop.f32.mrf.mxu0
      %v2433 = vadd.f32 %v2240, %v2432
      %2434 = vmatprep.mubr.bf16.mxu0 %v1010
      %2435 = vmatmul.mubr.bf16.gmra.mxu0 %v1009
      %v2436 = vpop.f32.mrf.mxu0
      %v2437 = vadd.f32 %v2244, %v2436
      %v2438 = vpop.f32.mrf.mxu0
      %v2439 = vadd.f32 %v2246, %v2438
      %v2440 = vpop.f32.mrf.mxu0
      %v2441 = vadd.f32 %v2248, %v2440
      %v2442 = vpop.f32.mrf.mxu0
      %v2443 = vadd.f32 %v2250, %v2442
      %2444 = vmatprep.mubr.bf16.mxu0 %v1019
      %2445 = vmatmul.mubr.bf16.gmra.mxu0 %v1018
      %v2446 = vpop.f32.mrf.mxu0
      %v2447 = vadd.f32 %v2254, %v2446
      %v2448 = vpop.f32.mrf.mxu0
      %v2449 = vadd.f32 %v2256, %v2448
      %v2450 = vpop.f32.mrf.mxu0
      %v2451 = vadd.f32 %v2258, %v2450
      %v2452 = vpop.f32.mrf.mxu0
      %v2453 = vadd.f32 %v2260, %v2452
      %2454 = vmatprep.mubr.bf16.mxu0 %v1028
      %2455 = vmatmul.mubr.bf16.gmra.mxu0 %v1027
      %v2456 = vpop.f32.mrf.mxu0
      %v2457 = vadd.f32 %v2264, %v2456
      %v2458 = vpop.f32.mrf.mxu0
      %v2459 = vadd.f32 %v2266, %v2458
      %v2460 = vpop.f32.mrf.mxu0
      %v2461 = vadd.f32 %v2268, %v2460
      %v2462 = vpop.f32.mrf.mxu0
      %v2463 = vadd.f32 %v2270, %v2462
      %2464 = vmatprep.mubr.bf16.mxu0 %v1037
      %2465 = vmatmul.mubr.bf16.gmra.mxu0 %v1036
      %v2466 = vpop.f32.mrf.mxu0
      %v2467 = vadd.f32 %v2274, %v2466
      %v2468 = vpop.f32.mrf.mxu0
      %v2469 = vadd.f32 %v2276, %v2468
      %v2470 = vpop.f32.mrf.mxu0
      %v2471 = vadd.f32 %v2278, %v2470
      %v2472 = vpop.f32.mrf.mxu0
      %v2473 = vadd.f32 %v2280, %v2472
      %2474 = vmatprep.mubr.bf16.mxu0 %v1046
      %2475 = vmatmul.mubr.bf16.gmra.mxu0 %v1045
      %v2476 = vpop.f32.mrf.mxu0
      %v2477 = vadd.f32 %v2284, %v2476
      %v2478 = vpop.f32.mrf.mxu0
      %v2479 = vadd.f32 %v2286, %v2478
      %v2480 = vpop.f32.mrf.mxu0
      %v2481 = vadd.f32 %v2288, %v2480
      %v2482 = vpop.f32.mrf.mxu0
      %v2483 = vadd.f32 %v2290, %v2482
      %2484 = vmatprep.mubr.bf16.mxu0 %v1055
      %2485 = vmatmul.mubr.bf16.gmra.mxu0 %v1054
      %v2486 = vpop.f32.mrf.mxu0
      %v2487 = vadd.f32 %v2294, %v2486
      %v2488 = vpop.f32.mrf.mxu0
      %v2489 = vadd.f32 %v2296, %v2488
      %v2490 = vpop.f32.mrf.mxu0
      %v2491 = vadd.f32 %v2298, %v2490
      %v2492 = vpop.f32.mrf.mxu0
      %v2493 = vadd.f32 %v2300, %v2492
      %2494 = vmatprep.mubr.bf16.mxu0 %v1064
      %2495 = vmatmul.mubr.bf16.gmra.mxu0 %v1063
      %v2496 = vpop.f32.mrf.mxu0
      %v2497 = vadd.f32 %v2304, %v2496
      %v2498 = vpop.f32.mrf.mxu0
      %v2499 = vadd.f32 %v2306, %v2498
      %v2500 = vpop.f32.mrf.mxu0
      %v2501 = vadd.f32 %v2308, %v2500
      %v2502 = vpop.f32.mrf.mxu0
      %v2503 = vadd.f32 %v2310, %v2502
      %2504 = vmatprep.mubr.bf16.mxu0 %v1073
      %2505 = vmatmul.mubr.bf16.gmra.mxu0 %v1072
      %v2506 = vpop.f32.mrf.mxu0
      %v2507 = vadd.f32 %v2314, %v2506
      %v2508 = vpop.f32.mrf.mxu0
      %v2509 = vadd.f32 %v2316, %v2508
      %v2510 = vpop.f32.mrf.mxu0
      %v2511 = vadd.f32 %v2318, %v2510
      %v2512 = vpop.f32.mrf.mxu0
      %v2513 = vadd.f32 %v2320, %v2512
      %2514 = vmatprep.mubr.bf16.mxu0 %v1082
      %2515 = vmatmul.mubr.bf16.gmra.mxu0 %v1081
      %v2516 = vpop.f32.mrf.mxu0
      %v2517 = vadd.f32 %v2324, %v2516
      %v2518 = vpop.f32.mrf.mxu0
      %v2519 = vadd.f32 %v2326, %v2518
      %v2520 = vpop.f32.mrf.mxu0
      %v2521 = vadd.f32 %v2328, %v2520
      %v2522 = vpop.f32.mrf.mxu0
      %v2523 = vadd.f32 %v2330, %v2522
      %2524 = vmatprep.mubr.bf16.mxu0 %v1091
      %2525 = vmatmul.mubr.bf16.gmra.mxu0 %v1090
      %v2526 = vpop.f32.mrf.mxu0
      %v2527 = vadd.f32 %v2334, %v2526
      %v2528 = vpop.f32.mrf.mxu0
      %v2529 = vadd.f32 %v2336, %v2528
      %v2530 = vpop.f32.mrf.mxu0
      %v2531 = vadd.f32 %v2338, %v2530
      %v2532 = vpop.f32.mrf.mxu0
      %v2533 = vadd.f32 %v2340, %v2532
      %2534 = vmatprep.mubr.bf16.mxu0 %v1100
      %2535 = vmatmul.mubr.bf16.gmra.mxu0 %v1099
      %v2536 = vpop.f32.mrf.mxu0
      %v2537 = vadd.f32 %v2344, %v2536
      %v2538 = vpop.f32.mrf.mxu0
      %v2539 = vadd.f32 %v2346, %v2538
      %v2540 = vpop.f32.mrf.mxu0
      %v2541 = vadd.f32 %v2348, %v2540
      %v2542 = vpop.f32.mrf.mxu0
      %v2543 = vadd.f32 %v2350, %v2542
      %2544 = vmatprep.mubr.bf16.mxu0 %v1109
      %2545 = vmatmul.mubr.bf16.gmra.mxu0 %v1108
      %v2546 = vpop.f32.mrf.mxu0
      %v2547 = vadd.f32 %v2354, %v2546
      %v2548 = vpop.f32.mrf.mxu0
      %v2549 = vadd.f32 %v2356, %v2548
      %v2550 = vpop.f32.mrf.mxu0
      %v2551 = vadd.f32 %v2358, %v2550
      %v2552 = vpop.f32.mrf.mxu0
      %v2553 = vadd.f32 %v2360, %v2552
      %2554 = vmatprep.mubr.bf16.mxu0 %v1118
      %2555 = vmatmul.mubr.bf16.gmra.mxu0 %v1117
      %v2556 = vpop.f32.mrf.mxu0
      %v2557 = vadd.f32 %v2364, %v2556
      %v2558 = vpop.f32.mrf.mxu0
      %v2559 = vadd.f32 %v2366, %v2558
      %v2560 = vpop.f32.mrf.mxu0
      %v2561 = vadd.f32 %v2368, %v2560
      %v2562 = vpop.f32.mrf.mxu0
      %v2563 = vadd.f32 %v2370, %v2562
      %2564 = vdwg.mxu0
      %2565 = vmatprep.subr.bf16.mxu0 %v1809
      %2566 = vmatpush1.bf16.msra.mxu0 %v1808
      %2567 = vmatprep.subr.bf16.mxu0 %v1807
      %2568 = vmatpush1.bf16.msra.mxu0 %v1806
      %2569 = vmatprep.subr.bf16.mxu0 %v1805
      %2570 = vmatpush1.bf16.msra.mxu0 %v1804
      %2571 = vmatprep.subr.bf16.mxu0 %v1803
      %2572 = vmatpush1.bf16.msra.mxu0 %v1802
      %2573 = vmatprep.subr.bf16.mxu0 %v1801
      %2574 = vmatpush1.bf16.msra.mxu0 %v1800
      %2575 = vmatprep.subr.bf16.mxu0 %v1799
      %2576 = vmatpush1.bf16.msra.mxu0 %v1798
      %2577 = vmatprep.subr.bf16.mxu0 %v1797
      %2578 = vmatpush1.bf16.msra.mxu0 %v1796
      %2579 = vmatprep.subr.bf16.mxu0 %v1795
      %2580 = vmatpush1.bf16.msra.mxu0 %v1794
      %2581 = vmatprep.subr.bf16.mxu0 %v1825
      %2582 = vmatpush2.bf16.msra.mxu0 %v1824
      %2583 = vmatprep.subr.bf16.mxu0 %v1823
      %2584 = vmatpush2.bf16.msra.mxu0 %v1822
      %2585 = vmatprep.subr.bf16.mxu0 %v1821
      %2586 = vmatpush2.bf16.msra.mxu0 %v1820
      %2587 = vmatprep.subr.bf16.mxu0 %v1819
      %2588 = vmatpush2.bf16.msra.mxu0 %v1818
      %2589 = vmatprep.subr.bf16.mxu0 %v1817
      %2590 = vmatpush2.bf16.msra.mxu0 %v1816
      %2591 = vmatprep.subr.bf16.mxu0 %v1815
      %2592 = vmatpush2.bf16.msra.mxu0 %v1814
      %2593 = vmatprep.subr.bf16.mxu0 %v1813
      %2594 = vmatpush2.bf16.msra.mxu0 %v1812
      %2595 = vmatprep.subr.bf16.mxu0 %v1811
      %2596 = vmatpush2.bf16.msra.mxu0 %v1810
      %2597 = vmatprep.mubr.bf16.mxu0 %v985
      %2598 = vmatmul.mubr.bf16.gmra.mxu0 %v984
      %v2599 = vpop.f32.mrf.mxu0
      %v2600 = vadd.f32 %v2407, %v2599
      %v2601 = vpop.f32.mrf.mxu0
      %v2602 = vadd.f32 %v2409, %v2601
      %v2603 = vpop.f32.mrf.mxu0
      %v2604 = vadd.f32 %v2411, %v2603
      %v2605 = vpop.f32.mrf.mxu0
      %v2606 = vadd.f32 %v2413, %v2605
      %2607 = vmatprep.mubr.bf16.mxu0 %v994
      %2608 = vmatmul.mubr.bf16.gmra.mxu0 %v993
      %v2609 = vpop.f32.mrf.mxu0
      %v2610 = vadd.f32 %v2417, %v2609
      %v2611 = vpop.f32.mrf.mxu0
      %v2612 = vadd.f32 %v2419, %v2611
      %v2613 = vpop.f32.mrf.mxu0
      %v2614 = vadd.f32 %v2421, %v2613
      %v2615 = vpop.f32.mrf.mxu0
      %v2616 = vadd.f32 %v2423, %v2615
      %2617 = vmatprep.mubr.bf16.mxu0 %v1003
      %2618 = vmatmul.mubr.bf16.gmra.mxu0 %v1002
      %v2619 = vpop.f32.mrf.mxu0
      %v2620 = vadd.f32 %v2427, %v2619
      %v2621 = vpop.f32.mrf.mxu0
      %v2622 = vadd.f32 %v2429, %v2621
      %v2623 = vpop.f32.mrf.mxu0
      %v2624 = vadd.f32 %v2431, %v2623
      %v2625 = vpop.f32.mrf.mxu0
      %v2626 = vadd.f32 %v2433, %v2625
      %2627 = vmatprep.mubr.bf16.mxu0 %v1012
      %2628 = vmatmul.mubr.bf16.gmra.mxu0 %v1011
      %v2629 = vpop.f32.mrf.mxu0
      %v2630 = vadd.f32 %v2437, %v2629
      %v2631 = vpop.f32.mrf.mxu0
      %v2632 = vadd.f32 %v2439, %v2631
      %v2633 = vpop.f32.mrf.mxu0
      %v2634 = vadd.f32 %v2441, %v2633
      %v2635 = vpop.f32.mrf.mxu0
      %v2636 = vadd.f32 %v2443, %v2635
      %2637 = vmatprep.mubr.bf16.mxu0 %v1021
      %2638 = vmatmul.mubr.bf16.gmra.mxu0 %v1020
      %v2639 = vpop.f32.mrf.mxu0
      %v2640 = vadd.f32 %v2447, %v2639
      %v2641 = vpop.f32.mrf.mxu0
      %v2642 = vadd.f32 %v2449, %v2641
      %v2643 = vpop.f32.mrf.mxu0
      %v2644 = vadd.f32 %v2451, %v2643
      %v2645 = vpop.f32.mrf.mxu0
      %v2646 = vadd.f32 %v2453, %v2645
      %2647 = vmatprep.mubr.bf16.mxu0 %v1030
      %2648 = vmatmul.mubr.bf16.gmra.mxu0 %v1029
      %v2649 = vpop.f32.mrf.mxu0
      %v2650 = vadd.f32 %v2457, %v2649
      %v2651 = vpop.f32.mrf.mxu0
      %v2652 = vadd.f32 %v2459, %v2651
      %v2653 = vpop.f32.mrf.mxu0
      %v2654 = vadd.f32 %v2461, %v2653
      %v2655 = vpop.f32.mrf.mxu0
      %v2656 = vadd.f32 %v2463, %v2655
      %2657 = vmatprep.mubr.bf16.mxu0 %v1039
      %2658 = vmatmul.mubr.bf16.gmra.mxu0 %v1038
      %v2659 = vpop.f32.mrf.mxu0
      %v2660 = vadd.f32 %v2467, %v2659
      %v2661 = vpop.f32.mrf.mxu0
      %v2662 = vadd.f32 %v2469, %v2661
      %v2663 = vpop.f32.mrf.mxu0
      %v2664 = vadd.f32 %v2471, %v2663
      %v2665 = vpop.f32.mrf.mxu0
      %v2666 = vadd.f32 %v2473, %v2665
      %2667 = vmatprep.mubr.bf16.mxu0 %v1048
      %2668 = vmatmul.mubr.bf16.gmra.mxu0 %v1047
      %v2669 = vpop.f32.mrf.mxu0
      %v2670 = vadd.f32 %v2477, %v2669
      %v2671 = vpop.f32.mrf.mxu0
      %v2672 = vadd.f32 %v2479, %v2671
      %v2673 = vpop.f32.mrf.mxu0
      %v2674 = vadd.f32 %v2481, %v2673
      %v2675 = vpop.f32.mrf.mxu0
      %v2676 = vadd.f32 %v2483, %v2675
      %2677 = vmatprep.mubr.bf16.mxu0 %v1057
      %2678 = vmatmul.mubr.bf16.gmra.mxu0 %v1056
      %v2679 = vpop.f32.mrf.mxu0
      %v2680 = vadd.f32 %v2487, %v2679
      %v2681 = vpop.f32.mrf.mxu0
      %v2682 = vadd.f32 %v2489, %v2681
      %v2683 = vpop.f32.mrf.mxu0
      %v2684 = vadd.f32 %v2491, %v2683
      %v2685 = vpop.f32.mrf.mxu0
      %v2686 = vadd.f32 %v2493, %v2685
      %2687 = vmatprep.mubr.bf16.mxu0 %v1066
      %2688 = vmatmul.mubr.bf16.gmra.mxu0 %v1065
      %v2689 = vpop.f32.mrf.mxu0
      %v2690 = vadd.f32 %v2497, %v2689
      %v2691 = vpop.f32.mrf.mxu0
      %v2692 = vadd.f32 %v2499, %v2691
      %v2693 = vpop.f32.mrf.mxu0
      %v2694 = vadd.f32 %v2501, %v2693
      %v2695 = vpop.f32.mrf.mxu0
      %v2696 = vadd.f32 %v2503, %v2695
      %2697 = vmatprep.mubr.bf16.mxu0 %v1075
      %2698 = vmatmul.mubr.bf16.gmra.mxu0 %v1074
      %v2699 = vpop.f32.mrf.mxu0
      %v2700 = vadd.f32 %v2507, %v2699
      %v2701 = vpop.f32.mrf.mxu0
      %v2702 = vadd.f32 %v2509, %v2701
      %v2703 = vpop.f32.mrf.mxu0
      %v2704 = vadd.f32 %v2511, %v2703
      %v2705 = vpop.f32.mrf.mxu0
      %v2706 = vadd.f32 %v2513, %v2705
      %2707 = vmatprep.mubr.bf16.mxu0 %v1084
      %2708 = vmatmul.mubr.bf16.gmra.mxu0 %v1083
      %v2709 = vpop.f32.mrf.mxu0
      %v2710 = vadd.f32 %v2517, %v2709
      %v2711 = vpop.f32.mrf.mxu0
      %v2712 = vadd.f32 %v2519, %v2711
      %v2713 = vpop.f32.mrf.mxu0
      %v2714 = vadd.f32 %v2521, %v2713
      %v2715 = vpop.f32.mrf.mxu0
      %v2716 = vadd.f32 %v2523, %v2715
      %2717 = vmatprep.mubr.bf16.mxu0 %v1093
      %2718 = vmatmul.mubr.bf16.gmra.mxu0 %v1092
      %v2719 = vpop.f32.mrf.mxu0
      %v2720 = vadd.f32 %v2527, %v2719
      %v2721 = vpop.f32.mrf.mxu0
      %v2722 = vadd.f32 %v2529, %v2721
      %v2723 = vpop.f32.mrf.mxu0
      %v2724 = vadd.f32 %v2531, %v2723
      %v2725 = vpop.f32.mrf.mxu0
      %v2726 = vadd.f32 %v2533, %v2725
      %2727 = vmatprep.mubr.bf16.mxu0 %v1102
      %2728 = vmatmul.mubr.bf16.gmra.mxu0 %v1101
      %v2729 = vpop.f32.mrf.mxu0
      %v2730 = vadd.f32 %v2537, %v2729
      %v2731 = vpop.f32.mrf.mxu0
      %v2732 = vadd.f32 %v2539, %v2731
      %v2733 = vpop.f32.mrf.mxu0
      %v2734 = vadd.f32 %v2541, %v2733
      %v2735 = vpop.f32.mrf.mxu0
      %v2736 = vadd.f32 %v2543, %v2735
      %2737 = vmatprep.mubr.bf16.mxu0 %v1111
      %2738 = vmatmul.mubr.bf16.gmra.mxu0 %v1110
      %v2739 = vpop.f32.mrf.mxu0
      %v2740 = vadd.f32 %v2547, %v2739
      %v2741 = vpop.f32.mrf.mxu0
      %v2742 = vadd.f32 %v2549, %v2741
      %v2743 = vpop.f32.mrf.mxu0
      %v2744 = vadd.f32 %v2551, %v2743
      %v2745 = vpop.f32.mrf.mxu0
      %v2746 = vadd.f32 %v2553, %v2745
      %2747 = vmatprep.mubr.bf16.mxu0 %v1120
      %2748 = vmatmul.mubr.bf16.gmra.mxu0 %v1119
      %v2749 = vpop.f32.mrf.mxu0
      %v2750 = vadd.f32 %v2557, %v2749
      %v2751 = vpop.f32.mrf.mxu0
      %v2752 = vadd.f32 %v2559, %v2751
      %v2753 = vpop.f32.mrf.mxu0
      %v2754 = vadd.f32 %v2561, %v2753
      %v2755 = vpop.f32.mrf.mxu0
      %v2756 = vadd.f32 %v2563, %v2755
      %2757 = vdwg.mxu0
      %2758 = vmatprep.subr.bf16.mxu0 %v1841
      %2759 = vmatpush1.bf16.msra.mxu0 %v1840
      %2760 = vmatprep.subr.bf16.mxu0 %v1839
      %2761 = vmatpush1.bf16.msra.mxu0 %v1838
      %2762 = vmatprep.subr.bf16.mxu0 %v1837
      %2763 = vmatpush1.bf16.msra.mxu0 %v1836
      %2764 = vmatprep.subr.bf16.mxu0 %v1835
      %2765 = vmatpush1.bf16.msra.mxu0 %v1834
      %2766 = vmatprep.subr.bf16.mxu0 %v1833
      %2767 = vmatpush1.bf16.msra.mxu0 %v1832
      %2768 = vmatprep.subr.bf16.mxu0 %v1831
      %2769 = vmatpush1.bf16.msra.mxu0 %v1830
      %2770 = vmatprep.subr.bf16.mxu0 %v1829
      %2771 = vmatpush1.bf16.msra.mxu0 %v1828
      %2772 = vmatprep.subr.bf16.mxu0 %v1827
      %2773 = vmatpush1.bf16.msra.mxu0 %v1826
      %2774 = vmatprep.subr.bf16.mxu0 0
      %2775 = vmatpush2.bf16.msra.mxu0 0
      %2776 = vmatprep.subr.bf16.mxu0 0
      %2777 = vmatpush2.bf16.msra.mxu0 0
      %2778 = vmatprep.subr.bf16.mxu0 0
      %2779 = vmatpush2.bf16.msra.mxu0 0
      %2780 = vmatprep.subr.bf16.mxu0 0
      %2781 = vmatpush2.bf16.msra.mxu0 0
      %2782 = vmatprep.subr.bf16.mxu0 0
      %2783 = vmatpush2.bf16.msra.mxu0 0
      %2784 = vmatprep.subr.bf16.mxu0 0
      %2785 = vmatpush2.bf16.msra.mxu0 0
      %2786 = vmatprep.subr.bf16.mxu0 0
      %2787 = vmatpush2.bf16.msra.mxu0 0
      %2788 = vmatprep.subr.bf16.mxu0 0
      %2789 = vmatpush2.bf16.msra.mxu0 0
      %2790 = vmatprep.mubr.bf16.mxu0 0
      %2791 = vmatmul.mubr.bf16.gmra.mxu0 %v986
      %v2792 = vpop.f32.mrf.mxu0
      %v2793 = vadd.f32 %v2600, %v2792
      %v2794 = vpop.f32.mrf.mxu0
      %v2795 = vadd.f32 %v2602, %v2794
      %v2796 = vpop.f32.mrf.mxu0
      %v2797 = vadd.f32 %v2604, %v2796
      %v2798 = vpop.f32.mrf.mxu0
      %v2799 = vadd.f32 %v2606, %v2798
      %2800 = vmatprep.mubr.bf16.mxu0 0
      %2801 = vmatmul.mubr.bf16.gmra.mxu0 %v995
      %v2802 = vpop.f32.mrf.mxu0
      %v2803 = vadd.f32 %v2610, %v2802
      %v2804 = vpop.f32.mrf.mxu0
      %v2805 = vadd.f32 %v2612, %v2804
      %v2806 = vpop.f32.mrf.mxu0
      %v2807 = vadd.f32 %v2614, %v2806
      %v2808 = vpop.f32.mrf.mxu0
      %v2809 = vadd.f32 %v2616, %v2808
      %2810 = vmatprep.mubr.bf16.mxu0 0
      %2811 = vmatmul.mubr.bf16.gmra.mxu0 %v1004
      %v2812 = vpop.f32.mrf.mxu0
      %v2813 = vadd.f32 %v2620, %v2812
      %v2814 = vpop.f32.mrf.mxu0
      %v2815 = vadd.f32 %v2622, %v2814
      %v2816 = vpop.f32.mrf.mxu0
      %v2817 = vadd.f32 %v2624, %v2816
      %v2818 = vpop.f32.mrf.mxu0
      %v2819 = vadd.f32 %v2626, %v2818
      %2820 = vmatprep.mubr.bf16.mxu0 0
      %2821 = vmatmul.mubr.bf16.gmra.mxu0 %v1013
      %v2822 = vpop.f32.mrf.mxu0
      %v2823 = vadd.f32 %v2630, %v2822
      %v2824 = vpop.f32.mrf.mxu0
      %v2825 = vadd.f32 %v2632, %v2824
      %v2826 = vpop.f32.mrf.mxu0
      %v2827 = vadd.f32 %v2634, %v2826
      %v2828 = vpop.f32.mrf.mxu0
      %v2829 = vadd.f32 %v2636, %v2828
      %2830 = vmatprep.mubr.bf16.mxu0 0
      %2831 = vmatmul.mubr.bf16.gmra.mxu0 %v1022
      %v2832 = vpop.f32.mrf.mxu0
      %v2833 = vadd.f32 %v2640, %v2832
      %v2834 = vpop.f32.mrf.mxu0
      %v2835 = vadd.f32 %v2642, %v2834
      %v2836 = vpop.f32.mrf.mxu0
      %v2837 = vadd.f32 %v2644, %v2836
      %v2838 = vpop.f32.mrf.mxu0
      %v2839 = vadd.f32 %v2646, %v2838
      %2840 = vmatprep.mubr.bf16.mxu0 0
      %2841 = vmatmul.mubr.bf16.gmra.mxu0 %v1031
      %v2842 = vpop.f32.mrf.mxu0
      %v2843 = vadd.f32 %v2650, %v2842
      %v2844 = vpop.f32.mrf.mxu0
      %v2845 = vadd.f32 %v2652, %v2844
      %v2846 = vpop.f32.mrf.mxu0
      %v2847 = vadd.f32 %v2654, %v2846
      %v2848 = vpop.f32.mrf.mxu0
      %v2849 = vadd.f32 %v2656, %v2848
      %2850 = vmatprep.mubr.bf16.mxu0 0
      %2851 = vmatmul.mubr.bf16.gmra.mxu0 %v1040
      %v2852 = vpop.f32.mrf.mxu0
      %v2853 = vadd.f32 %v2660, %v2852
      %v2854 = vpop.f32.mrf.mxu0
      %v2855 = vadd.f32 %v2662, %v2854
      %v2856 = vpop.f32.mrf.mxu0
      %v2857 = vadd.f32 %v2664, %v2856
      %v2858 = vpop.f32.mrf.mxu0
      %v2859 = vadd.f32 %v2666, %v2858
      %2860 = vmatprep.mubr.bf16.mxu0 0
      %2861 = vmatmul.mubr.bf16.gmra.mxu0 %v1049
      %v2862 = vpop.f32.mrf.mxu0
      %v2863 = vadd.f32 %v2670, %v2862
      %v2864 = vpop.f32.mrf.mxu0
      %v2865 = vadd.f32 %v2672, %v2864
      %v2866 = vpop.f32.mrf.mxu0
      %v2867 = vadd.f32 %v2674, %v2866
      %v2868 = vpop.f32.mrf.mxu0
      %v2869 = vadd.f32 %v2676, %v2868
      %2870 = vmatprep.mubr.bf16.mxu0 0
      %2871 = vmatmul.mubr.bf16.gmra.mxu0 %v1058
      %v2872 = vpop.f32.mrf.mxu0
      %v2873 = vadd.f32 %v2680, %v2872
      %v2874 = vpop.f32.mrf.mxu0
      %v2875 = vadd.f32 %v2682, %v2874
      %v2876 = vpop.f32.mrf.mxu0
      %v2877 = vadd.f32 %v2684, %v2876
      %v2878 = vpop.f32.mrf.mxu0
      %v2879 = vadd.f32 %v2686, %v2878
      %2880 = vmatprep.mubr.bf16.mxu0 0
      %2881 = vmatmul.mubr.bf16.gmra.mxu0 %v1067
      %v2882 = vpop.f32.mrf.mxu0
      %v2883 = vadd.f32 %v2690, %v2882
      %v2884 = vpop.f32.mrf.mxu0
      %v2885 = vadd.f32 %v2692, %v2884
      %v2886 = vpop.f32.mrf.mxu0
      %v2887 = vadd.f32 %v2694, %v2886
      %v2888 = vpop.f32.mrf.mxu0
      %v2889 = vadd.f32 %v2696, %v2888
      %2890 = vmatprep.mubr.bf16.mxu0 0
      %2891 = vmatmul.mubr.bf16.gmra.mxu0 %v1076
      %v2892 = vpop.f32.mrf.mxu0
      %v2893 = vadd.f32 %v2700, %v2892
      %v2894 = vpop.f32.mrf.mxu0
      %v2895 = vadd.f32 %v2702, %v2894
      %v2896 = vpop.f32.mrf.mxu0
      %v2897 = vadd.f32 %v2704, %v2896
      %v2898 = vpop.f32.mrf.mxu0
      %v2899 = vadd.f32 %v2706, %v2898
      %2900 = vmatprep.mubr.bf16.mxu0 0
      %2901 = vmatmul.mubr.bf16.gmra.mxu0 %v1085
      %v2902 = vpop.f32.mrf.mxu0
      %v2903 = vadd.f32 %v2710, %v2902
      %v2904 = vpop.f32.mrf.mxu0
      %v2905 = vadd.f32 %v2712, %v2904
      %v2906 = vpop.f32.mrf.mxu0
      %v2907 = vadd.f32 %v2714, %v2906
      %v2908 = vpop.f32.mrf.mxu0
      %v2909 = vadd.f32 %v2716, %v2908
      %2910 = vmatprep.mubr.bf16.mxu0 0
      %2911 = vmatmul.mubr.bf16.gmra.mxu0 %v1094
      %v2912 = vpop.f32.mrf.mxu0
      %v2913 = vadd.f32 %v2720, %v2912
      %v2914 = vpop.f32.mrf.mxu0
      %v2915 = vadd.f32 %v2722, %v2914
      %v2916 = vpop.f32.mrf.mxu0
      %v2917 = vadd.f32 %v2724, %v2916
      %v2918 = vpop.f32.mrf.mxu0
      %v2919 = vadd.f32 %v2726, %v2918
      %2920 = vmatprep.mubr.bf16.mxu0 0
      %2921 = vmatmul.mubr.bf16.gmra.mxu0 %v1103
      %v2922 = vpop.f32.mrf.mxu0
      %v2923 = vadd.f32 %v2730, %v2922
      %v2924 = vpop.f32.mrf.mxu0
      %v2925 = vadd.f32 %v2732, %v2924
      %v2926 = vpop.f32.mrf.mxu0
      %v2927 = vadd.f32 %v2734, %v2926
      %v2928 = vpop.f32.mrf.mxu0
      %v2929 = vadd.f32 %v2736, %v2928
      %2930 = vmatprep.mubr.bf16.mxu0 0
      %2931 = vmatmul.mubr.bf16.gmra.mxu0 %v1112
      %v2932 = vpop.f32.mrf.mxu0
      %v2933 = vadd.f32 %v2740, %v2932
      %v2934 = vpop.f32.mrf.mxu0
      %v2935 = vadd.f32 %v2742, %v2934
      %v2936 = vpop.f32.mrf.mxu0
      %v2937 = vadd.f32 %v2744, %v2936
      %v2938 = vpop.f32.mrf.mxu0
      %v2939 = vadd.f32 %v2746, %v2938
      %2940 = vmatprep.mubr.bf16.mxu0 0
      %2941 = vmatmul.mubr.bf16.gmra.mxu0 %v1121
      %v2942 = vpop.f32.mrf.mxu0
      %v2943 = vadd.f32 %v2750, %v2942
      %v2944 = vpop.f32.mrf.mxu0
      %v2945 = vadd.f32 %v2752, %v2944
      %v2946 = vpop.f32.mrf.mxu0
      %v2947 = vadd.f32 %v2754, %v2946
      %v2948 = vpop.f32.mrf.mxu0
      %v2949 = vadd.f32 %v2756, %v2948
      %2950 = vdwg.mxu0
      %2951 = vst [vmem:[#allocation2] sm:$0xff] %v2793
      %2952 = vst [vmem:[#allocation2 + $0x8] sm:$0xff] %v2795
      %2953 = vst [vmem:[#allocation2 + $0x10] sm:$0xff] %v2797
      %2954 = vst [vmem:[#allocation2 + $0x18] sm:$0xff] %v2799
      %2955 = vst [vmem:[#allocation2 + $0x20] sm:$0xff] %v2803
      %2956 = vst [vmem:[#allocation2 + $0x28] sm:$0xff] %v2805
      %2957 = vst [vmem:[#allocation2 + $0x30] sm:$0xff] %v2807
      %2958 = vst [vmem:[#allocation2 + $0x38] sm:$0xff] %v2809
      %2959 = vst [vmem:[#allocation2 + $0x40] sm:$0xff] %v2813
      %2960 = vst [vmem:[#allocation2 + $0x48] sm:$0xff] %v2815
      %2961 = vst [vmem:[#allocation2 + $0x50] sm:$0xff] %v2817
      %2962 = vst [vmem:[#allocation2 + $0x58] sm:$0xff] %v2819
      %2963 = vst [vmem:[#allocation2 + $0x60] sm:$0xff] %v2823
      %2964 = vst [vmem:[#allocation2 + $0x68] sm:$0xff] %v2825
      %2965 = vst [vmem:[#allocation2 + $0x70] sm:$0xff] %v2827
      %2966 = vst [vmem:[#allocation2 + $0x78] sm:$0xff] %v2829
      %2967 = vst [vmem:[#allocation2 + $0x80] sm:$0xff] %v2833
      %2968 = vst [vmem:[#allocation2 + $0x88] sm:$0xff] %v2835
      %2969 = vst [vmem:[#allocation2 + $0x90] sm:$0xff] %v2837
      %2970 = vst [vmem:[#allocation2 + $0x98] sm:$0xff] %v2839
      %2971 = vst [vmem:[#allocation2 + $0xa0] sm:$0xff] %v2843
      %2972 = vst [vmem:[#allocation2 + $0xa8] sm:$0xff] %v2845
      %2973 = vst [vmem:[#allocation2 + $0xb0] sm:$0xff] %v2847
      %2974 = vst [vmem:[#allocation2 + $0xb8] sm:$0xff] %v2849
      %2975 = vst [vmem:[#allocation2 + $0xc0] sm:$0xff] %v2853
      %2976 = vst [vmem:[#allocation2 + $0xc8] sm:$0xff] %v2855
      %2977 = vst [vmem:[#allocation2 + $0xd0] sm:$0xff] %v2857
      %2978 = vst [vmem:[#allocation2 + $0xd8] sm:$0xff] %v2859
      %2979 = vst [vmem:[#allocation2 + $0xe0] sm:$0xff] %v2863
      %2980 = vst [vmem:[#allocation2 + $0xe8] sm:$0xff] %v2865
      %2981 = vst [vmem:[#allocation2 + $0xf0] sm:$0xff] %v2867
      %2982 = vst [vmem:[#allocation2 + $0xf8] sm:$0xff] %v2869
      %2983 = vst [vmem:[#allocation2 + $0x100] sm:$0xff] %v2873
      %2984 = vst [vmem:[#allocation2 + $0x108] sm:$0xff] %v2875
      %2985 = vst [vmem:[#allocation2 + $0x110] sm:$0xff] %v2877
      %2986 = vst [vmem:[#allocation2 + $0x118] sm:$0xff] %v2879
      %2987 = vst [vmem:[#allocation2 + $0x120] sm:$0xff] %v2883
      %2988 = vst [vmem:[#allocation2 + $0x128] sm:$0xff] %v2885
      %2989 = vst [vmem:[#allocation2 + $0x130] sm:$0xff] %v2887
      %2990 = vst [vmem:[#allocation2 + $0x138] sm:$0xff] %v2889
      %2991 = vst [vmem:[#allocation2 + $0x140] sm:$0xff] %v2893
      %2992 = vst [vmem:[#allocation2 + $0x148] sm:$0xff] %v2895
      %2993 = vst [vmem:[#allocation2 + $0x150] sm:$0xff] %v2897
      %2994 = vst [vmem:[#allocation2 + $0x158] sm:$0xff] %v2899
      %2995 = vst [vmem:[#allocation2 + $0x160] sm:$0xff] %v2903
      %2996 = vst [vmem:[#allocation2 + $0x168] sm:$0xff] %v2905
      %2997 = vst [vmem:[#allocation2 + $0x170] sm:$0xff] %v2907
      %2998 = vst [vmem:[#allocation2 + $0x178] sm:$0xff] %v2909
      %2999 = vst [vmem:[#allocation2 + $0x180] sm:$0xff] %v2913
      %3000 = vst [vmem:[#allocation2 + $0x188] sm:$0xff] %v2915
      %3001 = vst [vmem:[#allocation2 + $0x190] sm:$0xff] %v2917
      %3002 = vst [vmem:[#allocation2 + $0x198] sm:$0xff] %v2919
      %3003 = vst [vmem:[#allocation2 + $0x1a0] sm:$0xff] %v2923
      %3004 = vst [vmem:[#allocation2 + $0x1a8] sm:$0xff] %v2925
      %3005 = vst [vmem:[#allocation2 + $0x1b0] sm:$0xff] %v2927
      %3006 = vst [vmem:[#allocation2 + $0x1b8] sm:$0xff] %v2929
      %3007 = vst [vmem:[#allocation2 + $0x1c0] sm:$0xff] %v2933
      %3008 = vst [vmem:[#allocation2 + $0x1c8] sm:$0xff] %v2935
      %3009 = vst [vmem:[#allocation2 + $0x1d0] sm:$0xff] %v2937
      %3010 = vst [vmem:[#allocation2 + $0x1d8] sm:$0xff] %v2939
      %3011 = vst [vmem:[#allocation2 + $0x1e0] sm:$0xff] %v2943
      %3012 = vst [vmem:[#allocation2 + $0x1e8] sm:$0xff] %v2945
      %3013 = vst [vmem:[#allocation2 + $0x1f0] sm:$0xff] %v2947
      %3014 = vst [vmem:[#allocation2 + $0x1f8] sm:$0xff] %v2949
      %v3015 = vld [vmem:[#allocation2] sm:$0xff]
      %v3016 = vld [vmem:[#allocation2 + $0x8] sm:$0xff]
      %v3017 = vld [vmem:[#allocation2 + $0x10] sm:$0xff]
      %v3018 = vld [vmem:[#allocation2 + $0x18] sm:$0xff]
      %v3019 = vld [vmem:[#allocation2 + $0x20] sm:$0xff]
      %v3020 = vld [vmem:[#allocation2 + $0x28] sm:$0xff]
      %v3021 = vld [vmem:[#allocation2 + $0x30] sm:$0xff]
      %v3022 = vld [vmem:[#allocation2 + $0x38] sm:$0xff]
      %v3023 = vld [vmem:[#allocation2 + $0x40] sm:$0xff]
      %v3024 = vld [vmem:[#allocation2 + $0x48] sm:$0xff]
      %v3025 = vld [vmem:[#allocation2 + $0x50] sm:$0xff]
      %v3026 = vld [vmem:[#allocation2 + $0x58] sm:$0xff]
      %v3027 = vld [vmem:[#allocation2 + $0x60] sm:$0xff]
      %v3028 = vld [vmem:[#allocation2 + $0x68] sm:$0xff]
      %v3029 = vld [vmem:[#allocation2 + $0x70] sm:$0xff]
      %v3030 = vld [vmem:[#allocation2 + $0x78] sm:$0xff]
      %v3031 = vld [vmem:[#allocation2 + $0x80] sm:$0xff]
      %v3032 = vld [vmem:[#allocation2 + $0x88] sm:$0xff]
      %v3033 = vld [vmem:[#allocation2 + $0x90] sm:$0xff]
      %v3034 = vld [vmem:[#allocation2 + $0x98] sm:$0xff]
      %v3035 = vld [vmem:[#allocation2 + $0xa0] sm:$0xff]
      %v3036 = vld [vmem:[#allocation2 + $0xa8] sm:$0xff]
      %v3037 = vld [vmem:[#allocation2 + $0xb0] sm:$0xff]
      %v3038 = vld [vmem:[#allocation2 + $0xb8] sm:$0xff]
      %v3039 = vld [vmem:[#allocation2 + $0xc0] sm:$0xff]
      %v3040 = vld [vmem:[#allocation2 + $0xc8] sm:$0xff]
      %v3041 = vld [vmem:[#allocation2 + $0xd0] sm:$0xff]
      %v3042 = vld [vmem:[#allocation2 + $0xd8] sm:$0xff]
      %v3043 = vld [vmem:[#allocation2 + $0xe0] sm:$0xff]
      %v3044 = vld [vmem:[#allocation2 + $0xe8] sm:$0xff]
      %v3045 = vld [vmem:[#allocation2 + $0xf0] sm:$0xff]
      %v3046 = vld [vmem:[#allocation2 + $0xf8] sm:$0xff]
      %v3047 = vld [vmem:[#allocation2 + $0x100] sm:$0xff]
      %v3048 = vld [vmem:[#allocation2 + $0x108] sm:$0xff]
      %v3049 = vld [vmem:[#allocation2 + $0x110] sm:$0xff]
      %v3050 = vld [vmem:[#allocation2 + $0x118] sm:$0xff]
      %v3051 = vld [vmem:[#allocation2 + $0x120] sm:$0xff]
      %v3052 = vld [vmem:[#allocation2 + $0x128] sm:$0xff]
      %v3053 = vld [vmem:[#allocation2 + $0x130] sm:$0xff]
      %v3054 = vld [vmem:[#allocation2 + $0x138] sm:$0xff]
      %v3055 = vld [vmem:[#allocation2 + $0x140] sm:$0xff]
      %v3056 = vld [vmem:[#allocation2 + $0x148] sm:$0xff]
      %v3057 = vld [vmem:[#allocation2 + $0x150] sm:$0xff]
      %v3058 = vld [vmem:[#allocation2 + $0x158] sm:$0xff]
      %v3059 = vld [vmem:[#allocation2 + $0x160] sm:$0xff]
      %v3060 = vld [vmem:[#allocation2 + $0x168] sm:$0xff]
      %v3061 = vld [vmem:[#allocation2 + $0x170] sm:$0xff]
      %v3062 = vld [vmem:[#allocation2 + $0x178] sm:$0xff]
      %v3063 = vld [vmem:[#allocation2 + $0x180] sm:$0xff]
      %v3064 = vld [vmem:[#allocation2 + $0x188] sm:$0xff]
      %v3065 = vld [vmem:[#allocation2 + $0x190] sm:$0xff]
      %v3066 = vld [vmem:[#allocation2 + $0x198] sm:$0xff]
      %v3067 = vld [vmem:[#allocation2 + $0x1a0] sm:$0xff]
      %v3068 = vld [vmem:[#allocation2 + $0x1a8] sm:$0xff]
      %v3069 = vld [vmem:[#allocation2 + $0x1b0] sm:$0xff]
      %v3070 = vld [vmem:[#allocation2 + $0x1b8] sm:$0xff]
      %v3071 = vld [vmem:[#allocation2 + $0x1c0] sm:$0xff]
      %v3072 = vld [vmem:[#allocation2 + $0x1c8] sm:$0xff]
      %v3073 = vld [vmem:[#allocation2 + $0x1d0] sm:$0xff]
      %v3074 = vld [vmem:[#allocation2 + $0x1d8] sm:$0xff]
      %v3075 = vld [vmem:[#allocation2 + $0x1e0] sm:$0xff]
      %v3076 = vld [vmem:[#allocation2 + $0x1e8] sm:$0xff]
      %v3077 = vld [vmem:[#allocation2 + $0x1f0] sm:$0xff]
      %v3078 = vld [vmem:[#allocation2 + $0x1f8] sm:$0xff]
      %v3079 = vld [vmem:[%s219 + $0x48] sm:$0xff]
      %v3080 = vld [vmem:[%s219 + $0x50] sm:$0xff]
      %v3081 = vld [vmem:[%s219 + $0x58] sm:$0xff]
      %v3082 = vld [vmem:[%s219 + $0x60] sm:$0xff]
      %v3083 = vld [vmem:[%s219 + $0x68] sm:$0xf]
      %v3084 = vld [vmem:[%s219 + $0x6c] sm:$0xff]
      %v3085 = vld [vmem:[%s219 + $0x74] sm:$0xff]
      %v3086 = vld [vmem:[%s219 + $0x7c] sm:$0xff]
      %v3087 = vld [vmem:[%s219 + $0x84] sm:$0xff]
      %v3088 = vld [vmem:[%s219 + $0x8c] sm:$0xf]
      %v3089 = vld [vmem:[%s219 + $0x90] sm:$0xff]
      %v3090 = vld [vmem:[%s219 + $0x98] sm:$0xff]
      %v3091 = vld [vmem:[%s219 + $0xa0] sm:$0xff]
      %v3092 = vld [vmem:[%s219 + $0xa8] sm:$0xff]
      %v3093 = vld [vmem:[%s219 + $0xb0] sm:$0xf]
      %v3094 = vld [vmem:[%s219 + $0xb4] sm:$0xff]
      %v3095 = vld [vmem:[%s219 + $0xbc] sm:$0xff]
      %v3096 = vld [vmem:[%s219 + $0xc4] sm:$0xff]
      %v3097 = vld [vmem:[%s219 + $0xcc] sm:$0xff]
      %v3098 = vld [vmem:[%s219 + $0xd4] sm:$0xf]
      %v3099 = vld [vmem:[%s219 + $0xd8] sm:$0xff]
      %v3100 = vld [vmem:[%s219 + $0xe0] sm:$0xff]
      %v3101 = vld [vmem:[%s219 + $0xe8] sm:$0xff]
      %v3102 = vld [vmem:[%s219 + $0xf0] sm:$0xff]
      %v3103 = vld [vmem:[%s219 + $0xf8] sm:$0xf]
      %v3104 = vld [vmem:[%s219 + $0xfc] sm:$0xff]
      %v3105 = vld [vmem:[%s219 + $0x104] sm:$0xff]
      %v3106 = vld [vmem:[%s219 + $0x10c] sm:$0xff]
      %v3107 = vld [vmem:[%s219 + $0x114] sm:$0xff]
      %v3108 = vld [vmem:[%s219 + $0x11c] sm:$0xf]
      %v3109 = vld [vmem:[%s219 + $0x120] sm:$0xff]
      %v3110 = vld [vmem:[%s219 + $0x128] sm:$0xff]
      %v3111 = vld [vmem:[%s219 + $0x130] sm:$0xff]
      %v3112 = vld [vmem:[%s219 + $0x138] sm:$0xff]
      %v3113 = vld [vmem:[%s219 + $0x140] sm:$0xf]
      %v3114 = vld [vmem:[%s219 + $0x144] sm:$0xff]
      %v3115 = vld [vmem:[%s219 + $0x14c] sm:$0xff]
      %v3116 = vld [vmem:[%s219 + $0x154] sm:$0xff]
      %v3117 = vld [vmem:[%s219 + $0x15c] sm:$0xff]
      %v3118 = vld [vmem:[%s219 + $0x164] sm:$0xf]
      %v3119 = vld [vmem:[%s219 + $0x168] sm:$0xff]
      %v3120 = vld [vmem:[%s219 + $0x170] sm:$0xff]
      %v3121 = vld [vmem:[%s219 + $0x178] sm:$0xff]
      %v3122 = vld [vmem:[%s219 + $0x180] sm:$0xff]
      %v3123 = vld [vmem:[%s219 + $0x188] sm:$0xf]
      %v3124 = vld [vmem:[%s219 + $0x18c] sm:$0xff]
      %v3125 = vld [vmem:[%s219 + $0x194] sm:$0xff]
      %v3126 = vld [vmem:[%s219 + $0x19c] sm:$0xff]
      %v3127 = vld [vmem:[%s219 + $0x1a4] sm:$0xff]
      %v3128 = vld [vmem:[%s219 + $0x1ac] sm:$0xf]
      %v3129 = vld [vmem:[%s219 + $0x1b0] sm:$0xff]
      %v3130 = vld [vmem:[%s219 + $0x1b8] sm:$0xff]
      %v3131 = vld [vmem:[%s219 + $0x1c0] sm:$0xff]
      %v3132 = vld [vmem:[%s219 + $0x1c8] sm:$0xff]
      %v3133 = vld [vmem:[%s219 + $0x1d0] sm:$0xf]
      %v3134 = vld [vmem:[%s219 + $0x1d4] sm:$0xff]
      %v3135 = vld [vmem:[%s219 + $0x1dc] sm:$0xff]
      %v3136 = vld [vmem:[%s219 + $0x1e4] sm:$0xff]
      %v3137 = vld [vmem:[%s219 + $0x1ec] sm:$0xff]
      %v3138 = vld [vmem:[%s219 + $0x1f4] sm:$0xf]
      %v3139 = vld [vmem:[%s219 + $0x1f8] sm:$0xff]
      %v3140 = vld [vmem:[%s219 + $0x200] sm:$0xff]
      %v3141 = vld [vmem:[%s219 + $0x208] sm:$0xff]
      %v3142 = vld [vmem:[%s219 + $0x210] sm:$0xff]
      %v3143 = vld [vmem:[%s219 + $0x218] sm:$0xf]
      %v3144 = vld [vmem:[%s219 + $0x21c] sm:$0xff]
      %v3145 = vld [vmem:[%s219 + $0x224] sm:$0xff]
      %v3146 = vld [vmem:[%s219 + $0x22c] sm:$0xff]
      %v3147 = vld [vmem:[%s219 + $0x234] sm:$0xff]
      %v3148 = vld [vmem:[%s219 + $0x23c] sm:$0xf]
      %v3149 = vld [vmem:[%s219 + $0x240] sm:$0xff]
      %v3150 = vld [vmem:[%s219 + $0x248] sm:$0xff]
      %v3151 = vld [vmem:[%s219 + $0x250] sm:$0xff]
      %v3152 = vld [vmem:[%s219 + $0x258] sm:$0xff]
      %v3153 = vld [vmem:[%s219 + $0x260] sm:$0xf]
      %v3154 = vld [vmem:[%s219 + $0x264] sm:$0xff]
      %v3155 = vld [vmem:[%s219 + $0x26c] sm:$0xff]
      %v3156 = vld [vmem:[%s219 + $0x274] sm:$0xff]
      %v3157 = vld [vmem:[%s219 + $0x27c] sm:$0xff]
      %v3158 = vld [vmem:[%s219 + $0x284] sm:$0xf]
      %v3159 = vld [vmem:[%s219 + $0x288] sm:$0xff]
      %v3160 = vld [vmem:[%s219 + $0x290] sm:$0xff]
      %v3161 = vld [vmem:[%s219 + $0x298] sm:$0xff]
      %v3162 = vld [vmem:[%s219 + $0x2a0] sm:$0xff]
      %v3163 = vld [vmem:[%s219 + $0x2a8] sm:$0xf]
      %v3164 = vld [vmem:[%s219 + $0x2ac] sm:$0xff]
      %v3165 = vld [vmem:[%s219 + $0x2b4] sm:$0xff]
      %v3166 = vld [vmem:[%s219 + $0x2bc] sm:$0xff]
      %v3167 = vld [vmem:[%s219 + $0x2c4] sm:$0xff]
      %v3168 = vld [vmem:[%s219 + $0x2cc] sm:$0xf]
      %v3169 = vld [vmem:[%s219 + $0x2d0] sm:$0xff]
      %v3170 = vld [vmem:[%s219 + $0x2d8] sm:$0xff]
      %v3171 = vld [vmem:[%s219 + $0x2e0] sm:$0xff]
      %v3172 = vld [vmem:[%s219 + $0x2e8] sm:$0xff]
      %v3173 = vld [vmem:[%s219 + $0x2f0] sm:$0xf]
      %v3174 = vld [vmem:[%s219 + $0x2f4] sm:$0xff]
      %v3175 = vld [vmem:[%s219 + $0x2fc] sm:$0xff]
      %v3176 = vld [vmem:[%s219 + $0x304] sm:$0xff]
      %v3177 = vld [vmem:[%s219 + $0x30c] sm:$0xff]
      %v3178 = vld [vmem:[%s219 + $0x314] sm:$0xf]
      %v3179 = vld [vmem:[%s219 + $0x318] sm:$0xff]
      %v3180 = vld [vmem:[%s219 + $0x320] sm:$0xff]
      %v3181 = vld [vmem:[%s219 + $0x328] sm:$0xff]
      %v3182 = vld [vmem:[%s219 + $0x330] sm:$0xff]
      %v3183 = vld [vmem:[%s219 + $0x338] sm:$0xf]
      %v3184 = vld [vmem:[%s219 + $0x33c] sm:$0xff]
      %v3185 = vld [vmem:[%s219 + $0x344] sm:$0xff]
      %v3186 = vld [vmem:[%s219 + $0x34c] sm:$0xff]
      %v3187 = vld [vmem:[%s219 + $0x354] sm:$0xff]
      %v3188 = vld [vmem:[%s219 + $0x35c] sm:$0xf]
      %v3189 = vld [vmem:[%s219 + $0x360] sm:$0xff]
      %v3190 = vld [vmem:[%s219 + $0x368] sm:$0xff]
      %v3191 = vld [vmem:[%s219 + $0x370] sm:$0xff]
      %v3192 = vld [vmem:[%s219 + $0x378] sm:$0xff]
      %v3193 = vld [vmem:[%s219 + $0x380] sm:$0xf]
      %v3194 = vld [vmem:[%s219 + $0x384] sm:$0xff]
      %v3195 = vld [vmem:[%s219 + $0x38c] sm:$0xff]
      %v3196 = vld [vmem:[%s219 + $0x394] sm:$0xff]
      %v3197 = vld [vmem:[%s219 + $0x39c] sm:$0xff]
      %v3198 = vld [vmem:[%s219 + $0x3a4] sm:$0xf]
      %v3199 = vld [vmem:[%s219 + $0x3a8] sm:$0xff]
      %v3200 = vld [vmem:[%s219 + $0x3b0] sm:$0xff]
      %v3201 = vld [vmem:[%s219 + $0x3b8] sm:$0xff]
      %v3202 = vld [vmem:[%s219 + $0x3c0] sm:$0xff]
      %v3203 = vld [vmem:[%s219 + $0x3c8] sm:$0xf]
      %v3204 = vld [vmem:[%s219 + $0x3cc] sm:$0xff]
      %v3205 = vld [vmem:[%s219 + $0x3d4] sm:$0xff]
      %v3206 = vld [vmem:[%s219 + $0x3dc] sm:$0xff]
      %v3207 = vld [vmem:[%s219 + $0x3e4] sm:$0xff]
      %v3208 = vld [vmem:[%s219 + $0x3ec] sm:$0xf]
      %v3209 = vld [vmem:[%s219 + $0x3f0] sm:$0xff]
      %v3210 = vld [vmem:[%s219 + $0x3f8] sm:$0xff]
      %v3211 = vld [vmem:[%s219 + $0x400] sm:$0xff]
      %v3212 = vld [vmem:[%s219 + $0x408] sm:$0xff]
      %v3213 = vld [vmem:[%s219 + $0x410] sm:$0xf]
      %v3214 = vld [vmem:[%s219 + $0x414] sm:$0xff]
      %v3215 = vld [vmem:[%s219 + $0x41c] sm:$0xff]
      %v3216 = vld [vmem:[%s219 + $0x424] sm:$0xff]
      %v3217 = vld [vmem:[%s219 + $0x42c] sm:$0xff]
      %v3218 = vld [vmem:[%s219 + $0x434] sm:$0xf]
      %v3219 = vld [vmem:[%s219 + $0x438] sm:$0xff]
      %v3220 = vld [vmem:[%s219 + $0x440] sm:$0xff]
      %v3221 = vld [vmem:[%s219 + $0x448] sm:$0xff]
      %v3222 = vld [vmem:[%s219 + $0x450] sm:$0xff]
      %v3223 = vld [vmem:[%s219 + $0x458] sm:$0xf]
      %v3224 = vld [vmem:[%s219 + $0x45c] sm:$0xff]
      %v3225 = vld [vmem:[%s219 + $0x464] sm:$0xff]
      %v3226 = vld [vmem:[%s219 + $0x46c] sm:$0xff]
      %v3227 = vld [vmem:[%s219 + $0x474] sm:$0xff]
      %v3228 = vld [vmem:[%s219 + $0x47c] sm:$0xf]
      %v3229 = vld [vmem:[%s219 + $0x480] sm:$0xff]
      %v3230 = vld [vmem:[%s219 + $0x488] sm:$0xff]
      %v3231 = vld [vmem:[%s219 + $0x490] sm:$0xff]
      %v3232 = vld [vmem:[%s219 + $0x498] sm:$0xff]
      %v3233 = vld [vmem:[%s219 + $0x4a0] sm:$0xf]
      %v3234 = vld [vmem:[%s219 + $0x4a4] sm:$0xff]
      %v3235 = vld [vmem:[%s219 + $0x4ac] sm:$0xff]
      %v3236 = vld [vmem:[%s219 + $0x4b4] sm:$0xff]
      %v3237 = vld [vmem:[%s219 + $0x4bc] sm:$0xff]
      %v3238 = vld [vmem:[%s219 + $0x4c4] sm:$0xf]
      %s3239 = scalar_lea.vmem %s1, 1152
      %v3240 = vld [vmem:[%s3239] sm:$0xff]
      %v3241 = vld [vmem:[%s3239 + $0x8] sm:$0xff]
      %v3242 = vld [vmem:[%s3239 + $0x10] sm:$0xff]
      %v3243 = vld [vmem:[%s3239 + $0x18] sm:$0xff]
      %v3244 = vld [vmem:[%s3239 + $0x20] sm:$0xff]
      %v3245 = vld [vmem:[%s3239 + $0x28] sm:$0xff]
      %v3246 = vld [vmem:[%s3239 + $0x30] sm:$0xff]
      %v3247 = vld [vmem:[%s3239 + $0x38] sm:$0xff]
      %v3248 = vld [vmem:[%s3239 + $0x40] sm:$0xff]
      %v3249 = vld [vmem:[%s3239 + $0x48] sm:$0xff]
      %v3250 = vld [vmem:[%s3239 + $0x50] sm:$0xff]
      %v3251 = vld [vmem:[%s3239 + $0x58] sm:$0xff]
      %v3252 = vld [vmem:[%s3239 + $0x60] sm:$0xff]
      %v3253 = vld [vmem:[%s3239 + $0x68] sm:$0xff]
      %v3254 = vld [vmem:[%s3239 + $0x70] sm:$0xff]
      %v3255 = vld [vmem:[%s3239 + $0x78] sm:$0xff]
      %v3256 = vld [vmem:[%s3239 + $0x80] sm:$0xff]
      %v3257 = vld [vmem:[%s3239 + $0x88] sm:$0xff]
      %v3258 = vld [vmem:[%s3239 + $0x90] sm:$0xff]
      %v3259 = vld [vmem:[%s3239 + $0x98] sm:$0xff]
      %v3260 = vld [vmem:[%s3239 + $0xa0] sm:$0xff]
      %v3261 = vld [vmem:[%s3239 + $0xa8] sm:$0xff]
      %v3262 = vld [vmem:[%s3239 + $0xb0] sm:$0xff]
      %v3263 = vld [vmem:[%s3239 + $0xb8] sm:$0xff]
      %v3264 = vld [vmem:[%s3239 + $0xc0] sm:$0xff]
      %v3265 = vld [vmem:[%s3239 + $0xc8] sm:$0xff]
      %v3266 = vld [vmem:[%s3239 + $0xd0] sm:$0xff]
      %v3267 = vld [vmem:[%s3239 + $0xd8] sm:$0xff]
      %v3268 = vld [vmem:[%s3239 + $0xe0] sm:$0xff]
      %v3269 = vld [vmem:[%s3239 + $0xe8] sm:$0xff]
      %v3270 = vld [vmem:[%s3239 + $0xf0] sm:$0xff]
      %v3271 = vld [vmem:[%s3239 + $0xf8] sm:$0xff]
      %v3272 = vld [vmem:[%s3239 + $0x100] sm:$0xff]
      %v3273 = vld [vmem:[%s3239 + $0x108] sm:$0xff]
      %v3274 = vld [vmem:[%s3239 + $0x110] sm:$0xff]
      %v3275 = vld [vmem:[%s3239 + $0x118] sm:$0xff]
      %v3276 = vld [vmem:[%s3239 + $0x120] sm:$0xff]
      %v3277 = vld [vmem:[%s3239 + $0x128] sm:$0xff]
      %v3278 = vld [vmem:[%s3239 + $0x130] sm:$0xff]
      %v3279 = vld [vmem:[%s3239 + $0x138] sm:$0xff]
      %v3280 = vld [vmem:[%s3239 + $0x140] sm:$0xff]
      %v3281 = vld [vmem:[%s3239 + $0x148] sm:$0xff]
      %v3282 = vld [vmem:[%s3239 + $0x150] sm:$0xff]
      %v3283 = vld [vmem:[%s3239 + $0x158] sm:$0xff]
      %v3284 = vld [vmem:[%s3239 + $0x160] sm:$0xff]
      %v3285 = vld [vmem:[%s3239 + $0x168] sm:$0xff]
      %v3286 = vld [vmem:[%s3239 + $0x170] sm:$0xff]
      %v3287 = vld [vmem:[%s3239 + $0x178] sm:$0xff]
      %v3288 = vld [vmem:[%s3239 + $0x180] sm:$0xff]
      %v3289 = vld [vmem:[%s3239 + $0x188] sm:$0xff]
      %v3290 = vld [vmem:[%s3239 + $0x190] sm:$0xff]
      %v3291 = vld [vmem:[%s3239 + $0x198] sm:$0xff]
      %v3292 = vld [vmem:[%s3239 + $0x1a0] sm:$0xff]
      %v3293 = vld [vmem:[%s3239 + $0x1a8] sm:$0xff]
      %v3294 = vld [vmem:[%s3239 + $0x1b0] sm:$0xff]
      %v3295 = vld [vmem:[%s3239 + $0x1b8] sm:$0xff]
      %v3296 = vld [vmem:[%s3239 + $0x1c0] sm:$0xff]
      %v3297 = vld [vmem:[%s3239 + $0x1c8] sm:$0xff]
      %v3298 = vld [vmem:[%s3239 + $0x1d0] sm:$0xff]
      %v3299 = vld [vmem:[%s3239 + $0x1d8] sm:$0xff]
      %v3300 = vld [vmem:[%s3239 + $0x1e0] sm:$0xff]
      %v3301 = vld [vmem:[%s3239 + $0x1e8] sm:$0xff]
      %v3302 = vld [vmem:[%s3239 + $0x1f0] sm:$0xff]
      %v3303 = vld [vmem:[%s3239 + $0x1f8] sm:$0xff]
      %v3304 = vld [vmem:[%s3239 + $0x200] sm:$0xff]
      %v3305 = vld [vmem:[%s3239 + $0x208] sm:$0xff]
      %v3306 = vld [vmem:[%s3239 + $0x210] sm:$0xff]
      %v3307 = vld [vmem:[%s3239 + $0x218] sm:$0xff]
      %v3308 = vld [vmem:[%s3239 + $0x220] sm:$0xff]
      %v3309 = vld [vmem:[%s3239 + $0x228] sm:$0xff]
      %v3310 = vld [vmem:[%s3239 + $0x230] sm:$0xff]
      %v3311 = vld [vmem:[%s3239 + $0x238] sm:$0xff]
      %v3312 = vld [vmem:[%s3239 + $0x240] sm:$0xff]
      %v3313 = vld [vmem:[%s3239 + $0x248] sm:$0xff]
      %v3314 = vld [vmem:[%s3239 + $0x250] sm:$0xff]
      %v3315 = vld [vmem:[%s3239 + $0x258] sm:$0xff]
      %v3316 = vld [vmem:[%s3239 + $0x260] sm:$0xff]
      %v3317 = vld [vmem:[%s3239 + $0x268] sm:$0xff]
      %v3318 = vld [vmem:[%s3239 + $0x270] sm:$0xff]
      %v3319 = vld [vmem:[%s3239 + $0x278] sm:$0xff]
      %v3320 = vld [vmem:[%s3239 + $0x280] sm:$0xff]
      %v3321 = vld [vmem:[%s3239 + $0x288] sm:$0xff]
      %v3322 = vld [vmem:[%s3239 + $0x290] sm:$0xff]
      %v3323 = vld [vmem:[%s3239 + $0x298] sm:$0xff]
      %v3324 = vld [vmem:[%s3239 + $0x2a0] sm:$0xff]
      %v3325 = vld [vmem:[%s3239 + $0x2a8] sm:$0xff]
      %v3326 = vld [vmem:[%s3239 + $0x2b0] sm:$0xff]
      %v3327 = vld [vmem:[%s3239 + $0x2b8] sm:$0xff]
      %v3328 = vld [vmem:[%s3239 + $0x2c0] sm:$0xff]
      %v3329 = vld [vmem:[%s3239 + $0x2c8] sm:$0xff]
      %v3330 = vld [vmem:[%s3239 + $0x2d0] sm:$0xff]
      %v3331 = vld [vmem:[%s3239 + $0x2d8] sm:$0xff]
      %v3332 = vld [vmem:[%s3239 + $0x2e0] sm:$0xff]
      %v3333 = vld [vmem:[%s3239 + $0x2e8] sm:$0xff]
      %v3334 = vld [vmem:[%s3239 + $0x2f0] sm:$0xff]
      %v3335 = vld [vmem:[%s3239 + $0x2f8] sm:$0xff]
      %v3336 = vld [vmem:[%s3239 + $0x300] sm:$0xff]
      %v3337 = vld [vmem:[%s3239 + $0x308] sm:$0xff]
      %v3338 = vld [vmem:[%s3239 + $0x310] sm:$0xff]
      %v3339 = vld [vmem:[%s3239 + $0x318] sm:$0xff]
      %v3340 = vld [vmem:[%s3239 + $0x320] sm:$0xff]
      %v3341 = vld [vmem:[%s3239 + $0x328] sm:$0xff]
      %v3342 = vld [vmem:[%s3239 + $0x330] sm:$0xff]
      %v3343 = vld [vmem:[%s3239 + $0x338] sm:$0xff]
      %v3344 = vld [vmem:[%s3239 + $0x340] sm:$0xff]
      %v3345 = vld [vmem:[%s3239 + $0x348] sm:$0xff]
      %v3346 = vld [vmem:[%s3239 + $0x350] sm:$0xff]
      %v3347 = vld [vmem:[%s3239 + $0x358] sm:$0xff]
      %v3348 = vld [vmem:[%s3239 + $0x360] sm:$0xff]
      %v3349 = vld [vmem:[%s3239 + $0x368] sm:$0xff]
      %v3350 = vld [vmem:[%s3239 + $0x370] sm:$0xff]
      %v3351 = vld [vmem:[%s3239 + $0x378] sm:$0xff]
      %v3352 = vld [vmem:[%s3239 + $0x380] sm:$0xff]
      %v3353 = vld [vmem:[%s3239 + $0x388] sm:$0xff]
      %v3354 = vld [vmem:[%s3239 + $0x390] sm:$0xff]
      %v3355 = vld [vmem:[%s3239 + $0x398] sm:$0xff]
      %v3356 = vld [vmem:[%s3239 + $0x3a0] sm:$0xff]
      %v3357 = vld [vmem:[%s3239 + $0x3a8] sm:$0xff]
      %v3358 = vld [vmem:[%s3239 + $0x3b0] sm:$0xff]
      %v3359 = vld [vmem:[%s3239 + $0x3b8] sm:$0xff]
      %v3360 = vld [vmem:[%s3239 + $0x3c0] sm:$0xff]
      %v3361 = vld [vmem:[%s3239 + $0x3c8] sm:$0xff]
      %v3362 = vld [vmem:[%s3239 + $0x3d0] sm:$0xff]
      %v3363 = vld [vmem:[%s3239 + $0x3d8] sm:$0xff]
      %v3364 = vld [vmem:[%s3239 + $0x3e0] sm:$0xff]
      %v3365 = vld [vmem:[%s3239 + $0x3e8] sm:$0xff]
      %v3366 = vld [vmem:[%s3239 + $0x3f0] sm:$0xff]
      %v3367 = vld [vmem:[%s3239 + $0x3f8] sm:$0xff]
      %v3368 = vld [vmem:[%s3239 + $0x400] sm:$0xff]
      %v3369 = vld [vmem:[%s3239 + $0x408] sm:$0xff]
      %v3370 = vld [vmem:[%s3239 + $0x410] sm:$0xff]
      %v3371 = vld [vmem:[%s3239 + $0x418] sm:$0xff]
      %v3372 = vld [vmem:[%s3239 + $0x420] sm:$0xff]
      %v3373 = vld [vmem:[%s3239 + $0x428] sm:$0xff]
      %v3374 = vld [vmem:[%s3239 + $0x430] sm:$0xff]
      %v3375 = vld [vmem:[%s3239 + $0x438] sm:$0xff]
      %v3376 = vld [vmem:[%s3239 + $0x440] sm:$0xff]
      %v3377 = vld [vmem:[%s3239 + $0x448] sm:$0xff]
      %v3378 = vld [vmem:[%s3239 + $0x450] sm:$0xff]
      %v3379 = vld [vmem:[%s3239 + $0x458] sm:$0xff]
      %v3380 = vld [vmem:[%s3239 + $0x460] sm:$0xff]
      %v3381 = vld [vmem:[%s3239 + $0x468] sm:$0xff]
      %v3382 = vld [vmem:[%s3239 + $0x470] sm:$0xff]
      %v3383 = vld [vmem:[%s3239 + $0x478] sm:$0xff]
      %v3544 = vunpack.c.l.b16 %v3079
      %v3545 = vunpack.c.h.b16 %v3079
      %v3546 = vunpack.c.l.b16 %v3080
      %v3547 = vunpack.c.h.b16 %v3080
      %v3548 = vunpack.c.l.b16 %v3081
      %v3549 = vunpack.c.h.b16 %v3081
      %v3550 = vunpack.c.l.b16 %v3082
      %v3551 = vunpack.c.h.b16 %v3082
      %v3552 = vunpack.c.l.b16 %v3083
      %v3553 = vunpack.c.l.b16 %v3084
      %v3554 = vunpack.c.h.b16 %v3084
      %v3555 = vunpack.c.l.b16 %v3085
      %v3556 = vunpack.c.h.b16 %v3085
      %v3557 = vunpack.c.l.b16 %v3086
      %v3558 = vunpack.c.h.b16 %v3086
      %v3559 = vunpack.c.l.b16 %v3087
      %v3560 = vunpack.c.h.b16 %v3087
      %v3561 = vunpack.c.l.b16 %v3088
      %v3562 = vunpack.c.l.b16 %v3089
      %v3563 = vunpack.c.h.b16 %v3089
      %v3564 = vunpack.c.l.b16 %v3090
      %v3565 = vunpack.c.h.b16 %v3090
      %v3566 = vunpack.c.l.b16 %v3091
      %v3567 = vunpack.c.h.b16 %v3091
      %v3568 = vunpack.c.l.b16 %v3092
      %v3569 = vunpack.c.h.b16 %v3092
      %v3570 = vunpack.c.l.b16 %v3093
      %v3571 = vunpack.c.l.b16 %v3094
      %v3572 = vunpack.c.h.b16 %v3094
      %v3573 = vunpack.c.l.b16 %v3095
      %v3574 = vunpack.c.h.b16 %v3095
      %v3575 = vunpack.c.l.b16 %v3096
      %v3576 = vunpack.c.h.b16 %v3096
      %v3577 = vunpack.c.l.b16 %v3097
      %v3578 = vunpack.c.h.b16 %v3097
      %v3579 = vunpack.c.l.b16 %v3098
      %v3580 = vunpack.c.l.b16 %v3099
      %v3581 = vunpack.c.h.b16 %v3099
      %v3582 = vunpack.c.l.b16 %v3100
      %v3583 = vunpack.c.h.b16 %v3100
      %v3584 = vunpack.c.l.b16 %v3101
      %v3585 = vunpack.c.h.b16 %v3101
      %v3586 = vunpack.c.l.b16 %v3102
      %v3587 = vunpack.c.h.b16 %v3102
      %v3588 = vunpack.c.l.b16 %v3103
      %v3589 = vunpack.c.l.b16 %v3104
      %v3590 = vunpack.c.h.b16 %v3104
      %v3591 = vunpack.c.l.b16 %v3105
      %v3592 = vunpack.c.h.b16 %v3105
      %v3593 = vunpack.c.l.b16 %v3106
      %v3594 = vunpack.c.h.b16 %v3106
      %v3595 = vunpack.c.l.b16 %v3107
      %v3596 = vunpack.c.h.b16 %v3107
      %v3597 = vunpack.c.l.b16 %v3108
      %v3598 = vunpack.c.l.b16 %v3109
      %v3599 = vunpack.c.h.b16 %v3109
      %v3600 = vunpack.c.l.b16 %v3110
      %v3601 = vunpack.c.h.b16 %v3110
      %v3602 = vunpack.c.l.b16 %v3111
      %v3603 = vunpack.c.h.b16 %v3111
      %v3604 = vunpack.c.l.b16 %v3112
      %v3605 = vunpack.c.h.b16 %v3112
      %v3606 = vunpack.c.l.b16 %v3113
      %v3607 = vunpack.c.l.b16 %v3114
      %v3608 = vunpack.c.h.b16 %v3114
      %v3609 = vunpack.c.l.b16 %v3115
      %v3610 = vunpack.c.h.b16 %v3115
      %v3611 = vunpack.c.l.b16 %v3116
      %v3612 = vunpack.c.h.b16 %v3116
      %v3613 = vunpack.c.l.b16 %v3117
      %v3614 = vunpack.c.h.b16 %v3117
      %v3615 = vunpack.c.l.b16 %v3118
      %v3616 = vunpack.c.l.b16 %v3119
      %v3617 = vunpack.c.h.b16 %v3119
      %v3618 = vunpack.c.l.b16 %v3120
      %v3619 = vunpack.c.h.b16 %v3120
      %v3620 = vunpack.c.l.b16 %v3121
      %v3621 = vunpack.c.h.b16 %v3121
      %v3622 = vunpack.c.l.b16 %v3122
      %v3623 = vunpack.c.h.b16 %v3122
      %v3624 = vunpack.c.l.b16 %v3123
      %v3625 = vunpack.c.l.b16 %v3124
      %v3626 = vunpack.c.h.b16 %v3124
      %v3627 = vunpack.c.l.b16 %v3125
      %v3628 = vunpack.c.h.b16 %v3125
      %v3629 = vunpack.c.l.b16 %v3126
      %v3630 = vunpack.c.h.b16 %v3126
      %v3631 = vunpack.c.l.b16 %v3127
      %v3632 = vunpack.c.h.b16 %v3127
      %v3633 = vunpack.c.l.b16 %v3128
      %v3634 = vunpack.c.l.b16 %v3129
      %v3635 = vunpack.c.h.b16 %v3129
      %v3636 = vunpack.c.l.b16 %v3130
      %v3637 = vunpack.c.h.b16 %v3130
      %v3638 = vunpack.c.l.b16 %v3131
      %v3639 = vunpack.c.h.b16 %v3131
      %v3640 = vunpack.c.l.b16 %v3132
      %v3641 = vunpack.c.h.b16 %v3132
      %v3642 = vunpack.c.l.b16 %v3133
      %v3643 = vunpack.c.l.b16 %v3134
      %v3644 = vunpack.c.h.b16 %v3134
      %v3645 = vunpack.c.l.b16 %v3135
      %v3646 = vunpack.c.h.b16 %v3135
      %v3647 = vunpack.c.l.b16 %v3136
      %v3648 = vunpack.c.h.b16 %v3136
      %v3649 = vunpack.c.l.b16 %v3137
      %v3650 = vunpack.c.h.b16 %v3137
      %v3651 = vunpack.c.l.b16 %v3138
      %v3652 = vunpack.c.l.b16 %v3139
      %v3653 = vunpack.c.h.b16 %v3139
      %v3654 = vunpack.c.l.b16 %v3140
      %v3655 = vunpack.c.h.b16 %v3140
      %v3656 = vunpack.c.l.b16 %v3141
      %v3657 = vunpack.c.h.b16 %v3141
      %v3658 = vunpack.c.l.b16 %v3142
      %v3659 = vunpack.c.h.b16 %v3142
      %v3660 = vunpack.c.l.b16 %v3143
      %v3661 = vunpack.c.l.b16 %v3144
      %v3662 = vunpack.c.h.b16 %v3144
      %v3663 = vunpack.c.l.b16 %v3145
      %v3664 = vunpack.c.h.b16 %v3145
      %v3665 = vunpack.c.l.b16 %v3146
      %v3666 = vunpack.c.h.b16 %v3146
      %v3667 = vunpack.c.l.b16 %v3147
      %v3668 = vunpack.c.h.b16 %v3147
      %v3669 = vunpack.c.l.b16 %v3148
      %v3670 = vunpack.c.l.b16 %v3149
      %v3671 = vunpack.c.h.b16 %v3149
      %v3672 = vunpack.c.l.b16 %v3150
      %v3673 = vunpack.c.h.b16 %v3150
      %v3674 = vunpack.c.l.b16 %v3151
      %v3675 = vunpack.c.h.b16 %v3151
      %v3676 = vunpack.c.l.b16 %v3152
      %v3677 = vunpack.c.h.b16 %v3152
      %v3678 = vunpack.c.l.b16 %v3153
      %v3679 = vunpack.c.l.b16 %v3154
      %v3680 = vunpack.c.h.b16 %v3154
      %v3681 = vunpack.c.l.b16 %v3155
      %v3682 = vunpack.c.h.b16 %v3155
      %v3683 = vunpack.c.l.b16 %v3156
      %v3684 = vunpack.c.h.b16 %v3156
      %v3685 = vunpack.c.l.b16 %v3157
      %v3686 = vunpack.c.h.b16 %v3157
      %v3687 = vunpack.c.l.b16 %v3158
      %v3688 = vunpack.c.l.b16 %v3159
      %v3689 = vunpack.c.h.b16 %v3159
      %v3690 = vunpack.c.l.b16 %v3160
      %v3691 = vunpack.c.h.b16 %v3160
      %v3692 = vunpack.c.l.b16 %v3161
      %v3693 = vunpack.c.h.b16 %v3161
      %v3694 = vunpack.c.l.b16 %v3162
      %v3695 = vunpack.c.h.b16 %v3162
      %v3696 = vunpack.c.l.b16 %v3163
      %v3697 = vunpack.c.l.b16 %v3164
      %v3698 = vunpack.c.h.b16 %v3164
      %v3699 = vunpack.c.l.b16 %v3165
      %v3700 = vunpack.c.h.b16 %v3165
      %v3701 = vunpack.c.l.b16 %v3166
      %v3702 = vunpack.c.h.b16 %v3166
      %v3703 = vunpack.c.l.b16 %v3167
      %v3704 = vunpack.c.h.b16 %v3167
      %v3705 = vunpack.c.l.b16 %v3168
      %v3706 = vunpack.c.l.b16 %v3169
      %v3707 = vunpack.c.h.b16 %v3169
      %v3708 = vunpack.c.l.b16 %v3170
      %v3709 = vunpack.c.h.b16 %v3170
      %v3710 = vunpack.c.l.b16 %v3171
      %v3711 = vunpack.c.h.b16 %v3171
      %v3712 = vunpack.c.l.b16 %v3172
      %v3713 = vunpack.c.h.b16 %v3172
      %v3714 = vunpack.c.l.b16 %v3173
      %v3715 = vunpack.c.l.b16 %v3174
      %v3716 = vunpack.c.h.b16 %v3174
      %v3717 = vunpack.c.l.b16 %v3175
      %v3718 = vunpack.c.h.b16 %v3175
      %v3719 = vunpack.c.l.b16 %v3176
      %v3720 = vunpack.c.h.b16 %v3176
      %v3721 = vunpack.c.l.b16 %v3177
      %v3722 = vunpack.c.h.b16 %v3177
      %v3723 = vunpack.c.l.b16 %v3178
      %v3724 = vunpack.c.l.b16 %v3179
      %v3725 = vunpack.c.h.b16 %v3179
      %v3726 = vunpack.c.l.b16 %v3180
      %v3727 = vunpack.c.h.b16 %v3180
      %v3728 = vunpack.c.l.b16 %v3181
      %v3729 = vunpack.c.h.b16 %v3181
      %v3730 = vunpack.c.l.b16 %v3182
      %v3731 = vunpack.c.h.b16 %v3182
      %v3732 = vunpack.c.l.b16 %v3183
      %v3733 = vunpack.c.l.b16 %v3184
      %v3734 = vunpack.c.h.b16 %v3184
      %v3735 = vunpack.c.l.b16 %v3185
      %v3736 = vunpack.c.h.b16 %v3185
      %v3737 = vunpack.c.l.b16 %v3186
      %v3738 = vunpack.c.h.b16 %v3186
      %v3739 = vunpack.c.l.b16 %v3187
      %v3740 = vunpack.c.h.b16 %v3187
      %v3741 = vunpack.c.l.b16 %v3188
      %v3742 = vunpack.c.l.b16 %v3189
      %v3743 = vunpack.c.h.b16 %v3189
      %v3744 = vunpack.c.l.b16 %v3190
      %v3745 = vunpack.c.h.b16 %v3190
      %v3746 = vunpack.c.l.b16 %v3191
      %v3747 = vunpack.c.h.b16 %v3191
      %v3748 = vunpack.c.l.b16 %v3192
      %v3749 = vunpack.c.h.b16 %v3192
      %v3750 = vunpack.c.l.b16 %v3193
      %v3751 = vunpack.c.l.b16 %v3194
      %v3752 = vunpack.c.h.b16 %v3194
      %v3753 = vunpack.c.l.b16 %v3195
      %v3754 = vunpack.c.h.b16 %v3195
      %v3755 = vunpack.c.l.b16 %v3196
      %v3756 = vunpack.c.h.b16 %v3196
      %v3757 = vunpack.c.l.b16 %v3197
      %v3758 = vunpack.c.h.b16 %v3197
      %v3759 = vunpack.c.l.b16 %v3198
      %v3760 = vunpack.c.l.b16 %v3199
      %v3761 = vunpack.c.h.b16 %v3199
      %v3762 = vunpack.c.l.b16 %v3200
      %v3763 = vunpack.c.h.b16 %v3200
      %v3764 = vunpack.c.l.b16 %v3201
      %v3765 = vunpack.c.h.b16 %v3201
      %v3766 = vunpack.c.l.b16 %v3202
      %v3767 = vunpack.c.h.b16 %v3202
      %v3768 = vunpack.c.l.b16 %v3203
      %v3769 = vunpack.c.l.b16 %v3204
      %v3770 = vunpack.c.h.b16 %v3204
      %v3771 = vunpack.c.l.b16 %v3205
      %v3772 = vunpack.c.h.b16 %v3205
      %v3773 = vunpack.c.l.b16 %v3206
      %v3774 = vunpack.c.h.b16 %v3206
      %v3775 = vunpack.c.l.b16 %v3207
      %v3776 = vunpack.c.h.b16 %v3207
      %v3777 = vunpack.c.l.b16 %v3208
      %v3778 = vunpack.c.l.b16 %v3209
      %v3779 = vunpack.c.h.b16 %v3209
      %v3780 = vunpack.c.l.b16 %v3210
      %v3781 = vunpack.c.h.b16 %v3210
      %v3782 = vunpack.c.l.b16 %v3211
      %v3783 = vunpack.c.h.b16 %v3211
      %v3784 = vunpack.c.l.b16 %v3212
      %v3785 = vunpack.c.h.b16 %v3212
      %v3786 = vunpack.c.l.b16 %v3213
      %v3787 = vunpack.c.l.b16 %v3214
      %v3788 = vunpack.c.h.b16 %v3214
      %v3789 = vunpack.c.l.b16 %v3215
      %v3790 = vunpack.c.h.b16 %v3215
      %v3791 = vunpack.c.l.b16 %v3216
      %v3792 = vunpack.c.h.b16 %v3216
      %v3793 = vunpack.c.l.b16 %v3217
      %v3794 = vunpack.c.h.b16 %v3217
      %v3795 = vunpack.c.l.b16 %v3218
      %v3796 = vunpack.c.l.b16 %v3219
      %v3797 = vunpack.c.h.b16 %v3219
      %v3798 = vunpack.c.l.b16 %v3220
      %v3799 = vunpack.c.h.b16 %v3220
      %v3800 = vunpack.c.l.b16 %v3221
      %v3801 = vunpack.c.h.b16 %v3221
      %v3802 = vunpack.c.l.b16 %v3222
      %v3803 = vunpack.c.h.b16 %v3222
      %v3804 = vunpack.c.l.b16 %v3223
      %v3805 = vunpack.c.l.b16 %v3224
      %v3806 = vunpack.c.h.b16 %v3224
      %v3807 = vunpack.c.l.b16 %v3225
      %v3808 = vunpack.c.h.b16 %v3225
      %v3809 = vunpack.c.l.b16 %v3226
      %v3810 = vunpack.c.h.b16 %v3226
      %v3811 = vunpack.c.l.b16 %v3227
      %v3812 = vunpack.c.h.b16 %v3227
      %v3813 = vunpack.c.l.b16 %v3228
      %v3814 = vunpack.c.l.b16 %v3229
      %v3815 = vunpack.c.h.b16 %v3229
      %v3816 = vunpack.c.l.b16 %v3230
      %v3817 = vunpack.c.h.b16 %v3230
      %v3818 = vunpack.c.l.b16 %v3231
      %v3819 = vunpack.c.h.b16 %v3231
      %v3820 = vunpack.c.l.b16 %v3232
      %v3821 = vunpack.c.h.b16 %v3232
      %v3822 = vunpack.c.l.b16 %v3233
      %v3823 = vunpack.c.l.b16 %v3234
      %v3824 = vunpack.c.h.b16 %v3234
      %v3825 = vunpack.c.l.b16 %v3235
      %v3826 = vunpack.c.h.b16 %v3235
      %v3827 = vunpack.c.l.b16 %v3236
      %v3828 = vunpack.c.h.b16 %v3236
      %v3829 = vunpack.c.l.b16 %v3237
      %v3830 = vunpack.c.h.b16 %v3237
      %v3831 = vunpack.c.l.b16 %v3238
      %v3832 = vpack.c.b16 %v3553, %v3544
      %v3833 = vpack.c.b16 %v3554, %v3545
      %v3834 = vpack.c.b16 %v3555, %v3546
      %v3835 = vpack.c.b16 %v3556, %v3547
      %v3836 = vpack.c.b16 %v3557, %v3548
      %v3837 = vpack.c.b16 %v3558, %v3549
      %v3838 = vpack.c.b16 %v3559, %v3550
      %v3839 = vpack.c.b16 %v3560, %v3551
      %v3840 = vpack.c.b16 %v3561, %v3552
      %v3841 = vpack.c.b16 %v3571, %v3562
      %v3842 = vpack.c.b16 %v3572, %v3563
      %v3843 = vpack.c.b16 %v3573, %v3564
      %v3844 = vpack.c.b16 %v3574, %v3565
      %v3845 = vpack.c.b16 %v3575, %v3566
      %v3846 = vpack.c.b16 %v3576, %v3567
      %v3847 = vpack.c.b16 %v3577, %v3568
      %v3848 = vpack.c.b16 %v3578, %v3569
      %v3849 = vpack.c.b16 %v3579, %v3570
      %v3850 = vpack.c.b16 %v3589, %v3580
      %v3851 = vpack.c.b16 %v3590, %v3581
      %v3852 = vpack.c.b16 %v3591, %v3582
      %v3853 = vpack.c.b16 %v3592, %v3583
      %v3854 = vpack.c.b16 %v3593, %v3584
      %v3855 = vpack.c.b16 %v3594, %v3585
      %v3856 = vpack.c.b16 %v3595, %v3586
      %v3857 = vpack.c.b16 %v3596, %v3587
      %v3858 = vpack.c.b16 %v3597, %v3588
      %v3859 = vpack.c.b16 %v3607, %v3598
      %v3860 = vpack.c.b16 %v3608, %v3599
      %v3861 = vpack.c.b16 %v3609, %v3600
      %v3862 = vpack.c.b16 %v3610, %v3601
      %v3863 = vpack.c.b16 %v3611, %v3602
      %v3864 = vpack.c.b16 %v3612, %v3603
      %v3865 = vpack.c.b16 %v3613, %v3604
      %v3866 = vpack.c.b16 %v3614, %v3605
      %v3867 = vpack.c.b16 %v3615, %v3606
      %v3868 = vpack.c.b16 %v3625, %v3616
      %v3869 = vpack.c.b16 %v3626, %v3617
      %v3870 = vpack.c.b16 %v3627, %v3618
      %v3871 = vpack.c.b16 %v3628, %v3619
      %v3872 = vpack.c.b16 %v3629, %v3620
      %v3873 = vpack.c.b16 %v3630, %v3621
      %v3874 = vpack.c.b16 %v3631, %v3622
      %v3875 = vpack.c.b16 %v3632, %v3623
      %v3876 = vpack.c.b16 %v3633, %v3624
      %v3877 = vpack.c.b16 %v3643, %v3634
      %v3878 = vpack.c.b16 %v3644, %v3635
      %v3879 = vpack.c.b16 %v3645, %v3636
      %v3880 = vpack.c.b16 %v3646, %v3637
      %v3881 = vpack.c.b16 %v3647, %v3638
      %v3882 = vpack.c.b16 %v3648, %v3639
      %v3883 = vpack.c.b16 %v3649, %v3640
      %v3884 = vpack.c.b16 %v3650, %v3641
      %v3885 = vpack.c.b16 %v3651, %v3642
      %v3886 = vpack.c.b16 %v3661, %v3652
      %v3887 = vpack.c.b16 %v3662, %v3653
      %v3888 = vpack.c.b16 %v3663, %v3654
      %v3889 = vpack.c.b16 %v3664, %v3655
      %v3890 = vpack.c.b16 %v3665, %v3656
      %v3891 = vpack.c.b16 %v3666, %v3657
      %v3892 = vpack.c.b16 %v3667, %v3658
      %v3893 = vpack.c.b16 %v3668, %v3659
      %v3894 = vpack.c.b16 %v3669, %v3660
      %v3895 = vpack.c.b16 %v3679, %v3670
      %v3896 = vpack.c.b16 %v3680, %v3671
      %v3897 = vpack.c.b16 %v3681, %v3672
      %v3898 = vpack.c.b16 %v3682, %v3673
      %v3899 = vpack.c.b16 %v3683, %v3674
      %v3900 = vpack.c.b16 %v3684, %v3675
      %v3901 = vpack.c.b16 %v3685, %v3676
      %v3902 = vpack.c.b16 %v3686, %v3677
      %v3903 = vpack.c.b16 %v3687, %v3678
      %v3904 = vpack.c.b16 %v3697, %v3688
      %v3905 = vpack.c.b16 %v3698, %v3689
      %v3906 = vpack.c.b16 %v3699, %v3690
      %v3907 = vpack.c.b16 %v3700, %v3691
      %v3908 = vpack.c.b16 %v3701, %v3692
      %v3909 = vpack.c.b16 %v3702, %v3693
      %v3910 = vpack.c.b16 %v3703, %v3694
      %v3911 = vpack.c.b16 %v3704, %v3695
      %v3912 = vpack.c.b16 %v3705, %v3696
      %v3913 = vpack.c.b16 %v3715, %v3706
      %v3914 = vpack.c.b16 %v3716, %v3707
      %v3915 = vpack.c.b16 %v3717, %v3708
      %v3916 = vpack.c.b16 %v3718, %v3709
      %v3917 = vpack.c.b16 %v3719, %v3710
      %v3918 = vpack.c.b16 %v3720, %v3711
      %v3919 = vpack.c.b16 %v3721, %v3712
      %v3920 = vpack.c.b16 %v3722, %v3713
      %v3921 = vpack.c.b16 %v3723, %v3714
      %v3922 = vpack.c.b16 %v3733, %v3724
      %v3923 = vpack.c.b16 %v3734, %v3725
      %v3924 = vpack.c.b16 %v3735, %v3726
      %v3925 = vpack.c.b16 %v3736, %v3727
      %v3926 = vpack.c.b16 %v3737, %v3728
      %v3927 = vpack.c.b16 %v3738, %v3729
      %v3928 = vpack.c.b16 %v3739, %v3730
      %v3929 = vpack.c.b16 %v3740, %v3731
      %v3930 = vpack.c.b16 %v3741, %v3732
      %v3931 = vpack.c.b16 %v3751, %v3742
      %v3932 = vpack.c.b16 %v3752, %v3743
      %v3933 = vpack.c.b16 %v3753, %v3744
      %v3934 = vpack.c.b16 %v3754, %v3745
      %v3935 = vpack.c.b16 %v3755, %v3746
      %v3936 = vpack.c.b16 %v3756, %v3747
      %v3937 = vpack.c.b16 %v3757, %v3748
      %v3938 = vpack.c.b16 %v3758, %v3749
      %v3939 = vpack.c.b16 %v3759, %v3750
      %v3940 = vpack.c.b16 %v3769, %v3760
      %v3941 = vpack.c.b16 %v3770, %v3761
      %v3942 = vpack.c.b16 %v3771, %v3762
      %v3943 = vpack.c.b16 %v3772, %v3763
      %v3944 = vpack.c.b16 %v3773, %v3764
      %v3945 = vpack.c.b16 %v3774, %v3765
      %v3946 = vpack.c.b16 %v3775, %v3766
      %v3947 = vpack.c.b16 %v3776, %v3767
      %v3948 = vpack.c.b16 %v3777, %v3768
      %v3949 = vpack.c.b16 %v3787, %v3778
      %v3950 = vpack.c.b16 %v3788, %v3779
      %v3951 = vpack.c.b16 %v3789, %v3780
      %v3952 = vpack.c.b16 %v3790, %v3781
      %v3953 = vpack.c.b16 %v3791, %v3782
      %v3954 = vpack.c.b16 %v3792, %v3783
      %v3955 = vpack.c.b16 %v3793, %v3784
      %v3956 = vpack.c.b16 %v3794, %v3785
      %v3957 = vpack.c.b16 %v3795, %v3786
      %v3958 = vpack.c.b16 %v3805, %v3796
      %v3959 = vpack.c.b16 %v3806, %v3797
      %v3960 = vpack.c.b16 %v3807, %v3798
      %v3961 = vpack.c.b16 %v3808, %v3799
      %v3962 = vpack.c.b16 %v3809, %v3800
      %v3963 = vpack.c.b16 %v3810, %v3801
      %v3964 = vpack.c.b16 %v3811, %v3802
      %v3965 = vpack.c.b16 %v3812, %v3803
      %v3966 = vpack.c.b16 %v3813, %v3804
      %v3967 = vpack.c.b16 %v3823, %v3814
      %v3968 = vpack.c.b16 %v3824, %v3815
      %v3969 = vpack.c.b16 %v3825, %v3816
      %v3970 = vpack.c.b16 %v3826, %v3817
      %v3971 = vpack.c.b16 %v3827, %v3818
      %v3972 = vpack.c.b16 %v3828, %v3819
      %v3973 = vpack.c.b16 %v3829, %v3820
      %v3974 = vpack.c.b16 %v3830, %v3821
      %v3975 = vpack.c.b16 %v3831, %v3822
      %v4264 = vunpack.c.l.b16 %v3240
      %v4265 = vunpack.c.h.b16 %v3240
      %v4266 = vunpack.c.l.b16 %v3241
      %v4267 = vunpack.c.h.b16 %v3241
      %v4268 = vunpack.c.l.b16 %v3242
      %v4269 = vunpack.c.h.b16 %v3242
      %v4270 = vunpack.c.l.b16 %v3243
      %v4271 = vunpack.c.h.b16 %v3243
      %v4272 = vunpack.c.l.b16 %v3244
      %v4273 = vunpack.c.h.b16 %v3244
      %v4274 = vunpack.c.l.b16 %v3245
      %v4275 = vunpack.c.h.b16 %v3245
      %v4276 = vunpack.c.l.b16 %v3246
      %v4277 = vunpack.c.h.b16 %v3246
      %v4278 = vunpack.c.l.b16 %v3247
      %v4279 = vunpack.c.h.b16 %v3247
      %v4280 = vunpack.c.l.b16 %v3248
      %v4281 = vunpack.c.h.b16 %v3248
      %v4282 = vunpack.c.l.b16 %v3249
      %v4283 = vunpack.c.h.b16 %v3249
      %v4284 = vunpack.c.l.b16 %v3250
      %v4285 = vunpack.c.h.b16 %v3250
      %v4286 = vunpack.c.l.b16 %v3251
      %v4287 = vunpack.c.h.b16 %v3251
      %v4288 = vunpack.c.l.b16 %v3252
      %v4289 = vunpack.c.h.b16 %v3252
      %v4290 = vunpack.c.l.b16 %v3253
      %v4291 = vunpack.c.h.b16 %v3253
      %v4292 = vunpack.c.l.b16 %v3254
      %v4293 = vunpack.c.h.b16 %v3254
      %v4294 = vunpack.c.l.b16 %v3255
      %v4295 = vunpack.c.h.b16 %v3255
      %v4296 = vunpack.c.l.b16 %v3256
      %v4297 = vunpack.c.h.b16 %v3256
      %v4298 = vunpack.c.l.b16 %v3257
      %v4299 = vunpack.c.h.b16 %v3257
      %v4300 = vunpack.c.l.b16 %v3258
      %v4301 = vunpack.c.h.b16 %v3258
      %v4302 = vunpack.c.l.b16 %v3259
      %v4303 = vunpack.c.h.b16 %v3259
      %v4304 = vunpack.c.l.b16 %v3260
      %v4305 = vunpack.c.h.b16 %v3260
      %v4306 = vunpack.c.l.b16 %v3261
      %v4307 = vunpack.c.h.b16 %v3261
      %v4308 = vunpack.c.l.b16 %v3262
      %v4309 = vunpack.c.h.b16 %v3262
      %v4310 = vunpack.c.l.b16 %v3263
      %v4311 = vunpack.c.h.b16 %v3263
      %v4312 = vunpack.c.l.b16 %v3264
      %v4313 = vunpack.c.h.b16 %v3264
      %v4314 = vunpack.c.l.b16 %v3265
      %v4315 = vunpack.c.h.b16 %v3265
      %v4316 = vunpack.c.l.b16 %v3266
      %v4317 = vunpack.c.h.b16 %v3266
      %v4318 = vunpack.c.l.b16 %v3267
      %v4319 = vunpack.c.h.b16 %v3267
      %v4320 = vunpack.c.l.b16 %v3268
      %v4321 = vunpack.c.h.b16 %v3268
      %v4322 = vunpack.c.l.b16 %v3269
      %v4323 = vunpack.c.h.b16 %v3269
      %v4324 = vunpack.c.l.b16 %v3270
      %v4325 = vunpack.c.h.b16 %v3270
      %v4326 = vunpack.c.l.b16 %v3271
      %v4327 = vunpack.c.h.b16 %v3271
      %v4328 = vunpack.c.l.b16 %v3272
      %v4329 = vunpack.c.h.b16 %v3272
      %v4330 = vunpack.c.l.b16 %v3273
      %v4331 = vunpack.c.h.b16 %v3273
      %v4332 = vunpack.c.l.b16 %v3274
      %v4333 = vunpack.c.h.b16 %v3274
      %v4334 = vunpack.c.l.b16 %v3275
      %v4335 = vunpack.c.h.b16 %v3275
      %v4336 = vunpack.c.l.b16 %v3276
      %v4337 = vunpack.c.h.b16 %v3276
      %v4338 = vunpack.c.l.b16 %v3277
      %v4339 = vunpack.c.h.b16 %v3277
      %v4340 = vunpack.c.l.b16 %v3278
      %v4341 = vunpack.c.h.b16 %v3278
      %v4342 = vunpack.c.l.b16 %v3279
      %v4343 = vunpack.c.h.b16 %v3279
      %v4344 = vunpack.c.l.b16 %v3280
      %v4345 = vunpack.c.h.b16 %v3280
      %v4346 = vunpack.c.l.b16 %v3281
      %v4347 = vunpack.c.h.b16 %v3281
      %v4348 = vunpack.c.l.b16 %v3282
      %v4349 = vunpack.c.h.b16 %v3282
      %v4350 = vunpack.c.l.b16 %v3283
      %v4351 = vunpack.c.h.b16 %v3283
      %v4352 = vunpack.c.l.b16 %v3284
      %v4353 = vunpack.c.h.b16 %v3284
      %v4354 = vunpack.c.l.b16 %v3285
      %v4355 = vunpack.c.h.b16 %v3285
      %v4356 = vunpack.c.l.b16 %v3286
      %v4357 = vunpack.c.h.b16 %v3286
      %v4358 = vunpack.c.l.b16 %v3287
      %v4359 = vunpack.c.h.b16 %v3287
      %v4360 = vunpack.c.l.b16 %v3288
      %v4361 = vunpack.c.h.b16 %v3288
      %v4362 = vunpack.c.l.b16 %v3289
      %v4363 = vunpack.c.h.b16 %v3289
      %v4364 = vunpack.c.l.b16 %v3290
      %v4365 = vunpack.c.h.b16 %v3290
      %v4366 = vunpack.c.l.b16 %v3291
      %v4367 = vunpack.c.h.b16 %v3291
      %v4368 = vunpack.c.l.b16 %v3292
      %v4369 = vunpack.c.h.b16 %v3292
      %v4370 = vunpack.c.l.b16 %v3293
      %v4371 = vunpack.c.h.b16 %v3293
      %v4372 = vunpack.c.l.b16 %v3294
      %v4373 = vunpack.c.h.b16 %v3294
      %v4374 = vunpack.c.l.b16 %v3295
      %v4375 = vunpack.c.h.b16 %v3295
      %v4376 = vunpack.c.l.b16 %v3296
      %v4377 = vunpack.c.h.b16 %v3296
      %v4378 = vunpack.c.l.b16 %v3297
      %v4379 = vunpack.c.h.b16 %v3297
      %v4380 = vunpack.c.l.b16 %v3298
      %v4381 = vunpack.c.h.b16 %v3298
      %v4382 = vunpack.c.l.b16 %v3299
      %v4383 = vunpack.c.h.b16 %v3299
      %v4384 = vunpack.c.l.b16 %v3300
      %v4385 = vunpack.c.h.b16 %v3300
      %v4386 = vunpack.c.l.b16 %v3301
      %v4387 = vunpack.c.h.b16 %v3301
      %v4388 = vunpack.c.l.b16 %v3302
      %v4389 = vunpack.c.h.b16 %v3302
      %v4390 = vunpack.c.l.b16 %v3303
      %v4391 = vunpack.c.h.b16 %v3303
      %v4392 = vunpack.c.l.b16 %v3304
      %v4393 = vunpack.c.h.b16 %v3304
      %v4394 = vunpack.c.l.b16 %v3305
      %v4395 = vunpack.c.h.b16 %v3305
      %v4396 = vunpack.c.l.b16 %v3306
      %v4397 = vunpack.c.h.b16 %v3306
      %v4398 = vunpack.c.l.b16 %v3307
      %v4399 = vunpack.c.h.b16 %v3307
      %v4400 = vunpack.c.l.b16 %v3308
      %v4401 = vunpack.c.h.b16 %v3308
      %v4402 = vunpack.c.l.b16 %v3309
      %v4403 = vunpack.c.h.b16 %v3309
      %v4404 = vunpack.c.l.b16 %v3310
      %v4405 = vunpack.c.h.b16 %v3310
      %v4406 = vunpack.c.l.b16 %v3311
      %v4407 = vunpack.c.h.b16 %v3311
      %v4408 = vunpack.c.l.b16 %v3312
      %v4409 = vunpack.c.h.b16 %v3312
      %v4410 = vunpack.c.l.b16 %v3313
      %v4411 = vunpack.c.h.b16 %v3313
      %v4412 = vunpack.c.l.b16 %v3314
      %v4413 = vunpack.c.h.b16 %v3314
      %v4414 = vunpack.c.l.b16 %v3315
      %v4415 = vunpack.c.h.b16 %v3315
      %v4416 = vunpack.c.l.b16 %v3316
      %v4417 = vunpack.c.h.b16 %v3316
      %v4418 = vunpack.c.l.b16 %v3317
      %v4419 = vunpack.c.h.b16 %v3317
      %v4420 = vunpack.c.l.b16 %v3318
      %v4421 = vunpack.c.h.b16 %v3318
      %v4422 = vunpack.c.l.b16 %v3319
      %v4423 = vunpack.c.h.b16 %v3319
      %v4424 = vunpack.c.l.b16 %v3320
      %v4425 = vunpack.c.h.b16 %v3320
      %v4426 = vunpack.c.l.b16 %v3321
      %v4427 = vunpack.c.h.b16 %v3321
      %v4428 = vunpack.c.l.b16 %v3322
      %v4429 = vunpack.c.h.b16 %v3322
      %v4430 = vunpack.c.l.b16 %v3323
      %v4431 = vunpack.c.h.b16 %v3323
      %v4432 = vunpack.c.l.b16 %v3324
      %v4433 = vunpack.c.h.b16 %v3324
      %v4434 = vunpack.c.l.b16 %v3325
      %v4435 = vunpack.c.h.b16 %v3325
      %v4436 = vunpack.c.l.b16 %v3326
      %v4437 = vunpack.c.h.b16 %v3326
      %v4438 = vunpack.c.l.b16 %v3327
      %v4439 = vunpack.c.h.b16 %v3327
      %v4440 = vunpack.c.l.b16 %v3328
      %v4441 = vunpack.c.h.b16 %v3328
      %v4442 = vunpack.c.l.b16 %v3329
      %v4443 = vunpack.c.h.b16 %v3329
      %v4444 = vunpack.c.l.b16 %v3330
      %v4445 = vunpack.c.h.b16 %v3330
      %v4446 = vunpack.c.l.b16 %v3331
      %v4447 = vunpack.c.h.b16 %v3331
      %v4448 = vunpack.c.l.b16 %v3332
      %v4449 = vunpack.c.h.b16 %v3332
      %v4450 = vunpack.c.l.b16 %v3333
      %v4451 = vunpack.c.h.b16 %v3333
      %v4452 = vunpack.c.l.b16 %v3334
      %v4453 = vunpack.c.h.b16 %v3334
      %v4454 = vunpack.c.l.b16 %v3335
      %v4455 = vunpack.c.h.b16 %v3335
      %v4456 = vunpack.c.l.b16 %v3336
      %v4457 = vunpack.c.h.b16 %v3336
      %v4458 = vunpack.c.l.b16 %v3337
      %v4459 = vunpack.c.h.b16 %v3337
      %v4460 = vunpack.c.l.b16 %v3338
      %v4461 = vunpack.c.h.b16 %v3338
      %v4462 = vunpack.c.l.b16 %v3339
      %v4463 = vunpack.c.h.b16 %v3339
      %v4464 = vunpack.c.l.b16 %v3340
      %v4465 = vunpack.c.h.b16 %v3340
      %v4466 = vunpack.c.l.b16 %v3341
      %v4467 = vunpack.c.h.b16 %v3341
      %v4468 = vunpack.c.l.b16 %v3342
      %v4469 = vunpack.c.h.b16 %v3342
      %v4470 = vunpack.c.l.b16 %v3343
      %v4471 = vunpack.c.h.b16 %v3343
      %v4472 = vunpack.c.l.b16 %v3344
      %v4473 = vunpack.c.h.b16 %v3344
      %v4474 = vunpack.c.l.b16 %v3345
      %v4475 = vunpack.c.h.b16 %v3345
      %v4476 = vunpack.c.l.b16 %v3346
      %v4477 = vunpack.c.h.b16 %v3346
      %v4478 = vunpack.c.l.b16 %v3347
      %v4479 = vunpack.c.h.b16 %v3347
      %v4480 = vunpack.c.l.b16 %v3348
      %v4481 = vunpack.c.h.b16 %v3348
      %v4482 = vunpack.c.l.b16 %v3349
      %v4483 = vunpack.c.h.b16 %v3349
      %v4484 = vunpack.c.l.b16 %v3350
      %v4485 = vunpack.c.h.b16 %v3350
      %v4486 = vunpack.c.l.b16 %v3351
      %v4487 = vunpack.c.h.b16 %v3351
      %v4488 = vunpack.c.l.b16 %v3352
      %v4489 = vunpack.c.h.b16 %v3352
      %v4490 = vunpack.c.l.b16 %v3353
      %v4491 = vunpack.c.h.b16 %v3353
      %v4492 = vunpack.c.l.b16 %v3354
      %v4493 = vunpack.c.h.b16 %v3354
      %v4494 = vunpack.c.l.b16 %v3355
      %v4495 = vunpack.c.h.b16 %v3355
      %v4496 = vunpack.c.l.b16 %v3356
      %v4497 = vunpack.c.h.b16 %v3356
      %v4498 = vunpack.c.l.b16 %v3357
      %v4499 = vunpack.c.h.b16 %v3357
      %v4500 = vunpack.c.l.b16 %v3358
      %v4501 = vunpack.c.h.b16 %v3358
      %v4502 = vunpack.c.l.b16 %v3359
      %v4503 = vunpack.c.h.b16 %v3359
      %v4504 = vunpack.c.l.b16 %v3360
      %v4505 = vunpack.c.h.b16 %v3360
      %v4506 = vunpack.c.l.b16 %v3361
      %v4507 = vunpack.c.h.b16 %v3361
      %v4508 = vunpack.c.l.b16 %v3362
      %v4509 = vunpack.c.h.b16 %v3362
      %v4510 = vunpack.c.l.b16 %v3363
      %v4511 = vunpack.c.h.b16 %v3363
      %v4512 = vunpack.c.l.b16 %v3364
      %v4513 = vunpack.c.h.b16 %v3364
      %v4514 = vunpack.c.l.b16 %v3365
      %v4515 = vunpack.c.h.b16 %v3365
      %v4516 = vunpack.c.l.b16 %v3366
      %v4517 = vunpack.c.h.b16 %v3366
      %v4518 = vunpack.c.l.b16 %v3367
      %v4519 = vunpack.c.h.b16 %v3367
      %v4520 = vunpack.c.l.b16 %v3368
      %v4521 = vunpack.c.h.b16 %v3368
      %v4522 = vunpack.c.l.b16 %v3369
      %v4523 = vunpack.c.h.b16 %v3369
      %v4524 = vunpack.c.l.b16 %v3370
      %v4525 = vunpack.c.h.b16 %v3370
      %v4526 = vunpack.c.l.b16 %v3371
      %v4527 = vunpack.c.h.b16 %v3371
      %v4528 = vunpack.c.l.b16 %v3372
      %v4529 = vunpack.c.h.b16 %v3372
      %v4530 = vunpack.c.l.b16 %v3373
      %v4531 = vunpack.c.h.b16 %v3373
      %v4532 = vunpack.c.l.b16 %v3374
      %v4533 = vunpack.c.h.b16 %v3374
      %v4534 = vunpack.c.l.b16 %v3375
      %v4535 = vunpack.c.h.b16 %v3375
      %v4536 = vunpack.c.l.b16 %v3376
      %v4537 = vunpack.c.h.b16 %v3376
      %v4538 = vunpack.c.l.b16 %v3377
      %v4539 = vunpack.c.h.b16 %v3377
      %v4540 = vunpack.c.l.b16 %v3378
      %v4541 = vunpack.c.h.b16 %v3378
      %v4542 = vunpack.c.l.b16 %v3379
      %v4543 = vunpack.c.h.b16 %v3379
      %v4544 = vunpack.c.l.b16 %v3380
      %v4545 = vunpack.c.h.b16 %v3380
      %v4546 = vunpack.c.l.b16 %v3381
      %v4547 = vunpack.c.h.b16 %v3381
      %v4548 = vunpack.c.l.b16 %v3382
      %v4549 = vunpack.c.h.b16 %v3382
      %v4550 = vunpack.c.l.b16 %v3383
      %v4551 = vunpack.c.h.b16 %v3383
      %v4552 = vpack.c.b16 %v4266, %v4264
      %v4553 = vpack.c.b16 %v4267, %v4265
      %v4554 = vpack.c.b16 %v4270, %v4268
      %v4555 = vpack.c.b16 %v4271, %v4269
      %v4556 = vpack.c.b16 %v4274, %v4272
      %v4557 = vpack.c.b16 %v4275, %v4273
      %v4558 = vpack.c.b16 %v4278, %v4276
      %v4559 = vpack.c.b16 %v4279, %v4277
      %v4560 = vpack.c.b16 %v4282, %v4280
      %v4561 = vpack.c.b16 %v4283, %v4281
      %v4562 = vpack.c.b16 %v4286, %v4284
      %v4563 = vpack.c.b16 %v4287, %v4285
      %v4564 = vpack.c.b16 %v4290, %v4288
      %v4565 = vpack.c.b16 %v4291, %v4289
      %v4566 = vpack.c.b16 %v4294, %v4292
      %v4567 = vpack.c.b16 %v4295, %v4293
      %v4568 = vpack.c.b16 %v4298, %v4296
      %v4569 = vpack.c.b16 %v4299, %v4297
      %v4570 = vpack.c.b16 %v4302, %v4300
      %v4571 = vpack.c.b16 %v4303, %v4301
      %v4572 = vpack.c.b16 %v4306, %v4304
      %v4573 = vpack.c.b16 %v4307, %v4305
      %v4574 = vpack.c.b16 %v4310, %v4308
      %v4575 = vpack.c.b16 %v4311, %v4309
      %v4576 = vpack.c.b16 %v4314, %v4312
      %v4577 = vpack.c.b16 %v4315, %v4313
      %v4578 = vpack.c.b16 %v4318, %v4316
      %v4579 = vpack.c.b16 %v4319, %v4317
      %v4580 = vpack.c.b16 %v4322, %v4320
      %v4581 = vpack.c.b16 %v4323, %v4321
      %v4582 = vpack.c.b16 %v4326, %v4324
      %v4583 = vpack.c.b16 %v4327, %v4325
      %v4584 = vpack.c.b16 %v4330, %v4328
      %v4585 = vpack.c.b16 %v4331, %v4329
      %v4586 = vpack.c.b16 %v4334, %v4332
      %v4587 = vpack.c.b16 %v4335, %v4333
      %v4588 = vpack.c.b16 %v4338, %v4336
      %v4589 = vpack.c.b16 %v4339, %v4337
      %v4590 = vpack.c.b16 %v4342, %v4340
      %v4591 = vpack.c.b16 %v4343, %v4341
      %v4592 = vpack.c.b16 %v4346, %v4344
      %v4593 = vpack.c.b16 %v4347, %v4345
      %v4594 = vpack.c.b16 %v4350, %v4348
      %v4595 = vpack.c.b16 %v4351, %v4349
      %v4596 = vpack.c.b16 %v4354, %v4352
      %v4597 = vpack.c.b16 %v4355, %v4353
      %v4598 = vpack.c.b16 %v4358, %v4356
      %v4599 = vpack.c.b16 %v4359, %v4357
      %v4600 = vpack.c.b16 %v4362, %v4360
      %v4601 = vpack.c.b16 %v4363, %v4361
      %v4602 = vpack.c.b16 %v4366, %v4364
      %v4603 = vpack.c.b16 %v4367, %v4365
      %v4604 = vpack.c.b16 %v4370, %v4368
      %v4605 = vpack.c.b16 %v4371, %v4369
      %v4606 = vpack.c.b16 %v4374, %v4372
      %v4607 = vpack.c.b16 %v4375, %v4373
      %v4608 = vpack.c.b16 %v4378, %v4376
      %v4609 = vpack.c.b16 %v4379, %v4377
      %v4610 = vpack.c.b16 %v4382, %v4380
      %v4611 = vpack.c.b16 %v4383, %v4381
      %v4612 = vpack.c.b16 %v4386, %v4384
      %v4613 = vpack.c.b16 %v4387, %v4385
      %v4614 = vpack.c.b16 %v4390, %v4388
      %v4615 = vpack.c.b16 %v4391, %v4389
      %v4616 = vpack.c.b16 %v4394, %v4392
      %v4617 = vpack.c.b16 %v4395, %v4393
      %v4618 = vpack.c.b16 %v4398, %v4396
      %v4619 = vpack.c.b16 %v4399, %v4397
      %v4620 = vpack.c.b16 %v4402, %v4400
      %v4621 = vpack.c.b16 %v4403, %v4401
      %v4622 = vpack.c.b16 %v4406, %v4404
      %v4623 = vpack.c.b16 %v4407, %v4405
      %v4624 = vpack.c.b16 %v4410, %v4408
      %v4625 = vpack.c.b16 %v4411, %v4409
      %v4626 = vpack.c.b16 %v4414, %v4412
      %v4627 = vpack.c.b16 %v4415, %v4413
      %v4628 = vpack.c.b16 %v4418, %v4416
      %v4629 = vpack.c.b16 %v4419, %v4417
      %v4630 = vpack.c.b16 %v4422, %v4420
      %v4631 = vpack.c.b16 %v4423, %v4421
      %v4632 = vpack.c.b16 %v4426, %v4424
      %v4633 = vpack.c.b16 %v4427, %v4425
      %v4634 = vpack.c.b16 %v4430, %v4428
      %v4635 = vpack.c.b16 %v4431, %v4429
      %v4636 = vpack.c.b16 %v4434, %v4432
      %v4637 = vpack.c.b16 %v4435, %v4433
      %v4638 = vpack.c.b16 %v4438, %v4436
      %v4639 = vpack.c.b16 %v4439, %v4437
      %v4640 = vpack.c.b16 %v4442, %v4440
      %v4641 = vpack.c.b16 %v4443, %v4441
      %v4642 = vpack.c.b16 %v4446, %v4444
      %v4643 = vpack.c.b16 %v4447, %v4445
      %v4644 = vpack.c.b16 %v4450, %v4448
      %v4645 = vpack.c.b16 %v4451, %v4449
      %v4646 = vpack.c.b16 %v4454, %v4452
      %v4647 = vpack.c.b16 %v4455, %v4453
      %v4648 = vpack.c.b16 %v4458, %v4456
      %v4649 = vpack.c.b16 %v4459, %v4457
      %v4650 = vpack.c.b16 %v4462, %v4460
      %v4651 = vpack.c.b16 %v4463, %v4461
      %v4652 = vpack.c.b16 %v4466, %v4464
      %v4653 = vpack.c.b16 %v4467, %v4465
      %v4654 = vpack.c.b16 %v4470, %v4468
      %v4655 = vpack.c.b16 %v4471, %v4469
      %v4656 = vpack.c.b16 %v4474, %v4472
      %v4657 = vpack.c.b16 %v4475, %v4473
      %v4658 = vpack.c.b16 %v4478, %v4476
      %v4659 = vpack.c.b16 %v4479, %v4477
      %v4660 = vpack.c.b16 %v4482, %v4480
      %v4661 = vpack.c.b16 %v4483, %v4481
      %v4662 = vpack.c.b16 %v4486, %v4484
      %v4663 = vpack.c.b16 %v4487, %v4485
      %v4664 = vpack.c.b16 %v4490, %v4488
      %v4665 = vpack.c.b16 %v4491, %v4489
      %v4666 = vpack.c.b16 %v4494, %v4492
      %v4667 = vpack.c.b16 %v4495, %v4493
      %v4668 = vpack.c.b16 %v4498, %v4496
      %v4669 = vpack.c.b16 %v4499, %v4497
      %v4670 = vpack.c.b16 %v4502, %v4500
      %v4671 = vpack.c.b16 %v4503, %v4501
      %v4672 = vpack.c.b16 %v4506, %v4504
      %v4673 = vpack.c.b16 %v4507, %v4505
      %v4674 = vpack.c.b16 %v4510, %v4508
      %v4675 = vpack.c.b16 %v4511, %v4509
      %v4676 = vpack.c.b16 %v4514, %v4512
      %v4677 = vpack.c.b16 %v4515, %v4513
      %v4678 = vpack.c.b16 %v4518, %v4516
      %v4679 = vpack.c.b16 %v4519, %v4517
      %v4680 = vpack.c.b16 %v4522, %v4520
      %v4681 = vpack.c.b16 %v4523, %v4521
      %v4682 = vpack.c.b16 %v4526, %v4524
      %v4683 = vpack.c.b16 %v4527, %v4525
      %v4684 = vpack.c.b16 %v4530, %v4528
      %v4685 = vpack.c.b16 %v4531, %v4529
      %v4686 = vpack.c.b16 %v4534, %v4532
      %v4687 = vpack.c.b16 %v4535, %v4533
      %v4688 = vpack.c.b16 %v4538, %v4536
      %v4689 = vpack.c.b16 %v4539, %v4537
      %v4690 = vpack.c.b16 %v4542, %v4540
      %v4691 = vpack.c.b16 %v4543, %v4541
      %v4692 = vpack.c.b16 %v4546, %v4544
      %v4693 = vpack.c.b16 %v4547, %v4545
      %v4694 = vpack.c.b16 %v4550, %v4548
      %v4695 = vpack.c.b16 %v4551, %v4549
      %4840 = vmatprep.subr.bf16.mxu0 %v4567
      %4841 = vmatpush1.bf16.msra.mxu0 %v4566
      %4842 = vmatprep.subr.bf16.mxu0 %v4565
      %4843 = vmatpush1.bf16.msra.mxu0 %v4564
      %4844 = vmatprep.subr.bf16.mxu0 %v4563
      %4845 = vmatpush1.bf16.msra.mxu0 %v4562
      %4846 = vmatprep.subr.bf16.mxu0 %v4561
      %4847 = vmatpush1.bf16.msra.mxu0 %v4560
      %4848 = vmatprep.subr.bf16.mxu0 %v4559
      %4849 = vmatpush1.bf16.msra.mxu0 %v4558
      %4850 = vmatprep.subr.bf16.mxu0 %v4557
      %4851 = vmatpush1.bf16.msra.mxu0 %v4556
      %4852 = vmatprep.subr.bf16.mxu0 %v4555
      %4853 = vmatpush1.bf16.msra.mxu0 %v4554
      %4854 = vmatprep.subr.bf16.mxu0 %v4553
      %4855 = vmatpush1.bf16.msra.mxu0 %v4552
      %4856 = vmatprep.subr.bf16.mxu0 %v4583
      %4857 = vmatpush2.bf16.msra.mxu0 %v4582
      %4858 = vmatprep.subr.bf16.mxu0 %v4581
      %4859 = vmatpush2.bf16.msra.mxu0 %v4580
      %4860 = vmatprep.subr.bf16.mxu0 %v4579
      %4861 = vmatpush2.bf16.msra.mxu0 %v4578
      %4862 = vmatprep.subr.bf16.mxu0 %v4577
      %4863 = vmatpush2.bf16.msra.mxu0 %v4576
      %4864 = vmatprep.subr.bf16.mxu0 %v4575
      %4865 = vmatpush2.bf16.msra.mxu0 %v4574
      %4866 = vmatprep.subr.bf16.mxu0 %v4573
      %4867 = vmatpush2.bf16.msra.mxu0 %v4572
      %4868 = vmatprep.subr.bf16.mxu0 %v4571
      %4869 = vmatpush2.bf16.msra.mxu0 %v4570
      %4870 = vmatprep.subr.bf16.mxu0 %v4569
      %4871 = vmatpush2.bf16.msra.mxu0 %v4568
      %4872 = vmatprep.mubr.bf16.mxu0 %v3833
      %4873 = vmatmul.mubr.bf16.gmra.mxu0 %v3832
      %v4874 = vpop.f32.mrf.mxu0
      %v4875 = vadd.f32 0.0, %v4874
      %v4876 = vpop.f32.mrf.mxu0
      %v4877 = vadd.f32 0.0, %v4876
      %v4878 = vpop.f32.mrf.mxu0
      %v4879 = vadd.f32 0.0, %v4878
      %v4880 = vpop.f32.mrf.mxu0
      %v4881 = vadd.f32 0.0, %v4880
      %4882 = vmatprep.mubr.bf16.mxu0 %v3842
      %4883 = vmatmul.mubr.bf16.gmra.mxu0 %v3841
      %v4884 = vpop.f32.mrf.mxu0
      %v4885 = vadd.f32 0.0, %v4884
      %v4886 = vpop.f32.mrf.mxu0
      %v4887 = vadd.f32 0.0, %v4886
      %v4888 = vpop.f32.mrf.mxu0
      %v4889 = vadd.f32 0.0, %v4888
      %v4890 = vpop.f32.mrf.mxu0
      %v4891 = vadd.f32 0.0, %v4890
      %4892 = vmatprep.mubr.bf16.mxu0 %v3851
      %4893 = vmatmul.mubr.bf16.gmra.mxu0 %v3850
      %v4894 = vpop.f32.mrf.mxu0
      %v4895 = vadd.f32 0.0, %v4894
      %v4896 = vpop.f32.mrf.mxu0
      %v4897 = vadd.f32 0.0, %v4896
      %v4898 = vpop.f32.mrf.mxu0
      %v4899 = vadd.f32 0.0, %v4898
      %v4900 = vpop.f32.mrf.mxu0
      %v4901 = vadd.f32 0.0, %v4900
      %4902 = vmatprep.mubr.bf16.mxu0 %v3860
      %4903 = vmatmul.mubr.bf16.gmra.mxu0 %v3859
      %v4904 = vpop.f32.mrf.mxu0
      %v4905 = vadd.f32 0.0, %v4904
      %v4906 = vpop.f32.mrf.mxu0
      %v4907 = vadd.f32 0.0, %v4906
      %v4908 = vpop.f32.mrf.mxu0
      %v4909 = vadd.f32 0.0, %v4908
      %v4910 = vpop.f32.mrf.mxu0
      %v4911 = vadd.f32 0.0, %v4910
      %4912 = vmatprep.mubr.bf16.mxu0 %v3869
      %4913 = vmatmul.mubr.bf16.gmra.mxu0 %v3868
      %v4914 = vpop.f32.mrf.mxu0
      %v4915 = vadd.f32 0.0, %v4914
      %v4916 = vpop.f32.mrf.mxu0
      %v4917 = vadd.f32 0.0, %v4916
      %v4918 = vpop.f32.mrf.mxu0
      %v4919 = vadd.f32 0.0, %v4918
      %v4920 = vpop.f32.mrf.mxu0
      %v4921 = vadd.f32 0.0, %v4920
      %4922 = vmatprep.mubr.bf16.mxu0 %v3878
      %4923 = vmatmul.mubr.bf16.gmra.mxu0 %v3877
      %v4924 = vpop.f32.mrf.mxu0
      %v4925 = vadd.f32 0.0, %v4924
      %v4926 = vpop.f32.mrf.mxu0
      %v4927 = vadd.f32 0.0, %v4926
      %v4928 = vpop.f32.mrf.mxu0
      %v4929 = vadd.f32 0.0, %v4928
      %v4930 = vpop.f32.mrf.mxu0
      %v4931 = vadd.f32 0.0, %v4930
      %4932 = vmatprep.mubr.bf16.mxu0 %v3887
      %4933 = vmatmul.mubr.bf16.gmra.mxu0 %v3886
      %v4934 = vpop.f32.mrf.mxu0
      %v4935 = vadd.f32 0.0, %v4934
      %v4936 = vpop.f32.mrf.mxu0
      %v4937 = vadd.f32 0.0, %v4936
      %v4938 = vpop.f32.mrf.mxu0
      %v4939 = vadd.f32 0.0, %v4938
      %v4940 = vpop.f32.mrf.mxu0
      %v4941 = vadd.f32 0.0, %v4940
      %4942 = vmatprep.mubr.bf16.mxu0 %v3896
      %4943 = vmatmul.mubr.bf16.gmra.mxu0 %v3895
      %v4944 = vpop.f32.mrf.mxu0
      %v4945 = vadd.f32 0.0, %v4944
      %v4946 = vpop.f32.mrf.mxu0
      %v4947 = vadd.f32 0.0, %v4946
      %v4948 = vpop.f32.mrf.mxu0
      %v4949 = vadd.f32 0.0, %v4948
      %v4950 = vpop.f32.mrf.mxu0
      %v4951 = vadd.f32 0.0, %v4950
      %4952 = vmatprep.mubr.bf16.mxu0 %v3905
      %4953 = vmatmul.mubr.bf16.gmra.mxu0 %v3904
      %v4954 = vpop.f32.mrf.mxu0
      %v4955 = vadd.f32 0.0, %v4954
      %v4956 = vpop.f32.mrf.mxu0
      %v4957 = vadd.f32 0.0, %v4956
      %v4958 = vpop.f32.mrf.mxu0
      %v4959 = vadd.f32 0.0, %v4958
      %v4960 = vpop.f32.mrf.mxu0
      %v4961 = vadd.f32 0.0, %v4960
      %4962 = vmatprep.mubr.bf16.mxu0 %v3914
      %4963 = vmatmul.mubr.bf16.gmra.mxu0 %v3913
      %v4964 = vpop.f32.mrf.mxu0
      %v4965 = vadd.f32 0.0, %v4964
      %v4966 = vpop.f32.mrf.mxu0
      %v4967 = vadd.f32 0.0, %v4966
      %v4968 = vpop.f32.mrf.mxu0
      %v4969 = vadd.f32 0.0, %v4968
      %v4970 = vpop.f32.mrf.mxu0
      %v4971 = vadd.f32 0.0, %v4970
      %4972 = vmatprep.mubr.bf16.mxu0 %v3923
      %4973 = vmatmul.mubr.bf16.gmra.mxu0 %v3922
      %v4974 = vpop.f32.mrf.mxu0
      %v4975 = vadd.f32 0.0, %v4974
      %v4976 = vpop.f32.mrf.mxu0
      %v4977 = vadd.f32 0.0, %v4976
      %v4978 = vpop.f32.mrf.mxu0
      %v4979 = vadd.f32 0.0, %v4978
      %v4980 = vpop.f32.mrf.mxu0
      %v4981 = vadd.f32 0.0, %v4980
      %4982 = vmatprep.mubr.bf16.mxu0 %v3932
      %4983 = vmatmul.mubr.bf16.gmra.mxu0 %v3931
      %v4984 = vpop.f32.mrf.mxu0
      %v4985 = vadd.f32 0.0, %v4984
      %v4986 = vpop.f32.mrf.mxu0
      %v4987 = vadd.f32 0.0, %v4986
      %v4988 = vpop.f32.mrf.mxu0
      %v4989 = vadd.f32 0.0, %v4988
      %v4990 = vpop.f32.mrf.mxu0
      %v4991 = vadd.f32 0.0, %v4990
      %4992 = vmatprep.mubr.bf16.mxu0 %v3941
      %4993 = vmatmul.mubr.bf16.gmra.mxu0 %v3940
      %v4994 = vpop.f32.mrf.mxu0
      %v4995 = vadd.f32 0.0, %v4994
      %v4996 = vpop.f32.mrf.mxu0
      %v4997 = vadd.f32 0.0, %v4996
      %v4998 = vpop.f32.mrf.mxu0
      %v4999 = vadd.f32 0.0, %v4998
      %v5000 = vpop.f32.mrf.mxu0
      %v5001 = vadd.f32 0.0, %v5000
      %5002 = vmatprep.mubr.bf16.mxu0 %v3950
      %5003 = vmatmul.mubr.bf16.gmra.mxu0 %v3949
      %v5004 = vpop.f32.mrf.mxu0
      %v5005 = vadd.f32 0.0, %v5004
      %v5006 = vpop.f32.mrf.mxu0
      %v5007 = vadd.f32 0.0, %v5006
      %v5008 = vpop.f32.mrf.mxu0
      %v5009 = vadd.f32 0.0, %v5008
      %v5010 = vpop.f32.mrf.mxu0
      %v5011 = vadd.f32 0.0, %v5010
      %5012 = vmatprep.mubr.bf16.mxu0 %v3959
      %5013 = vmatmul.mubr.bf16.gmra.mxu0 %v3958
      %v5014 = vpop.f32.mrf.mxu0
      %v5015 = vadd.f32 0.0, %v5014
      %v5016 = vpop.f32.mrf.mxu0
      %v5017 = vadd.f32 0.0, %v5016
      %v5018 = vpop.f32.mrf.mxu0
      %v5019 = vadd.f32 0.0, %v5018
      %v5020 = vpop.f32.mrf.mxu0
      %v5021 = vadd.f32 0.0, %v5020
      %5022 = vmatprep.mubr.bf16.mxu0 %v3968
      %5023 = vmatmul.mubr.bf16.gmra.mxu0 %v3967
      %v5024 = vpop.f32.mrf.mxu0
      %v5025 = vadd.f32 0.0, %v5024
      %v5026 = vpop.f32.mrf.mxu0
      %v5027 = vadd.f32 0.0, %v5026
      %v5028 = vpop.f32.mrf.mxu0
      %v5029 = vadd.f32 0.0, %v5028
      %v5030 = vpop.f32.mrf.mxu0
      %v5031 = vadd.f32 0.0, %v5030
      %5032 = vdwg.mxu0
      %5033 = vmatprep.subr.bf16.mxu0 %v4599
      %5034 = vmatpush1.bf16.msra.mxu0 %v4598
      %5035 = vmatprep.subr.bf16.mxu0 %v4597
      %5036 = vmatpush1.bf16.msra.mxu0 %v4596
      %5037 = vmatprep.subr.bf16.mxu0 %v4595
      %5038 = vmatpush1.bf16.msra.mxu0 %v4594
      %5039 = vmatprep.subr.bf16.mxu0 %v4593
      %5040 = vmatpush1.bf16.msra.mxu0 %v4592
      %5041 = vmatprep.subr.bf16.mxu0 %v4591
      %5042 = vmatpush1.bf16.msra.mxu0 %v4590
      %5043 = vmatprep.subr.bf16.mxu0 %v4589
      %5044 = vmatpush1.bf16.msra.mxu0 %v4588
      %5045 = vmatprep.subr.bf16.mxu0 %v4587
      %5046 = vmatpush1.bf16.msra.mxu0 %v4586
      %5047 = vmatprep.subr.bf16.mxu0 %v4585
      %5048 = vmatpush1.bf16.msra.mxu0 %v4584
      %5049 = vmatprep.subr.bf16.mxu0 %v4615
      %5050 = vmatpush2.bf16.msra.mxu0 %v4614
      %5051 = vmatprep.subr.bf16.mxu0 %v4613
      %5052 = vmatpush2.bf16.msra.mxu0 %v4612
      %5053 = vmatprep.subr.bf16.mxu0 %v4611
      %5054 = vmatpush2.bf16.msra.mxu0 %v4610
      %5055 = vmatprep.subr.bf16.mxu0 %v4609
      %5056 = vmatpush2.bf16.msra.mxu0 %v4608
      %5057 = vmatprep.subr.bf16.mxu0 %v4607
      %5058 = vmatpush2.bf16.msra.mxu0 %v4606
      %5059 = vmatprep.subr.bf16.mxu0 %v4605
      %5060 = vmatpush2.bf16.msra.mxu0 %v4604
      %5061 = vmatprep.subr.bf16.mxu0 %v4603
      %5062 = vmatpush2.bf16.msra.mxu0 %v4602
      %5063 = vmatprep.subr.bf16.mxu0 %v4601
      %5064 = vmatpush2.bf16.msra.mxu0 %v4600
      %5065 = vmatprep.mubr.bf16.mxu0 %v3835
      %5066 = vmatmul.mubr.bf16.gmra.mxu0 %v3834
      %v5067 = vpop.f32.mrf.mxu0
      %v5068 = vadd.f32 %v4875, %v5067
      %v5069 = vpop.f32.mrf.mxu0
      %v5070 = vadd.f32 %v4877, %v5069
      %v5071 = vpop.f32.mrf.mxu0
      %v5072 = vadd.f32 %v4879, %v5071
      %v5073 = vpop.f32.mrf.mxu0
      %v5074 = vadd.f32 %v4881, %v5073
      %5075 = vmatprep.mubr.bf16.mxu0 %v3844
      %5076 = vmatmul.mubr.bf16.gmra.mxu0 %v3843
      %v5077 = vpop.f32.mrf.mxu0
      %v5078 = vadd.f32 %v4885, %v5077
      %v5079 = vpop.f32.mrf.mxu0
      %v5080 = vadd.f32 %v4887, %v5079
      %v5081 = vpop.f32.mrf.mxu0
      %v5082 = vadd.f32 %v4889, %v5081
      %v5083 = vpop.f32.mrf.mxu0
      %v5084 = vadd.f32 %v4891, %v5083
      %5085 = vmatprep.mubr.bf16.mxu0 %v3853
      %5086 = vmatmul.mubr.bf16.gmra.mxu0 %v3852
      %v5087 = vpop.f32.mrf.mxu0
      %v5088 = vadd.f32 %v4895, %v5087
      %v5089 = vpop.f32.mrf.mxu0
      %v5090 = vadd.f32 %v4897, %v5089
      %v5091 = vpop.f32.mrf.mxu0
      %v5092 = vadd.f32 %v4899, %v5091
      %v5093 = vpop.f32.mrf.mxu0
      %v5094 = vadd.f32 %v4901, %v5093
      %5095 = vmatprep.mubr.bf16.mxu0 %v3862
      %5096 = vmatmul.mubr.bf16.gmra.mxu0 %v3861
      %v5097 = vpop.f32.mrf.mxu0
      %v5098 = vadd.f32 %v4905, %v5097
      %v5099 = vpop.f32.mrf.mxu0
      %v5100 = vadd.f32 %v4907, %v5099
      %v5101 = vpop.f32.mrf.mxu0
      %v5102 = vadd.f32 %v4909, %v5101
      %v5103 = vpop.f32.mrf.mxu0
      %v5104 = vadd.f32 %v4911, %v5103
      %5105 = vmatprep.mubr.bf16.mxu0 %v3871
      %5106 = vmatmul.mubr.bf16.gmra.mxu0 %v3870
      %v5107 = vpop.f32.mrf.mxu0
      %v5108 = vadd.f32 %v4915, %v5107
      %v5109 = vpop.f32.mrf.mxu0
      %v5110 = vadd.f32 %v4917, %v5109
      %v5111 = vpop.f32.mrf.mxu0
      %v5112 = vadd.f32 %v4919, %v5111
      %v5113 = vpop.f32.mrf.mxu0
      %v5114 = vadd.f32 %v4921, %v5113
      %5115 = vmatprep.mubr.bf16.mxu0 %v3880
      %5116 = vmatmul.mubr.bf16.gmra.mxu0 %v3879
      %v5117 = vpop.f32.mrf.mxu0
      %v5118 = vadd.f32 %v4925, %v5117
      %v5119 = vpop.f32.mrf.mxu0
      %v5120 = vadd.f32 %v4927, %v5119
      %v5121 = vpop.f32.mrf.mxu0
      %v5122 = vadd.f32 %v4929, %v5121
      %v5123 = vpop.f32.mrf.mxu0
      %v5124 = vadd.f32 %v4931, %v5123
      %5125 = vmatprep.mubr.bf16.mxu0 %v3889
      %5126 = vmatmul.mubr.bf16.gmra.mxu0 %v3888
      %v5127 = vpop.f32.mrf.mxu0
      %v5128 = vadd.f32 %v4935, %v5127
      %v5129 = vpop.f32.mrf.mxu0
      %v5130 = vadd.f32 %v4937, %v5129
      %v5131 = vpop.f32.mrf.mxu0
      %v5132 = vadd.f32 %v4939, %v5131
      %v5133 = vpop.f32.mrf.mxu0
      %v5134 = vadd.f32 %v4941, %v5133
      %5135 = vmatprep.mubr.bf16.mxu0 %v3898
      %5136 = vmatmul.mubr.bf16.gmra.mxu0 %v3897
      %v5137 = vpop.f32.mrf.mxu0
      %v5138 = vadd.f32 %v4945, %v5137
      %v5139 = vpop.f32.mrf.mxu0
      %v5140 = vadd.f32 %v4947, %v5139
      %v5141 = vpop.f32.mrf.mxu0
      %v5142 = vadd.f32 %v4949, %v5141
      %v5143 = vpop.f32.mrf.mxu0
      %v5144 = vadd.f32 %v4951, %v5143
      %5145 = vmatprep.mubr.bf16.mxu0 %v3907
      %5146 = vmatmul.mubr.bf16.gmra.mxu0 %v3906
      %v5147 = vpop.f32.mrf.mxu0
      %v5148 = vadd.f32 %v4955, %v5147
      %v5149 = vpop.f32.mrf.mxu0
      %v5150 = vadd.f32 %v4957, %v5149
      %v5151 = vpop.f32.mrf.mxu0
      %v5152 = vadd.f32 %v4959, %v5151
      %v5153 = vpop.f32.mrf.mxu0
      %v5154 = vadd.f32 %v4961, %v5153
      %5155 = vmatprep.mubr.bf16.mxu0 %v3916
      %5156 = vmatmul.mubr.bf16.gmra.mxu0 %v3915
      %v5157 = vpop.f32.mrf.mxu0
      %v5158 = vadd.f32 %v4965, %v5157
      %v5159 = vpop.f32.mrf.mxu0
      %v5160 = vadd.f32 %v4967, %v5159
      %v5161 = vpop.f32.mrf.mxu0
      %v5162 = vadd.f32 %v4969, %v5161
      %v5163 = vpop.f32.mrf.mxu0
      %v5164 = vadd.f32 %v4971, %v5163
      %5165 = vmatprep.mubr.bf16.mxu0 %v3925
      %5166 = vmatmul.mubr.bf16.gmra.mxu0 %v3924
      %v5167 = vpop.f32.mrf.mxu0
      %v5168 = vadd.f32 %v4975, %v5167
      %v5169 = vpop.f32.mrf.mxu0
      %v5170 = vadd.f32 %v4977, %v5169
      %v5171 = vpop.f32.mrf.mxu0
      %v5172 = vadd.f32 %v4979, %v5171
      %v5173 = vpop.f32.mrf.mxu0
      %v5174 = vadd.f32 %v4981, %v5173
      %5175 = vmatprep.mubr.bf16.mxu0 %v3934
      %5176 = vmatmul.mubr.bf16.gmra.mxu0 %v3933
      %v5177 = vpop.f32.mrf.mxu0
      %v5178 = vadd.f32 %v4985, %v5177
      %v5179 = vpop.f32.mrf.mxu0
      %v5180 = vadd.f32 %v4987, %v5179
      %v5181 = vpop.f32.mrf.mxu0
      %v5182 = vadd.f32 %v4989, %v5181
      %v5183 = vpop.f32.mrf.mxu0
      %v5184 = vadd.f32 %v4991, %v5183
      %5185 = vmatprep.mubr.bf16.mxu0 %v3943
      %5186 = vmatmul.mubr.bf16.gmra.mxu0 %v3942
      %v5187 = vpop.f32.mrf.mxu0
      %v5188 = vadd.f32 %v4995, %v5187
      %v5189 = vpop.f32.mrf.mxu0
      %v5190 = vadd.f32 %v4997, %v5189
      %v5191 = vpop.f32.mrf.mxu0
      %v5192 = vadd.f32 %v4999, %v5191
      %v5193 = vpop.f32.mrf.mxu0
      %v5194 = vadd.f32 %v5001, %v5193
      %5195 = vmatprep.mubr.bf16.mxu0 %v3952
      %5196 = vmatmul.mubr.bf16.gmra.mxu0 %v3951
      %v5197 = vpop.f32.mrf.mxu0
      %v5198 = vadd.f32 %v5005, %v5197
      %v5199 = vpop.f32.mrf.mxu0
      %v5200 = vadd.f32 %v5007, %v5199
      %v5201 = vpop.f32.mrf.mxu0
      %v5202 = vadd.f32 %v5009, %v5201
      %v5203 = vpop.f32.mrf.mxu0
      %v5204 = vadd.f32 %v5011, %v5203
      %5205 = vmatprep.mubr.bf16.mxu0 %v3961
      %5206 = vmatmul.mubr.bf16.gmra.mxu0 %v3960
      %v5207 = vpop.f32.mrf.mxu0
      %v5208 = vadd.f32 %v5015, %v5207
      %v5209 = vpop.f32.mrf.mxu0
      %v5210 = vadd.f32 %v5017, %v5209
      %v5211 = vpop.f32.mrf.mxu0
      %v5212 = vadd.f32 %v5019, %v5211
      %v5213 = vpop.f32.mrf.mxu0
      %v5214 = vadd.f32 %v5021, %v5213
      %5215 = vmatprep.mubr.bf16.mxu0 %v3970
      %5216 = vmatmul.mubr.bf16.gmra.mxu0 %v3969
      %v5217 = vpop.f32.mrf.mxu0
      %v5218 = vadd.f32 %v5025, %v5217
      %v5219 = vpop.f32.mrf.mxu0
      %v5220 = vadd.f32 %v5027, %v5219
      %v5221 = vpop.f32.mrf.mxu0
      %v5222 = vadd.f32 %v5029, %v5221
      %v5223 = vpop.f32.mrf.mxu0
      %v5224 = vadd.f32 %v5031, %v5223
      %5225 = vdwg.mxu0
      %5226 = vmatprep.subr.bf16.mxu0 %v4631
      %5227 = vmatpush1.bf16.msra.mxu0 %v4630
      %5228 = vmatprep.subr.bf16.mxu0 %v4629
      %5229 = vmatpush1.bf16.msra.mxu0 %v4628
      %5230 = vmatprep.subr.bf16.mxu0 %v4627
      %5231 = vmatpush1.bf16.msra.mxu0 %v4626
      %5232 = vmatprep.subr.bf16.mxu0 %v4625
      %5233 = vmatpush1.bf16.msra.mxu0 %v4624
      %5234 = vmatprep.subr.bf16.mxu0 %v4623
      %5235 = vmatpush1.bf16.msra.mxu0 %v4622
      %5236 = vmatprep.subr.bf16.mxu0 %v4621
      %5237 = vmatpush1.bf16.msra.mxu0 %v4620
      %5238 = vmatprep.subr.bf16.mxu0 %v4619
      %5239 = vmatpush1.bf16.msra.mxu0 %v4618
      %5240 = vmatprep.subr.bf16.mxu0 %v4617
      %5241 = vmatpush1.bf16.msra.mxu0 %v4616
      %5242 = vmatprep.subr.bf16.mxu0 %v4647
      %5243 = vmatpush2.bf16.msra.mxu0 %v4646
      %5244 = vmatprep.subr.bf16.mxu0 %v4645
      %5245 = vmatpush2.bf16.msra.mxu0 %v4644
      %5246 = vmatprep.subr.bf16.mxu0 %v4643
      %5247 = vmatpush2.bf16.msra.mxu0 %v4642
      %5248 = vmatprep.subr.bf16.mxu0 %v4641
      %5249 = vmatpush2.bf16.msra.mxu0 %v4640
      %5250 = vmatprep.subr.bf16.mxu0 %v4639
      %5251 = vmatpush2.bf16.msra.mxu0 %v4638
      %5252 = vmatprep.subr.bf16.mxu0 %v4637
      %5253 = vmatpush2.bf16.msra.mxu0 %v4636
      %5254 = vmatprep.subr.bf16.mxu0 %v4635
      %5255 = vmatpush2.bf16.msra.mxu0 %v4634
      %5256 = vmatprep.subr.bf16.mxu0 %v4633
      %5257 = vmatpush2.bf16.msra.mxu0 %v4632
      %5258 = vmatprep.mubr.bf16.mxu0 %v3837
      %5259 = vmatmul.mubr.bf16.gmra.mxu0 %v3836
      %v5260 = vpop.f32.mrf.mxu0
      %v5261 = vadd.f32 %v5068, %v5260
      %v5262 = vpop.f32.mrf.mxu0
      %v5263 = vadd.f32 %v5070, %v5262
      %v5264 = vpop.f32.mrf.mxu0
      %v5265 = vadd.f32 %v5072, %v5264
      %v5266 = vpop.f32.mrf.mxu0
      %v5267 = vadd.f32 %v5074, %v5266
      %5268 = vmatprep.mubr.bf16.mxu0 %v3846
      %5269 = vmatmul.mubr.bf16.gmra.mxu0 %v3845
      %v5270 = vpop.f32.mrf.mxu0
      %v5271 = vadd.f32 %v5078, %v5270
      %v5272 = vpop.f32.mrf.mxu0
      %v5273 = vadd.f32 %v5080, %v5272
      %v5274 = vpop.f32.mrf.mxu0
      %v5275 = vadd.f32 %v5082, %v5274
      %v5276 = vpop.f32.mrf.mxu0
      %v5277 = vadd.f32 %v5084, %v5276
      %5278 = vmatprep.mubr.bf16.mxu0 %v3855
      %5279 = vmatmul.mubr.bf16.gmra.mxu0 %v3854
      %v5280 = vpop.f32.mrf.mxu0
      %v5281 = vadd.f32 %v5088, %v5280
      %v5282 = vpop.f32.mrf.mxu0
      %v5283 = vadd.f32 %v5090, %v5282
      %v5284 = vpop.f32.mrf.mxu0
      %v5285 = vadd.f32 %v5092, %v5284
      %v5286 = vpop.f32.mrf.mxu0
      %v5287 = vadd.f32 %v5094, %v5286
      %5288 = vmatprep.mubr.bf16.mxu0 %v3864
      %5289 = vmatmul.mubr.bf16.gmra.mxu0 %v3863
      %v5290 = vpop.f32.mrf.mxu0
      %v5291 = vadd.f32 %v5098, %v5290
      %v5292 = vpop.f32.mrf.mxu0
      %v5293 = vadd.f32 %v5100, %v5292
      %v5294 = vpop.f32.mrf.mxu0
      %v5295 = vadd.f32 %v5102, %v5294
      %v5296 = vpop.f32.mrf.mxu0
      %v5297 = vadd.f32 %v5104, %v5296
      %5298 = vmatprep.mubr.bf16.mxu0 %v3873
      %5299 = vmatmul.mubr.bf16.gmra.mxu0 %v3872
      %v5300 = vpop.f32.mrf.mxu0
      %v5301 = vadd.f32 %v5108, %v5300
      %v5302 = vpop.f32.mrf.mxu0
      %v5303 = vadd.f32 %v5110, %v5302
      %v5304 = vpop.f32.mrf.mxu0
      %v5305 = vadd.f32 %v5112, %v5304
      %v5306 = vpop.f32.mrf.mxu0
      %v5307 = vadd.f32 %v5114, %v5306
      %5308 = vmatprep.mubr.bf16.mxu0 %v3882
      %5309 = vmatmul.mubr.bf16.gmra.mxu0 %v3881
      %v5310 = vpop.f32.mrf.mxu0
      %v5311 = vadd.f32 %v5118, %v5310
      %v5312 = vpop.f32.mrf.mxu0
      %v5313 = vadd.f32 %v5120, %v5312
      %v5314 = vpop.f32.mrf.mxu0
      %v5315 = vadd.f32 %v5122, %v5314
      %v5316 = vpop.f32.mrf.mxu0
      %v5317 = vadd.f32 %v5124, %v5316
      %5318 = vmatprep.mubr.bf16.mxu0 %v3891
      %5319 = vmatmul.mubr.bf16.gmra.mxu0 %v3890
      %v5320 = vpop.f32.mrf.mxu0
      %v5321 = vadd.f32 %v5128, %v5320
      %v5322 = vpop.f32.mrf.mxu0
      %v5323 = vadd.f32 %v5130, %v5322
      %v5324 = vpop.f32.mrf.mxu0
      %v5325 = vadd.f32 %v5132, %v5324
      %v5326 = vpop.f32.mrf.mxu0
      %v5327 = vadd.f32 %v5134, %v5326
      %5328 = vmatprep.mubr.bf16.mxu0 %v3900
      %5329 = vmatmul.mubr.bf16.gmra.mxu0 %v3899
      %v5330 = vpop.f32.mrf.mxu0
      %v5331 = vadd.f32 %v5138, %v5330
      %v5332 = vpop.f32.mrf.mxu0
      %v5333 = vadd.f32 %v5140, %v5332
      %v5334 = vpop.f32.mrf.mxu0
      %v5335 = vadd.f32 %v5142, %v5334
      %v5336 = vpop.f32.mrf.mxu0
      %v5337 = vadd.f32 %v5144, %v5336
      %5338 = vmatprep.mubr.bf16.mxu0 %v3909
      %5339 = vmatmul.mubr.bf16.gmra.mxu0 %v3908
      %v5340 = vpop.f32.mrf.mxu0
      %v5341 = vadd.f32 %v5148, %v5340
      %v5342 = vpop.f32.mrf.mxu0
      %v5343 = vadd.f32 %v5150, %v5342
      %v5344 = vpop.f32.mrf.mxu0
      %v5345 = vadd.f32 %v5152, %v5344
      %v5346 = vpop.f32.mrf.mxu0
      %v5347 = vadd.f32 %v5154, %v5346
      %5348 = vmatprep.mubr.bf16.mxu0 %v3918
      %5349 = vmatmul.mubr.bf16.gmra.mxu0 %v3917
      %v5350 = vpop.f32.mrf.mxu0
      %v5351 = vadd.f32 %v5158, %v5350
      %v5352 = vpop.f32.mrf.mxu0
      %v5353 = vadd.f32 %v5160, %v5352
      %v5354 = vpop.f32.mrf.mxu0
      %v5355 = vadd.f32 %v5162, %v5354
      %v5356 = vpop.f32.mrf.mxu0
      %v5357 = vadd.f32 %v5164, %v5356
      %5358 = vmatprep.mubr.bf16.mxu0 %v3927
      %5359 = vmatmul.mubr.bf16.gmra.mxu0 %v3926
      %v5360 = vpop.f32.mrf.mxu0
      %v5361 = vadd.f32 %v5168, %v5360
      %v5362 = vpop.f32.mrf.mxu0
      %v5363 = vadd.f32 %v5170, %v5362
      %v5364 = vpop.f32.mrf.mxu0
      %v5365 = vadd.f32 %v5172, %v5364
      %v5366 = vpop.f32.mrf.mxu0
      %v5367 = vadd.f32 %v5174, %v5366
      %5368 = vmatprep.mubr.bf16.mxu0 %v3936
      %5369 = vmatmul.mubr.bf16.gmra.mxu0 %v3935
      %v5370 = vpop.f32.mrf.mxu0
      %v5371 = vadd.f32 %v5178, %v5370
      %v5372 = vpop.f32.mrf.mxu0
      %v5373 = vadd.f32 %v5180, %v5372
      %v5374 = vpop.f32.mrf.mxu0
      %v5375 = vadd.f32 %v5182, %v5374
      %v5376 = vpop.f32.mrf.mxu0
      %v5377 = vadd.f32 %v5184, %v5376
      %5378 = vmatprep.mubr.bf16.mxu0 %v3945
      %5379 = vmatmul.mubr.bf16.gmra.mxu0 %v3944
      %v5380 = vpop.f32.mrf.mxu0
      %v5381 = vadd.f32 %v5188, %v5380
      %v5382 = vpop.f32.mrf.mxu0
      %v5383 = vadd.f32 %v5190, %v5382
      %v5384 = vpop.f32.mrf.mxu0
      %v5385 = vadd.f32 %v5192, %v5384
      %v5386 = vpop.f32.mrf.mxu0
      %v5387 = vadd.f32 %v5194, %v5386
      %5388 = vmatprep.mubr.bf16.mxu0 %v3954
      %5389 = vmatmul.mubr.bf16.gmra.mxu0 %v3953
      %v5390 = vpop.f32.mrf.mxu0
      %v5391 = vadd.f32 %v5198, %v5390
      %v5392 = vpop.f32.mrf.mxu0
      %v5393 = vadd.f32 %v5200, %v5392
      %v5394 = vpop.f32.mrf.mxu0
      %v5395 = vadd.f32 %v5202, %v5394
      %v5396 = vpop.f32.mrf.mxu0
      %v5397 = vadd.f32 %v5204, %v5396
      %5398 = vmatprep.mubr.bf16.mxu0 %v3963
      %5399 = vmatmul.mubr.bf16.gmra.mxu0 %v3962
      %v5400 = vpop.f32.mrf.mxu0
      %v5401 = vadd.f32 %v5208, %v5400
      %v5402 = vpop.f32.mrf.mxu0
      %v5403 = vadd.f32 %v5210, %v5402
      %v5404 = vpop.f32.mrf.mxu0
      %v5405 = vadd.f32 %v5212, %v5404
      %v5406 = vpop.f32.mrf.mxu0
      %v5407 = vadd.f32 %v5214, %v5406
      %5408 = vmatprep.mubr.bf16.mxu0 %v3972
      %5409 = vmatmul.mubr.bf16.gmra.mxu0 %v3971
      %v5410 = vpop.f32.mrf.mxu0
      %v5411 = vadd.f32 %v5218, %v5410
      %v5412 = vpop.f32.mrf.mxu0
      %v5413 = vadd.f32 %v5220, %v5412
      %v5414 = vpop.f32.mrf.mxu0
      %v5415 = vadd.f32 %v5222, %v5414
      %v5416 = vpop.f32.mrf.mxu0
      %v5417 = vadd.f32 %v5224, %v5416
      %5418 = vdwg.mxu0
      %5419 = vmatprep.subr.bf16.mxu0 %v4663
      %5420 = vmatpush1.bf16.msra.mxu0 %v4662
      %5421 = vmatprep.subr.bf16.mxu0 %v4661
      %5422 = vmatpush1.bf16.msra.mxu0 %v4660
      %5423 = vmatprep.subr.bf16.mxu0 %v4659
      %5424 = vmatpush1.bf16.msra.mxu0 %v4658
      %5425 = vmatprep.subr.bf16.mxu0 %v4657
      %5426 = vmatpush1.bf16.msra.mxu0 %v4656
      %5427 = vmatprep.subr.bf16.mxu0 %v4655
      %5428 = vmatpush1.bf16.msra.mxu0 %v4654
      %5429 = vmatprep.subr.bf16.mxu0 %v4653
      %5430 = vmatpush1.bf16.msra.mxu0 %v4652
      %5431 = vmatprep.subr.bf16.mxu0 %v4651
      %5432 = vmatpush1.bf16.msra.mxu0 %v4650
      %5433 = vmatprep.subr.bf16.mxu0 %v4649
      %5434 = vmatpush1.bf16.msra.mxu0 %v4648
      %5435 = vmatprep.subr.bf16.mxu0 %v4679
      %5436 = vmatpush2.bf16.msra.mxu0 %v4678
      %5437 = vmatprep.subr.bf16.mxu0 %v4677
      %5438 = vmatpush2.bf16.msra.mxu0 %v4676
      %5439 = vmatprep.subr.bf16.mxu0 %v4675
      %5440 = vmatpush2.bf16.msra.mxu0 %v4674
      %5441 = vmatprep.subr.bf16.mxu0 %v4673
      %5442 = vmatpush2.bf16.msra.mxu0 %v4672
      %5443 = vmatprep.subr.bf16.mxu0 %v4671
      %5444 = vmatpush2.bf16.msra.mxu0 %v4670
      %5445 = vmatprep.subr.bf16.mxu0 %v4669
      %5446 = vmatpush2.bf16.msra.mxu0 %v4668
      %5447 = vmatprep.subr.bf16.mxu0 %v4667
      %5448 = vmatpush2.bf16.msra.mxu0 %v4666
      %5449 = vmatprep.subr.bf16.mxu0 %v4665
      %5450 = vmatpush2.bf16.msra.mxu0 %v4664
      %5451 = vmatprep.mubr.bf16.mxu0 %v3839
      %5452 = vmatmul.mubr.bf16.gmra.mxu0 %v3838
      %v5453 = vpop.f32.mrf.mxu0
      %v5454 = vadd.f32 %v5261, %v5453
      %v5455 = vpop.f32.mrf.mxu0
      %v5456 = vadd.f32 %v5263, %v5455
      %v5457 = vpop.f32.mrf.mxu0
      %v5458 = vadd.f32 %v5265, %v5457
      %v5459 = vpop.f32.mrf.mxu0
      %v5460 = vadd.f32 %v5267, %v5459
      %5461 = vmatprep.mubr.bf16.mxu0 %v3848
      %5462 = vmatmul.mubr.bf16.gmra.mxu0 %v3847
      %v5463 = vpop.f32.mrf.mxu0
      %v5464 = vadd.f32 %v5271, %v5463
      %v5465 = vpop.f32.mrf.mxu0
      %v5466 = vadd.f32 %v5273, %v5465
      %v5467 = vpop.f32.mrf.mxu0
      %v5468 = vadd.f32 %v5275, %v5467
      %v5469 = vpop.f32.mrf.mxu0
      %v5470 = vadd.f32 %v5277, %v5469
      %5471 = vmatprep.mubr.bf16.mxu0 %v3857
      %5472 = vmatmul.mubr.bf16.gmra.mxu0 %v3856
      %v5473 = vpop.f32.mrf.mxu0
      %v5474 = vadd.f32 %v5281, %v5473
      %v5475 = vpop.f32.mrf.mxu0
      %v5476 = vadd.f32 %v5283, %v5475
      %v5477 = vpop.f32.mrf.mxu0
      %v5478 = vadd.f32 %v5285, %v5477
      %v5479 = vpop.f32.mrf.mxu0
      %v5480 = vadd.f32 %v5287, %v5479
      %5481 = vmatprep.mubr.bf16.mxu0 %v3866
      %5482 = vmatmul.mubr.bf16.gmra.mxu0 %v3865
      %v5483 = vpop.f32.mrf.mxu0
      %v5484 = vadd.f32 %v5291, %v5483
      %v5485 = vpop.f32.mrf.mxu0
      %v5486 = vadd.f32 %v5293, %v5485
      %v5487 = vpop.f32.mrf.mxu0
      %v5488 = vadd.f32 %v5295, %v5487
      %v5489 = vpop.f32.mrf.mxu0
      %v5490 = vadd.f32 %v5297, %v5489
      %5491 = vmatprep.mubr.bf16.mxu0 %v3875
      %5492 = vmatmul.mubr.bf16.gmra.mxu0 %v3874
      %v5493 = vpop.f32.mrf.mxu0
      %v5494 = vadd.f32 %v5301, %v5493
      %v5495 = vpop.f32.mrf.mxu0
      %v5496 = vadd.f32 %v5303, %v5495
      %v5497 = vpop.f32.mrf.mxu0
      %v5498 = vadd.f32 %v5305, %v5497
      %v5499 = vpop.f32.mrf.mxu0
      %v5500 = vadd.f32 %v5307, %v5499
      %5501 = vmatprep.mubr.bf16.mxu0 %v3884
      %5502 = vmatmul.mubr.bf16.gmra.mxu0 %v3883
      %v5503 = vpop.f32.mrf.mxu0
      %v5504 = vadd.f32 %v5311, %v5503
      %v5505 = vpop.f32.mrf.mxu0
      %v5506 = vadd.f32 %v5313, %v5505
      %v5507 = vpop.f32.mrf.mxu0
      %v5508 = vadd.f32 %v5315, %v5507
      %v5509 = vpop.f32.mrf.mxu0
      %v5510 = vadd.f32 %v5317, %v5509
      %5511 = vmatprep.mubr.bf16.mxu0 %v3893
      %5512 = vmatmul.mubr.bf16.gmra.mxu0 %v3892
      %v5513 = vpop.f32.mrf.mxu0
      %v5514 = vadd.f32 %v5321, %v5513
      %v5515 = vpop.f32.mrf.mxu0
      %v5516 = vadd.f32 %v5323, %v5515
      %v5517 = vpop.f32.mrf.mxu0
      %v5518 = vadd.f32 %v5325, %v5517
      %v5519 = vpop.f32.mrf.mxu0
      %v5520 = vadd.f32 %v5327, %v5519
      %5521 = vmatprep.mubr.bf16.mxu0 %v3902
      %5522 = vmatmul.mubr.bf16.gmra.mxu0 %v3901
      %v5523 = vpop.f32.mrf.mxu0
      %v5524 = vadd.f32 %v5331, %v5523
      %v5525 = vpop.f32.mrf.mxu0
      %v5526 = vadd.f32 %v5333, %v5525
      %v5527 = vpop.f32.mrf.mxu0
      %v5528 = vadd.f32 %v5335, %v5527
      %v5529 = vpop.f32.mrf.mxu0
      %v5530 = vadd.f32 %v5337, %v5529
      %5531 = vmatprep.mubr.bf16.mxu0 %v3911
      %5532 = vmatmul.mubr.bf16.gmra.mxu0 %v3910
      %v5533 = vpop.f32.mrf.mxu0
      %v5534 = vadd.f32 %v5341, %v5533
      %v5535 = vpop.f32.mrf.mxu0
      %v5536 = vadd.f32 %v5343, %v5535
      %v5537 = vpop.f32.mrf.mxu0
      %v5538 = vadd.f32 %v5345, %v5537
      %v5539 = vpop.f32.mrf.mxu0
      %v5540 = vadd.f32 %v5347, %v5539
      %5541 = vmatprep.mubr.bf16.mxu0 %v3920
      %5542 = vmatmul.mubr.bf16.gmra.mxu0 %v3919
      %v5543 = vpop.f32.mrf.mxu0
      %v5544 = vadd.f32 %v5351, %v5543
      %v5545 = vpop.f32.mrf.mxu0
      %v5546 = vadd.f32 %v5353, %v5545
      %v5547 = vpop.f32.mrf.mxu0
      %v5548 = vadd.f32 %v5355, %v5547
      %v5549 = vpop.f32.mrf.mxu0
      %v5550 = vadd.f32 %v5357, %v5549
      %5551 = vmatprep.mubr.bf16.mxu0 %v3929
      %5552 = vmatmul.mubr.bf16.gmra.mxu0 %v3928
      %v5553 = vpop.f32.mrf.mxu0
      %v5554 = vadd.f32 %v5361, %v5553
      %v5555 = vpop.f32.mrf.mxu0
      %v5556 = vadd.f32 %v5363, %v5555
      %v5557 = vpop.f32.mrf.mxu0
      %v5558 = vadd.f32 %v5365, %v5557
      %v5559 = vpop.f32.mrf.mxu0
      %v5560 = vadd.f32 %v5367, %v5559
      %5561 = vmatprep.mubr.bf16.mxu0 %v3938
      %5562 = vmatmul.mubr.bf16.gmra.mxu0 %v3937
      %v5563 = vpop.f32.mrf.mxu0
      %v5564 = vadd.f32 %v5371, %v5563
      %v5565 = vpop.f32.mrf.mxu0
      %v5566 = vadd.f32 %v5373, %v5565
      %v5567 = vpop.f32.mrf.mxu0
      %v5568 = vadd.f32 %v5375, %v5567
      %v5569 = vpop.f32.mrf.mxu0
      %v5570 = vadd.f32 %v5377, %v5569
      %5571 = vmatprep.mubr.bf16.mxu0 %v3947
      %5572 = vmatmul.mubr.bf16.gmra.mxu0 %v3946
      %v5573 = vpop.f32.mrf.mxu0
      %v5574 = vadd.f32 %v5381, %v5573
      %v5575 = vpop.f32.mrf.mxu0
      %v5576 = vadd.f32 %v5383, %v5575
      %v5577 = vpop.f32.mrf.mxu0
      %v5578 = vadd.f32 %v5385, %v5577
      %v5579 = vpop.f32.mrf.mxu0
      %v5580 = vadd.f32 %v5387, %v5579
      %5581 = vmatprep.mubr.bf16.mxu0 %v3956
      %5582 = vmatmul.mubr.bf16.gmra.mxu0 %v3955
      %v5583 = vpop.f32.mrf.mxu0
      %v5584 = vadd.f32 %v5391, %v5583
      %v5585 = vpop.f32.mrf.mxu0
      %v5586 = vadd.f32 %v5393, %v5585
      %v5587 = vpop.f32.mrf.mxu0
      %v5588 = vadd.f32 %v5395, %v5587
      %v5589 = vpop.f32.mrf.mxu0
      %v5590 = vadd.f32 %v5397, %v5589
      %5591 = vmatprep.mubr.bf16.mxu0 %v3965
      %5592 = vmatmul.mubr.bf16.gmra.mxu0 %v3964
      %v5593 = vpop.f32.mrf.mxu0
      %v5594 = vadd.f32 %v5401, %v5593
      %v5595 = vpop.f32.mrf.mxu0
      %v5596 = vadd.f32 %v5403, %v5595
      %v5597 = vpop.f32.mrf.mxu0
      %v5598 = vadd.f32 %v5405, %v5597
      %v5599 = vpop.f32.mrf.mxu0
      %v5600 = vadd.f32 %v5407, %v5599
      %5601 = vmatprep.mubr.bf16.mxu0 %v3974
      %5602 = vmatmul.mubr.bf16.gmra.mxu0 %v3973
      %v5603 = vpop.f32.mrf.mxu0
      %v5604 = vadd.f32 %v5411, %v5603
      %v5605 = vpop.f32.mrf.mxu0
      %v5606 = vadd.f32 %v5413, %v5605
      %v5607 = vpop.f32.mrf.mxu0
      %v5608 = vadd.f32 %v5415, %v5607
      %v5609 = vpop.f32.mrf.mxu0
      %v5610 = vadd.f32 %v5417, %v5609
      %5611 = vdwg.mxu0
      %5612 = vmatprep.subr.bf16.mxu0 %v4695
      %5613 = vmatpush1.bf16.msra.mxu0 %v4694
      %5614 = vmatprep.subr.bf16.mxu0 %v4693
      %5615 = vmatpush1.bf16.msra.mxu0 %v4692
      %5616 = vmatprep.subr.bf16.mxu0 %v4691
      %5617 = vmatpush1.bf16.msra.mxu0 %v4690
      %5618 = vmatprep.subr.bf16.mxu0 %v4689
      %5619 = vmatpush1.bf16.msra.mxu0 %v4688
      %5620 = vmatprep.subr.bf16.mxu0 %v4687
      %5621 = vmatpush1.bf16.msra.mxu0 %v4686
      %5622 = vmatprep.subr.bf16.mxu0 %v4685
      %5623 = vmatpush1.bf16.msra.mxu0 %v4684
      %5624 = vmatprep.subr.bf16.mxu0 %v4683
      %5625 = vmatpush1.bf16.msra.mxu0 %v4682
      %5626 = vmatprep.subr.bf16.mxu0 %v4681
      %5627 = vmatpush1.bf16.msra.mxu0 %v4680
      %5628 = vmatprep.subr.bf16.mxu0 0
      %5629 = vmatpush2.bf16.msra.mxu0 0
      %5630 = vmatprep.subr.bf16.mxu0 0
      %5631 = vmatpush2.bf16.msra.mxu0 0
      %5632 = vmatprep.subr.bf16.mxu0 0
      %5633 = vmatpush2.bf16.msra.mxu0 0
      %5634 = vmatprep.subr.bf16.mxu0 0
      %5635 = vmatpush2.bf16.msra.mxu0 0
      %5636 = vmatprep.subr.bf16.mxu0 0
      %5637 = vmatpush2.bf16.msra.mxu0 0
      %5638 = vmatprep.subr.bf16.mxu0 0
      %5639 = vmatpush2.bf16.msra.mxu0 0
      %5640 = vmatprep.subr.bf16.mxu0 0
      %5641 = vmatpush2.bf16.msra.mxu0 0
      %5642 = vmatprep.subr.bf16.mxu0 0
      %5643 = vmatpush2.bf16.msra.mxu0 0
      %5644 = vmatprep.mubr.bf16.mxu0 0
      %5645 = vmatmul.mubr.bf16.gmra.mxu0 %v3840
      %v5646 = vpop.f32.mrf.mxu0
      %v5647 = vadd.f32 %v5454, %v5646
      %v5648 = vpop.f32.mrf.mxu0
      %v5649 = vadd.f32 %v5456, %v5648
      %v5650 = vpop.f32.mrf.mxu0
      %v5651 = vadd.f32 %v5458, %v5650
      %v5652 = vpop.f32.mrf.mxu0
      %v5653 = vadd.f32 %v5460, %v5652
      %5654 = vmatprep.mubr.bf16.mxu0 0
      %5655 = vmatmul.mubr.bf16.gmra.mxu0 %v3849
      %v5656 = vpop.f32.mrf.mxu0
      %v5657 = vadd.f32 %v5464, %v5656
      %v5658 = vpop.f32.mrf.mxu0
      %v5659 = vadd.f32 %v5466, %v5658
      %v5660 = vpop.f32.mrf.mxu0
      %v5661 = vadd.f32 %v5468, %v5660
      %v5662 = vpop.f32.mrf.mxu0
      %v5663 = vadd.f32 %v5470, %v5662
      %5664 = vmatprep.mubr.bf16.mxu0 0
      %5665 = vmatmul.mubr.bf16.gmra.mxu0 %v3858
      %v5666 = vpop.f32.mrf.mxu0
      %v5667 = vadd.f32 %v5474, %v5666
      %v5668 = vpop.f32.mrf.mxu0
      %v5669 = vadd.f32 %v5476, %v5668
      %v5670 = vpop.f32.mrf.mxu0
      %v5671 = vadd.f32 %v5478, %v5670
      %v5672 = vpop.f32.mrf.mxu0
      %v5673 = vadd.f32 %v5480, %v5672
      %5674 = vmatprep.mubr.bf16.mxu0 0
      %5675 = vmatmul.mubr.bf16.gmra.mxu0 %v3867
      %v5676 = vpop.f32.mrf.mxu0
      %v5677 = vadd.f32 %v5484, %v5676
      %v5678 = vpop.f32.mrf.mxu0
      %v5679 = vadd.f32 %v5486, %v5678
      %v5680 = vpop.f32.mrf.mxu0
      %v5681 = vadd.f32 %v5488, %v5680
      %v5682 = vpop.f32.mrf.mxu0
      %v5683 = vadd.f32 %v5490, %v5682
      %5684 = vmatprep.mubr.bf16.mxu0 0
      %5685 = vmatmul.mubr.bf16.gmra.mxu0 %v3876
      %v5686 = vpop.f32.mrf.mxu0
      %v5687 = vadd.f32 %v5494, %v5686
      %v5688 = vpop.f32.mrf.mxu0
      %v5689 = vadd.f32 %v5496, %v5688
      %v5690 = vpop.f32.mrf.mxu0
      %v5691 = vadd.f32 %v5498, %v5690
      %v5692 = vpop.f32.mrf.mxu0
      %v5693 = vadd.f32 %v5500, %v5692
      %5694 = vmatprep.mubr.bf16.mxu0 0
      %5695 = vmatmul.mubr.bf16.gmra.mxu0 %v3885
      %v5696 = vpop.f32.mrf.mxu0
      %v5697 = vadd.f32 %v5504, %v5696
      %v5698 = vpop.f32.mrf.mxu0
      %v5699 = vadd.f32 %v5506, %v5698
      %v5700 = vpop.f32.mrf.mxu0
      %v5701 = vadd.f32 %v5508, %v5700
      %v5702 = vpop.f32.mrf.mxu0
      %v5703 = vadd.f32 %v5510, %v5702
      %5704 = vmatprep.mubr.bf16.mxu0 0
      %5705 = vmatmul.mubr.bf16.gmra.mxu0 %v3894
      %v5706 = vpop.f32.mrf.mxu0
      %v5707 = vadd.f32 %v5514, %v5706
      %v5708 = vpop.f32.mrf.mxu0
      %v5709 = vadd.f32 %v5516, %v5708
      %v5710 = vpop.f32.mrf.mxu0
      %v5711 = vadd.f32 %v5518, %v5710
      %v5712 = vpop.f32.mrf.mxu0
      %v5713 = vadd.f32 %v5520, %v5712
      %5714 = vmatprep.mubr.bf16.mxu0 0
      %5715 = vmatmul.mubr.bf16.gmra.mxu0 %v3903
      %v5716 = vpop.f32.mrf.mxu0
      %v5717 = vadd.f32 %v5524, %v5716
      %v5718 = vpop.f32.mrf.mxu0
      %v5719 = vadd.f32 %v5526, %v5718
      %v5720 = vpop.f32.mrf.mxu0
      %v5721 = vadd.f32 %v5528, %v5720
      %v5722 = vpop.f32.mrf.mxu0
      %v5723 = vadd.f32 %v5530, %v5722
      %5724 = vmatprep.mubr.bf16.mxu0 0
      %5725 = vmatmul.mubr.bf16.gmra.mxu0 %v3912
      %v5726 = vpop.f32.mrf.mxu0
      %v5727 = vadd.f32 %v5534, %v5726
      %v5728 = vpop.f32.mrf.mxu0
      %v5729 = vadd.f32 %v5536, %v5728
      %v5730 = vpop.f32.mrf.mxu0
      %v5731 = vadd.f32 %v5538, %v5730
      %v5732 = vpop.f32.mrf.mxu0
      %v5733 = vadd.f32 %v5540, %v5732
      %5734 = vmatprep.mubr.bf16.mxu0 0
      %5735 = vmatmul.mubr.bf16.gmra.mxu0 %v3921
      %v5736 = vpop.f32.mrf.mxu0
      %v5737 = vadd.f32 %v5544, %v5736
      %v5738 = vpop.f32.mrf.mxu0
      %v5739 = vadd.f32 %v5546, %v5738
      %v5740 = vpop.f32.mrf.mxu0
      %v5741 = vadd.f32 %v5548, %v5740
      %v5742 = vpop.f32.mrf.mxu0
      %v5743 = vadd.f32 %v5550, %v5742
      %5744 = vmatprep.mubr.bf16.mxu0 0
      %5745 = vmatmul.mubr.bf16.gmra.mxu0 %v3930
      %v5746 = vpop.f32.mrf.mxu0
      %v5747 = vadd.f32 %v5554, %v5746
      %v5748 = vpop.f32.mrf.mxu0
      %v5749 = vadd.f32 %v5556, %v5748
      %v5750 = vpop.f32.mrf.mxu0
      %v5751 = vadd.f32 %v5558, %v5750
      %v5752 = vpop.f32.mrf.mxu0
      %v5753 = vadd.f32 %v5560, %v5752
      %5754 = vmatprep.mubr.bf16.mxu0 0
      %5755 = vmatmul.mubr.bf16.gmra.mxu0 %v3939
      %v5756 = vpop.f32.mrf.mxu0
      %v5757 = vadd.f32 %v5564, %v5756
      %v5758 = vpop.f32.mrf.mxu0
      %v5759 = vadd.f32 %v5566, %v5758
      %v5760 = vpop.f32.mrf.mxu0
      %v5761 = vadd.f32 %v5568, %v5760
      %v5762 = vpop.f32.mrf.mxu0
      %v5763 = vadd.f32 %v5570, %v5762
      %5764 = vmatprep.mubr.bf16.mxu0 0
      %5765 = vmatmul.mubr.bf16.gmra.mxu0 %v3948
      %v5766 = vpop.f32.mrf.mxu0
      %v5767 = vadd.f32 %v5574, %v5766
      %v5768 = vpop.f32.mrf.mxu0
      %v5769 = vadd.f32 %v5576, %v5768
      %v5770 = vpop.f32.mrf.mxu0
      %v5771 = vadd.f32 %v5578, %v5770
      %v5772 = vpop.f32.mrf.mxu0
      %v5773 = vadd.f32 %v5580, %v5772
      %5774 = vmatprep.mubr.bf16.mxu0 0
      %5775 = vmatmul.mubr.bf16.gmra.mxu0 %v3957
      %v5776 = vpop.f32.mrf.mxu0
      %v5777 = vadd.f32 %v5584, %v5776
      %v5778 = vpop.f32.mrf.mxu0
      %v5779 = vadd.f32 %v5586, %v5778
      %v5780 = vpop.f32.mrf.mxu0
      %v5781 = vadd.f32 %v5588, %v5780
      %v5782 = vpop.f32.mrf.mxu0
      %v5783 = vadd.f32 %v5590, %v5782
      %5784 = vmatprep.mubr.bf16.mxu0 0
      %5785 = vmatmul.mubr.bf16.gmra.mxu0 %v3966
      %v5786 = vpop.f32.mrf.mxu0
      %v5787 = vadd.f32 %v5594, %v5786
      %v5788 = vpop.f32.mrf.mxu0
      %v5789 = vadd.f32 %v5596, %v5788
      %v5790 = vpop.f32.mrf.mxu0
      %v5791 = vadd.f32 %v5598, %v5790
      %v5792 = vpop.f32.mrf.mxu0
      %v5793 = vadd.f32 %v5600, %v5792
      %5794 = vmatprep.mubr.bf16.mxu0 0
      %5795 = vmatmul.mubr.bf16.gmra.mxu0 %v3975
      %v5796 = vpop.f32.mrf.mxu0
      %v5797 = vadd.f32 %v5604, %v5796
      %v5798 = vpop.f32.mrf.mxu0
      %v5799 = vadd.f32 %v5606, %v5798
      %v5800 = vpop.f32.mrf.mxu0
      %v5801 = vadd.f32 %v5608, %v5800
      %v5802 = vpop.f32.mrf.mxu0
      %v5803 = vadd.f32 %v5610, %v5802
      %5804 = vdwg.mxu0
      %v5805 = vadd.f32 %v3015, %v5647
      %v5806 = vadd.f32 %v3016, %v5649
      %v5807 = vadd.f32 %v3017, %v5651
      %v5808 = vadd.f32 %v3018, %v5653
      %v5809 = vadd.f32 %v3019, %v5657
      %v5810 = vadd.f32 %v3020, %v5659
      %v5811 = vadd.f32 %v3021, %v5661
      %v5812 = vadd.f32 %v3022, %v5663
      %v5813 = vadd.f32 %v3023, %v5667
      %v5814 = vadd.f32 %v3024, %v5669
      %v5815 = vadd.f32 %v3025, %v5671
      %v5816 = vadd.f32 %v3026, %v5673
      %v5817 = vadd.f32 %v3027, %v5677
      %v5818 = vadd.f32 %v3028, %v5679
      %v5819 = vadd.f32 %v3029, %v5681
      %v5820 = vadd.f32 %v3030, %v5683
      %v5821 = vadd.f32 %v3031, %v5687
      %v5822 = vadd.f32 %v3032, %v5689
      %v5823 = vadd.f32 %v3033, %v5691
      %v5824 = vadd.f32 %v3034, %v5693
      %v5825 = vadd.f32 %v3035, %v5697
      %v5826 = vadd.f32 %v3036, %v5699
      %v5827 = vadd.f32 %v3037, %v5701
      %v5828 = vadd.f32 %v3038, %v5703
      %v5829 = vadd.f32 %v3039, %v5707
      %v5830 = vadd.f32 %v3040, %v5709
      %v5831 = vadd.f32 %v3041, %v5711
      %v5832 = vadd.f32 %v3042, %v5713
      %v5833 = vadd.f32 %v3043, %v5717
      %v5834 = vadd.f32 %v3044, %v5719
      %v5835 = vadd.f32 %v3045, %v5721
      %v5836 = vadd.f32 %v3046, %v5723
      %v5837 = vadd.f32 %v3047, %v5727
      %v5838 = vadd.f32 %v3048, %v5729
      %v5839 = vadd.f32 %v3049, %v5731
      %v5840 = vadd.f32 %v3050, %v5733
      %v5841 = vadd.f32 %v3051, %v5737
      %v5842 = vadd.f32 %v3052, %v5739
      %v5843 = vadd.f32 %v3053, %v5741
      %v5844 = vadd.f32 %v3054, %v5743
      %v5845 = vadd.f32 %v3055, %v5747
      %v5846 = vadd.f32 %v3056, %v5749
      %v5847 = vadd.f32 %v3057, %v5751
      %v5848 = vadd.f32 %v3058, %v5753
      %v5849 = vadd.f32 %v3059, %v5757
      %v5850 = vadd.f32 %v3060, %v5759
      %v5851 = vadd.f32 %v3061, %v5761
      %v5852 = vadd.f32 %v3062, %v5763
      %v5853 = vadd.f32 %v3063, %v5767
      %v5854 = vadd.f32 %v3064, %v5769
      %v5855 = vadd.f32 %v3065, %v5771
      %v5856 = vadd.f32 %v3066, %v5773
      %v5857 = vadd.f32 %v3067, %v5777
      %v5858 = vadd.f32 %v3068, %v5779
      %v5859 = vadd.f32 %v3069, %v5781
      %v5860 = vadd.f32 %v3070, %v5783
      %v5861 = vadd.f32 %v3071, %v5787
      %v5862 = vadd.f32 %v3072, %v5789
      %v5863 = vadd.f32 %v3073, %v5791
      %v5864 = vadd.f32 %v3074, %v5793
      %v5865 = vadd.f32 %v3075, %v5797
      %v5866 = vadd.f32 %v3076, %v5799
      %v5867 = vadd.f32 %v3077, %v5801
      %v5868 = vadd.f32 %v3078, %v5803
      %5869 = vst [vmem:[#allocation2] sm:$0xff] %v5805
      %5870 = vst [vmem:[#allocation2 + $0x8] sm:$0xff] %v5806
      %5871 = vst [vmem:[#allocation2 + $0x10] sm:$0xff] %v5807
      %5872 = vst [vmem:[#allocation2 + $0x18] sm:$0xff] %v5808
      %5873 = vst [vmem:[#allocation2 + $0x20] sm:$0xff] %v5809
      %5874 = vst [vmem:[#allocation2 + $0x28] sm:$0xff] %v5810
      %5875 = vst [vmem:[#allocation2 + $0x30] sm:$0xff] %v5811
      %5876 = vst [vmem:[#allocation2 + $0x38] sm:$0xff] %v5812
      %5877 = vst [vmem:[#allocation2 + $0x40] sm:$0xff] %v5813
      %5878 = vst [vmem:[#allocation2 + $0x48] sm:$0xff] %v5814
      %5879 = vst [vmem:[#allocation2 + $0x50] sm:$0xff] %v5815
      %5880 = vst [vmem:[#allocation2 + $0x58] sm:$0xff] %v5816
      %5881 = vst [vmem:[#allocation2 + $0x60] sm:$0xff] %v5817
      %5882 = vst [vmem:[#allocation2 + $0x68] sm:$0xff] %v5818
      %5883 = vst [vmem:[#allocation2 + $0x70] sm:$0xff] %v5819
      %5884 = vst [vmem:[#allocation2 + $0x78] sm:$0xff] %v5820
      %5885 = vst [vmem:[#allocation2 + $0x80] sm:$0xff] %v5821
      %5886 = vst [vmem:[#allocation2 + $0x88] sm:$0xff] %v5822
      %5887 = vst [vmem:[#allocation2 + $0x90] sm:$0xff] %v5823
      %5888 = vst [vmem:[#allocation2 + $0x98] sm:$0xff] %v5824
      %5889 = vst [vmem:[#allocation2 + $0xa0] sm:$0xff] %v5825
      %5890 = vst [vmem:[#allocation2 + $0xa8] sm:$0xff] %v5826
      %5891 = vst [vmem:[#allocation2 + $0xb0] sm:$0xff] %v5827
      %5892 = vst [vmem:[#allocation2 + $0xb8] sm:$0xff] %v5828
      %5893 = vst [vmem:[#allocation2 + $0xc0] sm:$0xff] %v5829
      %5894 = vst [vmem:[#allocation2 + $0xc8] sm:$0xff] %v5830
      %5895 = vst [vmem:[#allocation2 + $0xd0] sm:$0xff] %v5831
      %5896 = vst [vmem:[#allocation2 + $0xd8] sm:$0xff] %v5832
      %5897 = vst [vmem:[#allocation2 + $0xe0] sm:$0xff] %v5833
      %5898 = vst [vmem:[#allocation2 + $0xe8] sm:$0xff] %v5834
      %5899 = vst [vmem:[#allocation2 + $0xf0] sm:$0xff] %v5835
      %5900 = vst [vmem:[#allocation2 + $0xf8] sm:$0xff] %v5836
      %5901 = vst [vmem:[#allocation2 + $0x100] sm:$0xff] %v5837
      %5902 = vst [vmem:[#allocation2 + $0x108] sm:$0xff] %v5838
      %5903 = vst [vmem:[#allocation2 + $0x110] sm:$0xff] %v5839
      %5904 = vst [vmem:[#allocation2 + $0x118] sm:$0xff] %v5840
      %5905 = vst [vmem:[#allocation2 + $0x120] sm:$0xff] %v5841
      %5906 = vst [vmem:[#allocation2 + $0x128] sm:$0xff] %v5842
      %5907 = vst [vmem:[#allocation2 + $0x130] sm:$0xff] %v5843
      %5908 = vst [vmem:[#allocation2 + $0x138] sm:$0xff] %v5844
      %5909 = vst [vmem:[#allocation2 + $0x140] sm:$0xff] %v5845
      %5910 = vst [vmem:[#allocation2 + $0x148] sm:$0xff] %v5846
      %5911 = vst [vmem:[#allocation2 + $0x150] sm:$0xff] %v5847
      %5912 = vst [vmem:[#allocation2 + $0x158] sm:$0xff] %v5848
      %5913 = vst [vmem:[#allocation2 + $0x160] sm:$0xff] %v5849
      %5914 = vst [vmem:[#allocation2 + $0x168] sm:$0xff] %v5850
      %5915 = vst [vmem:[#allocation2 + $0x170] sm:$0xff] %v5851
      %5916 = vst [vmem:[#allocation2 + $0x178] sm:$0xff] %v5852
      %5917 = vst [vmem:[#allocation2 + $0x180] sm:$0xff] %v5853
      %5918 = vst [vmem:[#allocation2 + $0x188] sm:$0xff] %v5854
      %5919 = vst [vmem:[#allocation2 + $0x190] sm:$0xff] %v5855
      %5920 = vst [vmem:[#allocation2 + $0x198] sm:$0xff] %v5856
      %5921 = vst [vmem:[#allocation2 + $0x1a0] sm:$0xff] %v5857
      %5922 = vst [vmem:[#allocation2 + $0x1a8] sm:$0xff] %v5858
      %5923 = vst [vmem:[#allocation2 + $0x1b0] sm:$0xff] %v5859
      %5924 = vst [vmem:[#allocation2 + $0x1b8] sm:$0xff] %v5860
      %5925 = vst [vmem:[#allocation2 + $0x1c0] sm:$0xff] %v5861
      %5926 = vst [vmem:[#allocation2 + $0x1c8] sm:$0xff] %v5862
      %5927 = vst [vmem:[#allocation2 + $0x1d0] sm:$0xff] %v5863
      %5928 = vst [vmem:[#allocation2 + $0x1d8] sm:$0xff] %v5864
      %5929 = vst [vmem:[#allocation2 + $0x1e0] sm:$0xff] %v5865
      %5930 = vst [vmem:[#allocation2 + $0x1e8] sm:$0xff] %v5866
      %5931 = vst [vmem:[#allocation2 + $0x1f0] sm:$0xff] %v5867
      %5932 = vst [vmem:[#allocation2 + $0x1f8] sm:$0xff] %v5868
      %v5933 = vld [vmem:[#allocation2] sm:$0xff]
      %v5934 = vld [vmem:[#allocation2 + $0x8] sm:$0xff]
      %v5935 = vld [vmem:[#allocation2 + $0x10] sm:$0xff]
      %v5936 = vld [vmem:[#allocation2 + $0x18] sm:$0xff]
      %v5937 = vld [vmem:[#allocation2 + $0x20] sm:$0xff]
      %v5938 = vld [vmem:[#allocation2 + $0x28] sm:$0xff]
      %v5939 = vld [vmem:[#allocation2 + $0x30] sm:$0xff]
      %v5940 = vld [vmem:[#allocation2 + $0x38] sm:$0xff]
      %v5941 = vld [vmem:[#allocation2 + $0x40] sm:$0xff]
      %v5942 = vld [vmem:[#allocation2 + $0x48] sm:$0xff]
      %v5943 = vld [vmem:[#allocation2 + $0x50] sm:$0xff]
      %v5944 = vld [vmem:[#allocation2 + $0x58] sm:$0xff]
      %v5945 = vld [vmem:[#allocation2 + $0x60] sm:$0xff]
      %v5946 = vld [vmem:[#allocation2 + $0x68] sm:$0xff]
      %v5947 = vld [vmem:[#allocation2 + $0x70] sm:$0xff]
      %v5948 = vld [vmem:[#allocation2 + $0x78] sm:$0xff]
      %v5949 = vld [vmem:[#allocation2 + $0x80] sm:$0xff]
      %v5950 = vld [vmem:[#allocation2 + $0x88] sm:$0xff]
      %v5951 = vld [vmem:[#allocation2 + $0x90] sm:$0xff]
      %v5952 = vld [vmem:[#allocation2 + $0x98] sm:$0xff]
      %v5953 = vld [vmem:[#allocation2 + $0xa0] sm:$0xff]
      %v5954 = vld [vmem:[#allocation2 + $0xa8] sm:$0xff]
      %v5955 = vld [vmem:[#allocation2 + $0xb0] sm:$0xff]
      %v5956 = vld [vmem:[#allocation2 + $0xb8] sm:$0xff]
      %v5957 = vld [vmem:[#allocation2 + $0xc0] sm:$0xff]
      %v5958 = vld [vmem:[#allocation2 + $0xc8] sm:$0xff]
      %v5959 = vld [vmem:[#allocation2 + $0xd0] sm:$0xff]
      %v5960 = vld [vmem:[#allocation2 + $0xd8] sm:$0xff]
      %v5961 = vld [vmem:[#allocation2 + $0xe0] sm:$0xff]
      %v5962 = vld [vmem:[#allocation2 + $0xe8] sm:$0xff]
      %v5963 = vld [vmem:[#allocation2 + $0xf0] sm:$0xff]
      %v5964 = vld [vmem:[#allocation2 + $0xf8] sm:$0xff]
      %v5965 = vld [vmem:[#allocation2 + $0x100] sm:$0xff]
      %v5966 = vld [vmem:[#allocation2 + $0x108] sm:$0xff]
      %v5967 = vld [vmem:[#allocation2 + $0x110] sm:$0xff]
      %v5968 = vld [vmem:[#allocation2 + $0x118] sm:$0xff]
      %v5969 = vld [vmem:[#allocation2 + $0x120] sm:$0xff]
      %v5970 = vld [vmem:[#allocation2 + $0x128] sm:$0xff]
      %v5971 = vld [vmem:[#allocation2 + $0x130] sm:$0xff]
      %v5972 = vld [vmem:[#allocation2 + $0x138] sm:$0xff]
      %v5973 = vld [vmem:[#allocation2 + $0x140] sm:$0xff]
      %v5974 = vld [vmem:[#allocation2 + $0x148] sm:$0xff]
      %v5975 = vld [vmem:[#allocation2 + $0x150] sm:$0xff]
      %v5976 = vld [vmem:[#allocation2 + $0x158] sm:$0xff]
      %v5977 = vld [vmem:[#allocation2 + $0x160] sm:$0xff]
      %v5978 = vld [vmem:[#allocation2 + $0x168] sm:$0xff]
      %v5979 = vld [vmem:[#allocation2 + $0x170] sm:$0xff]
      %v5980 = vld [vmem:[#allocation2 + $0x178] sm:$0xff]
      %v5981 = vld [vmem:[#allocation2 + $0x180] sm:$0xff]
      %v5982 = vld [vmem:[#allocation2 + $0x188] sm:$0xff]
      %v5983 = vld [vmem:[#allocation2 + $0x190] sm:$0xff]
      %v5984 = vld [vmem:[#allocation2 + $0x198] sm:$0xff]
      %v5985 = vld [vmem:[#allocation2 + $0x1a0] sm:$0xff]
      %v5986 = vld [vmem:[#allocation2 + $0x1a8] sm:$0xff]
      %v5987 = vld [vmem:[#allocation2 + $0x1b0] sm:$0xff]
      %v5988 = vld [vmem:[#allocation2 + $0x1b8] sm:$0xff]
      %v5989 = vld [vmem:[#allocation2 + $0x1c0] sm:$0xff]
      %v5990 = vld [vmem:[#allocation2 + $0x1c8] sm:$0xff]
      %v5991 = vld [vmem:[#allocation2 + $0x1d0] sm:$0xff]
      %v5992 = vld [vmem:[#allocation2 + $0x1d8] sm:$0xff]
      %v5993 = vld [vmem:[#allocation2 + $0x1e0] sm:$0xff]
      %v5994 = vld [vmem:[#allocation2 + $0x1e8] sm:$0xff]
      %v5995 = vld [vmem:[#allocation2 + $0x1f0] sm:$0xff]
      %v5996 = vld [vmem:[#allocation2 + $0x1f8] sm:$0xff]
      %v5997 = vld [vmem:[%s219 + $0x90] sm:$0xff]
      %v5998 = vld [vmem:[%s219 + $0x98] sm:$0xff]
      %v5999 = vld [vmem:[%s219 + $0xa0] sm:$0xff]
      %v6000 = vld [vmem:[%s219 + $0xa8] sm:$0xff]
      %v6001 = vld [vmem:[%s219 + $0xb0] sm:$0xf]
      %v6002 = vld [vmem:[%s219 + $0xb4] sm:$0xff]
      %v6003 = vld [vmem:[%s219 + $0xbc] sm:$0xff]
      %v6004 = vld [vmem:[%s219 + $0xc4] sm:$0xff]
      %v6005 = vld [vmem:[%s219 + $0xcc] sm:$0xff]
      %v6006 = vld [vmem:[%s219 + $0xd4] sm:$0xf]
      %v6007 = vld [vmem:[%s219 + $0xd8] sm:$0xff]
      %v6008 = vld [vmem:[%s219 + $0xe0] sm:$0xff]
      %v6009 = vld [vmem:[%s219 + $0xe8] sm:$0xff]
      %v6010 = vld [vmem:[%s219 + $0xf0] sm:$0xff]
      %v6011 = vld [vmem:[%s219 + $0xf8] sm:$0xf]
      %v6012 = vld [vmem:[%s219 + $0xfc] sm:$0xff]
      %v6013 = vld [vmem:[%s219 + $0x104] sm:$0xff]
      %v6014 = vld [vmem:[%s219 + $0x10c] sm:$0xff]
      %v6015 = vld [vmem:[%s219 + $0x114] sm:$0xff]
      %v6016 = vld [vmem:[%s219 + $0x11c] sm:$0xf]
      %v6017 = vld [vmem:[%s219 + $0x120] sm:$0xff]
      %v6018 = vld [vmem:[%s219 + $0x128] sm:$0xff]
      %v6019 = vld [vmem:[%s219 + $0x130] sm:$0xff]
      %v6020 = vld [vmem:[%s219 + $0x138] sm:$0xff]
      %v6021 = vld [vmem:[%s219 + $0x140] sm:$0xf]
      %v6022 = vld [vmem:[%s219 + $0x144] sm:$0xff]
      %v6023 = vld [vmem:[%s219 + $0x14c] sm:$0xff]
      %v6024 = vld [vmem:[%s219 + $0x154] sm:$0xff]
      %v6025 = vld [vmem:[%s219 + $0x15c] sm:$0xff]
      %v6026 = vld [vmem:[%s219 + $0x164] sm:$0xf]
      %v6027 = vld [vmem:[%s219 + $0x168] sm:$0xff]
      %v6028 = vld [vmem:[%s219 + $0x170] sm:$0xff]
      %v6029 = vld [vmem:[%s219 + $0x178] sm:$0xff]
      %v6030 = vld [vmem:[%s219 + $0x180] sm:$0xff]
      %v6031 = vld [vmem:[%s219 + $0x188] sm:$0xf]
      %v6032 = vld [vmem:[%s219 + $0x18c] sm:$0xff]
      %v6033 = vld [vmem:[%s219 + $0x194] sm:$0xff]
      %v6034 = vld [vmem:[%s219 + $0x19c] sm:$0xff]
      %v6035 = vld [vmem:[%s219 + $0x1a4] sm:$0xff]
      %v6036 = vld [vmem:[%s219 + $0x1ac] sm:$0xf]
      %v6037 = vld [vmem:[%s219 + $0x1b0] sm:$0xff]
      %v6038 = vld [vmem:[%s219 + $0x1b8] sm:$0xff]
      %v6039 = vld [vmem:[%s219 + $0x1c0] sm:$0xff]
      %v6040 = vld [vmem:[%s219 + $0x1c8] sm:$0xff]
      %v6041 = vld [vmem:[%s219 + $0x1d0] sm:$0xf]
      %v6042 = vld [vmem:[%s219 + $0x1d4] sm:$0xff]
      %v6043 = vld [vmem:[%s219 + $0x1dc] sm:$0xff]
      %v6044 = vld [vmem:[%s219 + $0x1e4] sm:$0xff]
      %v6045 = vld [vmem:[%s219 + $0x1ec] sm:$0xff]
      %v6046 = vld [vmem:[%s219 + $0x1f4] sm:$0xf]
      %v6047 = vld [vmem:[%s219 + $0x1f8] sm:$0xff]
      %v6048 = vld [vmem:[%s219 + $0x200] sm:$0xff]
      %v6049 = vld [vmem:[%s219 + $0x208] sm:$0xff]
      %v6050 = vld [vmem:[%s219 + $0x210] sm:$0xff]
      %v6051 = vld [vmem:[%s219 + $0x218] sm:$0xf]
      %v6052 = vld [vmem:[%s219 + $0x21c] sm:$0xff]
      %v6053 = vld [vmem:[%s219 + $0x224] sm:$0xff]
      %v6054 = vld [vmem:[%s219 + $0x22c] sm:$0xff]
      %v6055 = vld [vmem:[%s219 + $0x234] sm:$0xff]
      %v6056 = vld [vmem:[%s219 + $0x23c] sm:$0xf]
      %v6057 = vld [vmem:[%s219 + $0x240] sm:$0xff]
      %v6058 = vld [vmem:[%s219 + $0x248] sm:$0xff]
      %v6059 = vld [vmem:[%s219 + $0x250] sm:$0xff]
      %v6060 = vld [vmem:[%s219 + $0x258] sm:$0xff]
      %v6061 = vld [vmem:[%s219 + $0x260] sm:$0xf]
      %v6062 = vld [vmem:[%s219 + $0x264] sm:$0xff]
      %v6063 = vld [vmem:[%s219 + $0x26c] sm:$0xff]
      %v6064 = vld [vmem:[%s219 + $0x274] sm:$0xff]
      %v6065 = vld [vmem:[%s219 + $0x27c] sm:$0xff]
      %v6066 = vld [vmem:[%s219 + $0x284] sm:$0xf]
      %v6067 = vld [vmem:[%s219 + $0x288] sm:$0xff]
      %v6068 = vld [vmem:[%s219 + $0x290] sm:$0xff]
      %v6069 = vld [vmem:[%s219 + $0x298] sm:$0xff]
      %v6070 = vld [vmem:[%s219 + $0x2a0] sm:$0xff]
      %v6071 = vld [vmem:[%s219 + $0x2a8] sm:$0xf]
      %v6072 = vld [vmem:[%s219 + $0x2ac] sm:$0xff]
      %v6073 = vld [vmem:[%s219 + $0x2b4] sm:$0xff]
      %v6074 = vld [vmem:[%s219 + $0x2bc] sm:$0xff]
      %v6075 = vld [vmem:[%s219 + $0x2c4] sm:$0xff]
      %v6076 = vld [vmem:[%s219 + $0x2cc] sm:$0xf]
      %v6077 = vld [vmem:[%s219 + $0x2d0] sm:$0xff]
      %v6078 = vld [vmem:[%s219 + $0x2d8] sm:$0xff]
      %v6079 = vld [vmem:[%s219 + $0x2e0] sm:$0xff]
      %v6080 = vld [vmem:[%s219 + $0x2e8] sm:$0xff]
      %v6081 = vld [vmem:[%s219 + $0x2f0] sm:$0xf]
      %v6082 = vld [vmem:[%s219 + $0x2f4] sm:$0xff]
      %v6083 = vld [vmem:[%s219 + $0x2fc] sm:$0xff]
      %v6084 = vld [vmem:[%s219 + $0x304] sm:$0xff]
      %v6085 = vld [vmem:[%s219 + $0x30c] sm:$0xff]
      %v6086 = vld [vmem:[%s219 + $0x314] sm:$0xf]
      %v6087 = vld [vmem:[%s219 + $0x318] sm:$0xff]
      %v6088 = vld [vmem:[%s219 + $0x320] sm:$0xff]
      %v6089 = vld [vmem:[%s219 + $0x328] sm:$0xff]
      %v6090 = vld [vmem:[%s219 + $0x330] sm:$0xff]
      %v6091 = vld [vmem:[%s219 + $0x338] sm:$0xf]
      %v6092 = vld [vmem:[%s219 + $0x33c] sm:$0xff]
      %v6093 = vld [vmem:[%s219 + $0x344] sm:$0xff]
      %v6094 = vld [vmem:[%s219 + $0x34c] sm:$0xff]
      %v6095 = vld [vmem:[%s219 + $0x354] sm:$0xff]
      %v6096 = vld [vmem:[%s219 + $0x35c] sm:$0xf]
      %v6097 = vld [vmem:[%s219 + $0x360] sm:$0xff]
      %v6098 = vld [vmem:[%s219 + $0x368] sm:$0xff]
      %v6099 = vld [vmem:[%s219 + $0x370] sm:$0xff]
      %v6100 = vld [vmem:[%s219 + $0x378] sm:$0xff]
      %v6101 = vld [vmem:[%s219 + $0x380] sm:$0xf]
      %v6102 = vld [vmem:[%s219 + $0x384] sm:$0xff]
      %v6103 = vld [vmem:[%s219 + $0x38c] sm:$0xff]
      %v6104 = vld [vmem:[%s219 + $0x394] sm:$0xff]
      %v6105 = vld [vmem:[%s219 + $0x39c] sm:$0xff]
      %v6106 = vld [vmem:[%s219 + $0x3a4] sm:$0xf]
      %v6107 = vld [vmem:[%s219 + $0x3a8] sm:$0xff]
      %v6108 = vld [vmem:[%s219 + $0x3b0] sm:$0xff]
      %v6109 = vld [vmem:[%s219 + $0x3b8] sm:$0xff]
      %v6110 = vld [vmem:[%s219 + $0x3c0] sm:$0xff]
      %v6111 = vld [vmem:[%s219 + $0x3c8] sm:$0xf]
      %v6112 = vld [vmem:[%s219 + $0x3cc] sm:$0xff]
      %v6113 = vld [vmem:[%s219 + $0x3d4] sm:$0xff]
      %v6114 = vld [vmem:[%s219 + $0x3dc] sm:$0xff]
      %v6115 = vld [vmem:[%s219 + $0x3e4] sm:$0xff]
      %v6116 = vld [vmem:[%s219 + $0x3ec] sm:$0xf]
      %v6117 = vld [vmem:[%s219 + $0x3f0] sm:$0xff]
      %v6118 = vld [vmem:[%s219 + $0x3f8] sm:$0xff]
      %v6119 = vld [vmem:[%s219 + $0x400] sm:$0xff]
      %v6120 = vld [vmem:[%s219 + $0x408] sm:$0xff]
      %v6121 = vld [vmem:[%s219 + $0x410] sm:$0xf]
      %v6122 = vld [vmem:[%s219 + $0x414] sm:$0xff]
      %v6123 = vld [vmem:[%s219 + $0x41c] sm:$0xff]
      %v6124 = vld [vmem:[%s219 + $0x424] sm:$0xff]
      %v6125 = vld [vmem:[%s219 + $0x42c] sm:$0xff]
      %v6126 = vld [vmem:[%s219 + $0x434] sm:$0xf]
      %v6127 = vld [vmem:[%s219 + $0x438] sm:$0xff]
      %v6128 = vld [vmem:[%s219 + $0x440] sm:$0xff]
      %v6129 = vld [vmem:[%s219 + $0x448] sm:$0xff]
      %v6130 = vld [vmem:[%s219 + $0x450] sm:$0xff]
      %v6131 = vld [vmem:[%s219 + $0x458] sm:$0xf]
      %v6132 = vld [vmem:[%s219 + $0x45c] sm:$0xff]
      %v6133 = vld [vmem:[%s219 + $0x464] sm:$0xff]
      %v6134 = vld [vmem:[%s219 + $0x46c] sm:$0xff]
      %v6135 = vld [vmem:[%s219 + $0x474] sm:$0xff]
      %v6136 = vld [vmem:[%s219 + $0x47c] sm:$0xf]
      %v6137 = vld [vmem:[%s219 + $0x480] sm:$0xff]
      %v6138 = vld [vmem:[%s219 + $0x488] sm:$0xff]
      %v6139 = vld [vmem:[%s219 + $0x490] sm:$0xff]
      %v6140 = vld [vmem:[%s219 + $0x498] sm:$0xff]
      %v6141 = vld [vmem:[%s219 + $0x4a0] sm:$0xf]
      %v6142 = vld [vmem:[%s219 + $0x4a4] sm:$0xff]
      %v6143 = vld [vmem:[%s219 + $0x4ac] sm:$0xff]
      %v6144 = vld [vmem:[%s219 + $0x4b4] sm:$0xff]
      %v6145 = vld [vmem:[%s219 + $0x4bc] sm:$0xff]
      %v6146 = vld [vmem:[%s219 + $0x4c4] sm:$0xf]
      %v6147 = vld [vmem:[%s219 + $0x4c8] sm:$0xff]
      %v6148 = vld [vmem:[%s219 + $0x4d0] sm:$0xff]
      %v6149 = vld [vmem:[%s219 + $0x4d8] sm:$0xff]
      %v6150 = vld [vmem:[%s219 + $0x4e0] sm:$0xff]
      %v6151 = vld [vmem:[%s219 + $0x4e8] sm:$0xf]
      %v6152 = vld [vmem:[%s219 + $0x4ec] sm:$0xff]
      %v6153 = vld [vmem:[%s219 + $0x4f4] sm:$0xff]
      %v6154 = vld [vmem:[%s219 + $0x4fc] sm:$0xff]
      %v6155 = vld [vmem:[%s219 + $0x504] sm:$0xff]
      %v6156 = vld [vmem:[%s219 + $0x50c] sm:$0xf]
      %s6157 = scalar_lea.vmem %s1, 2304
      %v6158 = vld [vmem:[%s6157] sm:$0xff]
      %v6159 = vld [vmem:[%s6157 + $0x8] sm:$0xff]
      %v6160 = vld [vmem:[%s6157 + $0x10] sm:$0xff]
      %v6161 = vld [vmem:[%s6157 + $0x18] sm:$0xff]
      %v6162 = vld [vmem:[%s6157 + $0x20] sm:$0xff]
      %v6163 = vld [vmem:[%s6157 + $0x28] sm:$0xff]
      %v6164 = vld [vmem:[%s6157 + $0x30] sm:$0xff]
      %v6165 = vld [vmem:[%s6157 + $0x38] sm:$0xff]
      %v6166 = vld [vmem:[%s6157 + $0x40] sm:$0xff]
      %v6167 = vld [vmem:[%s6157 + $0x48] sm:$0xff]
      %v6168 = vld [vmem:[%s6157 + $0x50] sm:$0xff]
      %v6169 = vld [vmem:[%s6157 + $0x58] sm:$0xff]
      %v6170 = vld [vmem:[%s6157 + $0x60] sm:$0xff]
      %v6171 = vld [vmem:[%s6157 + $0x68] sm:$0xff]
      %v6172 = vld [vmem:[%s6157 + $0x70] sm:$0xff]
      %v6173 = vld [vmem:[%s6157 + $0x78] sm:$0xff]
      %v6174 = vld [vmem:[%s6157 + $0x80] sm:$0xff]
      %v6175 = vld [vmem:[%s6157 + $0x88] sm:$0xff]
      %v6176 = vld [vmem:[%s6157 + $0x90] sm:$0xff]
      %v6177 = vld [vmem:[%s6157 + $0x98] sm:$0xff]
      %v6178 = vld [vmem:[%s6157 + $0xa0] sm:$0xff]
      %v6179 = vld [vmem:[%s6157 + $0xa8] sm:$0xff]
      %v6180 = vld [vmem:[%s6157 + $0xb0] sm:$0xff]
      %v6181 = vld [vmem:[%s6157 + $0xb8] sm:$0xff]
      %v6182 = vld [vmem:[%s6157 + $0xc0] sm:$0xff]
      %v6183 = vld [vmem:[%s6157 + $0xc8] sm:$0xff]
      %v6184 = vld [vmem:[%s6157 + $0xd0] sm:$0xff]
      %v6185 = vld [vmem:[%s6157 + $0xd8] sm:$0xff]
      %v6186 = vld [vmem:[%s6157 + $0xe0] sm:$0xff]
      %v6187 = vld [vmem:[%s6157 + $0xe8] sm:$0xff]
      %v6188 = vld [vmem:[%s6157 + $0xf0] sm:$0xff]
      %v6189 = vld [vmem:[%s6157 + $0xf8] sm:$0xff]
      %v6190 = vld [vmem:[%s6157 + $0x100] sm:$0xff]
      %v6191 = vld [vmem:[%s6157 + $0x108] sm:$0xff]
      %v6192 = vld [vmem:[%s6157 + $0x110] sm:$0xff]
      %v6193 = vld [vmem:[%s6157 + $0x118] sm:$0xff]
      %v6194 = vld [vmem:[%s6157 + $0x120] sm:$0xff]
      %v6195 = vld [vmem:[%s6157 + $0x128] sm:$0xff]
      %v6196 = vld [vmem:[%s6157 + $0x130] sm:$0xff]
      %v6197 = vld [vmem:[%s6157 + $0x138] sm:$0xff]
      %v6198 = vld [vmem:[%s6157 + $0x140] sm:$0xff]
      %v6199 = vld [vmem:[%s6157 + $0x148] sm:$0xff]
      %v6200 = vld [vmem:[%s6157 + $0x150] sm:$0xff]
      %v6201 = vld [vmem:[%s6157 + $0x158] sm:$0xff]
      %v6202 = vld [vmem:[%s6157 + $0x160] sm:$0xff]
      %v6203 = vld [vmem:[%s6157 + $0x168] sm:$0xff]
      %v6204 = vld [vmem:[%s6157 + $0x170] sm:$0xff]
      %v6205 = vld [vmem:[%s6157 + $0x178] sm:$0xff]
      %v6206 = vld [vmem:[%s6157 + $0x180] sm:$0xff]
      %v6207 = vld [vmem:[%s6157 + $0x188] sm:$0xff]
      %v6208 = vld [vmem:[%s6157 + $0x190] sm:$0xff]
      %v6209 = vld [vmem:[%s6157 + $0x198] sm:$0xff]
      %v6210 = vld [vmem:[%s6157 + $0x1a0] sm:$0xff]
      %v6211 = vld [vmem:[%s6157 + $0x1a8] sm:$0xff]
      %v6212 = vld [vmem:[%s6157 + $0x1b0] sm:$0xff]
      %v6213 = vld [vmem:[%s6157 + $0x1b8] sm:$0xff]
      %v6214 = vld [vmem:[%s6157 + $0x1c0] sm:$0xff]
      %v6215 = vld [vmem:[%s6157 + $0x1c8] sm:$0xff]
      %v6216 = vld [vmem:[%s6157 + $0x1d0] sm:$0xff]
      %v6217 = vld [vmem:[%s6157 + $0x1d8] sm:$0xff]
      %v6218 = vld [vmem:[%s6157 + $0x1e0] sm:$0xff]
      %v6219 = vld [vmem:[%s6157 + $0x1e8] sm:$0xff]
      %v6220 = vld [vmem:[%s6157 + $0x1f0] sm:$0xff]
      %v6221 = vld [vmem:[%s6157 + $0x1f8] sm:$0xff]
      %v6222 = vld [vmem:[%s6157 + $0x200] sm:$0xff]
      %v6223 = vld [vmem:[%s6157 + $0x208] sm:$0xff]
      %v6224 = vld [vmem:[%s6157 + $0x210] sm:$0xff]
      %v6225 = vld [vmem:[%s6157 + $0x218] sm:$0xff]
      %v6226 = vld [vmem:[%s6157 + $0x220] sm:$0xff]
      %v6227 = vld [vmem:[%s6157 + $0x228] sm:$0xff]
      %v6228 = vld [vmem:[%s6157 + $0x230] sm:$0xff]
      %v6229 = vld [vmem:[%s6157 + $0x238] sm:$0xff]
      %v6230 = vld [vmem:[%s6157 + $0x240] sm:$0xff]
      %v6231 = vld [vmem:[%s6157 + $0x248] sm:$0xff]
      %v6232 = vld [vmem:[%s6157 + $0x250] sm:$0xff]
      %v6233 = vld [vmem:[%s6157 + $0x258] sm:$0xff]
      %v6234 = vld [vmem:[%s6157 + $0x260] sm:$0xff]
      %v6235 = vld [vmem:[%s6157 + $0x268] sm:$0xff]
      %v6236 = vld [vmem:[%s6157 + $0x270] sm:$0xff]
      %v6237 = vld [vmem:[%s6157 + $0x278] sm:$0xff]
      %v6238 = vld [vmem:[%s6157 + $0x280] sm:$0xff]
      %v6239 = vld [vmem:[%s6157 + $0x288] sm:$0xff]
      %v6240 = vld [vmem:[%s6157 + $0x290] sm:$0xff]
      %v6241 = vld [vmem:[%s6157 + $0x298] sm:$0xff]
      %v6242 = vld [vmem:[%s6157 + $0x2a0] sm:$0xff]
      %v6243 = vld [vmem:[%s6157 + $0x2a8] sm:$0xff]
      %v6244 = vld [vmem:[%s6157 + $0x2b0] sm:$0xff]
      %v6245 = vld [vmem:[%s6157 + $0x2b8] sm:$0xff]
      %v6246 = vld [vmem:[%s6157 + $0x2c0] sm:$0xff]
      %v6247 = vld [vmem:[%s6157 + $0x2c8] sm:$0xff]
      %v6248 = vld [vmem:[%s6157 + $0x2d0] sm:$0xff]
      %v6249 = vld [vmem:[%s6157 + $0x2d8] sm:$0xff]
      %v6250 = vld [vmem:[%s6157 + $0x2e0] sm:$0xff]
      %v6251 = vld [vmem:[%s6157 + $0x2e8] sm:$0xff]
      %v6252 = vld [vmem:[%s6157 + $0x2f0] sm:$0xff]
      %v6253 = vld [vmem:[%s6157 + $0x2f8] sm:$0xff]
      %v6254 = vld [vmem:[%s6157 + $0x300] sm:$0xff]
      %v6255 = vld [vmem:[%s6157 + $0x308] sm:$0xff]
      %v6256 = vld [vmem:[%s6157 + $0x310] sm:$0xff]
      %v6257 = vld [vmem:[%s6157 + $0x318] sm:$0xff]
      %v6258 = vld [vmem:[%s6157 + $0x320] sm:$0xff]
      %v6259 = vld [vmem:[%s6157 + $0x328] sm:$0xff]
      %v6260 = vld [vmem:[%s6157 + $0x330] sm:$0xff]
      %v6261 = vld [vmem:[%s6157 + $0x338] sm:$0xff]
      %v6262 = vld [vmem:[%s6157 + $0x340] sm:$0xff]
      %v6263 = vld [vmem:[%s6157 + $0x348] sm:$0xff]
      %v6264 = vld [vmem:[%s6157 + $0x350] sm:$0xff]
      %v6265 = vld [vmem:[%s6157 + $0x358] sm:$0xff]
      %v6266 = vld [vmem:[%s6157 + $0x360] sm:$0xff]
      %v6267 = vld [vmem:[%s6157 + $0x368] sm:$0xff]
      %v6268 = vld [vmem:[%s6157 + $0x370] sm:$0xff]
      %v6269 = vld [vmem:[%s6157 + $0x378] sm:$0xff]
      %v6270 = vld [vmem:[%s6157 + $0x380] sm:$0xff]
      %v6271 = vld [vmem:[%s6157 + $0x388] sm:$0xff]
      %v6272 = vld [vmem:[%s6157 + $0x390] sm:$0xff]
      %v6273 = vld [vmem:[%s6157 + $0x398] sm:$0xff]
      %v6274 = vld [vmem:[%s6157 + $0x3a0] sm:$0xff]
      %v6275 = vld [vmem:[%s6157 + $0x3a8] sm:$0xff]
      %v6276 = vld [vmem:[%s6157 + $0x3b0] sm:$0xff]
      %v6277 = vld [vmem:[%s6157 + $0x3b8] sm:$0xff]
      %v6278 = vld [vmem:[%s6157 + $0x3c0] sm:$0xff]
      %v6279 = vld [vmem:[%s6157 + $0x3c8] sm:$0xff]
      %v6280 = vld [vmem:[%s6157 + $0x3d0] sm:$0xff]
      %v6281 = vld [vmem:[%s6157 + $0x3d8] sm:$0xff]
      %v6282 = vld [vmem:[%s6157 + $0x3e0] sm:$0xff]
      %v6283 = vld [vmem:[%s6157 + $0x3e8] sm:$0xff]
      %v6284 = vld [vmem:[%s6157 + $0x3f0] sm:$0xff]
      %v6285 = vld [vmem:[%s6157 + $0x3f8] sm:$0xff]
      %v6286 = vld [vmem:[%s6157 + $0x400] sm:$0xff]
      %v6287 = vld [vmem:[%s6157 + $0x408] sm:$0xff]
      %v6288 = vld [vmem:[%s6157 + $0x410] sm:$0xff]
      %v6289 = vld [vmem:[%s6157 + $0x418] sm:$0xff]
      %v6290 = vld [vmem:[%s6157 + $0x420] sm:$0xff]
      %v6291 = vld [vmem:[%s6157 + $0x428] sm:$0xff]
      %v6292 = vld [vmem:[%s6157 + $0x430] sm:$0xff]
      %v6293 = vld [vmem:[%s6157 + $0x438] sm:$0xff]
      %v6294 = vld [vmem:[%s6157 + $0x440] sm:$0xff]
      %v6295 = vld [vmem:[%s6157 + $0x448] sm:$0xff]
      %v6296 = vld [vmem:[%s6157 + $0x450] sm:$0xff]
      %v6297 = vld [vmem:[%s6157 + $0x458] sm:$0xff]
      %v6298 = vld [vmem:[%s6157 + $0x460] sm:$0xff]
      %v6299 = vld [vmem:[%s6157 + $0x468] sm:$0xff]
      %v6300 = vld [vmem:[%s6157 + $0x470] sm:$0xff]
      %v6301 = vld [vmem:[%s6157 + $0x478] sm:$0xff]
      %v6462 = vunpack.c.l.b16 %v5997
      %v6463 = vunpack.c.h.b16 %v5997
      %v6464 = vunpack.c.l.b16 %v5998
      %v6465 = vunpack.c.h.b16 %v5998
      %v6466 = vunpack.c.l.b16 %v5999
      %v6467 = vunpack.c.h.b16 %v5999
      %v6468 = vunpack.c.l.b16 %v6000
      %v6469 = vunpack.c.h.b16 %v6000
      %v6470 = vunpack.c.l.b16 %v6001
      %v6471 = vunpack.c.l.b16 %v6002
      %v6472 = vunpack.c.h.b16 %v6002
      %v6473 = vunpack.c.l.b16 %v6003
      %v6474 = vunpack.c.h.b16 %v6003
      %v6475 = vunpack.c.l.b16 %v6004
      %v6476 = vunpack.c.h.b16 %v6004
      %v6477 = vunpack.c.l.b16 %v6005
      %v6478 = vunpack.c.h.b16 %v6005
      %v6479 = vunpack.c.l.b16 %v6006
      %v6480 = vunpack.c.l.b16 %v6007
      %v6481 = vunpack.c.h.b16 %v6007
      %v6482 = vunpack.c.l.b16 %v6008
      %v6483 = vunpack.c.h.b16 %v6008
      %v6484 = vunpack.c.l.b16 %v6009
      %v6485 = vunpack.c.h.b16 %v6009
      %v6486 = vunpack.c.l.b16 %v6010
      %v6487 = vunpack.c.h.b16 %v6010
      %v6488 = vunpack.c.l.b16 %v6011
      %v6489 = vunpack.c.l.b16 %v6012
      %v6490 = vunpack.c.h.b16 %v6012
      %v6491 = vunpack.c.l.b16 %v6013
      %v6492 = vunpack.c.h.b16 %v6013
      %v6493 = vunpack.c.l.b16 %v6014
      %v6494 = vunpack.c.h.b16 %v6014
      %v6495 = vunpack.c.l.b16 %v6015
      %v6496 = vunpack.c.h.b16 %v6015
      %v6497 = vunpack.c.l.b16 %v6016
      %v6498 = vunpack.c.l.b16 %v6017
      %v6499 = vunpack.c.h.b16 %v6017
      %v6500 = vunpack.c.l.b16 %v6018
      %v6501 = vunpack.c.h.b16 %v6018
      %v6502 = vunpack.c.l.b16 %v6019
      %v6503 = vunpack.c.h.b16 %v6019
      %v6504 = vunpack.c.l.b16 %v6020
      %v6505 = vunpack.c.h.b16 %v6020
      %v6506 = vunpack.c.l.b16 %v6021
      %v6507 = vunpack.c.l.b16 %v6022
      %v6508 = vunpack.c.h.b16 %v6022
      %v6509 = vunpack.c.l.b16 %v6023
      %v6510 = vunpack.c.h.b16 %v6023
      %v6511 = vunpack.c.l.b16 %v6024
      %v6512 = vunpack.c.h.b16 %v6024
      %v6513 = vunpack.c.l.b16 %v6025
      %v6514 = vunpack.c.h.b16 %v6025
      %v6515 = vunpack.c.l.b16 %v6026
      %v6516 = vunpack.c.l.b16 %v6027
      %v6517 = vunpack.c.h.b16 %v6027
      %v6518 = vunpack.c.l.b16 %v6028
      %v6519 = vunpack.c.h.b16 %v6028
      %v6520 = vunpack.c.l.b16 %v6029
      %v6521 = vunpack.c.h.b16 %v6029
      %v6522 = vunpack.c.l.b16 %v6030
      %v6523 = vunpack.c.h.b16 %v6030
      %v6524 = vunpack.c.l.b16 %v6031
      %v6525 = vunpack.c.l.b16 %v6032
      %v6526 = vunpack.c.h.b16 %v6032
      %v6527 = vunpack.c.l.b16 %v6033
      %v6528 = vunpack.c.h.b16 %v6033
      %v6529 = vunpack.c.l.b16 %v6034
      %v6530 = vunpack.c.h.b16 %v6034
      %v6531 = vunpack.c.l.b16 %v6035
      %v6532 = vunpack.c.h.b16 %v6035
      %v6533 = vunpack.c.l.b16 %v6036
      %v6534 = vunpack.c.l.b16 %v6037
      %v6535 = vunpack.c.h.b16 %v6037
      %v6536 = vunpack.c.l.b16 %v6038
      %v6537 = vunpack.c.h.b16 %v6038
      %v6538 = vunpack.c.l.b16 %v6039
      %v6539 = vunpack.c.h.b16 %v6039
      %v6540 = vunpack.c.l.b16 %v6040
      %v6541 = vunpack.c.h.b16 %v6040
      %v6542 = vunpack.c.l.b16 %v6041
      %v6543 = vunpack.c.l.b16 %v6042
      %v6544 = vunpack.c.h.b16 %v6042
      %v6545 = vunpack.c.l.b16 %v6043
      %v6546 = vunpack.c.h.b16 %v6043
      %v6547 = vunpack.c.l.b16 %v6044
      %v6548 = vunpack.c.h.b16 %v6044
      %v6549 = vunpack.c.l.b16 %v6045
      %v6550 = vunpack.c.h.b16 %v6045
      %v6551 = vunpack.c.l.b16 %v6046
      %v6552 = vunpack.c.l.b16 %v6047
      %v6553 = vunpack.c.h.b16 %v6047
      %v6554 = vunpack.c.l.b16 %v6048
      %v6555 = vunpack.c.h.b16 %v6048
      %v6556 = vunpack.c.l.b16 %v6049
      %v6557 = vunpack.c.h.b16 %v6049
      %v6558 = vunpack.c.l.b16 %v6050
      %v6559 = vunpack.c.h.b16 %v6050
      %v6560 = vunpack.c.l.b16 %v6051
      %v6561 = vunpack.c.l.b16 %v6052
      %v6562 = vunpack.c.h.b16 %v6052
      %v6563 = vunpack.c.l.b16 %v6053
      %v6564 = vunpack.c.h.b16 %v6053
      %v6565 = vunpack.c.l.b16 %v6054
      %v6566 = vunpack.c.h.b16 %v6054
      %v6567 = vunpack.c.l.b16 %v6055
      %v6568 = vunpack.c.h.b16 %v6055
      %v6569 = vunpack.c.l.b16 %v6056
      %v6570 = vunpack.c.l.b16 %v6057
      %v6571 = vunpack.c.h.b16 %v6057
      %v6572 = vunpack.c.l.b16 %v6058
      %v6573 = vunpack.c.h.b16 %v6058
      %v6574 = vunpack.c.l.b16 %v6059
      %v6575 = vunpack.c.h.b16 %v6059
      %v6576 = vunpack.c.l.b16 %v6060
      %v6577 = vunpack.c.h.b16 %v6060
      %v6578 = vunpack.c.l.b16 %v6061
      %v6579 = vunpack.c.l.b16 %v6062
      %v6580 = vunpack.c.h.b16 %v6062
      %v6581 = vunpack.c.l.b16 %v6063
      %v6582 = vunpack.c.h.b16 %v6063
      %v6583 = vunpack.c.l.b16 %v6064
      %v6584 = vunpack.c.h.b16 %v6064
      %v6585 = vunpack.c.l.b16 %v6065
      %v6586 = vunpack.c.h.b16 %v6065
      %v6587 = vunpack.c.l.b16 %v6066
      %v6588 = vunpack.c.l.b16 %v6067
      %v6589 = vunpack.c.h.b16 %v6067
      %v6590 = vunpack.c.l.b16 %v6068
      %v6591 = vunpack.c.h.b16 %v6068
      %v6592 = vunpack.c.l.b16 %v6069
      %v6593 = vunpack.c.h.b16 %v6069
      %v6594 = vunpack.c.l.b16 %v6070
      %v6595 = vunpack.c.h.b16 %v6070
      %v6596 = vunpack.c.l.b16 %v6071
      %v6597 = vunpack.c.l.b16 %v6072
      %v6598 = vunpack.c.h.b16 %v6072
      %v6599 = vunpack.c.l.b16 %v6073
      %v6600 = vunpack.c.h.b16 %v6073
      %v6601 = vunpack.c.l.b16 %v6074
      %v6602 = vunpack.c.h.b16 %v6074
      %v6603 = vunpack.c.l.b16 %v6075
      %v6604 = vunpack.c.h.b16 %v6075
      %v6605 = vunpack.c.l.b16 %v6076
      %v6606 = vunpack.c.l.b16 %v6077
      %v6607 = vunpack.c.h.b16 %v6077
      %v6608 = vunpack.c.l.b16 %v6078
      %v6609 = vunpack.c.h.b16 %v6078
      %v6610 = vunpack.c.l.b16 %v6079
      %v6611 = vunpack.c.h.b16 %v6079
      %v6612 = vunpack.c.l.b16 %v6080
      %v6613 = vunpack.c.h.b16 %v6080
      %v6614 = vunpack.c.l.b16 %v6081
      %v6615 = vunpack.c.l.b16 %v6082
      %v6616 = vunpack.c.h.b16 %v6082
      %v6617 = vunpack.c.l.b16 %v6083
      %v6618 = vunpack.c.h.b16 %v6083
      %v6619 = vunpack.c.l.b16 %v6084
      %v6620 = vunpack.c.h.b16 %v6084
      %v6621 = vunpack.c.l.b16 %v6085
      %v6622 = vunpack.c.h.b16 %v6085
      %v6623 = vunpack.c.l.b16 %v6086
      %v6624 = vunpack.c.l.b16 %v6087
      %v6625 = vunpack.c.h.b16 %v6087
      %v6626 = vunpack.c.l.b16 %v6088
      %v6627 = vunpack.c.h.b16 %v6088
      %v6628 = vunpack.c.l.b16 %v6089
      %v6629 = vunpack.c.h.b16 %v6089
      %v6630 = vunpack.c.l.b16 %v6090
      %v6631 = vunpack.c.h.b16 %v6090
      %v6632 = vunpack.c.l.b16 %v6091
      %v6633 = vunpack.c.l.b16 %v6092
      %v6634 = vunpack.c.h.b16 %v6092
      %v6635 = vunpack.c.l.b16 %v6093
      %v6636 = vunpack.c.h.b16 %v6093
      %v6637 = vunpack.c.l.b16 %v6094
      %v6638 = vunpack.c.h.b16 %v6094
      %v6639 = vunpack.c.l.b16 %v6095
      %v6640 = vunpack.c.h.b16 %v6095
      %v6641 = vunpack.c.l.b16 %v6096
      %v6642 = vunpack.c.l.b16 %v6097
      %v6643 = vunpack.c.h.b16 %v6097
      %v6644 = vunpack.c.l.b16 %v6098
      %v6645 = vunpack.c.h.b16 %v6098
      %v6646 = vunpack.c.l.b16 %v6099
      %v6647 = vunpack.c.h.b16 %v6099
      %v6648 = vunpack.c.l.b16 %v6100
      %v6649 = vunpack.c.h.b16 %v6100
      %v6650 = vunpack.c.l.b16 %v6101
      %v6651 = vunpack.c.l.b16 %v6102
      %v6652 = vunpack.c.h.b16 %v6102
      %v6653 = vunpack.c.l.b16 %v6103
      %v6654 = vunpack.c.h.b16 %v6103
      %v6655 = vunpack.c.l.b16 %v6104
      %v6656 = vunpack.c.h.b16 %v6104
      %v6657 = vunpack.c.l.b16 %v6105
      %v6658 = vunpack.c.h.b16 %v6105
      %v6659 = vunpack.c.l.b16 %v6106
      %v6660 = vunpack.c.l.b16 %v6107
      %v6661 = vunpack.c.h.b16 %v6107
      %v6662 = vunpack.c.l.b16 %v6108
      %v6663 = vunpack.c.h.b16 %v6108
      %v6664 = vunpack.c.l.b16 %v6109
      %v6665 = vunpack.c.h.b16 %v6109
      %v6666 = vunpack.c.l.b16 %v6110
      %v6667 = vunpack.c.h.b16 %v6110
      %v6668 = vunpack.c.l.b16 %v6111
      %v6669 = vunpack.c.l.b16 %v6112
      %v6670 = vunpack.c.h.b16 %v6112
      %v6671 = vunpack.c.l.b16 %v6113
      %v6672 = vunpack.c.h.b16 %v6113
      %v6673 = vunpack.c.l.b16 %v6114
      %v6674 = vunpack.c.h.b16 %v6114
      %v6675 = vunpack.c.l.b16 %v6115
      %v6676 = vunpack.c.h.b16 %v6115
      %v6677 = vunpack.c.l.b16 %v6116
      %v6678 = vunpack.c.l.b16 %v6117
      %v6679 = vunpack.c.h.b16 %v6117
      %v6680 = vunpack.c.l.b16 %v6118
      %v6681 = vunpack.c.h.b16 %v6118
      %v6682 = vunpack.c.l.b16 %v6119
      %v6683 = vunpack.c.h.b16 %v6119
      %v6684 = vunpack.c.l.b16 %v6120
      %v6685 = vunpack.c.h.b16 %v6120
      %v6686 = vunpack.c.l.b16 %v6121
      %v6687 = vunpack.c.l.b16 %v6122
      %v6688 = vunpack.c.h.b16 %v6122
      %v6689 = vunpack.c.l.b16 %v6123
      %v6690 = vunpack.c.h.b16 %v6123
      %v6691 = vunpack.c.l.b16 %v6124
      %v6692 = vunpack.c.h.b16 %v6124
      %v6693 = vunpack.c.l.b16 %v6125
      %v6694 = vunpack.c.h.b16 %v6125
      %v6695 = vunpack.c.l.b16 %v6126
      %v6696 = vunpack.c.l.b16 %v6127
      %v6697 = vunpack.c.h.b16 %v6127
      %v6698 = vunpack.c.l.b16 %v6128
      %v6699 = vunpack.c.h.b16 %v6128
      %v6700 = vunpack.c.l.b16 %v6129
      %v6701 = vunpack.c.h.b16 %v6129
      %v6702 = vunpack.c.l.b16 %v6130
      %v6703 = vunpack.c.h.b16 %v6130
      %v6704 = vunpack.c.l.b16 %v6131
      %v6705 = vunpack.c.l.b16 %v6132
      %v6706 = vunpack.c.h.b16 %v6132
      %v6707 = vunpack.c.l.b16 %v6133
      %v6708 = vunpack.c.h.b16 %v6133
      %v6709 = vunpack.c.l.b16 %v6134
      %v6710 = vunpack.c.h.b16 %v6134
      %v6711 = vunpack.c.l.b16 %v6135
      %v6712 = vunpack.c.h.b16 %v6135
      %v6713 = vunpack.c.l.b16 %v6136
      %v6714 = vunpack.c.l.b16 %v6137
      %v6715 = vunpack.c.h.b16 %v6137
      %v6716 = vunpack.c.l.b16 %v6138
      %v6717 = vunpack.c.h.b16 %v6138
      %v6718 = vunpack.c.l.b16 %v6139
      %v6719 = vunpack.c.h.b16 %v6139
      %v6720 = vunpack.c.l.b16 %v6140
      %v6721 = vunpack.c.h.b16 %v6140
      %v6722 = vunpack.c.l.b16 %v6141
      %v6723 = vunpack.c.l.b16 %v6142
      %v6724 = vunpack.c.h.b16 %v6142
      %v6725 = vunpack.c.l.b16 %v6143
      %v6726 = vunpack.c.h.b16 %v6143
      %v6727 = vunpack.c.l.b16 %v6144
      %v6728 = vunpack.c.h.b16 %v6144
      %v6729 = vunpack.c.l.b16 %v6145
      %v6730 = vunpack.c.h.b16 %v6145
      %v6731 = vunpack.c.l.b16 %v6146
      %v6732 = vunpack.c.l.b16 %v6147
      %v6733 = vunpack.c.h.b16 %v6147
      %v6734 = vunpack.c.l.b16 %v6148
      %v6735 = vunpack.c.h.b16 %v6148
      %v6736 = vunpack.c.l.b16 %v6149
      %v6737 = vunpack.c.h.b16 %v6149
      %v6738 = vunpack.c.l.b16 %v6150
      %v6739 = vunpack.c.h.b16 %v6150
      %v6740 = vunpack.c.l.b16 %v6151
      %v6741 = vunpack.c.l.b16 %v6152
      %v6742 = vunpack.c.h.b16 %v6152
      %v6743 = vunpack.c.l.b16 %v6153
      %v6744 = vunpack.c.h.b16 %v6153
      %v6745 = vunpack.c.l.b16 %v6154
      %v6746 = vunpack.c.h.b16 %v6154
      %v6747 = vunpack.c.l.b16 %v6155
      %v6748 = vunpack.c.h.b16 %v6155
      %v6749 = vunpack.c.l.b16 %v6156
      %v6750 = vpack.c.b16 %v6471, %v6462
      %v6751 = vpack.c.b16 %v6472, %v6463
      %v6752 = vpack.c.b16 %v6473, %v6464
      %v6753 = vpack.c.b16 %v6474, %v6465
      %v6754 = vpack.c.b16 %v6475, %v6466
      %v6755 = vpack.c.b16 %v6476, %v6467
      %v6756 = vpack.c.b16 %v6477, %v6468
      %v6757 = vpack.c.b16 %v6478, %v6469
      %v6758 = vpack.c.b16 %v6479, %v6470
      %v6759 = vpack.c.b16 %v6489, %v6480
      %v6760 = vpack.c.b16 %v6490, %v6481
      %v6761 = vpack.c.b16 %v6491, %v6482
      %v6762 = vpack.c.b16 %v6492, %v6483
      %v6763 = vpack.c.b16 %v6493, %v6484
      %v6764 = vpack.c.b16 %v6494, %v6485
      %v6765 = vpack.c.b16 %v6495, %v6486
      %v6766 = vpack.c.b16 %v6496, %v6487
      %v6767 = vpack.c.b16 %v6497, %v6488
      %v6768 = vpack.c.b16 %v6507, %v6498
      %v6769 = vpack.c.b16 %v6508, %v6499
      %v6770 = vpack.c.b16 %v6509, %v6500
      %v6771 = vpack.c.b16 %v6510, %v6501
      %v6772 = vpack.c.b16 %v6511, %v6502
      %v6773 = vpack.c.b16 %v6512, %v6503
      %v6774 = vpack.c.b16 %v6513, %v6504
      %v6775 = vpack.c.b16 %v6514, %v6505
      %v6776 = vpack.c.b16 %v6515, %v6506
      %v6777 = vpack.c.b16 %v6525, %v6516
      %v6778 = vpack.c.b16 %v6526, %v6517
      %v6779 = vpack.c.b16 %v6527, %v6518
      %v6780 = vpack.c.b16 %v6528, %v6519
      %v6781 = vpack.c.b16 %v6529, %v6520
      %v6782 = vpack.c.b16 %v6530, %v6521
      %v6783 = vpack.c.b16 %v6531, %v6522
      %v6784 = vpack.c.b16 %v6532, %v6523
      %v6785 = vpack.c.b16 %v6533, %v6524
      %v6786 = vpack.c.b16 %v6543, %v6534
      %v6787 = vpack.c.b16 %v6544, %v6535
      %v6788 = vpack.c.b16 %v6545, %v6536
      %v6789 = vpack.c.b16 %v6546, %v6537
      %v6790 = vpack.c.b16 %v6547, %v6538
      %v6791 = vpack.c.b16 %v6548, %v6539
      %v6792 = vpack.c.b16 %v6549, %v6540
      %v6793 = vpack.c.b16 %v6550, %v6541
      %v6794 = vpack.c.b16 %v6551, %v6542
      %v6795 = vpack.c.b16 %v6561, %v6552
      %v6796 = vpack.c.b16 %v6562, %v6553
      %v6797 = vpack.c.b16 %v6563, %v6554
      %v6798 = vpack.c.b16 %v6564, %v6555
      %v6799 = vpack.c.b16 %v6565, %v6556
      %v6800 = vpack.c.b16 %v6566, %v6557
      %v6801 = vpack.c.b16 %v6567, %v6558
      %v6802 = vpack.c.b16 %v6568, %v6559
      %v6803 = vpack.c.b16 %v6569, %v6560
      %v6804 = vpack.c.b16 %v6579, %v6570
      %v6805 = vpack.c.b16 %v6580, %v6571
      %v6806 = vpack.c.b16 %v6581, %v6572
      %v6807 = vpack.c.b16 %v6582, %v6573
      %v6808 = vpack.c.b16 %v6583, %v6574
      %v6809 = vpack.c.b16 %v6584, %v6575
      %v6810 = vpack.c.b16 %v6585, %v6576
      %v6811 = vpack.c.b16 %v6586, %v6577
      %v6812 = vpack.c.b16 %v6587, %v6578
      %v6813 = vpack.c.b16 %v6597, %v6588
      %v6814 = vpack.c.b16 %v6598, %v6589
      %v6815 = vpack.c.b16 %v6599, %v6590
      %v6816 = vpack.c.b16 %v6600, %v6591
      %v6817 = vpack.c.b16 %v6601, %v6592
      %v6818 = vpack.c.b16 %v6602, %v6593
      %v6819 = vpack.c.b16 %v6603, %v6594
      %v6820 = vpack.c.b16 %v6604, %v6595
      %v6821 = vpack.c.b16 %v6605, %v6596
      %v6822 = vpack.c.b16 %v6615, %v6606
      %v6823 = vpack.c.b16 %v6616, %v6607
      %v6824 = vpack.c.b16 %v6617, %v6608
      %v6825 = vpack.c.b16 %v6618, %v6609
      %v6826 = vpack.c.b16 %v6619, %v6610
      %v6827 = vpack.c.b16 %v6620, %v6611
      %v6828 = vpack.c.b16 %v6621, %v6612
      %v6829 = vpack.c.b16 %v6622, %v6613
      %v6830 = vpack.c.b16 %v6623, %v6614
      %v6831 = vpack.c.b16 %v6633, %v6624
      %v6832 = vpack.c.b16 %v6634, %v6625
      %v6833 = vpack.c.b16 %v6635, %v6626
      %v6834 = vpack.c.b16 %v6636, %v6627
      %v6835 = vpack.c.b16 %v6637, %v6628
      %v6836 = vpack.c.b16 %v6638, %v6629
      %v6837 = vpack.c.b16 %v6639, %v6630
      %v6838 = vpack.c.b16 %v6640, %v6631
      %v6839 = vpack.c.b16 %v6641, %v6632
      %v6840 = vpack.c.b16 %v6651, %v6642
      %v6841 = vpack.c.b16 %v6652, %v6643
      %v6842 = vpack.c.b16 %v6653, %v6644
      %v6843 = vpack.c.b16 %v6654, %v6645
      %v6844 = vpack.c.b16 %v6655, %v6646
      %v6845 = vpack.c.b16 %v6656, %v6647
      %v6846 = vpack.c.b16 %v6657, %v6648
      %v6847 = vpack.c.b16 %v6658, %v6649
      %v6848 = vpack.c.b16 %v6659, %v6650
      %v6849 = vpack.c.b16 %v6669, %v6660
      %v6850 = vpack.c.b16 %v6670, %v6661
      %v6851 = vpack.c.b16 %v6671, %v6662
      %v6852 = vpack.c.b16 %v6672, %v6663
      %v6853 = vpack.c.b16 %v6673, %v6664
      %v6854 = vpack.c.b16 %v6674, %v6665
      %v6855 = vpack.c.b16 %v6675, %v6666
      %v6856 = vpack.c.b16 %v6676, %v6667
      %v6857 = vpack.c.b16 %v6677, %v6668
      %v6858 = vpack.c.b16 %v6687, %v6678
      %v6859 = vpack.c.b16 %v6688, %v6679
      %v6860 = vpack.c.b16 %v6689, %v6680
      %v6861 = vpack.c.b16 %v6690, %v6681
      %v6862 = vpack.c.b16 %v6691, %v6682
      %v6863 = vpack.c.b16 %v6692, %v6683
      %v6864 = vpack.c.b16 %v6693, %v6684
      %v6865 = vpack.c.b16 %v6694, %v6685
      %v6866 = vpack.c.b16 %v6695, %v6686
      %v6867 = vpack.c.b16 %v6705, %v6696
      %v6868 = vpack.c.b16 %v6706, %v6697
      %v6869 = vpack.c.b16 %v6707, %v6698
      %v6870 = vpack.c.b16 %v6708, %v6699
      %v6871 = vpack.c.b16 %v6709, %v6700
      %v6872 = vpack.c.b16 %v6710, %v6701
      %v6873 = vpack.c.b16 %v6711, %v6702
      %v6874 = vpack.c.b16 %v6712, %v6703
      %v6875 = vpack.c.b16 %v6713, %v6704
      %v6876 = vpack.c.b16 %v6723, %v6714
      %v6877 = vpack.c.b16 %v6724, %v6715
      %v6878 = vpack.c.b16 %v6725, %v6716
      %v6879 = vpack.c.b16 %v6726, %v6717
      %v6880 = vpack.c.b16 %v6727, %v6718
      %v6881 = vpack.c.b16 %v6728, %v6719
      %v6882 = vpack.c.b16 %v6729, %v6720
      %v6883 = vpack.c.b16 %v6730, %v6721
      %v6884 = vpack.c.b16 %v6731, %v6722
      %v6885 = vpack.c.b16 %v6741, %v6732
      %v6886 = vpack.c.b16 %v6742, %v6733
      %v6887 = vpack.c.b16 %v6743, %v6734
      %v6888 = vpack.c.b16 %v6744, %v6735
      %v6889 = vpack.c.b16 %v6745, %v6736
      %v6890 = vpack.c.b16 %v6746, %v6737
      %v6891 = vpack.c.b16 %v6747, %v6738
      %v6892 = vpack.c.b16 %v6748, %v6739
      %v6893 = vpack.c.b16 %v6749, %v6740
      %v7182 = vunpack.c.l.b16 %v6158
      %v7183 = vunpack.c.h.b16 %v6158
      %v7184 = vunpack.c.l.b16 %v6159
      %v7185 = vunpack.c.h.b16 %v6159
      %v7186 = vunpack.c.l.b16 %v6160
      %v7187 = vunpack.c.h.b16 %v6160
      %v7188 = vunpack.c.l.b16 %v6161
      %v7189 = vunpack.c.h.b16 %v6161
      %v7190 = vunpack.c.l.b16 %v6162
      %v7191 = vunpack.c.h.b16 %v6162
      %v7192 = vunpack.c.l.b16 %v6163
      %v7193 = vunpack.c.h.b16 %v6163
      %v7194 = vunpack.c.l.b16 %v6164
      %v7195 = vunpack.c.h.b16 %v6164
      %v7196 = vunpack.c.l.b16 %v6165
      %v7197 = vunpack.c.h.b16 %v6165
      %v7198 = vunpack.c.l.b16 %v6166
      %v7199 = vunpack.c.h.b16 %v6166
      %v7200 = vunpack.c.l.b16 %v6167
      %v7201 = vunpack.c.h.b16 %v6167
      %v7202 = vunpack.c.l.b16 %v6168
      %v7203 = vunpack.c.h.b16 %v6168
      %v7204 = vunpack.c.l.b16 %v6169
      %v7205 = vunpack.c.h.b16 %v6169
      %v7206 = vunpack.c.l.b16 %v6170
      %v7207 = vunpack.c.h.b16 %v6170
      %v7208 = vunpack.c.l.b16 %v6171
      %v7209 = vunpack.c.h.b16 %v6171
      %v7210 = vunpack.c.l.b16 %v6172
      %v7211 = vunpack.c.h.b16 %v6172
      %v7212 = vunpack.c.l.b16 %v6173
      %v7213 = vunpack.c.h.b16 %v6173
      %v7214 = vunpack.c.l.b16 %v6174
      %v7215 = vunpack.c.h.b16 %v6174
      %v7216 = vunpack.c.l.b16 %v6175
      %v7217 = vunpack.c.h.b16 %v6175
      %v7218 = vunpack.c.l.b16 %v6176
      %v7219 = vunpack.c.h.b16 %v6176
      %v7220 = vunpack.c.l.b16 %v6177
      %v7221 = vunpack.c.h.b16 %v6177
      %v7222 = vunpack.c.l.b16 %v6178
      %v7223 = vunpack.c.h.b16 %v6178
      %v7224 = vunpack.c.l.b16 %v6179
      %v7225 = vunpack.c.h.b16 %v6179
      %v7226 = vunpack.c.l.b16 %v6180
      %v7227 = vunpack.c.h.b16 %v6180
      %v7228 = vunpack.c.l.b16 %v6181
      %v7229 = vunpack.c.h.b16 %v6181
      %v7230 = vunpack.c.l.b16 %v6182
      %v7231 = vunpack.c.h.b16 %v6182
      %v7232 = vunpack.c.l.b16 %v6183
      %v7233 = vunpack.c.h.b16 %v6183
      %v7234 = vunpack.c.l.b16 %v6184
      %v7235 = vunpack.c.h.b16 %v6184
      %v7236 = vunpack.c.l.b16 %v6185
      %v7237 = vunpack.c.h.b16 %v6185
      %v7238 = vunpack.c.l.b16 %v6186
      %v7239 = vunpack.c.h.b16 %v6186
      %v7240 = vunpack.c.l.b16 %v6187
      %v7241 = vunpack.c.h.b16 %v6187
      %v7242 = vunpack.c.l.b16 %v6188
      %v7243 = vunpack.c.h.b16 %v6188
      %v7244 = vunpack.c.l.b16 %v6189
      %v7245 = vunpack.c.h.b16 %v6189
      %v7246 = vunpack.c.l.b16 %v6190
      %v7247 = vunpack.c.h.b16 %v6190
      %v7248 = vunpack.c.l.b16 %v6191
      %v7249 = vunpack.c.h.b16 %v6191
      %v7250 = vunpack.c.l.b16 %v6192
      %v7251 = vunpack.c.h.b16 %v6192
      %v7252 = vunpack.c.l.b16 %v6193
      %v7253 = vunpack.c.h.b16 %v6193
      %v7254 = vunpack.c.l.b16 %v6194
      %v7255 = vunpack.c.h.b16 %v6194
      %v7256 = vunpack.c.l.b16 %v6195
      %v7257 = vunpack.c.h.b16 %v6195
      %v7258 = vunpack.c.l.b16 %v6196
      %v7259 = vunpack.c.h.b16 %v6196
      %v7260 = vunpack.c.l.b16 %v6197
      %v7261 = vunpack.c.h.b16 %v6197
      %v7262 = vunpack.c.l.b16 %v6198
      %v7263 = vunpack.c.h.b16 %v6198
      %v7264 = vunpack.c.l.b16 %v6199
      %v7265 = vunpack.c.h.b16 %v6199
      %v7266 = vunpack.c.l.b16 %v6200
      %v7267 = vunpack.c.h.b16 %v6200
      %v7268 = vunpack.c.l.b16 %v6201
      %v7269 = vunpack.c.h.b16 %v6201
      %v7270 = vunpack.c.l.b16 %v6202
      %v7271 = vunpack.c.h.b16 %v6202
      %v7272 = vunpack.c.l.b16 %v6203
      %v7273 = vunpack.c.h.b16 %v6203
      %v7274 = vunpack.c.l.b16 %v6204
      %v7275 = vunpack.c.h.b16 %v6204
      %v7276 = vunpack.c.l.b16 %v6205
      %v7277 = vunpack.c.h.b16 %v6205
      %v7278 = vunpack.c.l.b16 %v6206
      %v7279 = vunpack.c.h.b16 %v6206
      %v7280 = vunpack.c.l.b16 %v6207
      %v7281 = vunpack.c.h.b16 %v6207
      %v7282 = vunpack.c.l.b16 %v6208
      %v7283 = vunpack.c.h.b16 %v6208
      %v7284 = vunpack.c.l.b16 %v6209
      %v7285 = vunpack.c.h.b16 %v6209
      %v7286 = vunpack.c.l.b16 %v6210
      %v7287 = vunpack.c.h.b16 %v6210
      %v7288 = vunpack.c.l.b16 %v6211
      %v7289 = vunpack.c.h.b16 %v6211
      %v7290 = vunpack.c.l.b16 %v6212
      %v7291 = vunpack.c.h.b16 %v6212
      %v7292 = vunpack.c.l.b16 %v6213
      %v7293 = vunpack.c.h.b16 %v6213
      %v7294 = vunpack.c.l.b16 %v6214
      %v7295 = vunpack.c.h.b16 %v6214
      %v7296 = vunpack.c.l.b16 %v6215
      %v7297 = vunpack.c.h.b16 %v6215
      %v7298 = vunpack.c.l.b16 %v6216
      %v7299 = vunpack.c.h.b16 %v6216
      %v7300 = vunpack.c.l.b16 %v6217
      %v7301 = vunpack.c.h.b16 %v6217
      %v7302 = vunpack.c.l.b16 %v6218
      %v7303 = vunpack.c.h.b16 %v6218
      %v7304 = vunpack.c.l.b16 %v6219
      %v7305 = vunpack.c.h.b16 %v6219
      %v7306 = vunpack.c.l.b16 %v6220
      %v7307 = vunpack.c.h.b16 %v6220
      %v7308 = vunpack.c.l.b16 %v6221
      %v7309 = vunpack.c.h.b16 %v6221
      %v7310 = vunpack.c.l.b16 %v6222
      %v7311 = vunpack.c.h.b16 %v6222
      %v7312 = vunpack.c.l.b16 %v6223
      %v7313 = vunpack.c.h.b16 %v6223
      %v7314 = vunpack.c.l.b16 %v6224
      %v7315 = vunpack.c.h.b16 %v6224
      %v7316 = vunpack.c.l.b16 %v6225
      %v7317 = vunpack.c.h.b16 %v6225
      %v7318 = vunpack.c.l.b16 %v6226
      %v7319 = vunpack.c.h.b16 %v6226
      %v7320 = vunpack.c.l.b16 %v6227
      %v7321 = vunpack.c.h.b16 %v6227
      %v7322 = vunpack.c.l.b16 %v6228
      %v7323 = vunpack.c.h.b16 %v6228
      %v7324 = vunpack.c.l.b16 %v6229
      %v7325 = vunpack.c.h.b16 %v6229
      %v7326 = vunpack.c.l.b16 %v6230
      %v7327 = vunpack.c.h.b16 %v6230
      %v7328 = vunpack.c.l.b16 %v6231
      %v7329 = vunpack.c.h.b16 %v6231
      %v7330 = vunpack.c.l.b16 %v6232
      %v7331 = vunpack.c.h.b16 %v6232
      %v7332 = vunpack.c.l.b16 %v6233
      %v7333 = vunpack.c.h.b16 %v6233
      %v7334 = vunpack.c.l.b16 %v6234
      %v7335 = vunpack.c.h.b16 %v6234
      %v7336 = vunpack.c.l.b16 %v6235
      %v7337 = vunpack.c.h.b16 %v6235
      %v7338 = vunpack.c.l.b16 %v6236
      %v7339 = vunpack.c.h.b16 %v6236
      %v7340 = vunpack.c.l.b16 %v6237
      %v7341 = vunpack.c.h.b16 %v6237
      %v7342 = vunpack.c.l.b16 %v6238
      %v7343 = vunpack.c.h.b16 %v6238
      %v7344 = vunpack.c.l.b16 %v6239
      %v7345 = vunpack.c.h.b16 %v6239
      %v7346 = vunpack.c.l.b16 %v6240
      %v7347 = vunpack.c.h.b16 %v6240
      %v7348 = vunpack.c.l.b16 %v6241
      %v7349 = vunpack.c.h.b16 %v6241
      %v7350 = vunpack.c.l.b16 %v6242
      %v7351 = vunpack.c.h.b16 %v6242
      %v7352 = vunpack.c.l.b16 %v6243
      %v7353 = vunpack.c.h.b16 %v6243
      %v7354 = vunpack.c.l.b16 %v6244
      %v7355 = vunpack.c.h.b16 %v6244
      %v7356 = vunpack.c.l.b16 %v6245
      %v7357 = vunpack.c.h.b16 %v6245
      %v7358 = vunpack.c.l.b16 %v6246
      %v7359 = vunpack.c.h.b16 %v6246
      %v7360 = vunpack.c.l.b16 %v6247
      %v7361 = vunpack.c.h.b16 %v6247
      %v7362 = vunpack.c.l.b16 %v6248
      %v7363 = vunpack.c.h.b16 %v6248
      %v7364 = vunpack.c.l.b16 %v6249
      %v7365 = vunpack.c.h.b16 %v6249
      %v7366 = vunpack.c.l.b16 %v6250
      %v7367 = vunpack.c.h.b16 %v6250
      %v7368 = vunpack.c.l.b16 %v6251
      %v7369 = vunpack.c.h.b16 %v6251
      %v7370 = vunpack.c.l.b16 %v6252
      %v7371 = vunpack.c.h.b16 %v6252
      %v7372 = vunpack.c.l.b16 %v6253
      %v7373 = vunpack.c.h.b16 %v6253
      %v7374 = vunpack.c.l.b16 %v6254
      %v7375 = vunpack.c.h.b16 %v6254
      %v7376 = vunpack.c.l.b16 %v6255
      %v7377 = vunpack.c.h.b16 %v6255
      %v7378 = vunpack.c.l.b16 %v6256
      %v7379 = vunpack.c.h.b16 %v6256
      %v7380 = vunpack.c.l.b16 %v6257
      %v7381 = vunpack.c.h.b16 %v6257
      %v7382 = vunpack.c.l.b16 %v6258
      %v7383 = vunpack.c.h.b16 %v6258
      %v7384 = vunpack.c.l.b16 %v6259
      %v7385 = vunpack.c.h.b16 %v6259
      %v7386 = vunpack.c.l.b16 %v6260
      %v7387 = vunpack.c.h.b16 %v6260
      %v7388 = vunpack.c.l.b16 %v6261
      %v7389 = vunpack.c.h.b16 %v6261
      %v7390 = vunpack.c.l.b16 %v6262
      %v7391 = vunpack.c.h.b16 %v6262
      %v7392 = vunpack.c.l.b16 %v6263
      %v7393 = vunpack.c.h.b16 %v6263
      %v7394 = vunpack.c.l.b16 %v6264
      %v7395 = vunpack.c.h.b16 %v6264
      %v7396 = vunpack.c.l.b16 %v6265
      %v7397 = vunpack.c.h.b16 %v6265
      %v7398 = vunpack.c.l.b16 %v6266
      %v7399 = vunpack.c.h.b16 %v6266
      %v7400 = vunpack.c.l.b16 %v6267
      %v7401 = vunpack.c.h.b16 %v6267
      %v7402 = vunpack.c.l.b16 %v6268
      %v7403 = vunpack.c.h.b16 %v6268
      %v7404 = vunpack.c.l.b16 %v6269
      %v7405 = vunpack.c.h.b16 %v6269
      %v7406 = vunpack.c.l.b16 %v6270
      %v7407 = vunpack.c.h.b16 %v6270
      %v7408 = vunpack.c.l.b16 %v6271
      %v7409 = vunpack.c.h.b16 %v6271
      %v7410 = vunpack.c.l.b16 %v6272
      %v7411 = vunpack.c.h.b16 %v6272
      %v7412 = vunpack.c.l.b16 %v6273
      %v7413 = vunpack.c.h.b16 %v6273
      %v7414 = vunpack.c.l.b16 %v6274
      %v7415 = vunpack.c.h.b16 %v6274
      %v7416 = vunpack.c.l.b16 %v6275
      %v7417 = vunpack.c.h.b16 %v6275
      %v7418 = vunpack.c.l.b16 %v6276
      %v7419 = vunpack.c.h.b16 %v6276
      %v7420 = vunpack.c.l.b16 %v6277
      %v7421 = vunpack.c.h.b16 %v6277
      %v7422 = vunpack.c.l.b16 %v6278
      %v7423 = vunpack.c.h.b16 %v6278
      %v7424 = vunpack.c.l.b16 %v6279
      %v7425 = vunpack.c.h.b16 %v6279
      %v7426 = vunpack.c.l.b16 %v6280
      %v7427 = vunpack.c.h.b16 %v6280
      %v7428 = vunpack.c.l.b16 %v6281
      %v7429 = vunpack.c.h.b16 %v6281
      %v7430 = vunpack.c.l.b16 %v6282
      %v7431 = vunpack.c.h.b16 %v6282
      %v7432 = vunpack.c.l.b16 %v6283
      %v7433 = vunpack.c.h.b16 %v6283
      %v7434 = vunpack.c.l.b16 %v6284
      %v7435 = vunpack.c.h.b16 %v6284
      %v7436 = vunpack.c.l.b16 %v6285
      %v7437 = vunpack.c.h.b16 %v6285
      %v7438 = vunpack.c.l.b16 %v6286
      %v7439 = vunpack.c.h.b16 %v6286
      %v7440 = vunpack.c.l.b16 %v6287
      %v7441 = vunpack.c.h.b16 %v6287
      %v7442 = vunpack.c.l.b16 %v6288
      %v7443 = vunpack.c.h.b16 %v6288
      %v7444 = vunpack.c.l.b16 %v6289
      %v7445 = vunpack.c.h.b16 %v6289
      %v7446 = vunpack.c.l.b16 %v6290
      %v7447 = vunpack.c.h.b16 %v6290
      %v7448 = vunpack.c.l.b16 %v6291
      %v7449 = vunpack.c.h.b16 %v6291
      %v7450 = vunpack.c.l.b16 %v6292
      %v7451 = vunpack.c.h.b16 %v6292
      %v7452 = vunpack.c.l.b16 %v6293
      %v7453 = vunpack.c.h.b16 %v6293
      %v7454 = vunpack.c.l.b16 %v6294
      %v7455 = vunpack.c.h.b16 %v6294
      %v7456 = vunpack.c.l.b16 %v6295
      %v7457 = vunpack.c.h.b16 %v6295
      %v7458 = vunpack.c.l.b16 %v6296
      %v7459 = vunpack.c.h.b16 %v6296
      %v7460 = vunpack.c.l.b16 %v6297
      %v7461 = vunpack.c.h.b16 %v6297
      %v7462 = vunpack.c.l.b16 %v6298
      %v7463 = vunpack.c.h.b16 %v6298
      %v7464 = vunpack.c.l.b16 %v6299
      %v7465 = vunpack.c.h.b16 %v6299
      %v7466 = vunpack.c.l.b16 %v6300
      %v7467 = vunpack.c.h.b16 %v6300
      %v7468 = vunpack.c.l.b16 %v6301
      %v7469 = vunpack.c.h.b16 %v6301
      %v7470 = vpack.c.b16 %v7184, %v7182
      %v7471 = vpack.c.b16 %v7185, %v7183
      %v7472 = vpack.c.b16 %v7188, %v7186
      %v7473 = vpack.c.b16 %v7189, %v7187
      %v7474 = vpack.c.b16 %v7192, %v7190
      %v7475 = vpack.c.b16 %v7193, %v7191
      %v7476 = vpack.c.b16 %v7196, %v7194
      %v7477 = vpack.c.b16 %v7197, %v7195
      %v7478 = vpack.c.b16 %v7200, %v7198
      %v7479 = vpack.c.b16 %v7201, %v7199
      %v7480 = vpack.c.b16 %v7204, %v7202
      %v7481 = vpack.c.b16 %v7205, %v7203
      %v7482 = vpack.c.b16 %v7208, %v7206
      %v7483 = vpack.c.b16 %v7209, %v7207
      %v7484 = vpack.c.b16 %v7212, %v7210
      %v7485 = vpack.c.b16 %v7213, %v7211
      %v7486 = vpack.c.b16 %v7216, %v7214
      %v7487 = vpack.c.b16 %v7217, %v7215
      %v7488 = vpack.c.b16 %v7220, %v7218
      %v7489 = vpack.c.b16 %v7221, %v7219
      %v7490 = vpack.c.b16 %v7224, %v7222
      %v7491 = vpack.c.b16 %v7225, %v7223
      %v7492 = vpack.c.b16 %v7228, %v7226
      %v7493 = vpack.c.b16 %v7229, %v7227
      %v7494 = vpack.c.b16 %v7232, %v7230
      %v7495 = vpack.c.b16 %v7233, %v7231
      %v7496 = vpack.c.b16 %v7236, %v7234
      %v7497 = vpack.c.b16 %v7237, %v7235
      %v7498 = vpack.c.b16 %v7240, %v7238
      %v7499 = vpack.c.b16 %v7241, %v7239
      %v7500 = vpack.c.b16 %v7244, %v7242
      %v7501 = vpack.c.b16 %v7245, %v7243
      %v7502 = vpack.c.b16 %v7248, %v7246
      %v7503 = vpack.c.b16 %v7249, %v7247
      %v7504 = vpack.c.b16 %v7252, %v7250
      %v7505 = vpack.c.b16 %v7253, %v7251
      %v7506 = vpack.c.b16 %v7256, %v7254
      %v7507 = vpack.c.b16 %v7257, %v7255
      %v7508 = vpack.c.b16 %v7260, %v7258
      %v7509 = vpack.c.b16 %v7261, %v7259
      %v7510 = vpack.c.b16 %v7264, %v7262
      %v7511 = vpack.c.b16 %v7265, %v7263
      %v7512 = vpack.c.b16 %v7268, %v7266
      %v7513 = vpack.c.b16 %v7269, %v7267
      %v7514 = vpack.c.b16 %v7272, %v7270
      %v7515 = vpack.c.b16 %v7273, %v7271
      %v7516 = vpack.c.b16 %v7276, %v7274
      %v7517 = vpack.c.b16 %v7277, %v7275
      %v7518 = vpack.c.b16 %v7280, %v7278
      %v7519 = vpack.c.b16 %v7281, %v7279
      %v7520 = vpack.c.b16 %v7284, %v7282
      %v7521 = vpack.c.b16 %v7285, %v7283
      %v7522 = vpack.c.b16 %v7288, %v7286
      %v7523 = vpack.c.b16 %v7289, %v7287
      %v7524 = vpack.c.b16 %v7292, %v7290
      %v7525 = vpack.c.b16 %v7293, %v7291
      %v7526 = vpack.c.b16 %v7296, %v7294
      %v7527 = vpack.c.b16 %v7297, %v7295
      %v7528 = vpack.c.b16 %v7300, %v7298
      %v7529 = vpack.c.b16 %v7301, %v7299
      %v7530 = vpack.c.b16 %v7304, %v7302
      %v7531 = vpack.c.b16 %v7305, %v7303
      %v7532 = vpack.c.b16 %v7308, %v7306
      %v7533 = vpack.c.b16 %v7309, %v7307
      %v7534 = vpack.c.b16 %v7312, %v7310
      %v7535 = vpack.c.b16 %v7313, %v7311
      %v7536 = vpack.c.b16 %v7316, %v7314
      %v7537 = vpack.c.b16 %v7317, %v7315
      %v7538 = vpack.c.b16 %v7320, %v7318
      %v7539 = vpack.c.b16 %v7321, %v7319
      %v7540 = vpack.c.b16 %v7324, %v7322
      %v7541 = vpack.c.b16 %v7325, %v7323
      %v7542 = vpack.c.b16 %v7328, %v7326
      %v7543 = vpack.c.b16 %v7329, %v7327
      %v7544 = vpack.c.b16 %v7332, %v7330
      %v7545 = vpack.c.b16 %v7333, %v7331
      %v7546 = vpack.c.b16 %v7336, %v7334
      %v7547 = vpack.c.b16 %v7337, %v7335
      %v7548 = vpack.c.b16 %v7340, %v7338
      %v7549 = vpack.c.b16 %v7341, %v7339
      %v7550 = vpack.c.b16 %v7344, %v7342
      %v7551 = vpack.c.b16 %v7345, %v7343
      %v7552 = vpack.c.b16 %v7348, %v7346
      %v7553 = vpack.c.b16 %v7349, %v7347
      %v7554 = vpack.c.b16 %v7352, %v7350
      %v7555 = vpack.c.b16 %v7353, %v7351
      %v7556 = vpack.c.b16 %v7356, %v7354
      %v7557 = vpack.c.b16 %v7357, %v7355
      %v7558 = vpack.c.b16 %v7360, %v7358
      %v7559 = vpack.c.b16 %v7361, %v7359
      %v7560 = vpack.c.b16 %v7364, %v7362
      %v7561 = vpack.c.b16 %v7365, %v7363
      %v7562 = vpack.c.b16 %v7368, %v7366
      %v7563 = vpack.c.b16 %v7369, %v7367
      %v7564 = vpack.c.b16 %v7372, %v7370
      %v7565 = vpack.c.b16 %v7373, %v7371
      %v7566 = vpack.c.b16 %v7376, %v7374
      %v7567 = vpack.c.b16 %v7377, %v7375
      %v7568 = vpack.c.b16 %v7380, %v7378
      %v7569 = vpack.c.b16 %v7381, %v7379
      %v7570 = vpack.c.b16 %v7384, %v7382
      %v7571 = vpack.c.b16 %v7385, %v7383
      %v7572 = vpack.c.b16 %v7388, %v7386
      %v7573 = vpack.c.b16 %v7389, %v7387
      %v7574 = vpack.c.b16 %v7392, %v7390
      %v7575 = vpack.c.b16 %v7393, %v7391
      %v7576 = vpack.c.b16 %v7396, %v7394
      %v7577 = vpack.c.b16 %v7397, %v7395
      %v7578 = vpack.c.b16 %v7400, %v7398
      %v7579 = vpack.c.b16 %v7401, %v7399
      %v7580 = vpack.c.b16 %v7404, %v7402
      %v7581 = vpack.c.b16 %v7405, %v7403
      %v7582 = vpack.c.b16 %v7408, %v7406
      %v7583 = vpack.c.b16 %v7409, %v7407
      %v7584 = vpack.c.b16 %v7412, %v7410
      %v7585 = vpack.c.b16 %v7413, %v7411
      %v7586 = vpack.c.b16 %v7416, %v7414
      %v7587 = vpack.c.b16 %v7417, %v7415
      %v7588 = vpack.c.b16 %v7420, %v7418
      %v7589 = vpack.c.b16 %v7421, %v7419
      %v7590 = vpack.c.b16 %v7424, %v7422
      %v7591 = vpack.c.b16 %v7425, %v7423
      %v7592 = vpack.c.b16 %v7428, %v7426
      %v7593 = vpack.c.b16 %v7429, %v7427
      %v7594 = vpack.c.b16 %v7432, %v7430
      %v7595 = vpack.c.b16 %v7433, %v7431
      %v7596 = vpack.c.b16 %v7436, %v7434
      %v7597 = vpack.c.b16 %v7437, %v7435
      %v7598 = vpack.c.b16 %v7440, %v7438
      %v7599 = vpack.c.b16 %v7441, %v7439
      %v7600 = vpack.c.b16 %v7444, %v7442
      %v7601 = vpack.c.b16 %v7445, %v7443
      %v7602 = vpack.c.b16 %v7448, %v7446
      %v7603 = vpack.c.b16 %v7449, %v7447
      %v7604 = vpack.c.b16 %v7452, %v7450
      %v7605 = vpack.c.b16 %v7453, %v7451
      %v7606 = vpack.c.b16 %v7456, %v7454
      %v7607 = vpack.c.b16 %v7457, %v7455
      %v7608 = vpack.c.b16 %v7460, %v7458
      %v7609 = vpack.c.b16 %v7461, %v7459
      %v7610 = vpack.c.b16 %v7464, %v7462
      %v7611 = vpack.c.b16 %v7465, %v7463
      %v7612 = vpack.c.b16 %v7468, %v7466
      %v7613 = vpack.c.b16 %v7469, %v7467
      %7758 = vmatprep.subr.bf16.mxu0 %v7485
      %7759 = vmatpush1.bf16.msra.mxu0 %v7484
      %7760 = vmatprep.subr.bf16.mxu0 %v7483
      %7761 = vmatpush1.bf16.msra.mxu0 %v7482
      %7762 = vmatprep.subr.bf16.mxu0 %v7481
      %7763 = vmatpush1.bf16.msra.mxu0 %v7480
      %7764 = vmatprep.subr.bf16.mxu0 %v7479
      %7765 = vmatpush1.bf16.msra.mxu0 %v7478
      %7766 = vmatprep.subr.bf16.mxu0 %v7477
      %7767 = vmatpush1.bf16.msra.mxu0 %v7476
      %7768 = vmatprep.subr.bf16.mxu0 %v7475
      %7769 = vmatpush1.bf16.msra.mxu0 %v7474
      %7770 = vmatprep.subr.bf16.mxu0 %v7473
      %7771 = vmatpush1.bf16.msra.mxu0 %v7472
      %7772 = vmatprep.subr.bf16.mxu0 %v7471
      %7773 = vmatpush1.bf16.msra.mxu0 %v7470
      %7774 = vmatprep.subr.bf16.mxu0 %v7501
      %7775 = vmatpush2.bf16.msra.mxu0 %v7500
      %7776 = vmatprep.subr.bf16.mxu0 %v7499
      %7777 = vmatpush2.bf16.msra.mxu0 %v7498
      %7778 = vmatprep.subr.bf16.mxu0 %v7497
      %7779 = vmatpush2.bf16.msra.mxu0 %v7496
      %7780 = vmatprep.subr.bf16.mxu0 %v7495
      %7781 = vmatpush2.bf16.msra.mxu0 %v7494
      %7782 = vmatprep.subr.bf16.mxu0 %v7493
      %7783 = vmatpush2.bf16.msra.mxu0 %v7492
      %7784 = vmatprep.subr.bf16.mxu0 %v7491
      %7785 = vmatpush2.bf16.msra.mxu0 %v7490
      %7786 = vmatprep.subr.bf16.mxu0 %v7489
      %7787 = vmatpush2.bf16.msra.mxu0 %v7488
      %7788 = vmatprep.subr.bf16.mxu0 %v7487
      %7789 = vmatpush2.bf16.msra.mxu0 %v7486
      %7790 = vmatprep.mubr.bf16.mxu0 %v6751
      %7791 = vmatmul.mubr.bf16.gmra.mxu0 %v6750
      %v7792 = vpop.f32.mrf.mxu0
      %v7793 = vadd.f32 0.0, %v7792
      %v7794 = vpop.f32.mrf.mxu0
      %v7795 = vadd.f32 0.0, %v7794
      %v7796 = vpop.f32.mrf.mxu0
      %v7797 = vadd.f32 0.0, %v7796
      %v7798 = vpop.f32.mrf.mxu0
      %v7799 = vadd.f32 0.0, %v7798
      %7800 = vmatprep.mubr.bf16.mxu0 %v6760
      %7801 = vmatmul.mubr.bf16.gmra.mxu0 %v6759
      %v7802 = vpop.f32.mrf.mxu0
      %v7803 = vadd.f32 0.0, %v7802
      %v7804 = vpop.f32.mrf.mxu0
      %v7805 = vadd.f32 0.0, %v7804
      %v7806 = vpop.f32.mrf.mxu0
      %v7807 = vadd.f32 0.0, %v7806
      %v7808 = vpop.f32.mrf.mxu0
      %v7809 = vadd.f32 0.0, %v7808
      %7810 = vmatprep.mubr.bf16.mxu0 %v6769
      %7811 = vmatmul.mubr.bf16.gmra.mxu0 %v6768
      %v7812 = vpop.f32.mrf.mxu0
      %v7813 = vadd.f32 0.0, %v7812
      %v7814 = vpop.f32.mrf.mxu0
      %v7815 = vadd.f32 0.0, %v7814
      %v7816 = vpop.f32.mrf.mxu0
      %v7817 = vadd.f32 0.0, %v7816
      %v7818 = vpop.f32.mrf.mxu0
      %v7819 = vadd.f32 0.0, %v7818
      %7820 = vmatprep.mubr.bf16.mxu0 %v6778
      %7821 = vmatmul.mubr.bf16.gmra.mxu0 %v6777
      %v7822 = vpop.f32.mrf.mxu0
      %v7823 = vadd.f32 0.0, %v7822
      %v7824 = vpop.f32.mrf.mxu0
      %v7825 = vadd.f32 0.0, %v7824
      %v7826 = vpop.f32.mrf.mxu0
      %v7827 = vadd.f32 0.0, %v7826
      %v7828 = vpop.f32.mrf.mxu0
      %v7829 = vadd.f32 0.0, %v7828
      %7830 = vmatprep.mubr.bf16.mxu0 %v6787
      %7831 = vmatmul.mubr.bf16.gmra.mxu0 %v6786
      %v7832 = vpop.f32.mrf.mxu0
      %v7833 = vadd.f32 0.0, %v7832
      %v7834 = vpop.f32.mrf.mxu0
      %v7835 = vadd.f32 0.0, %v7834
      %v7836 = vpop.f32.mrf.mxu0
      %v7837 = vadd.f32 0.0, %v7836
      %v7838 = vpop.f32.mrf.mxu0
      %v7839 = vadd.f32 0.0, %v7838
      %7840 = vmatprep.mubr.bf16.mxu0 %v6796
      %7841 = vmatmul.mubr.bf16.gmra.mxu0 %v6795
      %v7842 = vpop.f32.mrf.mxu0
      %v7843 = vadd.f32 0.0, %v7842
      %v7844 = vpop.f32.mrf.mxu0
      %v7845 = vadd.f32 0.0, %v7844
      %v7846 = vpop.f32.mrf.mxu0
      %v7847 = vadd.f32 0.0, %v7846
      %v7848 = vpop.f32.mrf.mxu0
      %v7849 = vadd.f32 0.0, %v7848
      %7850 = vmatprep.mubr.bf16.mxu0 %v6805
      %7851 = vmatmul.mubr.bf16.gmra.mxu0 %v6804
      %v7852 = vpop.f32.mrf.mxu0
      %v7853 = vadd.f32 0.0, %v7852
      %v7854 = vpop.f32.mrf.mxu0
      %v7855 = vadd.f32 0.0, %v7854
      %v7856 = vpop.f32.mrf.mxu0
      %v7857 = vadd.f32 0.0, %v7856
      %v7858 = vpop.f32.mrf.mxu0
      %v7859 = vadd.f32 0.0, %v7858
      %7860 = vmatprep.mubr.bf16.mxu0 %v6814
      %7861 = vmatmul.mubr.bf16.gmra.mxu0 %v6813
      %v7862 = vpop.f32.mrf.mxu0
      %v7863 = vadd.f32 0.0, %v7862
      %v7864 = vpop.f32.mrf.mxu0
      %v7865 = vadd.f32 0.0, %v7864
      %v7866 = vpop.f32.mrf.mxu0
      %v7867 = vadd.f32 0.0, %v7866
      %v7868 = vpop.f32.mrf.mxu0
      %v7869 = vadd.f32 0.0, %v7868
      %7870 = vmatprep.mubr.bf16.mxu0 %v6823
      %7871 = vmatmul.mubr.bf16.gmra.mxu0 %v6822
      %v7872 = vpop.f32.mrf.mxu0
      %v7873 = vadd.f32 0.0, %v7872
      %v7874 = vpop.f32.mrf.mxu0
      %v7875 = vadd.f32 0.0, %v7874
      %v7876 = vpop.f32.mrf.mxu0
      %v7877 = vadd.f32 0.0, %v7876
      %v7878 = vpop.f32.mrf.mxu0
      %v7879 = vadd.f32 0.0, %v7878
      %7880 = vmatprep.mubr.bf16.mxu0 %v6832
      %7881 = vmatmul.mubr.bf16.gmra.mxu0 %v6831
      %v7882 = vpop.f32.mrf.mxu0
      %v7883 = vadd.f32 0.0, %v7882
      %v7884 = vpop.f32.mrf.mxu0
      %v7885 = vadd.f32 0.0, %v7884
      %v7886 = vpop.f32.mrf.mxu0
      %v7887 = vadd.f32 0.0, %v7886
      %v7888 = vpop.f32.mrf.mxu0
      %v7889 = vadd.f32 0.0, %v7888
      %7890 = vmatprep.mubr.bf16.mxu0 %v6841
      %7891 = vmatmul.mubr.bf16.gmra.mxu0 %v6840
      %v7892 = vpop.f32.mrf.mxu0
      %v7893 = vadd.f32 0.0, %v7892
      %v7894 = vpop.f32.mrf.mxu0
      %v7895 = vadd.f32 0.0, %v7894
      %v7896 = vpop.f32.mrf.mxu0
      %v7897 = vadd.f32 0.0, %v7896
      %v7898 = vpop.f32.mrf.mxu0
      %v7899 = vadd.f32 0.0, %v7898
      %7900 = vmatprep.mubr.bf16.mxu0 %v6850
      %7901 = vmatmul.mubr.bf16.gmra.mxu0 %v6849
      %v7902 = vpop.f32.mrf.mxu0
      %v7903 = vadd.f32 0.0, %v7902
      %v7904 = vpop.f32.mrf.mxu0
      %v7905 = vadd.f32 0.0, %v7904
      %v7906 = vpop.f32.mrf.mxu0
      %v7907 = vadd.f32 0.0, %v7906
      %v7908 = vpop.f32.mrf.mxu0
      %v7909 = vadd.f32 0.0, %v7908
      %7910 = vmatprep.mubr.bf16.mxu0 %v6859
      %7911 = vmatmul.mubr.bf16.gmra.mxu0 %v6858
      %v7912 = vpop.f32.mrf.mxu0
      %v7913 = vadd.f32 0.0, %v7912
      %v7914 = vpop.f32.mrf.mxu0
      %v7915 = vadd.f32 0.0, %v7914
      %v7916 = vpop.f32.mrf.mxu0
      %v7917 = vadd.f32 0.0, %v7916
      %v7918 = vpop.f32.mrf.mxu0
      %v7919 = vadd.f32 0.0, %v7918
      %7920 = vmatprep.mubr.bf16.mxu0 %v6868
      %7921 = vmatmul.mubr.bf16.gmra.mxu0 %v6867
      %v7922 = vpop.f32.mrf.mxu0
      %v7923 = vadd.f32 0.0, %v7922
      %v7924 = vpop.f32.mrf.mxu0
      %v7925 = vadd.f32 0.0, %v7924
      %v7926 = vpop.f32.mrf.mxu0
      %v7927 = vadd.f32 0.0, %v7926
      %v7928 = vpop.f32.mrf.mxu0
      %v7929 = vadd.f32 0.0, %v7928
      %7930 = vmatprep.mubr.bf16.mxu0 %v6877
      %7931 = vmatmul.mubr.bf16.gmra.mxu0 %v6876
      %v7932 = vpop.f32.mrf.mxu0
      %v7933 = vadd.f32 0.0, %v7932
      %v7934 = vpop.f32.mrf.mxu0
      %v7935 = vadd.f32 0.0, %v7934
      %v7936 = vpop.f32.mrf.mxu0
      %v7937 = vadd.f32 0.0, %v7936
      %v7938 = vpop.f32.mrf.mxu0
      %v7939 = vadd.f32 0.0, %v7938
      %7940 = vmatprep.mubr.bf16.mxu0 %v6886
      %7941 = vmatmul.mubr.bf16.gmra.mxu0 %v6885
      %v7942 = vpop.f32.mrf.mxu0
      %v7943 = vadd.f32 0.0, %v7942
      %v7944 = vpop.f32.mrf.mxu0
      %v7945 = vadd.f32 0.0, %v7944
      %v7946 = vpop.f32.mrf.mxu0
      %v7947 = vadd.f32 0.0, %v7946
      %v7948 = vpop.f32.mrf.mxu0
      %v7949 = vadd.f32 0.0, %v7948
      %7950 = vdwg.mxu0
      %7951 = vmatprep.subr.bf16.mxu0 %v7517
      %7952 = vmatpush1.bf16.msra.mxu0 %v7516
      %7953 = vmatprep.subr.bf16.mxu0 %v7515
      %7954 = vmatpush1.bf16.msra.mxu0 %v7514
      %7955 = vmatprep.subr.bf16.mxu0 %v7513
      %7956 = vmatpush1.bf16.msra.mxu0 %v7512
      %7957 = vmatprep.subr.bf16.mxu0 %v7511
      %7958 = vmatpush1.bf16.msra.mxu0 %v7510
      %7959 = vmatprep.subr.bf16.mxu0 %v7509
      %7960 = vmatpush1.bf16.msra.mxu0 %v7508
      %7961 = vmatprep.subr.bf16.mxu0 %v7507
      %7962 = vmatpush1.bf16.msra.mxu0 %v7506
      %7963 = vmatprep.subr.bf16.mxu0 %v7505
      %7964 = vmatpush1.bf16.msra.mxu0 %v7504
      %7965 = vmatprep.subr.bf16.mxu0 %v7503
      %7966 = vmatpush1.bf16.msra.mxu0 %v7502
      %7967 = vmatprep.subr.bf16.mxu0 %v7533
      %7968 = vmatpush2.bf16.msra.mxu0 %v7532
      %7969 = vmatprep.subr.bf16.mxu0 %v7531
      %7970 = vmatpush2.bf16.msra.mxu0 %v7530
      %7971 = vmatprep.subr.bf16.mxu0 %v7529
      %7972 = vmatpush2.bf16.msra.mxu0 %v7528
      %7973 = vmatprep.subr.bf16.mxu0 %v7527
      %7974 = vmatpush2.bf16.msra.mxu0 %v7526
      %7975 = vmatprep.subr.bf16.mxu0 %v7525
      %7976 = vmatpush2.bf16.msra.mxu0 %v7524
      %7977 = vmatprep.subr.bf16.mxu0 %v7523
      %7978 = vmatpush2.bf16.msra.mxu0 %v7522
      %7979 = vmatprep.subr.bf16.mxu0 %v7521
      %7980 = vmatpush2.bf16.msra.mxu0 %v7520
      %7981 = vmatprep.subr.bf16.mxu0 %v7519
      %7982 = vmatpush2.bf16.msra.mxu0 %v7518
      %7983 = vmatprep.mubr.bf16.mxu0 %v6753
      %7984 = vmatmul.mubr.bf16.gmra.mxu0 %v6752
      %v7985 = vpop.f32.mrf.mxu0
      %v7986 = vadd.f32 %v7793, %v7985
      %v7987 = vpop.f32.mrf.mxu0
      %v7988 = vadd.f32 %v7795, %v7987
      %v7989 = vpop.f32.mrf.mxu0
      %v7990 = vadd.f32 %v7797, %v7989
      %v7991 = vpop.f32.mrf.mxu0
      %v7992 = vadd.f32 %v7799, %v7991
      %7993 = vmatprep.mubr.bf16.mxu0 %v6762
      %7994 = vmatmul.mubr.bf16.gmra.mxu0 %v6761
      %v7995 = vpop.f32.mrf.mxu0
      %v7996 = vadd.f32 %v7803, %v7995
      %v7997 = vpop.f32.mrf.mxu0
      %v7998 = vadd.f32 %v7805, %v7997
      %v7999 = vpop.f32.mrf.mxu0
      %v8000 = vadd.f32 %v7807, %v7999
      %v8001 = vpop.f32.mrf.mxu0
      %v8002 = vadd.f32 %v7809, %v8001
      %8003 = vmatprep.mubr.bf16.mxu0 %v6771
      %8004 = vmatmul.mubr.bf16.gmra.mxu0 %v6770
      %v8005 = vpop.f32.mrf.mxu0
      %v8006 = vadd.f32 %v7813, %v8005
      %v8007 = vpop.f32.mrf.mxu0
      %v8008 = vadd.f32 %v7815, %v8007
      %v8009 = vpop.f32.mrf.mxu0
      %v8010 = vadd.f32 %v7817, %v8009
      %v8011 = vpop.f32.mrf.mxu0
      %v8012 = vadd.f32 %v7819, %v8011
      %8013 = vmatprep.mubr.bf16.mxu0 %v6780
      %8014 = vmatmul.mubr.bf16.gmra.mxu0 %v6779
      %v8015 = vpop.f32.mrf.mxu0
      %v8016 = vadd.f32 %v7823, %v8015
      %v8017 = vpop.f32.mrf.mxu0
      %v8018 = vadd.f32 %v7825, %v8017
      %v8019 = vpop.f32.mrf.mxu0
      %v8020 = vadd.f32 %v7827, %v8019
      %v8021 = vpop.f32.mrf.mxu0
      %v8022 = vadd.f32 %v7829, %v8021
      %8023 = vmatprep.mubr.bf16.mxu0 %v6789
      %8024 = vmatmul.mubr.bf16.gmra.mxu0 %v6788
      %v8025 = vpop.f32.mrf.mxu0
      %v8026 = vadd.f32 %v7833, %v8025
      %v8027 = vpop.f32.mrf.mxu0
      %v8028 = vadd.f32 %v7835, %v8027
      %v8029 = vpop.f32.mrf.mxu0
      %v8030 = vadd.f32 %v7837, %v8029
      %v8031 = vpop.f32.mrf.mxu0
      %v8032 = vadd.f32 %v7839, %v8031
      %8033 = vmatprep.mubr.bf16.mxu0 %v6798
      %8034 = vmatmul.mubr.bf16.gmra.mxu0 %v6797
      %v8035 = vpop.f32.mrf.mxu0
      %v8036 = vadd.f32 %v7843, %v8035
      %v8037 = vpop.f32.mrf.mxu0
      %v8038 = vadd.f32 %v7845, %v8037
      %v8039 = vpop.f32.mrf.mxu0
      %v8040 = vadd.f32 %v7847, %v8039
      %v8041 = vpop.f32.mrf.mxu0
      %v8042 = vadd.f32 %v7849, %v8041
      %8043 = vmatprep.mubr.bf16.mxu0 %v6807
      %8044 = vmatmul.mubr.bf16.gmra.mxu0 %v6806
      %v8045 = vpop.f32.mrf.mxu0
      %v8046 = vadd.f32 %v7853, %v8045
      %v8047 = vpop.f32.mrf.mxu0
      %v8048 = vadd.f32 %v7855, %v8047
      %v8049 = vpop.f32.mrf.mxu0
      %v8050 = vadd.f32 %v7857, %v8049
      %v8051 = vpop.f32.mrf.mxu0
      %v8052 = vadd.f32 %v7859, %v8051
      %8053 = vmatprep.mubr.bf16.mxu0 %v6816
      %8054 = vmatmul.mubr.bf16.gmra.mxu0 %v6815
      %v8055 = vpop.f32.mrf.mxu0
      %v8056 = vadd.f32 %v7863, %v8055
      %v8057 = vpop.f32.mrf.mxu0
      %v8058 = vadd.f32 %v7865, %v8057
      %v8059 = vpop.f32.mrf.mxu0
      %v8060 = vadd.f32 %v7867, %v8059
      %v8061 = vpop.f32.mrf.mxu0
      %v8062 = vadd.f32 %v7869, %v8061
      %8063 = vmatprep.mubr.bf16.mxu0 %v6825
      %8064 = vmatmul.mubr.bf16.gmra.mxu0 %v6824
      %v8065 = vpop.f32.mrf.mxu0
      %v8066 = vadd.f32 %v7873, %v8065
      %v8067 = vpop.f32.mrf.mxu0
      %v8068 = vadd.f32 %v7875, %v8067
      %v8069 = vpop.f32.mrf.mxu0
      %v8070 = vadd.f32 %v7877, %v8069
      %v8071 = vpop.f32.mrf.mxu0
      %v8072 = vadd.f32 %v7879, %v8071
      %8073 = vmatprep.mubr.bf16.mxu0 %v6834
      %8074 = vmatmul.mubr.bf16.gmra.mxu0 %v6833
      %v8075 = vpop.f32.mrf.mxu0
      %v8076 = vadd.f32 %v7883, %v8075
      %v8077 = vpop.f32.mrf.mxu0
      %v8078 = vadd.f32 %v7885, %v8077
      %v8079 = vpop.f32.mrf.mxu0
      %v8080 = vadd.f32 %v7887, %v8079
      %v8081 = vpop.f32.mrf.mxu0
      %v8082 = vadd.f32 %v7889, %v8081
      %8083 = vmatprep.mubr.bf16.mxu0 %v6843
      %8084 = vmatmul.mubr.bf16.gmra.mxu0 %v6842
      %v8085 = vpop.f32.mrf.mxu0
      %v8086 = vadd.f32 %v7893, %v8085
      %v8087 = vpop.f32.mrf.mxu0
      %v8088 = vadd.f32 %v7895, %v8087
      %v8089 = vpop.f32.mrf.mxu0
      %v8090 = vadd.f32 %v7897, %v8089
      %v8091 = vpop.f32.mrf.mxu0
      %v8092 = vadd.f32 %v7899, %v8091
      %8093 = vmatprep.mubr.bf16.mxu0 %v6852
      %8094 = vmatmul.mubr.bf16.gmra.mxu0 %v6851
      %v8095 = vpop.f32.mrf.mxu0
      %v8096 = vadd.f32 %v7903, %v8095
      %v8097 = vpop.f32.mrf.mxu0
      %v8098 = vadd.f32 %v7905, %v8097
      %v8099 = vpop.f32.mrf.mxu0
      %v8100 = vadd.f32 %v7907, %v8099
      %v8101 = vpop.f32.mrf.mxu0
      %v8102 = vadd.f32 %v7909, %v8101
      %8103 = vmatprep.mubr.bf16.mxu0 %v6861
      %8104 = vmatmul.mubr.bf16.gmra.mxu0 %v6860
      %v8105 = vpop.f32.mrf.mxu0
      %v8106 = vadd.f32 %v7913, %v8105
      %v8107 = vpop.f32.mrf.mxu0
      %v8108 = vadd.f32 %v7915, %v8107
      %v8109 = vpop.f32.mrf.mxu0
      %v8110 = vadd.f32 %v7917, %v8109
      %v8111 = vpop.f32.mrf.mxu0
      %v8112 = vadd.f32 %v7919, %v8111
      %8113 = vmatprep.mubr.bf16.mxu0 %v6870
      %8114 = vmatmul.mubr.bf16.gmra.mxu0 %v6869
      %v8115 = vpop.f32.mrf.mxu0
      %v8116 = vadd.f32 %v7923, %v8115
      %v8117 = vpop.f32.mrf.mxu0
      %v8118 = vadd.f32 %v7925, %v8117
      %v8119 = vpop.f32.mrf.mxu0
      %v8120 = vadd.f32 %v7927, %v8119
      %v8121 = vpop.f32.mrf.mxu0
      %v8122 = vadd.f32 %v7929, %v8121
      %8123 = vmatprep.mubr.bf16.mxu0 %v6879
      %8124 = vmatmul.mubr.bf16.gmra.mxu0 %v6878
      %v8125 = vpop.f32.mrf.mxu0
      %v8126 = vadd.f32 %v7933, %v8125
      %v8127 = vpop.f32.mrf.mxu0
      %v8128 = vadd.f32 %v7935, %v8127
      %v8129 = vpop.f32.mrf.mxu0
      %v8130 = vadd.f32 %v7937, %v8129
      %v8131 = vpop.f32.mrf.mxu0
      %v8132 = vadd.f32 %v7939, %v8131
      %8133 = vmatprep.mubr.bf16.mxu0 %v6888
      %8134 = vmatmul.mubr.bf16.gmra.mxu0 %v6887
      %v8135 = vpop.f32.mrf.mxu0
      %v8136 = vadd.f32 %v7943, %v8135
      %v8137 = vpop.f32.mrf.mxu0
      %v8138 = vadd.f32 %v7945, %v8137
      %v8139 = vpop.f32.mrf.mxu0
      %v8140 = vadd.f32 %v7947, %v8139
      %v8141 = vpop.f32.mrf.mxu0
      %v8142 = vadd.f32 %v7949, %v8141
      %8143 = vdwg.mxu0
      %8144 = vmatprep.subr.bf16.mxu0 %v7549
      %8145 = vmatpush1.bf16.msra.mxu0 %v7548
      %8146 = vmatprep.subr.bf16.mxu0 %v7547
      %8147 = vmatpush1.bf16.msra.mxu0 %v7546
      %8148 = vmatprep.subr.bf16.mxu0 %v7545
      %8149 = vmatpush1.bf16.msra.mxu0 %v7544
      %8150 = vmatprep.subr.bf16.mxu0 %v7543
      %8151 = vmatpush1.bf16.msra.mxu0 %v7542
      %8152 = vmatprep.subr.bf16.mxu0 %v7541
      %8153 = vmatpush1.bf16.msra.mxu0 %v7540
      %8154 = vmatprep.subr.bf16.mxu0 %v7539
      %8155 = vmatpush1.bf16.msra.mxu0 %v7538
      %8156 = vmatprep.subr.bf16.mxu0 %v7537
      %8157 = vmatpush1.bf16.msra.mxu0 %v7536
      %8158 = vmatprep.subr.bf16.mxu0 %v7535
      %8159 = vmatpush1.bf16.msra.mxu0 %v7534
      %8160 = vmatprep.subr.bf16.mxu0 %v7565
      %8161 = vmatpush2.bf16.msra.mxu0 %v7564
      %8162 = vmatprep.subr.bf16.mxu0 %v7563
      %8163 = vmatpush2.bf16.msra.mxu0 %v7562
      %8164 = vmatprep.subr.bf16.mxu0 %v7561
      %8165 = vmatpush2.bf16.msra.mxu0 %v7560
      %8166 = vmatprep.subr.bf16.mxu0 %v7559
      %8167 = vmatpush2.bf16.msra.mxu0 %v7558
      %8168 = vmatprep.subr.bf16.mxu0 %v7557
      %8169 = vmatpush2.bf16.msra.mxu0 %v7556
      %8170 = vmatprep.subr.bf16.mxu0 %v7555
      %8171 = vmatpush2.bf16.msra.mxu0 %v7554
      %8172 = vmatprep.subr.bf16.mxu0 %v7553
      %8173 = vmatpush2.bf16.msra.mxu0 %v7552
      %8174 = vmatprep.subr.bf16.mxu0 %v7551
      %8175 = vmatpush2.bf16.msra.mxu0 %v7550
      %8176 = vmatprep.mubr.bf16.mxu0 %v6755
      %8177 = vmatmul.mubr.bf16.gmra.mxu0 %v6754
      %v8178 = vpop.f32.mrf.mxu0
      %v8179 = vadd.f32 %v7986, %v8178
      %v8180 = vpop.f32.mrf.mxu0
      %v8181 = vadd.f32 %v7988, %v8180
      %v8182 = vpop.f32.mrf.mxu0
      %v8183 = vadd.f32 %v7990, %v8182
      %v8184 = vpop.f32.mrf.mxu0
      %v8185 = vadd.f32 %v7992, %v8184
      %8186 = vmatprep.mubr.bf16.mxu0 %v6764
      %8187 = vmatmul.mubr.bf16.gmra.mxu0 %v6763
      %v8188 = vpop.f32.mrf.mxu0
      %v8189 = vadd.f32 %v7996, %v8188
      %v8190 = vpop.f32.mrf.mxu0
      %v8191 = vadd.f32 %v7998, %v8190
      %v8192 = vpop.f32.mrf.mxu0
      %v8193 = vadd.f32 %v8000, %v8192
      %v8194 = vpop.f32.mrf.mxu0
      %v8195 = vadd.f32 %v8002, %v8194
      %8196 = vmatprep.mubr.bf16.mxu0 %v6773
      %8197 = vmatmul.mubr.bf16.gmra.mxu0 %v6772
      %v8198 = vpop.f32.mrf.mxu0
      %v8199 = vadd.f32 %v8006, %v8198
      %v8200 = vpop.f32.mrf.mxu0
      %v8201 = vadd.f32 %v8008, %v8200
      %v8202 = vpop.f32.mrf.mxu0
      %v8203 = vadd.f32 %v8010, %v8202
      %v8204 = vpop.f32.mrf.mxu0
      %v8205 = vadd.f32 %v8012, %v8204
      %8206 = vmatprep.mubr.bf16.mxu0 %v6782
      %8207 = vmatmul.mubr.bf16.gmra.mxu0 %v6781
      %v8208 = vpop.f32.mrf.mxu0
      %v8209 = vadd.f32 %v8016, %v8208
      %v8210 = vpop.f32.mrf.mxu0
      %v8211 = vadd.f32 %v8018, %v8210
      %v8212 = vpop.f32.mrf.mxu0
      %v8213 = vadd.f32 %v8020, %v8212
      %v8214 = vpop.f32.mrf.mxu0
      %v8215 = vadd.f32 %v8022, %v8214
      %8216 = vmatprep.mubr.bf16.mxu0 %v6791
      %8217 = vmatmul.mubr.bf16.gmra.mxu0 %v6790
      %v8218 = vpop.f32.mrf.mxu0
      %v8219 = vadd.f32 %v8026, %v8218
      %v8220 = vpop.f32.mrf.mxu0
      %v8221 = vadd.f32 %v8028, %v8220
      %v8222 = vpop.f32.mrf.mxu0
      %v8223 = vadd.f32 %v8030, %v8222
      %v8224 = vpop.f32.mrf.mxu0
      %v8225 = vadd.f32 %v8032, %v8224
      %8226 = vmatprep.mubr.bf16.mxu0 %v6800
      %8227 = vmatmul.mubr.bf16.gmra.mxu0 %v6799
      %v8228 = vpop.f32.mrf.mxu0
      %v8229 = vadd.f32 %v8036, %v8228
      %v8230 = vpop.f32.mrf.mxu0
      %v8231 = vadd.f32 %v8038, %v8230
      %v8232 = vpop.f32.mrf.mxu0
      %v8233 = vadd.f32 %v8040, %v8232
      %v8234 = vpop.f32.mrf.mxu0
      %v8235 = vadd.f32 %v8042, %v8234
      %8236 = vmatprep.mubr.bf16.mxu0 %v6809
      %8237 = vmatmul.mubr.bf16.gmra.mxu0 %v6808
      %v8238 = vpop.f32.mrf.mxu0
      %v8239 = vadd.f32 %v8046, %v8238
      %v8240 = vpop.f32.mrf.mxu0
      %v8241 = vadd.f32 %v8048, %v8240
      %v8242 = vpop.f32.mrf.mxu0
      %v8243 = vadd.f32 %v8050, %v8242
      %v8244 = vpop.f32.mrf.mxu0
      %v8245 = vadd.f32 %v8052, %v8244
      %8246 = vmatprep.mubr.bf16.mxu0 %v6818
      %8247 = vmatmul.mubr.bf16.gmra.mxu0 %v6817
      %v8248 = vpop.f32.mrf.mxu0
      %v8249 = vadd.f32 %v8056, %v8248
      %v8250 = vpop.f32.mrf.mxu0
      %v8251 = vadd.f32 %v8058, %v8250
      %v8252 = vpop.f32.mrf.mxu0
      %v8253 = vadd.f32 %v8060, %v8252
      %v8254 = vpop.f32.mrf.mxu0
      %v8255 = vadd.f32 %v8062, %v8254
      %8256 = vmatprep.mubr.bf16.mxu0 %v6827
      %8257 = vmatmul.mubr.bf16.gmra.mxu0 %v6826
      %v8258 = vpop.f32.mrf.mxu0
      %v8259 = vadd.f32 %v8066, %v8258
      %v8260 = vpop.f32.mrf.mxu0
      %v8261 = vadd.f32 %v8068, %v8260
      %v8262 = vpop.f32.mrf.mxu0
      %v8263 = vadd.f32 %v8070, %v8262
      %v8264 = vpop.f32.mrf.mxu0
      %v8265 = vadd.f32 %v8072, %v8264
      %8266 = vmatprep.mubr.bf16.mxu0 %v6836
      %8267 = vmatmul.mubr.bf16.gmra.mxu0 %v6835
      %v8268 = vpop.f32.mrf.mxu0
      %v8269 = vadd.f32 %v8076, %v8268
      %v8270 = vpop.f32.mrf.mxu0
      %v8271 = vadd.f32 %v8078, %v8270
      %v8272 = vpop.f32.mrf.mxu0
      %v8273 = vadd.f32 %v8080, %v8272
      %v8274 = vpop.f32.mrf.mxu0
      %v8275 = vadd.f32 %v8082, %v8274
      %8276 = vmatprep.mubr.bf16.mxu0 %v6845
      %8277 = vmatmul.mubr.bf16.gmra.mxu0 %v6844
      %v8278 = vpop.f32.mrf.mxu0
      %v8279 = vadd.f32 %v8086, %v8278
      %v8280 = vpop.f32.mrf.mxu0
      %v8281 = vadd.f32 %v8088, %v8280
      %v8282 = vpop.f32.mrf.mxu0
      %v8283 = vadd.f32 %v8090, %v8282
      %v8284 = vpop.f32.mrf.mxu0
      %v8285 = vadd.f32 %v8092, %v8284
      %8286 = vmatprep.mubr.bf16.mxu0 %v6854
      %8287 = vmatmul.mubr.bf16.gmra.mxu0 %v6853
      %v8288 = vpop.f32.mrf.mxu0
      %v8289 = vadd.f32 %v8096, %v8288
      %v8290 = vpop.f32.mrf.mxu0
      %v8291 = vadd.f32 %v8098, %v8290
      %v8292 = vpop.f32.mrf.mxu0
      %v8293 = vadd.f32 %v8100, %v8292
      %v8294 = vpop.f32.mrf.mxu0
      %v8295 = vadd.f32 %v8102, %v8294
      %8296 = vmatprep.mubr.bf16.mxu0 %v6863
      %8297 = vmatmul.mubr.bf16.gmra.mxu0 %v6862
      %v8298 = vpop.f32.mrf.mxu0
      %v8299 = vadd.f32 %v8106, %v8298
      %v8300 = vpop.f32.mrf.mxu0
      %v8301 = vadd.f32 %v8108, %v8300
      %v8302 = vpop.f32.mrf.mxu0
      %v8303 = vadd.f32 %v8110, %v8302
      %v8304 = vpop.f32.mrf.mxu0
      %v8305 = vadd.f32 %v8112, %v8304
      %8306 = vmatprep.mubr.bf16.mxu0 %v6872
      %8307 = vmatmul.mubr.bf16.gmra.mxu0 %v6871
      %v8308 = vpop.f32.mrf.mxu0
      %v8309 = vadd.f32 %v8116, %v8308
      %v8310 = vpop.f32.mrf.mxu0
      %v8311 = vadd.f32 %v8118, %v8310
      %v8312 = vpop.f32.mrf.mxu0
      %v8313 = vadd.f32 %v8120, %v8312
      %v8314 = vpop.f32.mrf.mxu0
      %v8315 = vadd.f32 %v8122, %v8314
      %8316 = vmatprep.mubr.bf16.mxu0 %v6881
      %8317 = vmatmul.mubr.bf16.gmra.mxu0 %v6880
      %v8318 = vpop.f32.mrf.mxu0
      %v8319 = vadd.f32 %v8126, %v8318
      %v8320 = vpop.f32.mrf.mxu0
      %v8321 = vadd.f32 %v8128, %v8320
      %v8322 = vpop.f32.mrf.mxu0
      %v8323 = vadd.f32 %v8130, %v8322
      %v8324 = vpop.f32.mrf.mxu0
      %v8325 = vadd.f32 %v8132, %v8324
      %8326 = vmatprep.mubr.bf16.mxu0 %v6890
      %8327 = vmatmul.mubr.bf16.gmra.mxu0 %v6889
      %v8328 = vpop.f32.mrf.mxu0
      %v8329 = vadd.f32 %v8136, %v8328
      %v8330 = vpop.f32.mrf.mxu0
      %v8331 = vadd.f32 %v8138, %v8330
      %v8332 = vpop.f32.mrf.mxu0
      %v8333 = vadd.f32 %v8140, %v8332
      %v8334 = vpop.f32.mrf.mxu0
      %v8335 = vadd.f32 %v8142, %v8334
      %8336 = vdwg.mxu0
      %8337 = vmatprep.subr.bf16.mxu0 %v7581
      %8338 = vmatpush1.bf16.msra.mxu0 %v7580
      %8339 = vmatprep.subr.bf16.mxu0 %v7579
      %8340 = vmatpush1.bf16.msra.mxu0 %v7578
      %8341 = vmatprep.subr.bf16.mxu0 %v7577
      %8342 = vmatpush1.bf16.msra.mxu0 %v7576
      %8343 = vmatprep.subr.bf16.mxu0 %v7575
      %8344 = vmatpush1.bf16.msra.mxu0 %v7574
      %8345 = vmatprep.subr.bf16.mxu0 %v7573
      %8346 = vmatpush1.bf16.msra.mxu0 %v7572
      %8347 = vmatprep.subr.bf16.mxu0 %v7571
      %8348 = vmatpush1.bf16.msra.mxu0 %v7570
      %8349 = vmatprep.subr.bf16.mxu0 %v7569
      %8350 = vmatpush1.bf16.msra.mxu0 %v7568
      %8351 = vmatprep.subr.bf16.mxu0 %v7567
      %8352 = vmatpush1.bf16.msra.mxu0 %v7566
      %8353 = vmatprep.subr.bf16.mxu0 %v7597
      %8354 = vmatpush2.bf16.msra.mxu0 %v7596
      %8355 = vmatprep.subr.bf16.mxu0 %v7595
      %8356 = vmatpush2.bf16.msra.mxu0 %v7594
      %8357 = vmatprep.subr.bf16.mxu0 %v7593
      %8358 = vmatpush2.bf16.msra.mxu0 %v7592
      %8359 = vmatprep.subr.bf16.mxu0 %v7591
      %8360 = vmatpush2.bf16.msra.mxu0 %v7590
      %8361 = vmatprep.subr.bf16.mxu0 %v7589
      %8362 = vmatpush2.bf16.msra.mxu0 %v7588
      %8363 = vmatprep.subr.bf16.mxu0 %v7587
      %8364 = vmatpush2.bf16.msra.mxu0 %v7586
      %8365 = vmatprep.subr.bf16.mxu0 %v7585
      %8366 = vmatpush2.bf16.msra.mxu0 %v7584
      %8367 = vmatprep.subr.bf16.mxu0 %v7583
      %8368 = vmatpush2.bf16.msra.mxu0 %v7582
      %8369 = vmatprep.mubr.bf16.mxu0 %v6757
      %8370 = vmatmul.mubr.bf16.gmra.mxu0 %v6756
      %v8371 = vpop.f32.mrf.mxu0
      %v8372 = vadd.f32 %v8179, %v8371
      %v8373 = vpop.f32.mrf.mxu0
      %v8374 = vadd.f32 %v8181, %v8373
      %v8375 = vpop.f32.mrf.mxu0
      %v8376 = vadd.f32 %v8183, %v8375
      %v8377 = vpop.f32.mrf.mxu0
      %v8378 = vadd.f32 %v8185, %v8377
      %8379 = vmatprep.mubr.bf16.mxu0 %v6766
      %8380 = vmatmul.mubr.bf16.gmra.mxu0 %v6765
      %v8381 = vpop.f32.mrf.mxu0
      %v8382 = vadd.f32 %v8189, %v8381
      %v8383 = vpop.f32.mrf.mxu0
      %v8384 = vadd.f32 %v8191, %v8383
      %v8385 = vpop.f32.mrf.mxu0
      %v8386 = vadd.f32 %v8193, %v8385
      %v8387 = vpop.f32.mrf.mxu0
      %v8388 = vadd.f32 %v8195, %v8387
      %8389 = vmatprep.mubr.bf16.mxu0 %v6775
      %8390 = vmatmul.mubr.bf16.gmra.mxu0 %v6774
      %v8391 = vpop.f32.mrf.mxu0
      %v8392 = vadd.f32 %v8199, %v8391
      %v8393 = vpop.f32.mrf.mxu0
      %v8394 = vadd.f32 %v8201, %v8393
      %v8395 = vpop.f32.mrf.mxu0
      %v8396 = vadd.f32 %v8203, %v8395
      %v8397 = vpop.f32.mrf.mxu0
      %v8398 = vadd.f32 %v8205, %v8397
      %8399 = vmatprep.mubr.bf16.mxu0 %v6784
      %8400 = vmatmul.mubr.bf16.gmra.mxu0 %v6783
      %v8401 = vpop.f32.mrf.mxu0
      %v8402 = vadd.f32 %v8209, %v8401
      %v8403 = vpop.f32.mrf.mxu0
      %v8404 = vadd.f32 %v8211, %v8403
      %v8405 = vpop.f32.mrf.mxu0
      %v8406 = vadd.f32 %v8213, %v8405
      %v8407 = vpop.f32.mrf.mxu0
      %v8408 = vadd.f32 %v8215, %v8407
      %8409 = vmatprep.mubr.bf16.mxu0 %v6793
      %8410 = vmatmul.mubr.bf16.gmra.mxu0 %v6792
      %v8411 = vpop.f32.mrf.mxu0
      %v8412 = vadd.f32 %v8219, %v8411
      %v8413 = vpop.f32.mrf.mxu0
      %v8414 = vadd.f32 %v8221, %v8413
      %v8415 = vpop.f32.mrf.mxu0
      %v8416 = vadd.f32 %v8223, %v8415
      %v8417 = vpop.f32.mrf.mxu0
      %v8418 = vadd.f32 %v8225, %v8417
      %8419 = vmatprep.mubr.bf16.mxu0 %v6802
      %8420 = vmatmul.mubr.bf16.gmra.mxu0 %v6801
      %v8421 = vpop.f32.mrf.mxu0
      %v8422 = vadd.f32 %v8229, %v8421
      %v8423 = vpop.f32.mrf.mxu0
      %v8424 = vadd.f32 %v8231, %v8423
      %v8425 = vpop.f32.mrf.mxu0
      %v8426 = vadd.f32 %v8233, %v8425
      %v8427 = vpop.f32.mrf.mxu0
      %v8428 = vadd.f32 %v8235, %v8427
      %8429 = vmatprep.mubr.bf16.mxu0 %v6811
      %8430 = vmatmul.mubr.bf16.gmra.mxu0 %v6810
      %v8431 = vpop.f32.mrf.mxu0
      %v8432 = vadd.f32 %v8239, %v8431
      %v8433 = vpop.f32.mrf.mxu0
      %v8434 = vadd.f32 %v8241, %v8433
      %v8435 = vpop.f32.mrf.mxu0
      %v8436 = vadd.f32 %v8243, %v8435
      %v8437 = vpop.f32.mrf.mxu0
      %v8438 = vadd.f32 %v8245, %v8437
      %8439 = vmatprep.mubr.bf16.mxu0 %v6820
      %8440 = vmatmul.mubr.bf16.gmra.mxu0 %v6819
      %v8441 = vpop.f32.mrf.mxu0
      %v8442 = vadd.f32 %v8249, %v8441
      %v8443 = vpop.f32.mrf.mxu0
      %v8444 = vadd.f32 %v8251, %v8443
      %v8445 = vpop.f32.mrf.mxu0
      %v8446 = vadd.f32 %v8253, %v8445
      %v8447 = vpop.f32.mrf.mxu0
      %v8448 = vadd.f32 %v8255, %v8447
      %8449 = vmatprep.mubr.bf16.mxu0 %v6829
      %8450 = vmatmul.mubr.bf16.gmra.mxu0 %v6828
      %v8451 = vpop.f32.mrf.mxu0
      %v8452 = vadd.f32 %v8259, %v8451
      %v8453 = vpop.f32.mrf.mxu0
      %v8454 = vadd.f32 %v8261, %v8453
      %v8455 = vpop.f32.mrf.mxu0
      %v8456 = vadd.f32 %v8263, %v8455
      %v8457 = vpop.f32.mrf.mxu0
      %v8458 = vadd.f32 %v8265, %v8457
      %8459 = vmatprep.mubr.bf16.mxu0 %v6838
      %8460 = vmatmul.mubr.bf16.gmra.mxu0 %v6837
      %v8461 = vpop.f32.mrf.mxu0
      %v8462 = vadd.f32 %v8269, %v8461
      %v8463 = vpop.f32.mrf.mxu0
      %v8464 = vadd.f32 %v8271, %v8463
      %v8465 = vpop.f32.mrf.mxu0
      %v8466 = vadd.f32 %v8273, %v8465
      %v8467 = vpop.f32.mrf.mxu0
      %v8468 = vadd.f32 %v8275, %v8467
      %8469 = vmatprep.mubr.bf16.mxu0 %v6847
      %8470 = vmatmul.mubr.bf16.gmra.mxu0 %v6846
      %v8471 = vpop.f32.mrf.mxu0
      %v8472 = vadd.f32 %v8279, %v8471
      %v8473 = vpop.f32.mrf.mxu0
      %v8474 = vadd.f32 %v8281, %v8473
      %v8475 = vpop.f32.mrf.mxu0
      %v8476 = vadd.f32 %v8283, %v8475
      %v8477 = vpop.f32.mrf.mxu0
      %v8478 = vadd.f32 %v8285, %v8477
      %8479 = vmatprep.mubr.bf16.mxu0 %v6856
      %8480 = vmatmul.mubr.bf16.gmra.mxu0 %v6855
      %v8481 = vpop.f32.mrf.mxu0
      %v8482 = vadd.f32 %v8289, %v8481
      %v8483 = vpop.f32.mrf.mxu0
      %v8484 = vadd.f32 %v8291, %v8483
      %v8485 = vpop.f32.mrf.mxu0
      %v8486 = vadd.f32 %v8293, %v8485
      %v8487 = vpop.f32.mrf.mxu0
      %v8488 = vadd.f32 %v8295, %v8487
      %8489 = vmatprep.mubr.bf16.mxu0 %v6865
      %8490 = vmatmul.mubr.bf16.gmra.mxu0 %v6864
      %v8491 = vpop.f32.mrf.mxu0
      %v8492 = vadd.f32 %v8299, %v8491
      %v8493 = vpop.f32.mrf.mxu0
      %v8494 = vadd.f32 %v8301, %v8493
      %v8495 = vpop.f32.mrf.mxu0
      %v8496 = vadd.f32 %v8303, %v8495
      %v8497 = vpop.f32.mrf.mxu0
      %v8498 = vadd.f32 %v8305, %v8497
      %8499 = vmatprep.mubr.bf16.mxu0 %v6874
      %8500 = vmatmul.mubr.bf16.gmra.mxu0 %v6873
      %v8501 = vpop.f32.mrf.mxu0
      %v8502 = vadd.f32 %v8309, %v8501
      %v8503 = vpop.f32.mrf.mxu0
      %v8504 = vadd.f32 %v8311, %v8503
      %v8505 = vpop.f32.mrf.mxu0
      %v8506 = vadd.f32 %v8313, %v8505
      %v8507 = vpop.f32.mrf.mxu0
      %v8508 = vadd.f32 %v8315, %v8507
      %8509 = vmatprep.mubr.bf16.mxu0 %v6883
      %8510 = vmatmul.mubr.bf16.gmra.mxu0 %v6882
      %v8511 = vpop.f32.mrf.mxu0
      %v8512 = vadd.f32 %v8319, %v8511
      %v8513 = vpop.f32.mrf.mxu0
      %v8514 = vadd.f32 %v8321, %v8513
      %v8515 = vpop.f32.mrf.mxu0
      %v8516 = vadd.f32 %v8323, %v8515
      %v8517 = vpop.f32.mrf.mxu0
      %v8518 = vadd.f32 %v8325, %v8517
      %8519 = vmatprep.mubr.bf16.mxu0 %v6892
      %8520 = vmatmul.mubr.bf16.gmra.mxu0 %v6891
      %v8521 = vpop.f32.mrf.mxu0
      %v8522 = vadd.f32 %v8329, %v8521
      %v8523 = vpop.f32.mrf.mxu0
      %v8524 = vadd.f32 %v8331, %v8523
      %v8525 = vpop.f32.mrf.mxu0
      %v8526 = vadd.f32 %v8333, %v8525
      %v8527 = vpop.f32.mrf.mxu0
      %v8528 = vadd.f32 %v8335, %v8527
      %8529 = vdwg.mxu0
      %8530 = vmatprep.subr.bf16.mxu0 %v7613
      %8531 = vmatpush1.bf16.msra.mxu0 %v7612
      %8532 = vmatprep.subr.bf16.mxu0 %v7611
      %8533 = vmatpush1.bf16.msra.mxu0 %v7610
      %8534 = vmatprep.subr.bf16.mxu0 %v7609
      %8535 = vmatpush1.bf16.msra.mxu0 %v7608
      %8536 = vmatprep.subr.bf16.mxu0 %v7607
      %8537 = vmatpush1.bf16.msra.mxu0 %v7606
      %8538 = vmatprep.subr.bf16.mxu0 %v7605
      %8539 = vmatpush1.bf16.msra.mxu0 %v7604
      %8540 = vmatprep.subr.bf16.mxu0 %v7603
      %8541 = vmatpush1.bf16.msra.mxu0 %v7602
      %8542 = vmatprep.subr.bf16.mxu0 %v7601
      %8543 = vmatpush1.bf16.msra.mxu0 %v7600
      %8544 = vmatprep.subr.bf16.mxu0 %v7599
      %8545 = vmatpush1.bf16.msra.mxu0 %v7598
      %8546 = vmatprep.subr.bf16.mxu0 0
      %8547 = vmatpush2.bf16.msra.mxu0 0
      %8548 = vmatprep.subr.bf16.mxu0 0
      %8549 = vmatpush2.bf16.msra.mxu0 0
      %8550 = vmatprep.subr.bf16.mxu0 0
      %8551 = vmatpush2.bf16.msra.mxu0 0
      %8552 = vmatprep.subr.bf16.mxu0 0
      %8553 = vmatpush2.bf16.msra.mxu0 0
      %8554 = vmatprep.subr.bf16.mxu0 0
      %8555 = vmatpush2.bf16.msra.mxu0 0
      %8556 = vmatprep.subr.bf16.mxu0 0
      %8557 = vmatpush2.bf16.msra.mxu0 0
      %8558 = vmatprep.subr.bf16.mxu0 0
      %8559 = vmatpush2.bf16.msra.mxu0 0
      %8560 = vmatprep.subr.bf16.mxu0 0
      %8561 = vmatpush2.bf16.msra.mxu0 0
      %8562 = vmatprep.mubr.bf16.mxu0 0
      %8563 = vmatmul.mubr.bf16.gmra.mxu0 %v6758
      %v8564 = vpop.f32.mrf.mxu0
      %v8565 = vadd.f32 %v8372, %v8564
      %v8566 = vpop.f32.mrf.mxu0
      %v8567 = vadd.f32 %v8374, %v8566
      %v8568 = vpop.f32.mrf.mxu0
      %v8569 = vadd.f32 %v8376, %v8568
      %v8570 = vpop.f32.mrf.mxu0
      %v8571 = vadd.f32 %v8378, %v8570
      %8572 = vmatprep.mubr.bf16.mxu0 0
      %8573 = vmatmul.mubr.bf16.gmra.mxu0 %v6767
      %v8574 = vpop.f32.mrf.mxu0
      %v8575 = vadd.f32 %v8382, %v8574
      %v8576 = vpop.f32.mrf.mxu0
      %v8577 = vadd.f32 %v8384, %v8576
      %v8578 = vpop.f32.mrf.mxu0
      %v8579 = vadd.f32 %v8386, %v8578
      %v8580 = vpop.f32.mrf.mxu0
      %v8581 = vadd.f32 %v8388, %v8580
      %8582 = vmatprep.mubr.bf16.mxu0 0
      %8583 = vmatmul.mubr.bf16.gmra.mxu0 %v6776
      %v8584 = vpop.f32.mrf.mxu0
      %v8585 = vadd.f32 %v8392, %v8584
      %v8586 = vpop.f32.mrf.mxu0
      %v8587 = vadd.f32 %v8394, %v8586
      %v8588 = vpop.f32.mrf.mxu0
      %v8589 = vadd.f32 %v8396, %v8588
      %v8590 = vpop.f32.mrf.mxu0
      %v8591 = vadd.f32 %v8398, %v8590
      %8592 = vmatprep.mubr.bf16.mxu0 0
      %8593 = vmatmul.mubr.bf16.gmra.mxu0 %v6785
      %v8594 = vpop.f32.mrf.mxu0
      %v8595 = vadd.f32 %v8402, %v8594
      %v8596 = vpop.f32.mrf.mxu0
      %v8597 = vadd.f32 %v8404, %v8596
      %v8598 = vpop.f32.mrf.mxu0
      %v8599 = vadd.f32 %v8406, %v8598
      %v8600 = vpop.f32.mrf.mxu0
      %v8601 = vadd.f32 %v8408, %v8600
      %8602 = vmatprep.mubr.bf16.mxu0 0
      %8603 = vmatmul.mubr.bf16.gmra.mxu0 %v6794
      %v8604 = vpop.f32.mrf.mxu0
      %v8605 = vadd.f32 %v8412, %v8604
      %v8606 = vpop.f32.mrf.mxu0
      %v8607 = vadd.f32 %v8414, %v8606
      %v8608 = vpop.f32.mrf.mxu0
      %v8609 = vadd.f32 %v8416, %v8608
      %v8610 = vpop.f32.mrf.mxu0
      %v8611 = vadd.f32 %v8418, %v8610
      %8612 = vmatprep.mubr.bf16.mxu0 0
      %8613 = vmatmul.mubr.bf16.gmra.mxu0 %v6803
      %v8614 = vpop.f32.mrf.mxu0
      %v8615 = vadd.f32 %v8422, %v8614
      %v8616 = vpop.f32.mrf.mxu0
      %v8617 = vadd.f32 %v8424, %v8616
      %v8618 = vpop.f32.mrf.mxu0
      %v8619 = vadd.f32 %v8426, %v8618
      %v8620 = vpop.f32.mrf.mxu0
      %v8621 = vadd.f32 %v8428, %v8620
      %8622 = vmatprep.mubr.bf16.mxu0 0
      %8623 = vmatmul.mubr.bf16.gmra.mxu0 %v6812
      %v8624 = vpop.f32.mrf.mxu0
      %v8625 = vadd.f32 %v8432, %v8624
      %v8626 = vpop.f32.mrf.mxu0
      %v8627 = vadd.f32 %v8434, %v8626
      %v8628 = vpop.f32.mrf.mxu0
      %v8629 = vadd.f32 %v8436, %v8628
      %v8630 = vpop.f32.mrf.mxu0
      %v8631 = vadd.f32 %v8438, %v8630
      %8632 = vmatprep.mubr.bf16.mxu0 0
      %8633 = vmatmul.mubr.bf16.gmra.mxu0 %v6821
      %v8634 = vpop.f32.mrf.mxu0
      %v8635 = vadd.f32 %v8442, %v8634
      %v8636 = vpop.f32.mrf.mxu0
      %v8637 = vadd.f32 %v8444, %v8636
      %v8638 = vpop.f32.mrf.mxu0
      %v8639 = vadd.f32 %v8446, %v8638
      %v8640 = vpop.f32.mrf.mxu0
      %v8641 = vadd.f32 %v8448, %v8640
      %8642 = vmatprep.mubr.bf16.mxu0 0
      %8643 = vmatmul.mubr.bf16.gmra.mxu0 %v6830
      %v8644 = vpop.f32.mrf.mxu0
      %v8645 = vadd.f32 %v8452, %v8644
      %v8646 = vpop.f32.mrf.mxu0
      %v8647 = vadd.f32 %v8454, %v8646
      %v8648 = vpop.f32.mrf.mxu0
      %v8649 = vadd.f32 %v8456, %v8648
      %v8650 = vpop.f32.mrf.mxu0
      %v8651 = vadd.f32 %v8458, %v8650
      %8652 = vmatprep.mubr.bf16.mxu0 0
      %8653 = vmatmul.mubr.bf16.gmra.mxu0 %v6839
      %v8654 = vpop.f32.mrf.mxu0
      %v8655 = vadd.f32 %v8462, %v8654
      %v8656 = vpop.f32.mrf.mxu0
      %v8657 = vadd.f32 %v8464, %v8656
      %v8658 = vpop.f32.mrf.mxu0
      %v8659 = vadd.f32 %v8466, %v8658
      %v8660 = vpop.f32.mrf.mxu0
      %v8661 = vadd.f32 %v8468, %v8660
      %8662 = vmatprep.mubr.bf16.mxu0 0
      %8663 = vmatmul.mubr.bf16.gmra.mxu0 %v6848
      %v8664 = vpop.f32.mrf.mxu0
      %v8665 = vadd.f32 %v8472, %v8664
      %v8666 = vpop.f32.mrf.mxu0
      %v8667 = vadd.f32 %v8474, %v8666
      %v8668 = vpop.f32.mrf.mxu0
      %v8669 = vadd.f32 %v8476, %v8668
      %v8670 = vpop.f32.mrf.mxu0
      %v8671 = vadd.f32 %v8478, %v8670
      %8672 = vmatprep.mubr.bf16.mxu0 0
      %8673 = vmatmul.mubr.bf16.gmra.mxu0 %v6857
      %v8674 = vpop.f32.mrf.mxu0
      %v8675 = vadd.f32 %v8482, %v8674
      %v8676 = vpop.f32.mrf.mxu0
      %v8677 = vadd.f32 %v8484, %v8676
      %v8678 = vpop.f32.mrf.mxu0
      %v8679 = vadd.f32 %v8486, %v8678
      %v8680 = vpop.f32.mrf.mxu0
      %v8681 = vadd.f32 %v8488, %v8680
      %8682 = vmatprep.mubr.bf16.mxu0 0
      %8683 = vmatmul.mubr.bf16.gmra.mxu0 %v6866
      %v8684 = vpop.f32.mrf.mxu0
      %v8685 = vadd.f32 %v8492, %v8684
      %v8686 = vpop.f32.mrf.mxu0
      %v8687 = vadd.f32 %v8494, %v8686
      %v8688 = vpop.f32.mrf.mxu0
      %v8689 = vadd.f32 %v8496, %v8688
      %v8690 = vpop.f32.mrf.mxu0
      %v8691 = vadd.f32 %v8498, %v8690
      %8692 = vmatprep.mubr.bf16.mxu0 0
      %8693 = vmatmul.mubr.bf16.gmra.mxu0 %v6875
      %v8694 = vpop.f32.mrf.mxu0
      %v8695 = vadd.f32 %v8502, %v8694
      %v8696 = vpop.f32.mrf.mxu0
      %v8697 = vadd.f32 %v8504, %v8696
      %v8698 = vpop.f32.mrf.mxu0
      %v8699 = vadd.f32 %v8506, %v8698
      %v8700 = vpop.f32.mrf.mxu0
      %v8701 = vadd.f32 %v8508, %v8700
      %8702 = vmatprep.mubr.bf16.mxu0 0
      %8703 = vmatmul.mubr.bf16.gmra.mxu0 %v6884
      %v8704 = vpop.f32.mrf.mxu0
      %v8705 = vadd.f32 %v8512, %v8704
      %v8706 = vpop.f32.mrf.mxu0
      %v8707 = vadd.f32 %v8514, %v8706
      %v8708 = vpop.f32.mrf.mxu0
      %v8709 = vadd.f32 %v8516, %v8708
      %v8710 = vpop.f32.mrf.mxu0
      %v8711 = vadd.f32 %v8518, %v8710
      %8712 = vmatprep.mubr.bf16.mxu0 0
      %8713 = vmatmul.mubr.bf16.gmra.mxu0 %v6893
      %v8714 = vpop.f32.mrf.mxu0
      %v8715 = vadd.f32 %v8522, %v8714
      %v8716 = vpop.f32.mrf.mxu0
      %v8717 = vadd.f32 %v8524, %v8716
      %v8718 = vpop.f32.mrf.mxu0
      %v8719 = vadd.f32 %v8526, %v8718
      %v8720 = vpop.f32.mrf.mxu0
      %v8721 = vadd.f32 %v8528, %v8720
      %8722 = vdwg.mxu0
      %v8723 = vadd.f32 %v5933, %v8565
      %v8724 = vadd.f32 %v5934, %v8567
      %v8725 = vadd.f32 %v5935, %v8569
      %v8726 = vadd.f32 %v5936, %v8571
      %v8727 = vadd.f32 %v5937, %v8575
      %v8728 = vadd.f32 %v5938, %v8577
      %v8729 = vadd.f32 %v5939, %v8579
      %v8730 = vadd.f32 %v5940, %v8581
      %v8731 = vadd.f32 %v5941, %v8585
      %v8732 = vadd.f32 %v5942, %v8587
      %v8733 = vadd.f32 %v5943, %v8589
      %v8734 = vadd.f32 %v5944, %v8591
      %v8735 = vadd.f32 %v5945, %v8595
      %v8736 = vadd.f32 %v5946, %v8597
      %v8737 = vadd.f32 %v5947, %v8599
      %v8738 = vadd.f32 %v5948, %v8601
      %v8739 = vadd.f32 %v5949, %v8605
      %v8740 = vadd.f32 %v5950, %v8607
      %v8741 = vadd.f32 %v5951, %v8609
      %v8742 = vadd.f32 %v5952, %v8611
      %v8743 = vadd.f32 %v5953, %v8615
      %v8744 = vadd.f32 %v5954, %v8617
      %v8745 = vadd.f32 %v5955, %v8619
      %v8746 = vadd.f32 %v5956, %v8621
      %v8747 = vadd.f32 %v5957, %v8625
      %v8748 = vadd.f32 %v5958, %v8627
      %v8749 = vadd.f32 %v5959, %v8629
      %v8750 = vadd.f32 %v5960, %v8631
      %v8751 = vadd.f32 %v5961, %v8635
      %v8752 = vadd.f32 %v5962, %v8637
      %v8753 = vadd.f32 %v5963, %v8639
      %v8754 = vadd.f32 %v5964, %v8641
      %v8755 = vadd.f32 %v5965, %v8645
      %v8756 = vadd.f32 %v5966, %v8647
      %v8757 = vadd.f32 %v5967, %v8649
      %v8758 = vadd.f32 %v5968, %v8651
      %v8759 = vadd.f32 %v5969, %v8655
      %v8760 = vadd.f32 %v5970, %v8657
      %v8761 = vadd.f32 %v5971, %v8659
      %v8762 = vadd.f32 %v5972, %v8661
      %v8763 = vadd.f32 %v5973, %v8665
      %v8764 = vadd.f32 %v5974, %v8667
      %v8765 = vadd.f32 %v5975, %v8669
      %v8766 = vadd.f32 %v5976, %v8671
      %v8767 = vadd.f32 %v5977, %v8675
      %v8768 = vadd.f32 %v5978, %v8677
      %v8769 = vadd.f32 %v5979, %v8679
      %v8770 = vadd.f32 %v5980, %v8681
      %v8771 = vadd.f32 %v5981, %v8685
      %v8772 = vadd.f32 %v5982, %v8687
      %v8773 = vadd.f32 %v5983, %v8689
      %v8774 = vadd.f32 %v5984, %v8691
      %v8775 = vadd.f32 %v5985, %v8695
      %v8776 = vadd.f32 %v5986, %v8697
      %v8777 = vadd.f32 %v5987, %v8699
      %v8778 = vadd.f32 %v5988, %v8701
      %v8779 = vadd.f32 %v5989, %v8705
      %v8780 = vadd.f32 %v5990, %v8707
      %v8781 = vadd.f32 %v5991, %v8709
      %v8782 = vadd.f32 %v5992, %v8711
      %v8783 = vadd.f32 %v5993, %v8715
      %v8784 = vadd.f32 %v5994, %v8717
      %v8785 = vadd.f32 %v5995, %v8719
      %v8786 = vadd.f32 %v5996, %v8721
      %8787 = vst [vmem:[#allocation2] sm:$0xff] %v8723
      %8788 = vst [vmem:[#allocation2 + $0x8] sm:$0xff] %v8724
      %8789 = vst [vmem:[#allocation2 + $0x10] sm:$0xff] %v8725
      %8790 = vst [vmem:[#allocation2 + $0x18] sm:$0xff] %v8726
      %8791 = vst [vmem:[#allocation2 + $0x20] sm:$0xff] %v8727
      %8792 = vst [vmem:[#allocation2 + $0x28] sm:$0xff] %v8728
      %8793 = vst [vmem:[#allocation2 + $0x30] sm:$0xff] %v8729
      %8794 = vst [vmem:[#allocation2 + $0x38] sm:$0xff] %v8730
      %8795 = vst [vmem:[#allocation2 + $0x40] sm:$0xff] %v8731
      %8796 = vst [vmem:[#allocation2 + $0x48] sm:$0xff] %v8732
      %8797 = vst [vmem:[#allocation2 + $0x50] sm:$0xff] %v8733
      %8798 = vst [vmem:[#allocation2 + $0x58] sm:$0xff] %v8734
      %8799 = vst [vmem:[#allocation2 + $0x60] sm:$0xff] %v8735
      %8800 = vst [vmem:[#allocation2 + $0x68] sm:$0xff] %v8736
      %8801 = vst [vmem:[#allocation2 + $0x70] sm:$0xff] %v8737
      %8802 = vst [vmem:[#allocation2 + $0x78] sm:$0xff] %v8738
      %8803 = vst [vmem:[#allocation2 + $0x80] sm:$0xff] %v8739
      %8804 = vst [vmem:[#allocation2 + $0x88] sm:$0xff] %v8740
      %8805 = vst [vmem:[#allocation2 + $0x90] sm:$0xff] %v8741
      %8806 = vst [vmem:[#allocation2 + $0x98] sm:$0xff] %v8742
      %8807 = vst [vmem:[#allocation2 + $0xa0] sm:$0xff] %v8743
      %8808 = vst [vmem:[#allocation2 + $0xa8] sm:$0xff] %v8744
      %8809 = vst [vmem:[#allocation2 + $0xb0] sm:$0xff] %v8745
      %8810 = vst [vmem:[#allocation2 + $0xb8] sm:$0xff] %v8746
      %8811 = vst [vmem:[#allocation2 + $0xc0] sm:$0xff] %v8747
      %8812 = vst [vmem:[#allocation2 + $0xc8] sm:$0xff] %v8748
      %8813 = vst [vmem:[#allocation2 + $0xd0] sm:$0xff] %v8749
      %8814 = vst [vmem:[#allocation2 + $0xd8] sm:$0xff] %v8750
      %8815 = vst [vmem:[#allocation2 + $0xe0] sm:$0xff] %v8751
      %8816 = vst [vmem:[#allocation2 + $0xe8] sm:$0xff] %v8752
      %8817 = vst [vmem:[#allocation2 + $0xf0] sm:$0xff] %v8753
      %8818 = vst [vmem:[#allocation2 + $0xf8] sm:$0xff] %v8754
      %8819 = vst [vmem:[#allocation2 + $0x100] sm:$0xff] %v8755
      %8820 = vst [vmem:[#allocation2 + $0x108] sm:$0xff] %v8756
      %8821 = vst [vmem:[#allocation2 + $0x110] sm:$0xff] %v8757
      %8822 = vst [vmem:[#allocation2 + $0x118] sm:$0xff] %v8758
      %8823 = vst [vmem:[#allocation2 + $0x120] sm:$0xff] %v8759
      %8824 = vst [vmem:[#allocation2 + $0x128] sm:$0xff] %v8760
      %8825 = vst [vmem:[#allocation2 + $0x130] sm:$0xff] %v8761
      %8826 = vst [vmem:[#allocation2 + $0x138] sm:$0xff] %v8762
      %8827 = vst [vmem:[#allocation2 + $0x140] sm:$0xff] %v8763
      %8828 = vst [vmem:[#allocation2 + $0x148] sm:$0xff] %v8764
      %8829 = vst [vmem:[#allocation2 + $0x150] sm:$0xff] %v8765
      %8830 = vst [vmem:[#allocation2 + $0x158] sm:$0xff] %v8766
      %8831 = vst [vmem:[#allocation2 + $0x160] sm:$0xff] %v8767
      %8832 = vst [vmem:[#allocation2 + $0x168] sm:$0xff] %v8768
      %8833 = vst [vmem:[#allocation2 + $0x170] sm:$0xff] %v8769
      %8834 = vst [vmem:[#allocation2 + $0x178] sm:$0xff] %v8770
      %8835 = vst [vmem:[#allocation2 + $0x180] sm:$0xff] %v8771
      %8836 = vst [vmem:[#allocation2 + $0x188] sm:$0xff] %v8772
      %8837 = vst [vmem:[#allocation2 + $0x190] sm:$0xff] %v8773
      %8838 = vst [vmem:[#allocation2 + $0x198] sm:$0xff] %v8774
      %8839 = vst [vmem:[#allocation2 + $0x1a0] sm:$0xff] %v8775
      %8840 = vst [vmem:[#allocation2 + $0x1a8] sm:$0xff] %v8776
      %8841 = vst [vmem:[#allocation2 + $0x1b0] sm:$0xff] %v8777
      %8842 = vst [vmem:[#allocation2 + $0x1b8] sm:$0xff] %v8778
      %8843 = vst [vmem:[#allocation2 + $0x1c0] sm:$0xff] %v8779
      %8844 = vst [vmem:[#allocation2 + $0x1c8] sm:$0xff] %v8780
      %8845 = vst [vmem:[#allocation2 + $0x1d0] sm:$0xff] %v8781
      %8846 = vst [vmem:[#allocation2 + $0x1d8] sm:$0xff] %v8782
      %8847 = vst [vmem:[#allocation2 + $0x1e0] sm:$0xff] %v8783
      %8848 = vst [vmem:[#allocation2 + $0x1e8] sm:$0xff] %v8784
      %8849 = vst [vmem:[#allocation2 + $0x1f0] sm:$0xff] %v8785
      %8850 = vst [vmem:[#allocation2 + $0x1f8] sm:$0xff] %v8786
      %v8851 = vld [vmem:[#allocation2] sm:$0xff]
      %v8852 = vld [vmem:[#allocation2 + $0x8] sm:$0xff]
      %v8853 = vld [vmem:[#allocation2 + $0x10] sm:$0xff]
      %v8854 = vld [vmem:[#allocation2 + $0x18] sm:$0xff]
      %v8855 = vld [vmem:[#allocation2 + $0x20] sm:$0xff]
      %v8856 = vld [vmem:[#allocation2 + $0x28] sm:$0xff]
      %v8857 = vld [vmem:[#allocation2 + $0x30] sm:$0xff]
      %v8858 = vld [vmem:[#allocation2 + $0x38] sm:$0xff]
      %v8859 = vld [vmem:[#allocation2 + $0x40] sm:$0xff]
      %v8860 = vld [vmem:[#allocation2 + $0x48] sm:$0xff]
      %v8861 = vld [vmem:[#allocation2 + $0x50] sm:$0xff]
      %v8862 = vld [vmem:[#allocation2 + $0x58] sm:$0xff]
      %v8863 = vld [vmem:[#allocation2 + $0x60] sm:$0xff]
      %v8864 = vld [vmem:[#allocation2 + $0x68] sm:$0xff]
      %v8865 = vld [vmem:[#allocation2 + $0x70] sm:$0xff]
      %v8866 = vld [vmem:[#allocation2 + $0x78] sm:$0xff]
      %v8867 = vld [vmem:[#allocation2 + $0x80] sm:$0xff]
      %v8868 = vld [vmem:[#allocation2 + $0x88] sm:$0xff]
      %v8869 = vld [vmem:[#allocation2 + $0x90] sm:$0xff]
      %v8870 = vld [vmem:[#allocation2 + $0x98] sm:$0xff]
      %v8871 = vld [vmem:[#allocation2 + $0xa0] sm:$0xff]
      %v8872 = vld [vmem:[#allocation2 + $0xa8] sm:$0xff]
      %v8873 = vld [vmem:[#allocation2 + $0xb0] sm:$0xff]
      %v8874 = vld [vmem:[#allocation2 + $0xb8] sm:$0xff]
      %v8875 = vld [vmem:[#allocation2 + $0xc0] sm:$0xff]
      %v8876 = vld [vmem:[#allocation2 + $0xc8] sm:$0xff]
      %v8877 = vld [vmem:[#allocation2 + $0xd0] sm:$0xff]
      %v8878 = vld [vmem:[#allocation2 + $0xd8] sm:$0xff]
      %v8879 = vld [vmem:[#allocation2 + $0xe0] sm:$0xff]
      %v8880 = vld [vmem:[#allocation2 + $0xe8] sm:$0xff]
      %v8881 = vld [vmem:[#allocation2 + $0xf0] sm:$0xff]
      %v8882 = vld [vmem:[#allocation2 + $0xf8] sm:$0xff]
      %v8883 = vld [vmem:[#allocation2 + $0x100] sm:$0xff]
      %v8884 = vld [vmem:[#allocation2 + $0x108] sm:$0xff]
      %v8885 = vld [vmem:[#allocation2 + $0x110] sm:$0xff]
      %v8886 = vld [vmem:[#allocation2 + $0x118] sm:$0xff]
      %v8887 = vld [vmem:[#allocation2 + $0x120] sm:$0xff]
      %v8888 = vld [vmem:[#allocation2 + $0x128] sm:$0xff]
      %v8889 = vld [vmem:[#allocation2 + $0x130] sm:$0xff]
      %v8890 = vld [vmem:[#allocation2 + $0x138] sm:$0xff]
      %v8891 = vld [vmem:[#allocation2 + $0x140] sm:$0xff]
      %v8892 = vld [vmem:[#allocation2 + $0x148] sm:$0xff]
      %v8893 = vld [vmem:[#allocation2 + $0x150] sm:$0xff]
      %v8894 = vld [vmem:[#allocation2 + $0x158] sm:$0xff]
      %v8895 = vld [vmem:[#allocation2 + $0x160] sm:$0xff]
      %v8896 = vld [vmem:[#allocation2 + $0x168] sm:$0xff]
      %v8897 = vld [vmem:[#allocation2 + $0x170] sm:$0xff]
      %v8898 = vld [vmem:[#allocation2 + $0x178] sm:$0xff]
      %v8899 = vld [vmem:[#allocation2 + $0x180] sm:$0xff]
      %v8900 = vld [vmem:[#allocation2 + $0x188] sm:$0xff]
      %v8901 = vld [vmem:[#allocation2 + $0x190] sm:$0xff]
      %v8902 = vld [vmem:[#allocation2 + $0x198] sm:$0xff]
      %v8903 = vld [vmem:[#allocation2 + $0x1a0] sm:$0xff]
      %v8904 = vld [vmem:[#allocation2 + $0x1a8] sm:$0xff]
      %v8905 = vld [vmem:[#allocation2 + $0x1b0] sm:$0xff]
      %v8906 = vld [vmem:[#allocation2 + $0x1b8] sm:$0xff]
      %v8907 = vld [vmem:[#allocation2 + $0x1c0] sm:$0xff]
      %v8908 = vld [vmem:[#allocation2 + $0x1c8] sm:$0xff]
      %v8909 = vld [vmem:[#allocation2 + $0x1d0] sm:$0xff]
      %v8910 = vld [vmem:[#allocation2 + $0x1d8] sm:$0xff]
      %v8911 = vld [vmem:[#allocation2 + $0x1e0] sm:$0xff]
      %v8912 = vld [vmem:[#allocation2 + $0x1e8] sm:$0xff]
      %v8913 = vld [vmem:[#allocation2 + $0x1f0] sm:$0xff]
      %v8914 = vld [vmem:[#allocation2 + $0x1f8] sm:$0xff]
      %v8915 = vld [vmem:[%s2] sm:$0x3]
      %v8917 = vlaneseq
      %v8918 = vshrl.u32 %v8917, 7
      %v8919 = vsub.s32 0, %v8918
      %v8920 = vrot.slane %v8915, %v8919
      %v8921 = vlaneseq
      %v8922 = vshrl.u32 %v8921, 7
      %v8923 = vsub.s32 1, %v8922
      %v8924 = vrot.slane %v8915, %v8923
      %v8927 = vadd.f32 %v8851, %v8920
      %v8928 = vadd.f32 %v8852, %v8924
      %v8929 = vadd.f32 %v8853, %v8920
      %v8930 = vadd.f32 %v8854, %v8924
      %v8931 = vadd.f32 %v8855, %v8920
      %v8932 = vadd.f32 %v8856, %v8924
      %v8933 = vadd.f32 %v8857, %v8920
      %v8934 = vadd.f32 %v8858, %v8924
      %v8935 = vadd.f32 %v8859, %v8920
      %v8936 = vadd.f32 %v8860, %v8924
      %v8937 = vadd.f32 %v8861, %v8920
      %v8938 = vadd.f32 %v8862, %v8924
      %v8939 = vadd.f32 %v8863, %v8920
      %v8940 = vadd.f32 %v8864, %v8924
      %v8941 = vadd.f32 %v8865, %v8920
      %v8942 = vadd.f32 %v8866, %v8924
      %v8943 = vadd.f32 %v8867, %v8920
      %v8944 = vadd.f32 %v8868, %v8924
      %v8945 = vadd.f32 %v8869, %v8920
      %v8946 = vadd.f32 %v8870, %v8924
      %v8947 = vadd.f32 %v8871, %v8920
      %v8948 = vadd.f32 %v8872, %v8924
      %v8949 = vadd.f32 %v8873, %v8920
      %v8950 = vadd.f32 %v8874, %v8924
      %v8951 = vadd.f32 %v8875, %v8920
      %v8952 = vadd.f32 %v8876, %v8924
      %v8953 = vadd.f32 %v8877, %v8920
      %v8954 = vadd.f32 %v8878, %v8924
      %v8955 = vadd.f32 %v8879, %v8920
      %v8956 = vadd.f32 %v8880, %v8924
      %v8957 = vadd.f32 %v8881, %v8920
      %v8958 = vadd.f32 %v8882, %v8924
      %v8959 = vadd.f32 %v8883, %v8920
      %v8960 = vadd.f32 %v8884, %v8924
      %v8961 = vadd.f32 %v8885, %v8920
      %v8962 = vadd.f32 %v8886, %v8924
      %v8963 = vadd.f32 %v8887, %v8920
      %v8964 = vadd.f32 %v8888, %v8924
      %v8965 = vadd.f32 %v8889, %v8920
      %v8966 = vadd.f32 %v8890, %v8924
      %v8967 = vadd.f32 %v8891, %v8920
      %v8968 = vadd.f32 %v8892, %v8924
      %v8969 = vadd.f32 %v8893, %v8920
      %v8970 = vadd.f32 %v8894, %v8924
      %v8971 = vadd.f32 %v8895, %v8920
      %v8972 = vadd.f32 %v8896, %v8924
      %v8973 = vadd.f32 %v8897, %v8920
      %v8974 = vadd.f32 %v8898, %v8924
      %v8975 = vadd.f32 %v8899, %v8920
      %v8976 = vadd.f32 %v8900, %v8924
      %v8977 = vadd.f32 %v8901, %v8920
      %v8978 = vadd.f32 %v8902, %v8924
      %v8979 = vadd.f32 %v8903, %v8920
      %v8980 = vadd.f32 %v8904, %v8924
      %v8981 = vadd.f32 %v8905, %v8920
      %v8982 = vadd.f32 %v8906, %v8924
      %v8983 = vadd.f32 %v8907, %v8920
      %v8984 = vadd.f32 %v8908, %v8924
      %v8985 = vadd.f32 %v8909, %v8920
      %v8986 = vadd.f32 %v8910, %v8924
      %v8987 = vadd.f32 %v8911, %v8920
      %v8988 = vadd.f32 %v8912, %v8924
      %v8989 = vadd.f32 %v8913, %v8920
      %v8990 = vadd.f32 %v8914, %v8924
      %v8991 = vmax.f32 %v8927, 0.0
      %v8992 = vmax.f32 %v8928, 0.0
      %v8993 = vmax.f32 %v8929, 0.0
      %v8994 = vmax.f32 %v8930, 0.0
      %v8995 = vmax.f32 %v8931, 0.0
      %v8996 = vmax.f32 %v8932, 0.0
      %v8997 = vmax.f32 %v8933, 0.0
      %v8998 = vmax.f32 %v8934, 0.0
      %v8999 = vmax.f32 %v8935, 0.0
      %v9000 = vmax.f32 %v8936, 0.0
      %v9001 = vmax.f32 %v8937, 0.0
      %v9002 = vmax.f32 %v8938, 0.0
      %v9003 = vmax.f32 %v8939, 0.0
      %v9004 = vmax.f32 %v8940, 0.0
      %v9005 = vmax.f32 %v8941, 0.0
      %v9006 = vmax.f32 %v8942, 0.0
      %v9007 = vmax.f32 %v8943, 0.0
      %v9008 = vmax.f32 %v8944, 0.0
      %v9009 = vmax.f32 %v8945, 0.0
      %v9010 = vmax.f32 %v8946, 0.0
      %v9011 = vmax.f32 %v8947, 0.0
      %v9012 = vmax.f32 %v8948, 0.0
      %v9013 = vmax.f32 %v8949, 0.0
      %v9014 = vmax.f32 %v8950, 0.0
      %v9015 = vmax.f32 %v8951, 0.0
      %v9016 = vmax.f32 %v8952, 0.0
      %v9017 = vmax.f32 %v8953, 0.0
      %v9018 = vmax.f32 %v8954, 0.0
      %v9019 = vmax.f32 %v8955, 0.0
      %v9020 = vmax.f32 %v8956, 0.0
      %v9021 = vmax.f32 %v8957, 0.0
      %v9022 = vmax.f32 %v8958, 0.0
      %v9023 = vmax.f32 %v8959, 0.0
      %v9024 = vmax.f32 %v8960, 0.0
      %v9025 = vmax.f32 %v8961, 0.0
      %v9026 = vmax.f32 %v8962, 0.0
      %v9027 = vmax.f32 %v8963, 0.0
      %v9028 = vmax.f32 %v8964, 0.0
      %v9029 = vmax.f32 %v8965, 0.0
      %v9030 = vmax.f32 %v8966, 0.0
      %v9031 = vmax.f32 %v8967, 0.0
      %v9032 = vmax.f32 %v8968, 0.0
      %v9033 = vmax.f32 %v8969, 0.0
      %v9034 = vmax.f32 %v8970, 0.0
      %v9035 = vmax.f32 %v8971, 0.0
      %v9036 = vmax.f32 %v8972, 0.0
      %v9037 = vmax.f32 %v8973, 0.0
      %v9038 = vmax.f32 %v8974, 0.0
      %v9039 = vmax.f32 %v8975, 0.0
      %v9040 = vmax.f32 %v8976, 0.0
      %v9041 = vmax.f32 %v8977, 0.0
      %v9042 = vmax.f32 %v8978, 0.0
      %v9043 = vmax.f32 %v8979, 0.0
      %v9044 = vmax.f32 %v8980, 0.0
      %v9045 = vmax.f32 %v8981, 0.0
      %v9046 = vmax.f32 %v8982, 0.0
      %v9047 = vmax.f32 %v8983, 0.0
      %v9048 = vmax.f32 %v8984, 0.0
      %v9049 = vmax.f32 %v8985, 0.0
      %v9050 = vmax.f32 %v8986, 0.0
      %v9051 = vmax.f32 %v8987, 0.0
      %v9052 = vmax.f32 %v8988, 0.0
      %v9053 = vmax.f32 %v8989, 0.0
      %v9054 = vmax.f32 %v8990, 0.0
      %v9055 = vpack.c.bf16 %v8993, %v8991
      %v9056 = vpack.c.bf16 %v8994, %v8992
      %v9057 = vpack.c.bf16 %v8997, %v8995
      %v9058 = vpack.c.bf16 %v8998, %v8996
      %v9059 = vpack.c.bf16 %v9001, %v8999
      %v9060 = vpack.c.bf16 %v9002, %v9000
      %v9061 = vpack.c.bf16 %v9005, %v9003
      %v9062 = vpack.c.bf16 %v9006, %v9004
      %v9063 = vpack.c.bf16 %v9009, %v9007
      %v9064 = vpack.c.bf16 %v9010, %v9008
      %v9065 = vpack.c.bf16 %v9013, %v9011
      %v9066 = vpack.c.bf16 %v9014, %v9012
      %v9067 = vpack.c.bf16 %v9017, %v9015
      %v9068 = vpack.c.bf16 %v9018, %v9016
      %v9069 = vpack.c.bf16 %v9021, %v9019
      %v9070 = vpack.c.bf16 %v9022, %v9020
      %v9071 = vpack.c.bf16 %v9025, %v9023
      %v9072 = vpack.c.bf16 %v9026, %v9024
      %v9073 = vpack.c.bf16 %v9029, %v9027
      %v9074 = vpack.c.bf16 %v9030, %v9028
      %v9075 = vpack.c.bf16 %v9033, %v9031
      %v9076 = vpack.c.bf16 %v9034, %v9032
      %v9077 = vpack.c.bf16 %v9037, %v9035
      %v9078 = vpack.c.bf16 %v9038, %v9036
      %v9079 = vpack.c.bf16 %v9041, %v9039
      %v9080 = vpack.c.bf16 %v9042, %v9040
      %v9081 = vpack.c.bf16 %v9045, %v9043
      %v9082 = vpack.c.bf16 %v9046, %v9044
      %v9083 = vpack.c.bf16 %v9049, %v9047
      %v9084 = vpack.c.bf16 %v9050, %v9048
      %v9085 = vpack.c.bf16 %v9053, %v9051
      %v9086 = vpack.c.bf16 %v9054, %v9052
      %v9087 = vld [vmem:[%s3] sm:$0xf]
      %v9088 = vld [vmem:[%s3 + $0x4] sm:$0xf]
      %v9089 = vld [vmem:[%s3 + $0x8] sm:$0xf]
      %v9090 = vld [vmem:[%s3 + $0xc] sm:$0xf]
      %v9091 = vld [vmem:[%s3 + $0x10] sm:$0xf]
      %v9092 = vld [vmem:[%s3 + $0x14] sm:$0xf]
      %v9093 = vld [vmem:[%s3 + $0x18] sm:$0xf]
      %v9094 = vld [vmem:[%s3 + $0x1c] sm:$0xf]
      %v9095 = vld [vmem:[%s3 + $0x20] sm:$0xf]
      %v9096 = vld [vmem:[%s3 + $0x24] sm:$0xf]
      %v9097 = vld [vmem:[%s3 + $0x28] sm:$0xf]
      %v9098 = vld [vmem:[%s3 + $0x2c] sm:$0xf]
      %v9099 = vld [vmem:[%s3 + $0x30] sm:$0xf]
      %v9100 = vld [vmem:[%s3 + $0x34] sm:$0xf]
      %v9101 = vld [vmem:[%s3 + $0x38] sm:$0xf]
      %v9102 = vld [vmem:[%s3 + $0x3c] sm:$0xf]
      %v9103 = vld [vmem:[%s3 + $0x40] sm:$0xf]
      %v9104 = vld [vmem:[%s3 + $0x44] sm:$0xf]
      %v9105 = vld [vmem:[%s3 + $0x48] sm:$0xf]
      %v9106 = vld [vmem:[%s3 + $0x4c] sm:$0xf]
      %v9107 = vld [vmem:[%s3 + $0x50] sm:$0xf]
      %v9108 = vld [vmem:[%s3 + $0x54] sm:$0xf]
      %v9109 = vld [vmem:[%s3 + $0x58] sm:$0xf]
      %v9110 = vld [vmem:[%s3 + $0x5c] sm:$0xf]
      %v9111 = vld [vmem:[%s3 + $0x60] sm:$0xf]
      %v9112 = vld [vmem:[%s3 + $0x64] sm:$0xf]
      %v9113 = vld [vmem:[%s3 + $0x68] sm:$0xf]
      %v9114 = vld [vmem:[%s3 + $0x6c] sm:$0xf]
      %v9115 = vld [vmem:[%s3 + $0x70] sm:$0xf]
      %v9116 = vld [vmem:[%s3 + $0x74] sm:$0xf]
      %v9117 = vld [vmem:[%s3 + $0x78] sm:$0xf]
      %v9118 = vld [vmem:[%s3 + $0x7c] sm:$0xf]
      %v9119 = vld [vmem:[%s4] sm:$0x1]
      %v9121 = vlaneseq
      %v9122 = vshrl.u32 %v9121, 7
      %v9123 = vsub.s32 0, %v9122
      %v9124 = vrot.slane %v9119, %v9123
      %v9158 = vunpack.c.l.b16 %v9087
      %v9159 = vunpack.c.l.b16 %v9088
      %v9160 = vunpack.c.l.b16 %v9089
      %v9161 = vunpack.c.l.b16 %v9090
      %v9162 = vunpack.c.l.b16 %v9091
      %v9163 = vunpack.c.l.b16 %v9092
      %v9164 = vunpack.c.l.b16 %v9093
      %v9165 = vunpack.c.l.b16 %v9094
      %v9166 = vunpack.c.l.b16 %v9095
      %v9167 = vunpack.c.l.b16 %v9096
      %v9168 = vunpack.c.l.b16 %v9097
      %v9169 = vunpack.c.l.b16 %v9098
      %v9170 = vunpack.c.l.b16 %v9099
      %v9171 = vunpack.c.l.b16 %v9100
      %v9172 = vunpack.c.l.b16 %v9101
      %v9173 = vunpack.c.l.b16 %v9102
      %v9174 = vunpack.c.l.b16 %v9103
      %v9175 = vunpack.c.l.b16 %v9104
      %v9176 = vunpack.c.l.b16 %v9105
      %v9177 = vunpack.c.l.b16 %v9106
      %v9178 = vunpack.c.l.b16 %v9107
      %v9179 = vunpack.c.l.b16 %v9108
      %v9180 = vunpack.c.l.b16 %v9109
      %v9181 = vunpack.c.l.b16 %v9110
      %v9182 = vunpack.c.l.b16 %v9111
      %v9183 = vunpack.c.l.b16 %v9112
      %v9184 = vunpack.c.l.b16 %v9113
      %v9185 = vunpack.c.l.b16 %v9114
      %v9186 = vunpack.c.l.b16 %v9115
      %v9187 = vunpack.c.l.b16 %v9116
      %v9188 = vunpack.c.l.b16 %v9117
      %v9189 = vunpack.c.l.b16 %v9118
      %v9190 = vpack.c.b16 %v9159, %v9158
      %v9191 = vpack.c.b16 %v9161, %v9160
      %v9192 = vpack.c.b16 %v9163, %v9162
      %v9193 = vpack.c.b16 %v9165, %v9164
      %v9194 = vpack.c.b16 %v9167, %v9166
      %v9195 = vpack.c.b16 %v9169, %v9168
      %v9196 = vpack.c.b16 %v9171, %v9170
      %v9197 = vpack.c.b16 %v9173, %v9172
      %v9198 = vpack.c.b16 %v9175, %v9174
      %v9199 = vpack.c.b16 %v9177, %v9176
      %v9200 = vpack.c.b16 %v9179, %v9178
      %v9201 = vpack.c.b16 %v9181, %v9180
      %v9202 = vpack.c.b16 %v9183, %v9182
      %v9203 = vpack.c.b16 %v9185, %v9184
      %v9204 = vpack.c.b16 %v9187, %v9186
      %v9205 = vpack.c.b16 %v9189, %v9188
      %9222 = vmatprep.subr.bf16.mxu0 0
      %9223 = vmatpush1.bf16.msra.mxu0 %v9197
      %9224 = vmatprep.subr.bf16.mxu0 0
      %9225 = vmatpush1.bf16.msra.mxu0 %v9196
      %9226 = vmatprep.subr.bf16.mxu0 0
      %9227 = vmatpush1.bf16.msra.mxu0 %v9195
      %9228 = vmatprep.subr.bf16.mxu0 0
      %9229 = vmatpush1.bf16.msra.mxu0 %v9194
      %9230 = vmatprep.subr.bf16.mxu0 0
      %9231 = vmatpush1.bf16.msra.mxu0 %v9193
      %9232 = vmatprep.subr.bf16.mxu0 0
      %9233 = vmatpush1.bf16.msra.mxu0 %v9192
      %9234 = vmatprep.subr.bf16.mxu0 0
      %9235 = vmatpush1.bf16.msra.mxu0 %v9191
      %9236 = vmatprep.subr.bf16.mxu0 0
      %9237 = vmatpush1.bf16.msra.mxu0 %v9190
      %9238 = vmatprep.subr.bf16.mxu0 0
      %9239 = vmatpush2.bf16.msra.mxu0 %v9205
      %9240 = vmatprep.subr.bf16.mxu0 0
      %9241 = vmatpush2.bf16.msra.mxu0 %v9204
      %9242 = vmatprep.subr.bf16.mxu0 0
      %9243 = vmatpush2.bf16.msra.mxu0 %v9203
      %9244 = vmatprep.subr.bf16.mxu0 0
      %9245 = vmatpush2.bf16.msra.mxu0 %v9202
      %9246 = vmatprep.subr.bf16.mxu0 0
      %9247 = vmatpush2.bf16.msra.mxu0 %v9201
      %9248 = vmatprep.subr.bf16.mxu0 0
      %9249 = vmatpush2.bf16.msra.mxu0 %v9200
      %9250 = vmatprep.subr.bf16.mxu0 0
      %9251 = vmatpush2.bf16.msra.mxu0 %v9199
      %9252 = vmatprep.subr.bf16.mxu0 0
      %9253 = vmatpush2.bf16.msra.mxu0 %v9198
      %9254 = vmatprep.mubr.bf16.mxu0 %v9056
      %9255 = vmatmul.mubr.bf16.gmra.mxu0 %v9055
      %v9256 = vpop.f32.mrf.mxu0
      %v9257 = vadd.f32 %v9124, %v9256
      %v9258 = vpop.f32.mrf.mxu0
      %v9259 = vpop.f32.mrf.mxu0
      %v9260 = vadd.f32 %v9124, %v9259
      %v9261 = vpop.f32.mrf.mxu0
      %9262 = vmatprep.mubr.bf16.mxu0 %v9058
      %9263 = vmatmul.mubr.bf16.gmra.mxu0 %v9057
      %v9264 = vpop.f32.mrf.mxu0
      %v9265 = vadd.f32 %v9124, %v9264
      %v9266 = vpop.f32.mrf.mxu0
      %v9267 = vpop.f32.mrf.mxu0
      %v9268 = vadd.f32 %v9124, %v9267
      %v9269 = vpop.f32.mrf.mxu0
      %9270 = vmatprep.mubr.bf16.mxu0 %v9060
      %9271 = vmatmul.mubr.bf16.gmra.mxu0 %v9059
      %v9272 = vpop.f32.mrf.mxu0
      %v9273 = vadd.f32 %v9124, %v9272
      %v9274 = vpop.f32.mrf.mxu0
      %v9275 = vpop.f32.mrf.mxu0
      %v9276 = vadd.f32 %v9124, %v9275
      %v9277 = vpop.f32.mrf.mxu0
      %9278 = vmatprep.mubr.bf16.mxu0 %v9062
      %9279 = vmatmul.mubr.bf16.gmra.mxu0 %v9061
      %v9280 = vpop.f32.mrf.mxu0
      %v9281 = vadd.f32 %v9124, %v9280
      %v9282 = vpop.f32.mrf.mxu0
      %v9283 = vpop.f32.mrf.mxu0
      %v9284 = vadd.f32 %v9124, %v9283
      %v9285 = vpop.f32.mrf.mxu0
      %9286 = vmatprep.mubr.bf16.mxu0 %v9064
      %9287 = vmatmul.mubr.bf16.gmra.mxu0 %v9063
      %v9288 = vpop.f32.mrf.mxu0
      %v9289 = vadd.f32 %v9124, %v9288
      %v9290 = vpop.f32.mrf.mxu0
      %v9291 = vpop.f32.mrf.mxu0
      %v9292 = vadd.f32 %v9124, %v9291
      %v9293 = vpop.f32.mrf.mxu0
      %9294 = vmatprep.mubr.bf16.mxu0 %v9066
      %9295 = vmatmul.mubr.bf16.gmra.mxu0 %v9065
      %v9296 = vpop.f32.mrf.mxu0
      %v9297 = vadd.f32 %v9124, %v9296
      %v9298 = vpop.f32.mrf.mxu0
      %v9299 = vpop.f32.mrf.mxu0
      %v9300 = vadd.f32 %v9124, %v9299
      %v9301 = vpop.f32.mrf.mxu0
      %9302 = vmatprep.mubr.bf16.mxu0 %v9068
      %9303 = vmatmul.mubr.bf16.gmra.mxu0 %v9067
      %v9304 = vpop.f32.mrf.mxu0
      %v9305 = vadd.f32 %v9124, %v9304
      %v9306 = vpop.f32.mrf.mxu0
      %v9307 = vpop.f32.mrf.mxu0
      %v9308 = vadd.f32 %v9124, %v9307
      %v9309 = vpop.f32.mrf.mxu0
      %9310 = vmatprep.mubr.bf16.mxu0 %v9070
      %9311 = vmatmul.mubr.bf16.gmra.mxu0 %v9069
      %v9312 = vpop.f32.mrf.mxu0
      %v9313 = vadd.f32 %v9124, %v9312
      %v9314 = vpop.f32.mrf.mxu0
      %v9315 = vpop.f32.mrf.mxu0
      %v9316 = vadd.f32 %v9124, %v9315
      %v9317 = vpop.f32.mrf.mxu0
      %9318 = vmatprep.mubr.bf16.mxu0 %v9072
      %9319 = vmatmul.mubr.bf16.gmra.mxu0 %v9071
      %v9320 = vpop.f32.mrf.mxu0
      %v9321 = vadd.f32 %v9124, %v9320
      %v9322 = vpop.f32.mrf.mxu0
      %v9323 = vpop.f32.mrf.mxu0
      %v9324 = vadd.f32 %v9124, %v9323
      %v9325 = vpop.f32.mrf.mxu0
      %9326 = vmatprep.mubr.bf16.mxu0 %v9074
      %9327 = vmatmul.mubr.bf16.gmra.mxu0 %v9073
      %v9328 = vpop.f32.mrf.mxu0
      %v9329 = vadd.f32 %v9124, %v9328
      %v9330 = vpop.f32.mrf.mxu0
      %v9331 = vpop.f32.mrf.mxu0
      %v9332 = vadd.f32 %v9124, %v9331
      %v9333 = vpop.f32.mrf.mxu0
      %9334 = vmatprep.mubr.bf16.mxu0 %v9076
      %9335 = vmatmul.mubr.bf16.gmra.mxu0 %v9075
      %v9336 = vpop.f32.mrf.mxu0
      %v9337 = vadd.f32 %v9124, %v9336
      %v9338 = vpop.f32.mrf.mxu0
      %v9339 = vpop.f32.mrf.mxu0
      %v9340 = vadd.f32 %v9124, %v9339
      %v9341 = vpop.f32.mrf.mxu0
      %9342 = vmatprep.mubr.bf16.mxu0 %v9078
      %9343 = vmatmul.mubr.bf16.gmra.mxu0 %v9077
      %v9344 = vpop.f32.mrf.mxu0
      %v9345 = vadd.f32 %v9124, %v9344
      %v9346 = vpop.f32.mrf.mxu0
      %v9347 = vpop.f32.mrf.mxu0
      %v9348 = vadd.f32 %v9124, %v9347
      %v9349 = vpop.f32.mrf.mxu0
      %9350 = vmatprep.mubr.bf16.mxu0 %v9080
      %9351 = vmatmul.mubr.bf16.gmra.mxu0 %v9079
      %v9352 = vpop.f32.mrf.mxu0
      %v9353 = vadd.f32 %v9124, %v9352
      %v9354 = vpop.f32.mrf.mxu0
      %v9355 = vpop.f32.mrf.mxu0
      %v9356 = vadd.f32 %v9124, %v9355
      %v9357 = vpop.f32.mrf.mxu0
      %9358 = vmatprep.mubr.bf16.mxu0 %v9082
      %9359 = vmatmul.mubr.bf16.gmra.mxu0 %v9081
      %v9360 = vpop.f32.mrf.mxu0
      %v9361 = vadd.f32 %v9124, %v9360
      %v9362 = vpop.f32.mrf.mxu0
      %v9363 = vpop.f32.mrf.mxu0
      %v9364 = vadd.f32 %v9124, %v9363
      %v9365 = vpop.f32.mrf.mxu0
      %9366 = vmatprep.mubr.bf16.mxu0 %v9084
      %9367 = vmatmul.mubr.bf16.gmra.mxu0 %v9083
      %v9368 = vpop.f32.mrf.mxu0
      %v9369 = vadd.f32 %v9124, %v9368
      %v9370 = vpop.f32.mrf.mxu0
      %v9371 = vpop.f32.mrf.mxu0
      %v9372 = vadd.f32 %v9124, %v9371
      %v9373 = vpop.f32.mrf.mxu0
      %9374 = vmatprep.mubr.bf16.mxu0 %v9086
      %9375 = vmatmul.mubr.bf16.gmra.mxu0 %v9085
      %v9376 = vpop.f32.mrf.mxu0
      %v9377 = vadd.f32 %v9124, %v9376
      %v9378 = vpop.f32.mrf.mxu0
      %v9379 = vpop.f32.mrf.mxu0
      %v9380 = vadd.f32 %v9124, %v9379
      %v9381 = vpop.f32.mrf.mxu0
      %9382 = vdwg.mxu0
      %v9383 = vmax.f32 %v9257, 0.0
      %v9384 = vmax.f32 %v9260, 0.0
      %v9385 = vmax.f32 %v9265, 0.0
      %v9386 = vmax.f32 %v9268, 0.0
      %v9387 = vmax.f32 %v9273, 0.0
      %v9388 = vmax.f32 %v9276, 0.0
      %v9389 = vmax.f32 %v9281, 0.0
      %v9390 = vmax.f32 %v9284, 0.0
      %v9391 = vmax.f32 %v9289, 0.0
      %v9392 = vmax.f32 %v9292, 0.0
      %v9393 = vmax.f32 %v9297, 0.0
      %v9394 = vmax.f32 %v9300, 0.0
      %v9395 = vmax.f32 %v9305, 0.0
      %v9396 = vmax.f32 %v9308, 0.0
      %v9397 = vmax.f32 %v9313, 0.0
      %v9398 = vmax.f32 %v9316, 0.0
      %v9399 = vmax.f32 %v9321, 0.0
      %v9400 = vmax.f32 %v9324, 0.0
      %v9401 = vmax.f32 %v9329, 0.0
      %v9402 = vmax.f32 %v9332, 0.0
      %v9403 = vmax.f32 %v9337, 0.0
      %v9404 = vmax.f32 %v9340, 0.0
      %v9405 = vmax.f32 %v9345, 0.0
      %v9406 = vmax.f32 %v9348, 0.0
      %v9407 = vmax.f32 %v9353, 0.0
      %v9408 = vmax.f32 %v9356, 0.0
      %v9409 = vmax.f32 %v9361, 0.0
      %v9410 = vmax.f32 %v9364, 0.0
      %v9411 = vmax.f32 %v9369, 0.0
      %v9412 = vmax.f32 %v9372, 0.0
      %v9413 = vmax.f32 %v9377, 0.0
      %v9414 = vmax.f32 %v9380, 0.0
      %9415 = vst [vmem:[%s224] sm:$0xff] %v9383
      %9416 = vst [vmem:[%s224 + $0x8] sm:$0xff] %v9384
      %9417 = vst [vmem:[%s224 + $0x10] sm:$0xff] %v9385
      %9418 = vst [vmem:[%s224 + $0x18] sm:$0xff] %v9386
      %9419 = vst [vmem:[%s224 + $0x20] sm:$0xff] %v9387
      %9420 = vst [vmem:[%s224 + $0x28] sm:$0xff] %v9388
      %9421 = vst [vmem:[%s224 + $0x30] sm:$0xff] %v9389
      %9422 = vst [vmem:[%s224 + $0x38] sm:$0xff] %v9390
      %9423 = vst [vmem:[%s224 + $0x40] sm:$0xff] %v9391
      %9424 = vst [vmem:[%s224 + $0x48] sm:$0xff] %v9392
      %9425 = vst [vmem:[%s224 + $0x50] sm:$0xff] %v9393
      %9426 = vst [vmem:[%s224 + $0x58] sm:$0xff] %v9394
      %9427 = vst [vmem:[%s224 + $0x60] sm:$0xff] %v9395
      %9428 = vst [vmem:[%s224 + $0x68] sm:$0xff] %v9396
      %9429 = vst [vmem:[%s224 + $0x70] sm:$0xff] %v9397
      %9430 = vst [vmem:[%s224 + $0x78] sm:$0xff] %v9398
      %9431 = vst [vmem:[%s224 + $0x80] sm:$0xff] %v9399
      %9432 = vst [vmem:[%s224 + $0x88] sm:$0xff] %v9400
      %9433 = vst [vmem:[%s224 + $0x90] sm:$0xff] %v9401
      %9434 = vst [vmem:[%s224 + $0x98] sm:$0xff] %v9402
      %9435 = vst [vmem:[%s224 + $0xa0] sm:$0xff] %v9403
      %9436 = vst [vmem:[%s224 + $0xa8] sm:$0xff] %v9404
      %9437 = vst [vmem:[%s224 + $0xb0] sm:$0xff] %v9405
      %9438 = vst [vmem:[%s224 + $0xb8] sm:$0xff] %v9406
      %9439 = vst [vmem:[%s224 + $0xc0] sm:$0xff] %v9407
      %9440 = vst [vmem:[%s224 + $0xc8] sm:$0xff] %v9408
      %9441 = vst [vmem:[%s224 + $0xd0] sm:$0xff] %v9409
      %9442 = vst [vmem:[%s224 + $0xd8] sm:$0xff] %v9410
      %9443 = vst [vmem:[%s224 + $0xe0] sm:$0xff] %v9411
      %9444 = vst [vmem:[%s224 + $0xe8] sm:$0xff] %v9412
      %9445 = vst [vmem:[%s224 + $0xf0] sm:$0xff] %v9413
      %9446 = vst [vmem:[%s224 + $0xf8] sm:$0xff] %v9414
      %p9447 = scmp.lt.s32.totalorder %s16, 1
      %s9448 = scalar_select %p9447, %s16, 1
      %s9449 = smul.addr %s9448, 32
      %s9450 = smul.addr %s9449, 8
      %s9451 = scalar_lea.vmem %s5, %s9450
      // Predicated region
      $region41: #{decoder_forward.9} parent=39 // pred_check
        %p9452 = pneg %p144
      $region42: #{decoder_forward.9} parent=39 // pred_check_branch
        %9454 = sbr.rel (%p9452) target = $region44
      $region43: #{decoder_forward.9} parent=39 // pred_region
        _
      $region44: #{decoder_forward.9} parent=39 // pred_fallthru
        _
    $region40: #{decoder_forward.9} parent=5 // pred_fallthru
      _
    %p9455 = scmp.le.s32.totalorder 2, %s11
    // Predicated region
    $region45: #{decoder_forward.9} parent=5 // pred_check
      %p9456 = pneg %p9455
    $region46: #{decoder_forward.9} parent=5 // pred_check_branch
      %9458 = sbr.rel (%p9456) target = $region48
    $region47: #{decoder_forward.9} parent=5 // pred_region
      %s9459 = ssub.s32 %s11, 2
      // Predicated region
      $region49: #{decoder_forward.9} parent=47 // pred_check
        %p9460 = pneg %p150
      $region50: #{decoder_forward.9} parent=47 // pred_check_branch
        %9462 = sbr.rel (%p9460) target = $region52
      $region51: #{decoder_forward.9} parent=47 // pred_region
        %p9463 = scmp.lt.s32.totalorder %s17, 1
        %s9464 = scalar_select %p9463, %s17, 1
        %s9465 = smul.addr %s9464, 32
        %s9466 = smul.addr %s9465, 8
        %s9467 = scalar_lea.vmem %s5, %s9466
      $region52: #{decoder_forward.9} parent=47 // pred_fallthru
        _
    $region48: #{decoder_forward.9} parent=5 // pred_fallthru
      _
  $region6: #{decoder_forward.9} parent=0 // loop_footer
    %s15 = sadd.s32 1, %s11
  $region7: #{decoder_forward.9} parent=0 // loop_footer_branch
    %10 = sbr.rel target = $region3
  $region8: #{decoder_forward.9} parent=0 // loop_exit
    _

</llo_original>
